<compile_context>
chip_gen: v7x
topology: tpu7x:2x2x1
jax: 0.10.0
libtpu: 0.0.40
codegen_flags: <defaults>
</compile_context>

<pallas_src>
import functools

import jax
import jax.numpy as jnp
from jax import lax
from jax.experimental import pallas as pl
from jax.experimental.pallas import tpu as pltpu


def _knn_group_kernel(p_ref, q_ref, out_ref, idx_ref, *, k: int, dim: int):
    """One (batch, query-tile) grid step.

    p_ref  : [1, R, N]   rows: p (dim), ones, |p|^2, iota, 0-pad  (R = ceil8(dim+3))
    q_ref  : [1, R, TM]  rows: -2*q (dim), |q|^2, ones, 0-pad
    out_ref: [1, k*dim, TM]  grouped coords, k-major, M on lanes
    idx_ref: [1, k, TM]      neighbor indices, M on lanes
    """
    p_all = p_ref[0]                                   # [R, N] f32
    q_aug = q_ref[0]                                   # [R, TM] f32
    n = p_all.shape[1]

    # dist[m, n] = |q_m|^2 + |p_n|^2 - 2 q_m.p_n in ONE MXU matmul.  q_aug's
    # padding rows are zero, so contracting over all R rows is exact.
    dist = lax.dot_general(
        q_aug, p_all, (((0,), (0,)), ((), ())),
        preferred_element_type=jnp.float32,
        precision=lax.Precision.HIGHEST)               # [TM, N]

    iota_row = p_all[dim + 2:dim + 3]                  # [1, N] f32 iota (no [TM,N] int temp)
    n_f = jnp.float32(n)
    big = jnp.float32(jnp.finfo(jnp.float32).max)

    out_rows = []                                      # k slabs of [dim, TM]
    idx_rows = []                                      # k rows of [1, TM]
    # k is small & static -> unrolled; per iteration: 2 XLU reduces, ~5 VPU
    # passes over [TM, N], 1 small MXU gather matmul.
    for kk in range(k):
        minval = jnp.min(dist, axis=1, keepdims=True)          # [TM, 1]
        # lowest-index tie-break, all in f32 (iota < 2^24 is exact)
        cand = jnp.where(dist <= minval, iota_row, n_f)        # [TM, N]
        min_idx = jnp.min(cand, axis=1, keepdims=True)         # [TM, 1]
        sel = iota_row == min_idx                              # [TM, N] exact one-hot mask
        onehot = sel.astype(jnp.float32)
        # Gather coords AND the selected index (iota row) in one MXU matmul:
        # [R, N] x [TM, N]^T -> [R, TM].  HIGHEST keeps the one-hot gather exact.
        g = lax.dot_general(
            p_all, onehot, (((1,), (1,)), ((), ())),
            preferred_element_type=jnp.float32,
            precision=lax.Precision.HIGHEST)
        out_rows.append(g[:dim])                               # [dim, TM]
        idx_rows.append(g[dim + 2:dim + 3])                    # [1, TM]
        if kk + 1 < k:                                         # skip last masking pass
            dist = jnp.where(sel, big, dist)

    # One dense, full-sublane store per output (k*dim / k rows, M on lanes).
    out_ref[0] = jnp.concatenate(out_rows, axis=0).astype(out_ref.dtype)
    idx_ref[0] = jnp.round(jnp.concatenate(idx_rows, axis=0)).astype(jnp.int32)


def _vmem_capacity_bytes(default: int = 64 * 1024 * 1024) -> int:
    """Physical VMEM per TensorCore; conservative (v7x-sized) default on failure."""
    try:
        cap = getattr(pltpu.get_tpu_info(), "vmem_capacity_bytes", None)
        if cap:
            return int(cap)
    except Exception:
        pass
    return default


def _choose_tile_m(m: int, n: int, b: int, temps_budget: int,
                   bytes_per_elem: int = 16, cap: int = 1024) -> int:
    """Largest lane-aligned query tile whose [TM, N] temporaries fit the budget."""
    tile_m = (temps_budget // (bytes_per_elem * max(n, 1))) // 128 * 128
    m_ceil = -(-m // 128) * 128
    tile_m = max(128, min(tile_m, cap, m_ceil))
    # v7x megacore: make sure at least 2 programs land on the 'parallel' axes.
    if b * (-(-m // tile_m)) < 2 and tile_m >= 256:
        tile_m = max(128, (tile_m // 2) // 128 * 128)
    return tile_m


def patcher_forward(p, q=None, *, k: int = 8):
    """Pallas equivalent of Patcher.forward (mode='knn', use_last=False).

    p: [B, dim, N] reference point cloud
    q: [B, dim, M] query point cloud (defaults to p)
    Returns (grouped [B, dim, M, k], idx [B, M, k]).
    """
    if q is None:
        q = p
    b, dim, n = p.shape
    _, _, m = q.shape
    assert k <= n, f"k={k} must not exceed number of reference points N={n}"

    # ---- generation-aware VMEM budgeting ------------------------------------
    vmem_cap = _vmem_capacity_bytes()               # 64 MiB (v7x) / 128 MiB (v5e,v6e)
    vmem_limit = (vmem_cap * 3) // 4                # 48 MiB / 96 MiB scoped limit
    rows = max(8, -(-(dim + 3) // 8) * 8)           # augmented rows padded to full sublanes
    fixed = 2 * rows * n * 4                        # double-buffered resident p_all block
    temps_budget = max(vmem_limit - fixed - 6 * 1024 * 1024, 8 * 1024 * 1024)
    tile_m = _choose_tile_m(m, n, b, temps_budget)
    m_pad = -(-m // tile_m) * tile_m                # lane-aligned, evenly divides the grid

    # ---- augmented operands (built once in XLA, outside the kernel) ---------
    #   p_all rows: [p (dim), 1, |p|^2, iota, 0...]  -> [B, rows, N]
    #   q_aug rows: [-2*q (dim), |q|^2, 1, 0...]     -> [B, rows, M_pad]
    p_f = p.astype(jnp.float32)
    q_f = q.astype(jnp.float32)
    if m_pad != m:
        q_f = jnp.pad(q_f, ((0, 0), (0, 0), (0, m_pad - m)))   # padded queries sliced off below
    p_sq = jnp.sum(p_f * p_f, axis=1, keepdims=True)                       # [B, 1, N]
    q_sq = jnp.sum(q_f * q_f, axis=1, keepdims=True)                       # [B, 1, M_pad]
    iota_n = jnp.broadcast_to(
        jnp.arange(n, dtype=jnp.float32)[None, None, :], (b, 1, n))
    p_all = jnp.concatenate(
        [p_f, jnp.ones((b, 1, n), jnp.float32), p_sq, iota_n,
         jnp.zeros((b, rows - (dim + 3), n), jnp.float32)], axis=1)        # [B, rows, N]
    q_aug = jnp.concatenate(
        [-2.0 * q_f, q_sq, jnp.ones((b, 1, m_pad), jnp.float32),
         jnp.zeros((b, rows - (dim + 2), m_pad), jnp.float32)], axis=1)    # [B, rows, M_pad]

    kernel = functools.partial(_knn_group_kernel, k=k, dim=dim)
    grouped_t, idx_t = pl.pallas_call(
        kernel,
        out_shape=(
            jax.ShapeDtypeStruct((b, k * dim, m_pad), p.dtype),   # lane-dense: M last
            jax.ShapeDtypeStruct((b, k, m_pad), jnp.int32),
        ),
        grid_spec=pltpu.PrefetchScalarGridSpec(
            num_scalar_prefetch=0,
            grid=(b, m_pad // tile_m),
            in_specs=[
                # p_all: constant block index across the M-tile axis -> resident,
                # DMA'd once per batch element.
                pl.BlockSpec((1, rows, n), lambda i, j: (i, 0, 0)),
                pl.BlockSpec((1, rows, tile_m), lambda i, j: (i, 0, j)),
            ],
            out_specs=[
                pl.BlockSpec((1, k * dim, tile_m), lambda i, j: (i, 0, j)),
                pl.BlockSpec((1, k, tile_m), lambda i, j: (i, 0, j)),
            ],
        ),
        compiler_params=pltpu.CompilerParams(
            dimension_semantics=("parallel", "parallel"),
            vmem_limit_bytes=int(vmem_limit),
        ),
    )(p_all, q_aug)

    # Back to the module's layout (cheap XLA transpose; keeps kernel stores
    # lane-dense).  Consumers that accept the native [B, k, dim, M] / [B, k, M]
    # layouts should skip this to save one output-sized HBM round trip.
    grouped = jnp.transpose(
        grouped_t[:, :, :m].reshape(b, k, dim, m), (0, 2, 3, 1))   # [B, dim, M, k]
    idx = jnp.transpose(idx_t[:, :, :m], (0, 2, 1))                # [B, M, k]
    return grouped, idx


def _reference_forward(p, q, k):
    """Pure-JAX reference for correctness checking."""
    d = (jnp.sum(q * q, axis=1)[:, :, None]
         + jnp.sum(p * p, axis=1)[:, None, :]
         - 2.0 * jnp.einsum("bdm,bdn->bmn", q, p,
                            precision=lax.Precision.HIGHEST))        # [B, M, N]
    idx = jnp.argsort(d, axis=-1)[..., :k]                           # [B, M, k] (stable)
    grouped = jnp.take_along_axis(p[:, :, None, :],
                                  idx[:, None, :, :], axis=-1)       # [B, dim, M, k]
    return grouped, idx


# TODO(synk): mode='ball' (ball_query), use_last=True index reuse, and the
# normalize/denormalize helpers are stateful / not part of the default forward
# path and are not implemented here.

if __name__ == "__main__":
    # Small shapes consistent with the module: point clouds [B, dim, num_point]
    B, DIM, N, K = 2, 3, 16, 8
    key = jax.random.PRNGKey(0)
    p = jax.random.normal(key, (B, DIM, N), dtype=jnp.float32)

    grouped, idx = patcher_forward(p, None, k=K)   # q defaults to p, as in the module
    grouped = jax.block_until_ready(grouped)
    idx = jax.block_until_ready(idx)

    # Sanity check against a pure-JAX reference (values AND indices).
    ref_grouped, ref_idx = _reference_forward(p, p, K)
    assert grouped.shape == (B, DIM, N, K)
    assert idx.shape == (B, N, K)
    assert jnp.allclose(grouped, ref_grouped, atol=1e-5, rtol=1e-5)
    assert jnp.array_equal(idx, ref_idx)

    print("KERNEL_OK")
</pallas_src>

<mosaic_0001>
module attributes {stable_mosaic.version = 11 : i64} {
  func.func @_knn_group_kernel(%arg0: i32, %arg1: i32, %arg2: memref<1x8x16xf32, #tpu.memory_space<vmem>>, %arg3: memref<1x8x128xf32, #tpu.memory_space<vmem>>, %arg4: memref<1x24x128xf32, #tpu.memory_space<vmem>>, %arg5: memref<1x8x128xi32, #tpu.memory_space<vmem>>) attributes {dimension_semantics = [#tpu.dimension_semantics<parallel>, #tpu.dimension_semantics<parallel>], iteration_bounds = array<i64: 2, 1>, scalar_prefetch = 0 : i64, scratch_operands = 0 : i64, tpu.core_type = #tpu.core_type<tc>, window_params = [{transform_indices = @transform_0, window_bounds = array<i64: 1, 8, 16>}, {transform_indices = @transform_1, window_bounds = array<i64: 1, 8, 128>}, {transform_indices = @transform_2, window_bounds = array<i64: 1, 24, 128>}, {transform_indices = @transform_3, window_bounds = array<i64: 1, 8, 128>}]} {
    %c0 = arith.constant 0 : index
    %c0_0 = arith.constant 0 : index
    %c0_1 = arith.constant 0 : index
    %0 = vector.load %arg2[%c0, %c0_0, %c0_1] : memref<1x8x16xf32, #tpu.memory_space<vmem>>, vector<1x8x16xf32>
    %1 = vector.shape_cast %0 : vector<1x8x16xf32> to vector<8x16xf32>
    %c0_2 = arith.constant 0 : index
    %c0_3 = arith.constant 0 : index
    %c0_4 = arith.constant 0 : index
    %2 = vector.load %arg3[%c0_2, %c0_3, %c0_4] : memref<1x8x128xf32, #tpu.memory_space<vmem>>, vector<1x8x128xf32>
    %3 = vector.shape_cast %2 : vector<1x8x128xf32> to vector<8x128xf32>
    %cst = arith.constant dense<0.000000e+00> : vector<128x16xf32>
    %4 = tpu.matmul %3, %1, %cst {dimension_numbers = #tpu.dot_dimension_numbers<[0], [0], [1], [1], [0, 1, 1, 1], [], []>, precision = #tpu.contract_precision<fp32>} : vector<8x128xf32>, vector<8x16xf32>, vector<128x16xf32> -> vector<128x16xf32>
    %5 = vector.extract_strided_slice %1 {offsets = [5, 0], sizes = [1, 16], strides = [1, 1]} : vector<8x16xf32> to vector<1x16xf32>
    %cst_5 = arith.constant dense<0x7F800000> : vector<128xf32>
    %6 = vector.multi_reduction <minimumf>, %4, %cst_5 [1] : vector<128x16xf32> to vector<128xf32>
    %7 = vector.shape_cast %6 : vector<128xf32> to vector<128x1xf32>
    %8 = vector.broadcast %7 : vector<128x1xf32> to vector<128x16xf32>
    %9 = arith.cmpf ole, %4, %8 : vector<128x16xf32>
    %cst_6 = arith.constant 1.600000e+01 : f32
    %10 = vector.shape_cast %5 : vector<1x16xf32> to vector<1x16xf32>
    %11 = vector.broadcast %10 : vector<1x16xf32> to vector<128x16xf32>
    %12 = vector.broadcast %cst_6 : f32 to vector<128x16xf32>
    %13 = arith.select %9, %11, %12 : vector<128x16xi1>, vector<128x16xf32>
    %cst_7 = arith.constant dense<0x7F800000> : vector<128xf32>
    %14 = vector.multi_reduction <minimumf>, %13, %cst_7 [1] : vector<128x16xf32> to vector<128xf32>
    %15 = vector.shape_cast %14 : vector<128xf32> to vector<128x1xf32>
    %16 = vector.broadcast %5 : vector<1x16xf32> to vector<128x16xf32>
    %17 = vector.broadcast %15 : vector<128x1xf32> to vector<128x16xf32>
    %18 = arith.cmpf oeq, %16, %17 : vector<128x16xf32>
    %19 = arith.extui %18 : vector<128x16xi1> to vector<128x16xi32>
    %20 = arith.sitofp %19 : vector<128x16xi32> to vector<128x16xf32>
    %cst_8 = arith.constant dense<0.000000e+00> : vector<8x128xf32>
    %21 = tpu.matmul %1, %20, %cst_8 {dimension_numbers = #tpu.dot_dimension_numbers<[1], [1], [0], [0], [0, 0, 1, 0], [], []>, precision = #tpu.contract_precision<fp32>} : vector<8x16xf32>, vector<128x16xf32>, vector<8x128xf32> -> vector<8x128xf32>
    %22 = vector.extract_strided_slice %21 {offsets = [0, 0], sizes = [3, 128], strides = [1, 1]} : vector<8x128xf32> to vector<3x128xf32>
    %23 = vector.extract_strided_slice %21 {offsets = [5, 0], sizes = [1, 128], strides = [1, 1]} : vector<8x128xf32> to vector<1x128xf32>
    %cst_9 = arith.constant 3.40282347E+38 : f32
    %24 = vector.broadcast %cst_9 : f32 to vector<128x16xf32>
    %25 = arith.select %18, %24, %4 : vector<128x16xi1>, vector<128x16xf32>
    %cst_10 = arith.constant dense<0x7F800000> : vector<128xf32>
    %26 = vector.multi_reduction <minimumf>, %25, %cst_10 [1] : vector<128x16xf32> to vector<128xf32>
    %27 = vector.shape_cast %26 : vector<128xf32> to vector<128x1xf32>
    %28 = vector.broadcast %27 : vector<128x1xf32> to vector<128x16xf32>
    %29 = arith.cmpf ole, %25, %28 : vector<128x16xf32>
    %cst_11 = arith.constant 1.600000e+01 : f32
    %30 = vector.shape_cast %5 : vector<1x16xf32> to vector<1x16xf32>
    %31 = vector.broadcast %30 : vector<1x16xf32> to vector<128x16xf32>
    %32 = vector.broadcast %cst_11 : f32 to vector<128x16xf32>
    %33 = arith.select %29, %31, %32 : vector<128x16xi1>, vector<128x16xf32>
    %cst_12 = arith.constant dense<0x7F800000> : vector<128xf32>
    %34 = vector.multi_reduction <minimumf>, %33, %cst_12 [1] : vector<128x16xf32> to vector<128xf32>
    %35 = vector.shape_cast %34 : vector<128xf32> to vector<128x1xf32>
    %36 = vector.broadcast %5 : vector<1x16xf32> to vector<128x16xf32>
    %37 = vector.broadcast %35 : vector<128x1xf32> to vector<128x16xf32>
    %38 = arith.cmpf oeq, %36, %37 : vector<128x16xf32>
    %39 = arith.extui %38 : vector<128x16xi1> to vector<128x16xi32>
    %40 = arith.sitofp %39 : vector<128x16xi32> to vector<128x16xf32>
    %cst_13 = arith.constant dense<0.000000e+00> : vector<8x128xf32>
    %41 = tpu.matmul %1, %40, %cst_13 {dimension_numbers = #tpu.dot_dimension_numbers<[1], [1], [0], [0], [0, 0, 1, 0], [], []>, precision = #tpu.contract_precision<fp32>} : vector<8x16xf32>, vector<128x16xf32>, vector<8x128xf32> -> vector<8x128xf32>
    %42 = vector.extract_strided_slice %41 {offsets = [0, 0], sizes = [3, 128], strides = [1, 1]} : vector<8x128xf32> to vector<3x128xf32>
    %43 = vector.extract_strided_slice %41 {offsets = [5, 0], sizes = [1, 128], strides = [1, 1]} : vector<8x128xf32> to vector<1x128xf32>
    %cst_14 = arith.constant 3.40282347E+38 : f32
    %44 = vector.broadcast %cst_14 : f32 to vector<128x16xf32>
    %45 = arith.select %38, %44, %25 : vector<128x16xi1>, vector<128x16xf32>
    %cst_15 = arith.constant dense<0x7F800000> : vector<128xf32>
    %46 = vector.multi_reduction <minimumf>, %45, %cst_15 [1] : vector<128x16xf32> to vector<128xf32>
    %47 = vector.shape_cast %46 : vector<128xf32> to vector<128x1xf32>
    %48 = vector.broadcast %47 : vector<128x1xf32> to vector<128x16xf32>
    %49 = arith.cmpf ole, %45, %48 : vector<128x16xf32>
    %cst_16 = arith.constant 1.600000e+01 : f32
    %50 = vector.shape_cast %5 : vector<1x16xf32> to vector<1x16xf32>
    %51 = vector.broadcast %50 : vector<1x16xf32> to vector<128x16xf32>
    %52 = vector.broadcast %cst_16 : f32 to vector<128x16xf32>
    %53 = arith.select %49, %51, %52 : vector<128x16xi1>, vector<128x16xf32>
    %cst_17 = arith.constant dense<0x7F800000> : vector<128xf32>
    %54 = vector.multi_reduction <minimumf>, %53, %cst_17 [1] : vector<128x16xf32> to vector<128xf32>
    %55 = vector.shape_cast %54 : vector<128xf32> to vector<128x1xf32>
    %56 = vector.broadcast %5 : vector<1x16xf32> to vector<128x16xf32>
    %57 = vector.broadcast %55 : vector<128x1xf32> to vector<128x16xf32>
    %58 = arith.cmpf oeq, %56, %57 : vector<128x16xf32>
    %59 = arith.extui %58 : vector<128x16xi1> to vector<128x16xi32>
    %60 = arith.sitofp %59 : vector<128x16xi32> to vector<128x16xf32>
    %cst_18 = arith.constant dense<0.000000e+00> : vector<8x128xf32>
    %61 = tpu.matmul %1, %60, %cst_18 {dimension_numbers = #tpu.dot_dimension_numbers<[1], [1], [0], [0], [0, 0, 1, 0], [], []>, precision = #tpu.contract_precision<fp32>} : vector<8x16xf32>, vector<128x16xf32>, vector<8x128xf32> -> vector<8x128xf32>
    %62 = vector.extract_strided_slice %61 {offsets = [0, 0], sizes = [3, 128], strides = [1, 1]} : vector<8x128xf32> to vector<3x128xf32>
    %63 = vector.extract_strided_slice %61 {offsets = [5, 0], sizes = [1, 128], strides = [1, 1]} : vector<8x128xf32> to vector<1x128xf32>
    %cst_19 = arith.constant 3.40282347E+38 : f32
    %64 = vector.broadcast %cst_19 : f32 to vector<128x16xf32>
    %65 = arith.select %58, %64, %45 : vector<128x16xi1>, vector<128x16xf32>
    %cst_20 = arith.constant dense<0x7F800000> : vector<128xf32>
    %66 = vector.multi_reduction <minimumf>, %65, %cst_20 [1] : vector<128x16xf32> to vector<128xf32>
    %67 = vector.shape_cast %66 : vector<128xf32> to vector<128x1xf32>
    %68 = vector.broadcast %67 : vector<128x1xf32> to vector<128x16xf32>
    %69 = arith.cmpf ole, %65, %68 : vector<128x16xf32>
    %cst_21 = arith.constant 1.600000e+01 : f32
    %70 = vector.shape_cast %5 : vector<1x16xf32> to vector<1x16xf32>
    %71 = vector.broadcast %70 : vector<1x16xf32> to vector<128x16xf32>
    %72 = vector.broadcast %cst_21 : f32 to vector<128x16xf32>
    %73 = arith.select %69, %71, %72 : vector<128x16xi1>, vector<128x16xf32>
    %cst_22 = arith.constant dense<0x7F800000> : vector<128xf32>
    %74 = vector.multi_reduction <minimumf>, %73, %cst_22 [1] : vector<128x16xf32> to vector<128xf32>
    %75 = vector.shape_cast %74 : vector<128xf32> to vector<128x1xf32>
    %76 = vector.broadcast %5 : vector<1x16xf32> to vector<128x16xf32>
    %77 = vector.broadcast %75 : vector<128x1xf32> to vector<128x16xf32>
    %78 = arith.cmpf oeq, %76, %77 : vector<128x16xf32>
    %79 = arith.extui %78 : vector<128x16xi1> to vector<128x16xi32>
    %80 = arith.sitofp %79 : vector<128x16xi32> to vector<128x16xf32>
    %cst_23 = arith.constant dense<0.000000e+00> : vector<8x128xf32>
    %81 = tpu.matmul %1, %80, %cst_23 {dimension_numbers = #tpu.dot_dimension_numbers<[1], [1], [0], [0], [0, 0, 1, 0], [], []>, precision = #tpu.contract_precision<fp32>} : vector<8x16xf32>, vector<128x16xf32>, vector<8x128xf32> -> vector<8x128xf32>
    %82 = vector.extract_strided_slice %81 {offsets = [0, 0], sizes = [3, 128], strides = [1, 1]} : vector<8x128xf32> to vector<3x128xf32>
    %83 = vector.extract_strided_slice %81 {offsets = [5, 0], sizes = [1, 128], strides = [1, 1]} : vector<8x128xf32> to vector<1x128xf32>
    %cst_24 = arith.constant 3.40282347E+38 : f32
    %84 = vector.broadcast %cst_24 : f32 to vector<128x16xf32>
    %85 = arith.select %78, %84, %65 : vector<128x16xi1>, vector<128x16xf32>
    %cst_25 = arith.constant dense<0x7F800000> : vector<128xf32>
    %86 = vector.multi_reduction <minimumf>, %85, %cst_25 [1] : vector<128x16xf32> to vector<128xf32>
    %87 = vector.shape_cast %86 : vector<128xf32> to vector<128x1xf32>
    %88 = vector.broadcast %87 : vector<128x1xf32> to vector<128x16xf32>
    %89 = arith.cmpf ole, %85, %88 : vector<128x16xf32>
    %cst_26 = arith.constant 1.600000e+01 : f32
    %90 = vector.shape_cast %5 : vector<1x16xf32> to vector<1x16xf32>
    %91 = vector.broadcast %90 : vector<1x16xf32> to vector<128x16xf32>
    %92 = vector.broadcast %cst_26 : f32 to vector<128x16xf32>
    %93 = arith.select %89, %91, %92 : vector<128x16xi1>, vector<128x16xf32>
    %cst_27 = arith.constant dense<0x7F800000> : vector<128xf32>
    %94 = vector.multi_reduction <minimumf>, %93, %cst_27 [1] : vector<128x16xf32> to vector<128xf32>
    %95 = vector.shape_cast %94 : vector<128xf32> to vector<128x1xf32>
    %96 = vector.broadcast %5 : vector<1x16xf32> to vector<128x16xf32>
    %97 = vector.broadcast %95 : vector<128x1xf32> to vector<128x16xf32>
    %98 = arith.cmpf oeq, %96, %97 : vector<128x16xf32>
    %99 = arith.extui %98 : vector<128x16xi1> to vector<128x16xi32>
    %100 = arith.sitofp %99 : vector<128x16xi32> to vector<128x16xf32>
    %cst_28 = arith.constant dense<0.000000e+00> : vector<8x128xf32>
    %101 = tpu.matmul %1, %100, %cst_28 {dimension_numbers = #tpu.dot_dimension_numbers<[1], [1], [0], [0], [0, 0, 1, 0], [], []>, precision = #tpu.contract_precision<fp32>} : vector<8x16xf32>, vector<128x16xf32>, vector<8x128xf32> -> vector<8x128xf32>
    %102 = vector.extract_strided_slice %101 {offsets = [0, 0], sizes = [3, 128], strides = [1, 1]} : vector<8x128xf32> to vector<3x128xf32>
    %103 = vector.extract_strided_slice %101 {offsets = [5, 0], sizes = [1, 128], strides = [1, 1]} : vector<8x128xf32> to vector<1x128xf32>
    %cst_29 = arith.constant 3.40282347E+38 : f32
    %104 = vector.broadcast %cst_29 : f32 to vector<128x16xf32>
    %105 = arith.select %98, %104, %85 : vector<128x16xi1>, vector<128x16xf32>
    %cst_30 = arith.constant dense<0x7F800000> : vector<128xf32>
    %106 = vector.multi_reduction <minimumf>, %105, %cst_30 [1] : vector<128x16xf32> to vector<128xf32>
    %107 = vector.shape_cast %106 : vector<128xf32> to vector<128x1xf32>
    %108 = vector.broadcast %107 : vector<128x1xf32> to vector<128x16xf32>
    %109 = arith.cmpf ole, %105, %108 : vector<128x16xf32>
    %cst_31 = arith.constant 1.600000e+01 : f32
    %110 = vector.shape_cast %5 : vector<1x16xf32> to vector<1x16xf32>
    %111 = vector.broadcast %110 : vector<1x16xf32> to vector<128x16xf32>
    %112 = vector.broadcast %cst_31 : f32 to vector<128x16xf32>
    %113 = arith.select %109, %111, %112 : vector<128x16xi1>, vector<128x16xf32>
    %cst_32 = arith.constant dense<0x7F800000> : vector<128xf32>
    %114 = vector.multi_reduction <minimumf>, %113, %cst_32 [1] : vector<128x16xf32> to vector<128xf32>
    %115 = vector.shape_cast %114 : vector<128xf32> to vector<128x1xf32>
    %116 = vector.broadcast %5 : vector<1x16xf32> to vector<128x16xf32>
    %117 = vector.broadcast %115 : vector<128x1xf32> to vector<128x16xf32>
    %118 = arith.cmpf oeq, %116, %117 : vector<128x16xf32>
    %119 = arith.extui %118 : vector<128x16xi1> to vector<128x16xi32>
    %120 = arith.sitofp %119 : vector<128x16xi32> to vector<128x16xf32>
    %cst_33 = arith.constant dense<0.000000e+00> : vector<8x128xf32>
    %121 = tpu.matmul %1, %120, %cst_33 {dimension_numbers = #tpu.dot_dimension_numbers<[1], [1], [0], [0], [0, 0, 1, 0], [], []>, precision = #tpu.contract_precision<fp32>} : vector<8x16xf32>, vector<128x16xf32>, vector<8x128xf32> -> vector<8x128xf32>
    %122 = vector.extract_strided_slice %121 {offsets = [0, 0], sizes = [3, 128], strides = [1, 1]} : vector<8x128xf32> to vector<3x128xf32>
    %123 = vector.extract_strided_slice %121 {offsets = [5, 0], sizes = [1, 128], strides = [1, 1]} : vector<8x128xf32> to vector<1x128xf32>
    %cst_34 = arith.constant 3.40282347E+38 : f32
    %124 = vector.broadcast %cst_34 : f32 to vector<128x16xf32>
    %125 = arith.select %118, %124, %105 : vector<128x16xi1>, vector<128x16xf32>
    %cst_35 = arith.constant dense<0x7F800000> : vector<128xf32>
    %126 = vector.multi_reduction <minimumf>, %125, %cst_35 [1] : vector<128x16xf32> to vector<128xf32>
    %127 = vector.shape_cast %126 : vector<128xf32> to vector<128x1xf32>
    %128 = vector.broadcast %127 : vector<128x1xf32> to vector<128x16xf32>
    %129 = arith.cmpf ole, %125, %128 : vector<128x16xf32>
    %cst_36 = arith.constant 1.600000e+01 : f32
    %130 = vector.shape_cast %5 : vector<1x16xf32> to vector<1x16xf32>
    %131 = vector.broadcast %130 : vector<1x16xf32> to vector<128x16xf32>
    %132 = vector.broadcast %cst_36 : f32 to vector<128x16xf32>
    %133 = arith.select %129, %131, %132 : vector<128x16xi1>, vector<128x16xf32>
    %cst_37 = arith.constant dense<0x7F800000> : vector<128xf32>
    %134 = vector.multi_reduction <minimumf>, %133, %cst_37 [1] : vector<128x16xf32> to vector<128xf32>
    %135 = vector.shape_cast %134 : vector<128xf32> to vector<128x1xf32>
    %136 = vector.broadcast %5 : vector<1x16xf32> to vector<128x16xf32>
    %137 = vector.broadcast %135 : vector<128x1xf32> to vector<128x16xf32>
    %138 = arith.cmpf oeq, %136, %137 : vector<128x16xf32>
    %139 = arith.extui %138 : vector<128x16xi1> to vector<128x16xi32>
    %140 = arith.sitofp %139 : vector<128x16xi32> to vector<128x16xf32>
    %cst_38 = arith.constant dense<0.000000e+00> : vector<8x128xf32>
    %141 = tpu.matmul %1, %140, %cst_38 {dimension_numbers = #tpu.dot_dimension_numbers<[1], [1], [0], [0], [0, 0, 1, 0], [], []>, precision = #tpu.contract_precision<fp32>} : vector<8x16xf32>, vector<128x16xf32>, vector<8x128xf32> -> vector<8x128xf32>
    %142 = vector.extract_strided_slice %141 {offsets = [0, 0], sizes = [3, 128], strides = [1, 1]} : vector<8x128xf32> to vector<3x128xf32>
    %143 = vector.extract_strided_slice %141 {offsets = [5, 0], sizes = [1, 128], strides = [1, 1]} : vector<8x128xf32> to vector<1x128xf32>
    %cst_39 = arith.constant 3.40282347E+38 : f32
    %144 = vector.broadcast %cst_39 : f32 to vector<128x16xf32>
    %145 = arith.select %138, %144, %125 : vector<128x16xi1>, vector<128x16xf32>
    %cst_40 = arith.constant dense<0x7F800000> : vector<128xf32>
    %146 = vector.multi_reduction <minimumf>, %145, %cst_40 [1] : vector<128x16xf32> to vector<128xf32>
    %147 = vector.shape_cast %146 : vector<128xf32> to vector<128x1xf32>
    %148 = vector.broadcast %147 : vector<128x1xf32> to vector<128x16xf32>
    %149 = arith.cmpf ole, %145, %148 : vector<128x16xf32>
    %cst_41 = arith.constant 1.600000e+01 : f32
    %150 = vector.shape_cast %5 : vector<1x16xf32> to vector<1x16xf32>
    %151 = vector.broadcast %150 : vector<1x16xf32> to vector<128x16xf32>
    %152 = vector.broadcast %cst_41 : f32 to vector<128x16xf32>
    %153 = arith.select %149, %151, %152 : vector<128x16xi1>, vector<128x16xf32>
    %cst_42 = arith.constant dense<0x7F800000> : vector<128xf32>
    %154 = vector.multi_reduction <minimumf>, %153, %cst_42 [1] : vector<128x16xf32> to vector<128xf32>
    %155 = vector.shape_cast %154 : vector<128xf32> to vector<128x1xf32>
    %156 = vector.broadcast %5 : vector<1x16xf32> to vector<128x16xf32>
    %157 = vector.broadcast %155 : vector<128x1xf32> to vector<128x16xf32>
    %158 = arith.cmpf oeq, %156, %157 : vector<128x16xf32>
    %159 = arith.extui %158 : vector<128x16xi1> to vector<128x16xi32>
    %160 = arith.sitofp %159 : vector<128x16xi32> to vector<128x16xf32>
    %cst_43 = arith.constant dense<0.000000e+00> : vector<8x128xf32>
    %161 = tpu.matmul %1, %160, %cst_43 {dimension_numbers = #tpu.dot_dimension_numbers<[1], [1], [0], [0], [0, 0, 1, 0], [], []>, precision = #tpu.contract_precision<fp32>} : vector<8x16xf32>, vector<128x16xf32>, vector<8x128xf32> -> vector<8x128xf32>
    %162 = vector.extract_strided_slice %161 {offsets = [0, 0], sizes = [3, 128], strides = [1, 1]} : vector<8x128xf32> to vector<3x128xf32>
    %163 = vector.extract_strided_slice %161 {offsets = [5, 0], sizes = [1, 128], strides = [1, 1]} : vector<8x128xf32> to vector<1x128xf32>
    %164 = tpu.concatenate %22, %42, %62, %82, %102, %122, %142, %162 in 0 : vector<3x128xf32>, vector<3x128xf32>, vector<3x128xf32>, vector<3x128xf32>, vector<3x128xf32>, vector<3x128xf32>, vector<3x128xf32>, vector<3x128xf32> -> vector<24x128xf32>
    %c0_44 = arith.constant 0 : index
    %c0_45 = arith.constant 0 : index
    %c0_46 = arith.constant 0 : index
    %165 = vector.load %arg4[%c0_44, %c0_45, %c0_46] : memref<1x24x128xf32, #tpu.memory_space<vmem>>, vector<1x24x128xf32>
    %166 = vector.shape_cast %165 : vector<1x24x128xf32> to vector<24x128xf32>
    %167 = vector.shape_cast %164 : vector<24x128xf32> to vector<1x24x128xf32>
    tpu.vector_store %arg4[%c0_44, %c0_45, %c0_46], %167 {strides = array<i32>} : memref<1x24x128xf32, #tpu.memory_space<vmem>>, vector<1x24x128xf32>,
    %168 = tpu.concatenate %23, %43, %63, %83, %103, %123, %143, %163 in 0 : vector<1x128xf32>, vector<1x128xf32>, vector<1x128xf32>, vector<1x128xf32>, vector<1x128xf32>, vector<1x128xf32>, vector<1x128xf32>, vector<1x128xf32> -> vector<8x128xf32>
    %169 = math.roundeven %168 : vector<8x128xf32>
    %170 = arith.fptosi %169 : vector<8x128xf32> to vector<8x128xi32>
    %c0_47 = arith.constant 0 : index
    %c0_48 = arith.constant 0 : index
    %c0_49 = arith.constant 0 : index
    %171 = vector.load %arg5[%c0_47, %c0_48, %c0_49] : memref<1x8x128xi32, #tpu.memory_space<vmem>>, vector<1x8x128xi32>
    %172 = vector.shape_cast %171 : vector<1x8x128xi32> to vector<8x128xi32>
    %173 = vector.shape_cast %170 : vector<8x128xi32> to vector<1x8x128xi32>
    tpu.vector_store %arg5[%c0_47, %c0_48, %c0_49], %173 {strides = array<i32>} : memref<1x8x128xi32, #tpu.memory_space<vmem>>, vector<1x8x128xi32>,
    return
  }
  func.func @transform_0(%arg0: i32, %arg1: i32) -> (i32, i32, i32) {
    %c0_i32 = arith.constant 0 : i32
    %c0_i32_0 = arith.constant 0 : i32
    %c0_i32_1 = arith.constant 0 : i32
    return %arg0, %c0_i32, %c0_i32_0 : i32, i32, i32
  }
  func.func @transform_1(%arg0: i32, %arg1: i32) -> (i32, i32, i32) {
    %c0_i32 = arith.constant 0 : i32
    %c0_i32_0 = arith.constant 0 : i32
    return %arg0, %c0_i32, %arg1 : i32, i32, i32
  }
  func.func @transform_2(%arg0: i32, %arg1: i32) -> (i32, i32, i32) {
    %c0_i32 = arith.constant 0 : i32
    %c0_i32_0 = arith.constant 0 : i32
    return %arg0, %c0_i32, %arg1 : i32, i32, i32
  }
  func.func @transform_3(%arg0: i32, %arg1: i32) -> (i32, i32, i32) {
    %c0_i32 = arith.constant 0 : i32
    %c0_i32_0 = arith.constant 0 : i32
    return %arg0, %c0_i32, %arg1 : i32, i32, i32
  }
}

</mosaic_0001>

<llo_original>
// kernel: tpu_custom_call.1
$region0: #{tpu_custom_call.1}
  #allocation0 [shape = 'u32[]', space=smem, size = 0x4, offset = 0x4, fixed_abs, tag = 'smem constant byte address 0x4 - core index']
  #allocation1 [shape = 'u32[144,128]{1,0:T(1,128)}', space=vmem, size = 0x12000, scoped, tag = 'internal scratch']
  %s0 = inlined_call_operand.hbm [shape: f32[2,8,16], index: 0, kind: input, shape index: {}]
  %s1 = inlined_call_operand.hbm [shape: f32[2,8,128], index: 1, kind: input, shape index: {}]
  %s2 = inlined_call_operand.hbm [shape: f32[2,24,128], index: 2, kind: output, shape index: {0}]
  %s3 = inlined_call_operand.hbm [shape: s32[2,8,128], index: 3, kind: output, shape index: {1}]
  %4 = xla_tuple %s2, %s3
  %s5 = sld [smem:[#allocation0]]
  $region57: #{tpu_custom_call.1} parent=0
    _
  %s7 = ssub.s32 1, %s5
  %s8 = scalar_select 0, %s7, %s5
  $region1: #{tpu_custom_call.1} parent=0
    #allocation2 [shape = 'u8[8192]{0}', space=vmem, size = 0x2000, scoped, tag = 'input window, operand 0']
    #allocation3 [shape = 's32[2]{0}', space=sflag, size = 0x8, scoped, tag = 'scoped memory for tpu_custom_call.1']
    #allocation4 [shape = 's32[2]{0}', space=sflag, size = 0x8, scoped, tag = 'scoped memory for tpu_custom_call.1']
    #allocation5 [shape = 'u8[8192]{0}', space=vmem, size = 0x2000, scoped, tag = 'input window, operand 1']
    #allocation6 [shape = 's32[2]{0}', space=sflag, size = 0x8, scoped, tag = 'scoped memory for tpu_custom_call.1']
    #allocation7 [shape = 'u8[24576]{0}', space=vmem, size = 0x6000, scoped, tag = 'output window, operand 0']
    #allocation8 [shape = 'u8[8192]{0}', space=vmem, size = 0x2000, scoped, tag = 'output window, operand 1']
    #allocation9 [shape = 's32[2]{0}', space=sflag, size = 0x8, scoped, tag = 'scoped memory for tpu_custom_call.1']
    %9 = vsyncpa [#allocation3], 0
    %s10 = scalar_lea.sflag [#allocation3], 1
    %11 = vsyncpa %s10, 0
    %12 = vsyncpa [#allocation6], 0
    %s13 = scalar_lea.sflag [#allocation6], 1
    %14 = vsyncpa %s13, 0
    %15 = vsyncpa [#allocation4], 0
    %s16 = scalar_lea.sflag [#allocation4], 1
    %17 = vsyncpa %s16, 0
    %18 = vsyncpa [#allocation9], 0
    %s19 = scalar_lea.sflag [#allocation9], 1
    %20 = vsyncpa %s19, 0
    loop: start=0, step=1, limit=4
    $region2: #{tpu_custom_call.1} parent=1 // loop_pre_header
      _
    $region3: #{tpu_custom_call.1} parent=1 // loop_header
      %s22 = sphi 0, %s26
      %p23 = scmp.ge.s32.totalorder %s22, 4
      %s29 = sphi 0, %s41
      %s30 = sphi 0, %s37
      %s31 = sphi 0, %s29
      %s32 = sphi 0, %s30
      %s33 = sphi 0, %s31
      %s34 = sphi 0, %s32
      %s44 = sphi 0, %s46
      %s47 = sphi 0, %s44
      %s48 = sphi 0, %s47
      %s64 = sphi 0, %s48
      %s72 = sphi 0, %s74
      %s75 = sphi 0, %s72
      %s76 = sphi 0, %s75
      %s92 = sphi 0, %s76
      %s100 = sphi 0, %s102
      %s103 = sphi 0, %s100
      %s104 = sphi 0, %s103
      %s120 = sphi 0, %s104
      %s128 = sphi 0, %s130
      %s131 = sphi 0, %s128
      %s132 = sphi 0, %s131
      %s148 = sphi 0, %s132
    $region4: #{tpu_custom_call.1} parent=1 // loop_header_branch
      %25 = sbr.rel (%p23) target = $region8
    $region5: #{tpu_custom_call.1} parent=1 // loop_body
      %s27 = ssub.s32 %s22, 1
      %s28 = ssub.s32 %s22, 2
      %s35 = sadd.s32 1, %s30
      %p36 = scmp.ge.s32.totalorder %s35, 1
      %s37 = scalar_select %p36, 0, %s35
      %s38 = sadd.s32 1, %s29
      %s39 = scalar_select %p36, %s38, %s29
      %p40 = scmp.ge.s32.totalorder %s39, 2
      %s41 = scalar_select %p40, 0, %s39
      %s42 = ssub.s32 %s29, %s41
      %p43 = scmp.eq.s32.totalorder %s42, 0
      %s45 = sadd.s32 %s44, 1
      %s46 = scalar_select %p43, %s44, %s45
      %p49 = pneg %p43
      %p50 = scmp.eq.s32.totalorder %s22, 1
      %p51 = por %p49, %p50
      %p52 = scmp.ne.s32.totalorder %s44, %s47
      %p53 = scmp.eq.s32.totalorder %s22, 0
      %p54 = por %p52, %p53
      %p55 = scmp.ne.s32.totalorder %s44, %s47
      %p56 = scmp.eq.s32.totalorder %s27, 1
      %p57 = por %p55, %p56
      %p58 = scmp.ne.s32.totalorder %s47, %s48
      %p59 = scmp.eq.s32.totalorder %s27, 0
      %p60 = por %p58, %p59
      %p61 = scmp.ne.s32.totalorder %s47, %s48
      %p62 = scmp.eq.s32.totalorder %s28, 1
      %p63 = por %p61, %p62
      %p65 = scmp.ne.s32.totalorder %s48, %s64
      %p66 = scmp.eq.s32.totalorder %s28, 0
      %p67 = por %p65, %p66
      %s68 = ssub.s32 %s29, %s41
      %s69 = ssub.s32 %s30, %s37
      %s70 = sor.u32 %s68, %s69
      %p71 = scmp.eq.s32.totalorder %s70, 0
      %s73 = sadd.s32 %s72, 1
      %s74 = scalar_select %p71, %s72, %s73
      %p77 = pneg %p71
      %p78 = scmp.eq.s32.totalorder %s22, 1
      %p79 = por %p77, %p78
      %p80 = scmp.ne.s32.totalorder %s72, %s75
      %p81 = scmp.eq.s32.totalorder %s22, 0
      %p82 = por %p80, %p81
      %p83 = scmp.ne.s32.totalorder %s72, %s75
      %p84 = scmp.eq.s32.totalorder %s27, 1
      %p85 = por %p83, %p84
      %p86 = scmp.ne.s32.totalorder %s75, %s76
      %p87 = scmp.eq.s32.totalorder %s27, 0
      %p88 = por %p86, %p87
      %p89 = scmp.ne.s32.totalorder %s75, %s76
      %p90 = scmp.eq.s32.totalorder %s28, 1
      %p91 = por %p89, %p90
      %p93 = scmp.ne.s32.totalorder %s76, %s92
      %p94 = scmp.eq.s32.totalorder %s28, 0
      %p95 = por %p93, %p94
      %s96 = ssub.s32 %s29, %s41
      %s97 = ssub.s32 %s30, %s37
      %s98 = sor.u32 %s96, %s97
      %p99 = scmp.eq.s32.totalorder %s98, 0
      %s101 = sadd.s32 %s100, 1
      %s102 = scalar_select %p99, %s100, %s101
      %p105 = pneg %p99
      %p106 = scmp.eq.s32.totalorder %s22, 1
      %p107 = por %p105, %p106
      %p108 = scmp.ne.s32.totalorder %s100, %s103
      %p109 = scmp.eq.s32.totalorder %s22, 0
      %p110 = por %p108, %p109
      %p111 = scmp.ne.s32.totalorder %s100, %s103
      %p112 = scmp.eq.s32.totalorder %s27, 1
      %p113 = por %p111, %p112
      %p114 = scmp.ne.s32.totalorder %s103, %s104
      %p115 = scmp.eq.s32.totalorder %s27, 0
      %p116 = por %p114, %p115
      %p117 = scmp.ne.s32.totalorder %s103, %s104
      %p118 = scmp.eq.s32.totalorder %s28, 1
      %p119 = por %p117, %p118
      %p121 = scmp.ne.s32.totalorder %s104, %s120
      %p122 = scmp.eq.s32.totalorder %s28, 0
      %p123 = por %p121, %p122
      %s124 = ssub.s32 %s29, %s41
      %s125 = ssub.s32 %s30, %s37
      %s126 = sor.u32 %s124, %s125
      %p127 = scmp.eq.s32.totalorder %s126, 0
      %s129 = sadd.s32 %s128, 1
      %s130 = scalar_select %p127, %s128, %s129
      %p133 = pneg %p127
      %p134 = scmp.eq.s32.totalorder %s22, 1
      %p135 = por %p133, %p134
      %p136 = scmp.ne.s32.totalorder %s128, %s131
      %p137 = scmp.eq.s32.totalorder %s22, 0
      %p138 = por %p136, %p137
      %p139 = scmp.ne.s32.totalorder %s128, %s131
      %p140 = scmp.eq.s32.totalorder %s27, 1
      %p141 = por %p139, %p140
      %p142 = scmp.ne.s32.totalorder %s131, %s132
      %p143 = scmp.eq.s32.totalorder %s27, 0
      %p144 = por %p142, %p143
      %p145 = scmp.ne.s32.totalorder %s131, %s132
      %p146 = scmp.eq.s32.totalorder %s28, 1
      %p147 = por %p145, %p146
      %p149 = scmp.ne.s32.totalorder %s132, %s148
      %p150 = scmp.eq.s32.totalorder %s28, 0
      %p151 = por %p149, %p150
      %p152 = scmp.le.s32.totalorder 1, %s22
      %p153 = scmp.lt.s32.totalorder %s22, 3
      %p154 = pnand %p152, %p153
      %p155 = pneg %p154
      // Predicated region
      $region9: #{tpu_custom_call.1} parent=5 // pred_check
        _
      $region10: #{tpu_custom_call.1} parent=5 // pred_check_branch
        %157 = sbr.rel (%p154) target = $region12
      $region11: #{tpu_custom_call.1} parent=5 // pred_region
        %s158 = ssub.s32 %s22, 1
      $region12: #{tpu_custom_call.1} parent=5 // pred_fallthru
        _
      %p159 = scmp.lt.s32.totalorder %s22, 2
      // Predicated region
      $region13: #{tpu_custom_call.1} parent=5 // pred_check
        %p160 = pneg %p159
      $region14: #{tpu_custom_call.1} parent=5 // pred_check_branch
        %162 = sbr.rel (%p160) target = $region16
      $region15: #{tpu_custom_call.1} parent=5 // pred_region
        // Predicated region
        $region17: #{tpu_custom_call.1} parent=15 // pred_check
          %p163 = pneg %p54
        $region18: #{tpu_custom_call.1} parent=15 // pred_check_branch
          %165 = sbr.rel (%p163) target = $region20
        $region19: #{tpu_custom_call.1} parent=15 // pred_region
          %s166 = sand.u32 %s44, 1
          %s167 = scalar_lea.sflag [#allocation3], %s166
          %s168 = sand.u32 %s44, 1
          %s169 = smul.addr %s168, 8
          %s170 = scalar_lea.vmem [#allocation2], %s169
          %s172 = ssub.s32 128, 128
          %173 = vsyncadd %s167, %s172
          %s174 = smul.addr %s29, 128
          %s175 = scalar_lea.hbm %s0, %s174
          %s177 = sshll.u32 %s170, 4
          %s178 = int_to_ptr.vmem [resolvable:$true] %s177
          %180 = dma.hbm_to_vmem [thread:$0]  %s175, 128, %s178, %s167
        $region20: #{tpu_custom_call.1} parent=15 // pred_fallthru
          _
        // Predicated region
        $region21: #{tpu_custom_call.1} parent=15 // pred_check
          %p181 = pneg %p82
        $region22: #{tpu_custom_call.1} parent=15 // pred_check_branch
          %183 = sbr.rel (%p181) target = $region24
        $region23: #{tpu_custom_call.1} parent=15 // pred_region
          %s184 = sand.u32 %s72, 1
          %s185 = scalar_lea.sflag [#allocation6], %s184
          %s186 = sand.u32 %s72, 1
          %s187 = smul.addr %s186, 8
          %s188 = scalar_lea.vmem [#allocation5], %s187
          %s190 = ssub.s32 128, 128
          %191 = vsyncadd %s185, %s190
          %s192 = sadd.s32 %s30, %s29
          %s193 = smul.addr %s192, 128
          %s194 = scalar_lea.hbm %s1, %s193
          %s196 = sshll.u32 %s188, 4
          %s197 = int_to_ptr.vmem [resolvable:$true] %s196
          %199 = dma.hbm_to_vmem [thread:$0]  %s194, 128, %s197, %s185
        $region24: #{tpu_custom_call.1} parent=15 // pred_fallthru
          _
      $region16: #{tpu_custom_call.1} parent=5 // pred_fallthru
        _
      %p200 = scmp.le.s32.totalorder 1, %s22
      %p201 = scmp.lt.s32.totalorder %s22, 3
      %p202 = pnand %p200, %p201
      %p203 = pneg %p202
      // Predicated region
      $region25: #{tpu_custom_call.1} parent=5 // pred_check
        _
      $region26: #{tpu_custom_call.1} parent=5 // pred_check_branch
        %205 = sbr.rel (%p202) target = $region28
      $region27: #{tpu_custom_call.1} parent=5 // pred_region
        %s206 = ssub.s32 %s22, 1
        %s207 = sand.u32 %s47, 1
        %s208 = scalar_lea.sflag [#allocation3], %s207
        %s209 = sand.u32 %s47, 1
        %s210 = smul.addr %s209, 8
        %s211 = scalar_lea.vmem [#allocation2], %s210
        // Predicated region
        $region29: #{tpu_custom_call.1} parent=27 // pred_check
          %p212 = pneg %p60
        $region30: #{tpu_custom_call.1} parent=27 // pred_check_branch
          %214 = sbr.rel (%p212) target = $region32
        $region31: #{tpu_custom_call.1} parent=27 // pred_region
          %215 = dma.done %s208, 128
        $region32: #{tpu_custom_call.1} parent=27 // pred_fallthru
          _
        %s216 = sand.u32 %s75, 1
        %s217 = scalar_lea.sflag [#allocation6], %s216
        %s218 = sand.u32 %s75, 1
        %s219 = smul.addr %s218, 8
        %s220 = scalar_lea.vmem [#allocation5], %s219
        // Predicated region
        $region33: #{tpu_custom_call.1} parent=27 // pred_check
          %p221 = pneg %p88
        $region34: #{tpu_custom_call.1} parent=27 // pred_check_branch
          %223 = sbr.rel (%p221) target = $region36
        $region35: #{tpu_custom_call.1} parent=27 // pred_region
          %224 = dma.done %s217, 128
        $region36: #{tpu_custom_call.1} parent=27 // pred_fallthru
          _
        %s225 = sand.u32 %s47, 1
        %s226 = scalar_lea.sflag [#allocation3], %s225
        %s227 = sand.u32 %s47, 1
        %s228 = smul.addr %s227, 8
        %s229 = scalar_lea.vmem [#allocation2], %s228
        %p230 = pneg %p60
        %p231 = pneg %p57
        %s232 = sand.u32 %s75, 1
        %s233 = scalar_lea.sflag [#allocation6], %s232
        %s234 = sand.u32 %s75, 1
        %s235 = smul.addr %s234, 8
        %s236 = scalar_lea.vmem [#allocation5], %s235
        %p237 = pneg %p88
        %p238 = pneg %p85
        %p239 = pneg %p116
        %p240 = pneg %p113
        %s241 = sand.u32 %s103, 1
        %s242 = scalar_lea.sflag [#allocation4], %s241
        %s243 = sand.u32 %s103, 1
        %s244 = smul.addr %s243, 24
        %s245 = scalar_lea.vmem [#allocation7], %s244
        %p246 = pneg %p144
        %p247 = pneg %p141
        %s248 = sand.u32 %s131, 1
        %s249 = scalar_lea.sflag [#allocation9], %s248
        %s250 = sand.u32 %s131, 1
        %s251 = smul.addr %s250, 8
        %s252 = scalar_lea.vmem [#allocation8], %s251
        %v253 = vld [vmem:[%s211] sm:$0xff]
        %v254 = vld [vmem:[%s220] sm:$0xff]
        %255 = vxpose.xlu0.b32.start [1/16] %v254, 128
        %256 = vxpose.xlu0.b32.cont [2/16] 0.0, 128
        %257 = vxpose.xlu0.b32.cont [3/16] 0.0, 128
        %258 = vxpose.xlu0.b32.cont [4/16] 0.0, 128
        %259 = vxpose.xlu0.b32.cont [5/16] 0.0, 128
        %260 = vxpose.xlu0.b32.cont [6/16] 0.0, 128
        %261 = vxpose.xlu0.b32.cont [7/16] 0.0, 128
        %262 = vxpose.xlu0.b32.cont [8/16] 0.0, 128
        %263 = vxpose.xlu0.b32.cont [9/16] 0.0, 128
        %264 = vxpose.xlu0.b32.cont [10/16] 0.0, 128
        %265 = vxpose.xlu0.b32.cont [11/16] 0.0, 128
        %266 = vxpose.xlu0.b32.cont [12/16] 0.0, 128
        %267 = vxpose.xlu0.b32.cont [13/16] 0.0, 128
        %268 = vxpose.xlu0.b32.cont [14/16] 0.0, 128
        %269 = vxpose.xlu0.b32.cont [15/16] 0.0, 128
        %270 = vxpose.xlu0.b32.end [16/16] 0.0, 128
        %v271 = vpop.trf.xlu0
        %v272 = vpop.trf.xlu0
        %v273 = vpop.trf.xlu0
        %v274 = vpop.trf.xlu0
        %v275 = vpop.trf.xlu0
        %v276 = vpop.trf.xlu0
        %v277 = vpop.trf.xlu0
        %v278 = vpop.trf.xlu0
        %v279 = vpop.trf.xlu0
        %v280 = vpop.trf.xlu0
        %v281 = vpop.trf.xlu0
        %v282 = vpop.trf.xlu0
        %v283 = vpop.trf.xlu0
        %v284 = vpop.trf.xlu0
        %v285 = vpop.trf.xlu0
        %v286 = vpop.trf.xlu0
        %vm287 = vcmask 64512
        %v289 = vsel %vm287, %v271, 0
        %v292 = vsel %vm287, %v272, 0
        %v295 = vsel %vm287, %v273, 0
        %v298 = vsel %vm287, %v274, 0
        %v301 = vsel %vm287, %v275, 0
        %v304 = vsel %vm287, %v276, 0
        %v307 = vsel %vm287, %v277, 0
        %v310 = vsel %vm287, %v278, 0
        %v313 = vsel %vm287, %v279, 0
        %v316 = vsel %vm287, %v280, 0
        %v319 = vsel %vm287, %v281, 0
        %v322 = vsel %vm287, %v282, 0
        %v325 = vsel %vm287, %v283, 0
        %v328 = vsel %vm287, %v284, 0
        %v331 = vsel %vm287, %v285, 0
        %v334 = vsel %vm287, %v286, 0
        %336 = vmatprep.subr.mxu0 0.0
        %v337 = vand.u32 %v253, 4294901760
        %338 = vmatpush1.msra.mxu0 %v337
        %339 = vmatprep.subr.mxu0 0.0
        %340 = vmatpush1.msra.mxu0 0.0
        %341 = vmatprep.subr.mxu0 0.0
        %342 = vmatpush1.msra.mxu0 0.0
        %343 = vmatprep.subr.mxu0 0.0
        %344 = vmatpush1.msra.mxu0 0.0
        %345 = vmatprep.subr.mxu0 0.0
        %346 = vmatpush1.msra.mxu0 0.0
        %347 = vmatprep.subr.mxu0 0.0
        %348 = vmatpush1.msra.mxu0 0.0
        %349 = vmatprep.subr.mxu0 0.0
        %350 = vmatpush1.msra.mxu0 0.0
        %351 = vmatprep.subr.mxu0 0.0
        %352 = vmatpush1.msra.mxu0 0.0
        %353 = vmatprep.subr.mxu0 0.0
        %354 = vmatpush1.msra.mxu0 0.0
        %355 = vmatprep.subr.mxu0 0.0
        %356 = vmatpush1.msra.mxu0 0.0
        %357 = vmatprep.subr.mxu0 0.0
        %358 = vmatpush1.msra.mxu0 0.0
        %359 = vmatprep.subr.mxu0 0.0
        %360 = vmatpush1.msra.mxu0 0.0
        %361 = vmatprep.subr.mxu0 0.0
        %362 = vmatpush1.msra.mxu0 0.0
        %363 = vmatprep.subr.mxu0 0.0
        %364 = vmatpush1.msra.mxu0 0.0
        %365 = vmatprep.subr.mxu0 0.0
        %366 = vmatpush1.msra.mxu0 0.0
        %367 = vmatprep.subr.mxu0 0.0
        %368 = vmatpush1.msra.mxu0 0.0
        %369 = vmatprep.subr.mxu0 0.0
        %370 = vmatpush1.msra.mxu0 0.0
        %371 = vmatprep.subr.mxu0 0.0
        %372 = vmatpush1.msra.mxu0 0.0
        %373 = vmatprep.subr.mxu0 0.0
        %374 = vmatpush1.msra.mxu0 0.0
        %375 = vmatprep.subr.mxu0 0.0
        %376 = vmatpush1.msra.mxu0 0.0
        %377 = vmatprep.subr.mxu0 0.0
        %378 = vmatpush1.msra.mxu0 0.0
        %379 = vmatprep.subr.mxu0 0.0
        %380 = vmatpush1.msra.mxu0 0.0
        %381 = vmatprep.subr.mxu0 0.0
        %382 = vmatpush1.msra.mxu0 0.0
        %383 = vmatprep.subr.mxu0 0.0
        %384 = vmatpush1.msra.mxu0 0.0
        %385 = vmatprep.subr.mxu0 0.0
        %386 = vmatpush1.msra.mxu0 0.0
        %387 = vmatprep.subr.mxu0 0.0
        %388 = vmatpush1.msra.mxu0 0.0
        %389 = vmatprep.subr.mxu0 0.0
        %390 = vmatpush1.msra.mxu0 0.0
        %391 = vmatprep.subr.mxu0 0.0
        %392 = vmatpush1.msra.mxu0 0.0
        %393 = vmatprep.subr.mxu0 0.0
        %394 = vmatpush1.msra.mxu0 0.0
        %395 = vmatprep.subr.mxu0 0.0
        %396 = vmatpush1.msra.mxu0 0.0
        %397 = vmatprep.subr.mxu0 0.0
        %398 = vmatpush1.msra.mxu0 0.0
        %399 = vmatprep.subr.mxu0 0.0
        %400 = vmatpush1.msra.mxu0 0.0
        %401 = vmatprep.mubr.f32.mxu0 0.0
        %v402 = vand.u32 %v289, 4294901760
        %v403 = vsub.f32 %v289, %v402
        %v404 = vand.u32 %v403, 4294901760
        %v405 = vsub.f32 %v403, %v404
        %v406 = vand.u32 %v405, 4294901760
        %407 = vmatmul.mubr.f32.gmra.mrb[0].mxu0 %v406
        %v408 = vpop.f32.mrb[0].mxu0
        %v409 = vadd.f32 0.0, %v408
        %v410 = vpop.f32.mrb[0].mxu0
        %411 = vmatprep.mubr.f32.mxu0 0.0
        %v412 = vand.u32 %v292, 4294901760
        %v413 = vsub.f32 %v292, %v412
        %v414 = vand.u32 %v413, 4294901760
        %v415 = vsub.f32 %v413, %v414
        %v416 = vand.u32 %v415, 4294901760
        %417 = vmatmul.mubr.f32.gmra.mrb[0].mxu0 %v416
        %v418 = vpop.f32.mrb[0].mxu0
        %v419 = vadd.f32 0.0, %v418
        %v420 = vpop.f32.mrb[0].mxu0
        %421 = vmatprep.mubr.f32.mxu0 0.0
        %v422 = vand.u32 %v295, 4294901760
        %v423 = vsub.f32 %v295, %v422
        %v424 = vand.u32 %v423, 4294901760
        %v425 = vsub.f32 %v423, %v424
        %v426 = vand.u32 %v425, 4294901760
        %427 = vmatmul.mubr.f32.gmra.mrb[0].mxu0 %v426
        %v428 = vpop.f32.mrb[0].mxu0
        %v429 = vadd.f32 0.0, %v428
        %v430 = vpop.f32.mrb[0].mxu0
        %431 = vmatprep.mubr.f32.mxu0 0.0
        %v432 = vand.u32 %v298, 4294901760
        %v433 = vsub.f32 %v298, %v432
        %v434 = vand.u32 %v433, 4294901760
        %v435 = vsub.f32 %v433, %v434
        %v436 = vand.u32 %v435, 4294901760
        %437 = vmatmul.mubr.f32.gmra.mrb[0].mxu0 %v436
        %v438 = vpop.f32.mrb[0].mxu0
        %v439 = vadd.f32 0.0, %v438
        %v440 = vpop.f32.mrb[0].mxu0
        %441 = vmatprep.mubr.f32.mxu0 0.0
        %v442 = vand.u32 %v301, 4294901760
        %v443 = vsub.f32 %v301, %v442
        %v444 = vand.u32 %v443, 4294901760
        %v445 = vsub.f32 %v443, %v444
        %v446 = vand.u32 %v445, 4294901760
        %447 = vmatmul.mubr.f32.gmra.mrb[0].mxu0 %v446
        %v448 = vpop.f32.mrb[0].mxu0
        %v449 = vadd.f32 0.0, %v448
        %v450 = vpop.f32.mrb[0].mxu0
        %451 = vmatprep.mubr.f32.mxu0 0.0
        %v452 = vand.u32 %v304, 4294901760
        %v453 = vsub.f32 %v304, %v452
        %v454 = vand.u32 %v453, 4294901760
        %v455 = vsub.f32 %v453, %v454
        %v456 = vand.u32 %v455, 4294901760
        %457 = vmatmul.mubr.f32.gmra.mrb[0].mxu0 %v456
        %v458 = vpop.f32.mrb[0].mxu0
        %v459 = vadd.f32 0.0, %v458
        %v460 = vpop.f32.mrb[0].mxu0
        %461 = vmatprep.mubr.f32.mxu0 0.0
        %v462 = vand.u32 %v307, 4294901760
        %v463 = vsub.f32 %v307, %v462
        %v464 = vand.u32 %v463, 4294901760
        %v465 = vsub.f32 %v463, %v464
        %v466 = vand.u32 %v465, 4294901760
        %467 = vmatmul.mubr.f32.gmra.mrb[0].mxu0 %v466
        %v468 = vpop.f32.mrb[0].mxu0
        %v469 = vadd.f32 0.0, %v468
        %v470 = vpop.f32.mrb[0].mxu0
        %471 = vmatprep.mubr.f32.mxu0 0.0
        %v472 = vand.u32 %v310, 4294901760
        %v473 = vsub.f32 %v310, %v472
        %v474 = vand.u32 %v473, 4294901760
        %v475 = vsub.f32 %v473, %v474
        %v476 = vand.u32 %v475, 4294901760
        %477 = vmatmul.mubr.f32.gmra.mrb[0].mxu0 %v476
        %v478 = vpop.f32.mrb[0].mxu0
        %v479 = vadd.f32 0.0, %v478
        %v480 = vpop.f32.mrb[0].mxu0
        %481 = vmatprep.mubr.f32.mxu0 0.0
        %v482 = vand.u32 %v313, 4294901760
        %v483 = vsub.f32 %v313, %v482
        %v484 = vand.u32 %v483, 4294901760
        %v485 = vsub.f32 %v483, %v484
        %v486 = vand.u32 %v485, 4294901760
        %487 = vmatmul.mubr.f32.gmra.mrb[0].mxu0 %v486
        %v488 = vpop.f32.mrb[0].mxu0
        %v489 = vadd.f32 0.0, %v488
        %v490 = vpop.f32.mrb[0].mxu0
        %491 = vmatprep.mubr.f32.mxu0 0.0
        %v492 = vand.u32 %v316, 4294901760
        %v493 = vsub.f32 %v316, %v492
        %v494 = vand.u32 %v493, 4294901760
        %v495 = vsub.f32 %v493, %v494
        %v496 = vand.u32 %v495, 4294901760
        %497 = vmatmul.mubr.f32.gmra.mrb[0].mxu0 %v496
        %v498 = vpop.f32.mrb[0].mxu0
        %v499 = vadd.f32 0.0, %v498
        %v500 = vpop.f32.mrb[0].mxu0
        %501 = vmatprep.mubr.f32.mxu0 0.0
        %v502 = vand.u32 %v319, 4294901760
        %v503 = vsub.f32 %v319, %v502
        %v504 = vand.u32 %v503, 4294901760
        %v505 = vsub.f32 %v503, %v504
        %v506 = vand.u32 %v505, 4294901760
        %507 = vmatmul.mubr.f32.gmra.mrb[0].mxu0 %v506
        %v508 = vpop.f32.mrb[0].mxu0
        %v509 = vadd.f32 0.0, %v508
        %v510 = vpop.f32.mrb[0].mxu0
        %511 = vmatprep.mubr.f32.mxu0 0.0
        %v512 = vand.u32 %v322, 4294901760
        %v513 = vsub.f32 %v322, %v512
        %v514 = vand.u32 %v513, 4294901760
        %v515 = vsub.f32 %v513, %v514
        %v516 = vand.u32 %v515, 4294901760
        %517 = vmatmul.mubr.f32.gmra.mrb[0].mxu0 %v516
        %v518 = vpop.f32.mrb[0].mxu0
        %v519 = vadd.f32 0.0, %v518
        %v520 = vpop.f32.mrb[0].mxu0
        %521 = vmatprep.mubr.f32.mxu0 0.0
        %v522 = vand.u32 %v325, 4294901760
        %v523 = vsub.f32 %v325, %v522
        %v524 = vand.u32 %v523, 4294901760
        %v525 = vsub.f32 %v523, %v524
        %v526 = vand.u32 %v525, 4294901760
        %527 = vmatmul.mubr.f32.gmra.mrb[0].mxu0 %v526
        %v528 = vpop.f32.mrb[0].mxu0
        %v529 = vadd.f32 0.0, %v528
        %v530 = vpop.f32.mrb[0].mxu0
        %531 = vmatprep.mubr.f32.mxu0 0.0
        %v532 = vand.u32 %v328, 4294901760
        %v533 = vsub.f32 %v328, %v532
        %v534 = vand.u32 %v533, 4294901760
        %v535 = vsub.f32 %v533, %v534
        %v536 = vand.u32 %v535, 4294901760
        %537 = vmatmul.mubr.f32.gmra.mrb[0].mxu0 %v536
        %v538 = vpop.f32.mrb[0].mxu0
        %v539 = vadd.f32 0.0, %v538
        %v540 = vpop.f32.mrb[0].mxu0
        %541 = vmatprep.mubr.f32.mxu0 0.0
        %v542 = vand.u32 %v331, 4294901760
        %v543 = vsub.f32 %v331, %v542
        %v544 = vand.u32 %v543, 4294901760
        %v545 = vsub.f32 %v543, %v544
        %v546 = vand.u32 %v545, 4294901760
        %547 = vmatmul.mubr.f32.gmra.mrb[0].mxu0 %v546
        %v548 = vpop.f32.mrb[0].mxu0
        %v549 = vadd.f32 0.0, %v548
        %v550 = vpop.f32.mrb[0].mxu0
        %551 = vmatprep.mubr.f32.mxu0 0.0
        %v552 = vand.u32 %v334, 4294901760
        %v553 = vsub.f32 %v334, %v552
        %v554 = vand.u32 %v553, 4294901760
        %v555 = vsub.f32 %v553, %v554
        %v556 = vand.u32 %v555, 4294901760
        %557 = vmatmul.mubr.f32.gmra.mrb[0].mxu0 %v556
        %v558 = vpop.f32.mrb[0].mxu0
        %v559 = vadd.f32 0.0, %v558
        %v560 = vpop.f32.mrb[0].mxu0
        %561 = vdwg.mxu0
        %562 = vmatprep.subr.mxu0 0.0
        %v563 = vand.u32 %v253, 4294901760
        %v564 = vsub.f32 %v253, %v563
        %v565 = vand.u32 %v564, 4294901760
        %v566 = vsub.f32 %v564, %v565
        %v567 = vand.u32 %v566, 4294901760
        %568 = vmatpush1.msra.mxu0 %v567
        %569 = vmatprep.subr.mxu0 0.0
        %570 = vmatpush1.msra.mxu0 0.0
        %571 = vmatprep.subr.mxu0 0.0
        %572 = vmatpush1.msra.mxu0 0.0
        %573 = vmatprep.subr.mxu0 0.0
        %574 = vmatpush1.msra.mxu0 0.0
        %575 = vmatprep.subr.mxu0 0.0
        %576 = vmatpush1.msra.mxu0 0.0
        %577 = vmatprep.subr.mxu0 0.0
        %578 = vmatpush1.msra.mxu0 0.0
        %579 = vmatprep.subr.mxu0 0.0
        %580 = vmatpush1.msra.mxu0 0.0
        %581 = vmatprep.subr.mxu0 0.0
        %582 = vmatpush1.msra.mxu0 0.0
        %583 = vmatprep.subr.mxu0 0.0
        %584 = vmatpush1.msra.mxu0 0.0
        %585 = vmatprep.subr.mxu0 0.0
        %586 = vmatpush1.msra.mxu0 0.0
        %587 = vmatprep.subr.mxu0 0.0
        %588 = vmatpush1.msra.mxu0 0.0
        %589 = vmatprep.subr.mxu0 0.0
        %590 = vmatpush1.msra.mxu0 0.0
        %591 = vmatprep.subr.mxu0 0.0
        %592 = vmatpush1.msra.mxu0 0.0
        %593 = vmatprep.subr.mxu0 0.0
        %594 = vmatpush1.msra.mxu0 0.0
        %595 = vmatprep.subr.mxu0 0.0
        %596 = vmatpush1.msra.mxu0 0.0
        %597 = vmatprep.subr.mxu0 0.0
        %598 = vmatpush1.msra.mxu0 0.0
        %599 = vmatprep.subr.mxu0 0.0
        %600 = vmatpush1.msra.mxu0 0.0
        %601 = vmatprep.subr.mxu0 0.0
        %602 = vmatpush1.msra.mxu0 0.0
        %603 = vmatprep.subr.mxu0 0.0
        %604 = vmatpush1.msra.mxu0 0.0
        %605 = vmatprep.subr.mxu0 0.0
        %606 = vmatpush1.msra.mxu0 0.0
        %607 = vmatprep.subr.mxu0 0.0
        %608 = vmatpush1.msra.mxu0 0.0
        %609 = vmatprep.subr.mxu0 0.0
        %610 = vmatpush1.msra.mxu0 0.0
        %611 = vmatprep.subr.mxu0 0.0
        %612 = vmatpush1.msra.mxu0 0.0
        %613 = vmatprep.subr.mxu0 0.0
        %614 = vmatpush1.msra.mxu0 0.0
        %615 = vmatprep.subr.mxu0 0.0
        %616 = vmatpush1.msra.mxu0 0.0
        %617 = vmatprep.subr.mxu0 0.0
        %618 = vmatpush1.msra.mxu0 0.0
        %619 = vmatprep.subr.mxu0 0.0
        %620 = vmatpush1.msra.mxu0 0.0
        %621 = vmatprep.subr.mxu0 0.0
        %622 = vmatpush1.msra.mxu0 0.0
        %623 = vmatprep.subr.mxu0 0.0
        %624 = vmatpush1.msra.mxu0 0.0
        %625 = vmatprep.subr.mxu0 0.0
        %626 = vmatpush1.msra.mxu0 0.0
        %627 = vmatprep.subr.mxu0 0.0
        %628 = vmatpush1.msra.mxu0 0.0
        %629 = vmatprep.subr.mxu0 0.0
        %630 = vmatpush1.msra.mxu0 0.0
        %631 = vmatprep.mubr.f32.mxu0 0.0
        %v632 = vand.u32 %v289, 4294901760
        %633 = vmatmul.mubr.f32.gmra.mrb[0].mxu0 %v632
        %v634 = vpop.f32.mrb[0].mxu0
        %v635 = vadd.f32 %v409, %v634
        %v636 = vpop.f32.mrb[0].mxu0
        %637 = vmatprep.mubr.f32.mxu0 0.0
        %v638 = vand.u32 %v292, 4294901760
        %639 = vmatmul.mubr.f32.gmra.mrb[0].mxu0 %v638
        %v640 = vpop.f32.mrb[0].mxu0
        %v641 = vadd.f32 %v419, %v640
        %v642 = vpop.f32.mrb[0].mxu0
        %643 = vmatprep.mubr.f32.mxu0 0.0
        %v644 = vand.u32 %v295, 4294901760
        %645 = vmatmul.mubr.f32.gmra.mrb[0].mxu0 %v644
        %v646 = vpop.f32.mrb[0].mxu0
        %v647 = vadd.f32 %v429, %v646
        %v648 = vpop.f32.mrb[0].mxu0
        %649 = vmatprep.mubr.f32.mxu0 0.0
        %v650 = vand.u32 %v298, 4294901760
        %651 = vmatmul.mubr.f32.gmra.mrb[0].mxu0 %v650
        %v652 = vpop.f32.mrb[0].mxu0
        %v653 = vadd.f32 %v439, %v652
        %v654 = vpop.f32.mrb[0].mxu0
        %655 = vmatprep.mubr.f32.mxu0 0.0
        %v656 = vand.u32 %v301, 4294901760
        %657 = vmatmul.mubr.f32.gmra.mrb[0].mxu0 %v656
        %v658 = vpop.f32.mrb[0].mxu0
        %v659 = vadd.f32 %v449, %v658
        %v660 = vpop.f32.mrb[0].mxu0
        %661 = vmatprep.mubr.f32.mxu0 0.0
        %v662 = vand.u32 %v304, 4294901760
        %663 = vmatmul.mubr.f32.gmra.mrb[0].mxu0 %v662
        %v664 = vpop.f32.mrb[0].mxu0
        %v665 = vadd.f32 %v459, %v664
        %v666 = vpop.f32.mrb[0].mxu0
        %667 = vmatprep.mubr.f32.mxu0 0.0
        %v668 = vand.u32 %v307, 4294901760
        %669 = vmatmul.mubr.f32.gmra.mrb[0].mxu0 %v668
        %v670 = vpop.f32.mrb[0].mxu0
        %v671 = vadd.f32 %v469, %v670
        %v672 = vpop.f32.mrb[0].mxu0
        %673 = vmatprep.mubr.f32.mxu0 0.0
        %v674 = vand.u32 %v310, 4294901760
        %675 = vmatmul.mubr.f32.gmra.mrb[0].mxu0 %v674
        %v676 = vpop.f32.mrb[0].mxu0
        %v677 = vadd.f32 %v479, %v676
        %v678 = vpop.f32.mrb[0].mxu0
        %679 = vmatprep.mubr.f32.mxu0 0.0
        %v680 = vand.u32 %v313, 4294901760
        %681 = vmatmul.mubr.f32.gmra.mrb[0].mxu0 %v680
        %v682 = vpop.f32.mrb[0].mxu0
        %v683 = vadd.f32 %v489, %v682
        %v684 = vpop.f32.mrb[0].mxu0
        %685 = vmatprep.mubr.f32.mxu0 0.0
        %v686 = vand.u32 %v316, 4294901760
        %687 = vmatmul.mubr.f32.gmra.mrb[0].mxu0 %v686
        %v688 = vpop.f32.mrb[0].mxu0
        %v689 = vadd.f32 %v499, %v688
        %v690 = vpop.f32.mrb[0].mxu0
        %691 = vmatprep.mubr.f32.mxu0 0.0
        %v692 = vand.u32 %v319, 4294901760
        %693 = vmatmul.mubr.f32.gmra.mrb[0].mxu0 %v692
        %v694 = vpop.f32.mrb[0].mxu0
        %v695 = vadd.f32 %v509, %v694
        %v696 = vpop.f32.mrb[0].mxu0
        %697 = vmatprep.mubr.f32.mxu0 0.0
        %v698 = vand.u32 %v322, 4294901760
        %699 = vmatmul.mubr.f32.gmra.mrb[0].mxu0 %v698
        %v700 = vpop.f32.mrb[0].mxu0
        %v701 = vadd.f32 %v519, %v700
        %v702 = vpop.f32.mrb[0].mxu0
        %703 = vmatprep.mubr.f32.mxu0 0.0
        %v704 = vand.u32 %v325, 4294901760
        %705 = vmatmul.mubr.f32.gmra.mrb[0].mxu0 %v704
        %v706 = vpop.f32.mrb[0].mxu0
        %v707 = vadd.f32 %v529, %v706
        %v708 = vpop.f32.mrb[0].mxu0
        %709 = vmatprep.mubr.f32.mxu0 0.0
        %v710 = vand.u32 %v328, 4294901760
        %711 = vmatmul.mubr.f32.gmra.mrb[0].mxu0 %v710
        %v712 = vpop.f32.mrb[0].mxu0
        %v713 = vadd.f32 %v539, %v712
        %v714 = vpop.f32.mrb[0].mxu0
        %715 = vmatprep.mubr.f32.mxu0 0.0
        %v716 = vand.u32 %v331, 4294901760
        %717 = vmatmul.mubr.f32.gmra.mrb[0].mxu0 %v716
        %v718 = vpop.f32.mrb[0].mxu0
        %v719 = vadd.f32 %v549, %v718
        %v720 = vpop.f32.mrb[0].mxu0
        %721 = vmatprep.mubr.f32.mxu0 0.0
        %v722 = vand.u32 %v334, 4294901760
        %723 = vmatmul.mubr.f32.gmra.mrb[0].mxu0 %v722
        %v724 = vpop.f32.mrb[0].mxu0
        %v725 = vadd.f32 %v559, %v724
        %v726 = vpop.f32.mrb[0].mxu0
        %727 = vdwg.mxu0
        %728 = vmatprep.subr.mxu0 0.0
        %v729 = vand.u32 %v253, 4294901760
        %v730 = vsub.f32 %v253, %v729
        %731 = vmatpush1.msra.mxu0 %v730
        %732 = vmatprep.subr.mxu0 0.0
        %733 = vmatpush1.msra.mxu0 0.0
        %734 = vmatprep.subr.mxu0 0.0
        %735 = vmatpush1.msra.mxu0 0.0
        %736 = vmatprep.subr.mxu0 0.0
        %737 = vmatpush1.msra.mxu0 0.0
        %738 = vmatprep.subr.mxu0 0.0
        %739 = vmatpush1.msra.mxu0 0.0
        %740 = vmatprep.subr.mxu0 0.0
        %741 = vmatpush1.msra.mxu0 0.0
        %742 = vmatprep.subr.mxu0 0.0
        %743 = vmatpush1.msra.mxu0 0.0
        %744 = vmatprep.subr.mxu0 0.0
        %745 = vmatpush1.msra.mxu0 0.0
        %746 = vmatprep.subr.mxu0 0.0
        %747 = vmatpush1.msra.mxu0 0.0
        %748 = vmatprep.subr.mxu0 0.0
        %749 = vmatpush1.msra.mxu0 0.0
        %750 = vmatprep.subr.mxu0 0.0
        %751 = vmatpush1.msra.mxu0 0.0
        %752 = vmatprep.subr.mxu0 0.0
        %753 = vmatpush1.msra.mxu0 0.0
        %754 = vmatprep.subr.mxu0 0.0
        %755 = vmatpush1.msra.mxu0 0.0
        %756 = vmatprep.subr.mxu0 0.0
        %757 = vmatpush1.msra.mxu0 0.0
        %758 = vmatprep.subr.mxu0 0.0
        %759 = vmatpush1.msra.mxu0 0.0
        %760 = vmatprep.subr.mxu0 0.0
        %761 = vmatpush1.msra.mxu0 0.0
        %762 = vmatprep.subr.mxu0 0.0
        %763 = vmatpush1.msra.mxu0 0.0
        %764 = vmatprep.subr.mxu0 0.0
        %765 = vmatpush1.msra.mxu0 0.0
        %766 = vmatprep.subr.mxu0 0.0
        %767 = vmatpush1.msra.mxu0 0.0
        %768 = vmatprep.subr.mxu0 0.0
        %769 = vmatpush1.msra.mxu0 0.0
        %770 = vmatprep.subr.mxu0 0.0
        %771 = vmatpush1.msra.mxu0 0.0
        %772 = vmatprep.subr.mxu0 0.0
        %773 = vmatpush1.msra.mxu0 0.0
        %774 = vmatprep.subr.mxu0 0.0
        %775 = vmatpush1.msra.mxu0 0.0
        %776 = vmatprep.subr.mxu0 0.0
        %777 = vmatpush1.msra.mxu0 0.0
        %778 = vmatprep.subr.mxu0 0.0
        %779 = vmatpush1.msra.mxu0 0.0
        %780 = vmatprep.subr.mxu0 0.0
        %781 = vmatpush1.msra.mxu0 0.0
        %782 = vmatprep.subr.mxu0 0.0
        %783 = vmatpush1.msra.mxu0 0.0
        %784 = vmatprep.subr.mxu0 0.0
        %785 = vmatpush1.msra.mxu0 0.0
        %786 = vmatprep.subr.mxu0 0.0
        %787 = vmatpush1.msra.mxu0 0.0
        %788 = vmatprep.subr.mxu0 0.0
        %789 = vmatpush1.msra.mxu0 0.0
        %790 = vmatprep.subr.mxu0 0.0
        %791 = vmatpush1.msra.mxu0 0.0
        %792 = vmatprep.subr.mxu0 0.0
        %793 = vmatpush1.msra.mxu0 0.0
        %794 = vmatprep.mubr.f32.mxu0 0.0
        %v795 = vand.u32 %v289, 4294901760
        %v796 = vsub.f32 %v289, %v795
        %797 = vmatmul.mubr.f32.gmra.mrb[0].mxu0 %v796
        %v798 = vpop.f32.mrb[0].mxu0
        %v799 = vadd.f32 %v635, %v798
        %v800 = vpop.f32.mrb[0].mxu0
        %801 = vmatprep.mubr.f32.mxu0 0.0
        %v802 = vand.u32 %v292, 4294901760
        %v803 = vsub.f32 %v292, %v802
        %804 = vmatmul.mubr.f32.gmra.mrb[0].mxu0 %v803
        %v805 = vpop.f32.mrb[0].mxu0
        %v806 = vadd.f32 %v641, %v805
        %v807 = vpop.f32.mrb[0].mxu0
        %808 = vmatprep.mubr.f32.mxu0 0.0
        %v809 = vand.u32 %v295, 4294901760
        %v810 = vsub.f32 %v295, %v809
        %811 = vmatmul.mubr.f32.gmra.mrb[0].mxu0 %v810
        %v812 = vpop.f32.mrb[0].mxu0
        %v813 = vadd.f32 %v647, %v812
        %v814 = vpop.f32.mrb[0].mxu0
        %815 = vmatprep.mubr.f32.mxu0 0.0
        %v816 = vand.u32 %v298, 4294901760
        %v817 = vsub.f32 %v298, %v816
        %818 = vmatmul.mubr.f32.gmra.mrb[0].mxu0 %v817
        %v819 = vpop.f32.mrb[0].mxu0
        %v820 = vadd.f32 %v653, %v819
        %v821 = vpop.f32.mrb[0].mxu0
        %822 = vmatprep.mubr.f32.mxu0 0.0
        %v823 = vand.u32 %v301, 4294901760
        %v824 = vsub.f32 %v301, %v823
        %825 = vmatmul.mubr.f32.gmra.mrb[0].mxu0 %v824
        %v826 = vpop.f32.mrb[0].mxu0
        %v827 = vadd.f32 %v659, %v826
        %v828 = vpop.f32.mrb[0].mxu0
        %829 = vmatprep.mubr.f32.mxu0 0.0
        %v830 = vand.u32 %v304, 4294901760
        %v831 = vsub.f32 %v304, %v830
        %832 = vmatmul.mubr.f32.gmra.mrb[0].mxu0 %v831
        %v833 = vpop.f32.mrb[0].mxu0
        %v834 = vadd.f32 %v665, %v833
        %v835 = vpop.f32.mrb[0].mxu0
        %836 = vmatprep.mubr.f32.mxu0 0.0
        %v837 = vand.u32 %v307, 4294901760
        %v838 = vsub.f32 %v307, %v837
        %839 = vmatmul.mubr.f32.gmra.mrb[0].mxu0 %v838
        %v840 = vpop.f32.mrb[0].mxu0
        %v841 = vadd.f32 %v671, %v840
        %v842 = vpop.f32.mrb[0].mxu0
        %843 = vmatprep.mubr.f32.mxu0 0.0
        %v844 = vand.u32 %v310, 4294901760
        %v845 = vsub.f32 %v310, %v844
        %846 = vmatmul.mubr.f32.gmra.mrb[0].mxu0 %v845
        %v847 = vpop.f32.mrb[0].mxu0
        %v848 = vadd.f32 %v677, %v847
        %v849 = vpop.f32.mrb[0].mxu0
        %850 = vmatprep.mubr.f32.mxu0 0.0
        %v851 = vand.u32 %v313, 4294901760
        %v852 = vsub.f32 %v313, %v851
        %853 = vmatmul.mubr.f32.gmra.mrb[0].mxu0 %v852
        %v854 = vpop.f32.mrb[0].mxu0
        %v855 = vadd.f32 %v683, %v854
        %v856 = vpop.f32.mrb[0].mxu0
        %857 = vmatprep.mubr.f32.mxu0 0.0
        %v858 = vand.u32 %v316, 4294901760
        %v859 = vsub.f32 %v316, %v858
        %860 = vmatmul.mubr.f32.gmra.mrb[0].mxu0 %v859
        %v861 = vpop.f32.mrb[0].mxu0
        %v862 = vadd.f32 %v689, %v861
        %v863 = vpop.f32.mrb[0].mxu0
        %864 = vmatprep.mubr.f32.mxu0 0.0
        %v865 = vand.u32 %v319, 4294901760
        %v866 = vsub.f32 %v319, %v865
        %867 = vmatmul.mubr.f32.gmra.mrb[0].mxu0 %v866
        %v868 = vpop.f32.mrb[0].mxu0
        %v869 = vadd.f32 %v695, %v868
        %v870 = vpop.f32.mrb[0].mxu0
        %871 = vmatprep.mubr.f32.mxu0 0.0
        %v872 = vand.u32 %v322, 4294901760
        %v873 = vsub.f32 %v322, %v872
        %874 = vmatmul.mubr.f32.gmra.mrb[0].mxu0 %v873
        %v875 = vpop.f32.mrb[0].mxu0
        %v876 = vadd.f32 %v701, %v875
        %v877 = vpop.f32.mrb[0].mxu0
        %878 = vmatprep.mubr.f32.mxu0 0.0
        %v879 = vand.u32 %v325, 4294901760
        %v880 = vsub.f32 %v325, %v879
        %881 = vmatmul.mubr.f32.gmra.mrb[0].mxu0 %v880
        %v882 = vpop.f32.mrb[0].mxu0
        %v883 = vadd.f32 %v707, %v882
        %v884 = vpop.f32.mrb[0].mxu0
        %885 = vmatprep.mubr.f32.mxu0 0.0
        %v886 = vand.u32 %v328, 4294901760
        %v887 = vsub.f32 %v328, %v886
        %888 = vmatmul.mubr.f32.gmra.mrb[0].mxu0 %v887
        %v889 = vpop.f32.mrb[0].mxu0
        %v890 = vadd.f32 %v713, %v889
        %v891 = vpop.f32.mrb[0].mxu0
        %892 = vmatprep.mubr.f32.mxu0 0.0
        %v893 = vand.u32 %v331, 4294901760
        %v894 = vsub.f32 %v331, %v893
        %895 = vmatmul.mubr.f32.gmra.mrb[0].mxu0 %v894
        %v896 = vpop.f32.mrb[0].mxu0
        %v897 = vadd.f32 %v719, %v896
        %v898 = vpop.f32.mrb[0].mxu0
        %899 = vmatprep.mubr.f32.mxu0 0.0
        %v900 = vand.u32 %v334, 4294901760
        %v901 = vsub.f32 %v334, %v900
        %902 = vmatmul.mubr.f32.gmra.mrb[0].mxu0 %v901
        %v903 = vpop.f32.mrb[0].mxu0
        %v904 = vadd.f32 %v725, %v903
        %v905 = vpop.f32.mrb[0].mxu0
        %906 = vdwg.mxu0
        %907 = vmatprep.subr.mxu0 0.0
        %v908 = vand.u32 %v253, 4294901760
        %909 = vmatpush1.msra.mxu0 %v908
        %910 = vmatprep.subr.mxu0 0.0
        %911 = vmatpush1.msra.mxu0 0.0
        %912 = vmatprep.subr.mxu0 0.0
        %913 = vmatpush1.msra.mxu0 0.0
        %914 = vmatprep.subr.mxu0 0.0
        %915 = vmatpush1.msra.mxu0 0.0
        %916 = vmatprep.subr.mxu0 0.0
        %917 = vmatpush1.msra.mxu0 0.0
        %918 = vmatprep.subr.mxu0 0.0
        %919 = vmatpush1.msra.mxu0 0.0
        %920 = vmatprep.subr.mxu0 0.0
        %921 = vmatpush1.msra.mxu0 0.0
        %922 = vmatprep.subr.mxu0 0.0
        %923 = vmatpush1.msra.mxu0 0.0
        %924 = vmatprep.subr.mxu0 0.0
        %925 = vmatpush1.msra.mxu0 0.0
        %926 = vmatprep.subr.mxu0 0.0
        %927 = vmatpush1.msra.mxu0 0.0
        %928 = vmatprep.subr.mxu0 0.0
        %929 = vmatpush1.msra.mxu0 0.0
        %930 = vmatprep.subr.mxu0 0.0
        %931 = vmatpush1.msra.mxu0 0.0
        %932 = vmatprep.subr.mxu0 0.0
        %933 = vmatpush1.msra.mxu0 0.0
        %934 = vmatprep.subr.mxu0 0.0
        %935 = vmatpush1.msra.mxu0 0.0
        %936 = vmatprep.subr.mxu0 0.0
        %937 = vmatpush1.msra.mxu0 0.0
        %938 = vmatprep.subr.mxu0 0.0
        %939 = vmatpush1.msra.mxu0 0.0
        %940 = vmatprep.subr.mxu0 0.0
        %941 = vmatpush1.msra.mxu0 0.0
        %942 = vmatprep.subr.mxu0 0.0
        %943 = vmatpush1.msra.mxu0 0.0
        %944 = vmatprep.subr.mxu0 0.0
        %945 = vmatpush1.msra.mxu0 0.0
        %946 = vmatprep.subr.mxu0 0.0
        %947 = vmatpush1.msra.mxu0 0.0
        %948 = vmatprep.subr.mxu0 0.0
        %949 = vmatpush1.msra.mxu0 0.0
        %950 = vmatprep.subr.mxu0 0.0
        %951 = vmatpush1.msra.mxu0 0.0
        %952 = vmatprep.subr.mxu0 0.0
        %953 = vmatpush1.msra.mxu0 0.0
        %954 = vmatprep.subr.mxu0 0.0
        %955 = vmatpush1.msra.mxu0 0.0
        %956 = vmatprep.subr.mxu0 0.0
        %957 = vmatpush1.msra.mxu0 0.0
        %958 = vmatprep.subr.mxu0 0.0
        %959 = vmatpush1.msra.mxu0 0.0
        %960 = vmatprep.subr.mxu0 0.0
        %961 = vmatpush1.msra.mxu0 0.0
        %962 = vmatprep.subr.mxu0 0.0
        %963 = vmatpush1.msra.mxu0 0.0
        %964 = vmatprep.subr.mxu0 0.0
        %965 = vmatpush1.msra.mxu0 0.0
        %966 = vmatprep.subr.mxu0 0.0
        %967 = vmatpush1.msra.mxu0 0.0
        %968 = vmatprep.subr.mxu0 0.0
        %969 = vmatpush1.msra.mxu0 0.0
        %970 = vmatprep.subr.mxu0 0.0
        %971 = vmatpush1.msra.mxu0 0.0
        %972 = vmatprep.mubr.f32.mxu0 0.0
        %v973 = vand.u32 %v289, 4294901760
        %v974 = vsub.f32 %v289, %v973
        %v975 = vand.u32 %v974, 4294901760
        %976 = vmatmul.mubr.f32.gmra.mrb[0].mxu0 %v975
        %v977 = vpop.f32.mrb[0].mxu0
        %v978 = vadd.f32 %v799, %v977
        %v979 = vpop.f32.mrb[0].mxu0
        %980 = vmatprep.mubr.f32.mxu0 0.0
        %v981 = vand.u32 %v292, 4294901760
        %v982 = vsub.f32 %v292, %v981
        %v983 = vand.u32 %v982, 4294901760
        %984 = vmatmul.mubr.f32.gmra.mrb[0].mxu0 %v983
        %v985 = vpop.f32.mrb[0].mxu0
        %v986 = vadd.f32 %v806, %v985
        %v987 = vpop.f32.mrb[0].mxu0
        %988 = vmatprep.mubr.f32.mxu0 0.0
        %v989 = vand.u32 %v295, 4294901760
        %v990 = vsub.f32 %v295, %v989
        %v991 = vand.u32 %v990, 4294901760
        %992 = vmatmul.mubr.f32.gmra.mrb[0].mxu0 %v991
        %v993 = vpop.f32.mrb[0].mxu0
        %v994 = vadd.f32 %v813, %v993
        %v995 = vpop.f32.mrb[0].mxu0
        %996 = vmatprep.mubr.f32.mxu0 0.0
        %v997 = vand.u32 %v298, 4294901760
        %v998 = vsub.f32 %v298, %v997
        %v999 = vand.u32 %v998, 4294901760
        %1000 = vmatmul.mubr.f32.gmra.mrb[0].mxu0 %v999
        %v1001 = vpop.f32.mrb[0].mxu0
        %v1002 = vadd.f32 %v820, %v1001
        %v1003 = vpop.f32.mrb[0].mxu0
        %1004 = vmatprep.mubr.f32.mxu0 0.0
        %v1005 = vand.u32 %v301, 4294901760
        %v1006 = vsub.f32 %v301, %v1005
        %v1007 = vand.u32 %v1006, 4294901760
        %1008 = vmatmul.mubr.f32.gmra.mrb[0].mxu0 %v1007
        %v1009 = vpop.f32.mrb[0].mxu0
        %v1010 = vadd.f32 %v827, %v1009
        %v1011 = vpop.f32.mrb[0].mxu0
        %1012 = vmatprep.mubr.f32.mxu0 0.0
        %v1013 = vand.u32 %v304, 4294901760
        %v1014 = vsub.f32 %v304, %v1013
        %v1015 = vand.u32 %v1014, 4294901760
        %1016 = vmatmul.mubr.f32.gmra.mrb[0].mxu0 %v1015
        %v1017 = vpop.f32.mrb[0].mxu0
        %v1018 = vadd.f32 %v834, %v1017
        %v1019 = vpop.f32.mrb[0].mxu0
        %1020 = vmatprep.mubr.f32.mxu0 0.0
        %v1021 = vand.u32 %v307, 4294901760
        %v1022 = vsub.f32 %v307, %v1021
        %v1023 = vand.u32 %v1022, 4294901760
        %1024 = vmatmul.mubr.f32.gmra.mrb[0].mxu0 %v1023
        %v1025 = vpop.f32.mrb[0].mxu0
        %v1026 = vadd.f32 %v841, %v1025
        %v1027 = vpop.f32.mrb[0].mxu0
        %1028 = vmatprep.mubr.f32.mxu0 0.0
        %v1029 = vand.u32 %v310, 4294901760
        %v1030 = vsub.f32 %v310, %v1029
        %v1031 = vand.u32 %v1030, 4294901760
        %1032 = vmatmul.mubr.f32.gmra.mrb[0].mxu0 %v1031
        %v1033 = vpop.f32.mrb[0].mxu0
        %v1034 = vadd.f32 %v848, %v1033
        %v1035 = vpop.f32.mrb[0].mxu0
        %1036 = vmatprep.mubr.f32.mxu0 0.0
        %v1037 = vand.u32 %v313, 4294901760
        %v1038 = vsub.f32 %v313, %v1037
        %v1039 = vand.u32 %v1038, 4294901760
        %1040 = vmatmul.mubr.f32.gmra.mrb[0].mxu0 %v1039
        %v1041 = vpop.f32.mrb[0].mxu0
        %v1042 = vadd.f32 %v855, %v1041
        %v1043 = vpop.f32.mrb[0].mxu0
        %1044 = vmatprep.mubr.f32.mxu0 0.0
        %v1045 = vand.u32 %v316, 4294901760
        %v1046 = vsub.f32 %v316, %v1045
        %v1047 = vand.u32 %v1046, 4294901760
        %1048 = vmatmul.mubr.f32.gmra.mrb[0].mxu0 %v1047
        %v1049 = vpop.f32.mrb[0].mxu0
        %v1050 = vadd.f32 %v862, %v1049
        %v1051 = vpop.f32.mrb[0].mxu0
        %1052 = vmatprep.mubr.f32.mxu0 0.0
        %v1053 = vand.u32 %v319, 4294901760
        %v1054 = vsub.f32 %v319, %v1053
        %v1055 = vand.u32 %v1054, 4294901760
        %1056 = vmatmul.mubr.f32.gmra.mrb[0].mxu0 %v1055
        %v1057 = vpop.f32.mrb[0].mxu0
        %v1058 = vadd.f32 %v869, %v1057
        %v1059 = vpop.f32.mrb[0].mxu0
        %1060 = vmatprep.mubr.f32.mxu0 0.0
        %v1061 = vand.u32 %v322, 4294901760
        %v1062 = vsub.f32 %v322, %v1061
        %v1063 = vand.u32 %v1062, 4294901760
        %1064 = vmatmul.mubr.f32.gmra.mrb[0].mxu0 %v1063
        %v1065 = vpop.f32.mrb[0].mxu0
        %v1066 = vadd.f32 %v876, %v1065
        %v1067 = vpop.f32.mrb[0].mxu0
        %1068 = vmatprep.mubr.f32.mxu0 0.0
        %v1069 = vand.u32 %v325, 4294901760
        %v1070 = vsub.f32 %v325, %v1069
        %v1071 = vand.u32 %v1070, 4294901760
        %1072 = vmatmul.mubr.f32.gmra.mrb[0].mxu0 %v1071
        %v1073 = vpop.f32.mrb[0].mxu0
        %v1074 = vadd.f32 %v883, %v1073
        %v1075 = vpop.f32.mrb[0].mxu0
        %1076 = vmatprep.mubr.f32.mxu0 0.0
        %v1077 = vand.u32 %v328, 4294901760
        %v1078 = vsub.f32 %v328, %v1077
        %v1079 = vand.u32 %v1078, 4294901760
        %1080 = vmatmul.mubr.f32.gmra.mrb[0].mxu0 %v1079
        %v1081 = vpop.f32.mrb[0].mxu0
        %v1082 = vadd.f32 %v890, %v1081
        %v1083 = vpop.f32.mrb[0].mxu0
        %1084 = vmatprep.mubr.f32.mxu0 0.0
        %v1085 = vand.u32 %v331, 4294901760
        %v1086 = vsub.f32 %v331, %v1085
        %v1087 = vand.u32 %v1086, 4294901760
        %1088 = vmatmul.mubr.f32.gmra.mrb[0].mxu0 %v1087
        %v1089 = vpop.f32.mrb[0].mxu0
        %v1090 = vadd.f32 %v897, %v1089
        %v1091 = vpop.f32.mrb[0].mxu0
        %1092 = vmatprep.mubr.f32.mxu0 0.0
        %v1093 = vand.u32 %v334, 4294901760
        %v1094 = vsub.f32 %v334, %v1093
        %v1095 = vand.u32 %v1094, 4294901760
        %1096 = vmatmul.mubr.f32.gmra.mrb[0].mxu0 %v1095
        %v1097 = vpop.f32.mrb[0].mxu0
        %v1098 = vadd.f32 %v904, %v1097
        %v1099 = vpop.f32.mrb[0].mxu0
        %1100 = vdwg.mxu0
        %1101 = vmatprep.subr.mxu0 0.0
        %v1102 = vand.u32 %v253, 4294901760
        %v1103 = vsub.f32 %v253, %v1102
        %v1104 = vand.u32 %v1103, 4294901760
        %1105 = vmatpush1.msra.mxu0 %v1104
        %1106 = vmatprep.subr.mxu0 0.0
        %1107 = vmatpush1.msra.mxu0 0.0
        %1108 = vmatprep.subr.mxu0 0.0
        %1109 = vmatpush1.msra.mxu0 0.0
        %1110 = vmatprep.subr.mxu0 0.0
        %1111 = vmatpush1.msra.mxu0 0.0
        %1112 = vmatprep.subr.mxu0 0.0
        %1113 = vmatpush1.msra.mxu0 0.0
        %1114 = vmatprep.subr.mxu0 0.0
        %1115 = vmatpush1.msra.mxu0 0.0
        %1116 = vmatprep.subr.mxu0 0.0
        %1117 = vmatpush1.msra.mxu0 0.0
        %1118 = vmatprep.subr.mxu0 0.0
        %1119 = vmatpush1.msra.mxu0 0.0
        %1120 = vmatprep.subr.mxu0 0.0
        %1121 = vmatpush1.msra.mxu0 0.0
        %1122 = vmatprep.subr.mxu0 0.0
        %1123 = vmatpush1.msra.mxu0 0.0
        %1124 = vmatprep.subr.mxu0 0.0
        %1125 = vmatpush1.msra.mxu0 0.0
        %1126 = vmatprep.subr.mxu0 0.0
        %1127 = vmatpush1.msra.mxu0 0.0
        %1128 = vmatprep.subr.mxu0 0.0
        %1129 = vmatpush1.msra.mxu0 0.0
        %1130 = vmatprep.subr.mxu0 0.0
        %1131 = vmatpush1.msra.mxu0 0.0
        %1132 = vmatprep.subr.mxu0 0.0
        %1133 = vmatpush1.msra.mxu0 0.0
        %1134 = vmatprep.subr.mxu0 0.0
        %1135 = vmatpush1.msra.mxu0 0.0
        %1136 = vmatprep.subr.mxu0 0.0
        %1137 = vmatpush1.msra.mxu0 0.0
        %1138 = vmatprep.subr.mxu0 0.0
        %1139 = vmatpush1.msra.mxu0 0.0
        %1140 = vmatprep.subr.mxu0 0.0
        %1141 = vmatpush1.msra.mxu0 0.0
        %1142 = vmatprep.subr.mxu0 0.0
        %1143 = vmatpush1.msra.mxu0 0.0
        %1144 = vmatprep.subr.mxu0 0.0
        %1145 = vmatpush1.msra.mxu0 0.0
        %1146 = vmatprep.subr.mxu0 0.0
        %1147 = vmatpush1.msra.mxu0 0.0
        %1148 = vmatprep.subr.mxu0 0.0
        %1149 = vmatpush1.msra.mxu0 0.0
        %1150 = vmatprep.subr.mxu0 0.0
        %1151 = vmatpush1.msra.mxu0 0.0
        %1152 = vmatprep.subr.mxu0 0.0
        %1153 = vmatpush1.msra.mxu0 0.0
        %1154 = vmatprep.subr.mxu0 0.0
        %1155 = vmatpush1.msra.mxu0 0.0
        %1156 = vmatprep.subr.mxu0 0.0
        %1157 = vmatpush1.msra.mxu0 0.0
        %1158 = vmatprep.subr.mxu0 0.0
        %1159 = vmatpush1.msra.mxu0 0.0
        %1160 = vmatprep.subr.mxu0 0.0
        %1161 = vmatpush1.msra.mxu0 0.0
        %1162 = vmatprep.subr.mxu0 0.0
        %1163 = vmatpush1.msra.mxu0 0.0
        %1164 = vmatprep.subr.mxu0 0.0
        %1165 = vmatpush1.msra.mxu0 0.0
        %1166 = vmatprep.subr.mxu0 0.0
        %1167 = vmatpush1.msra.mxu0 0.0
        %1168 = vmatprep.mubr.f32.mxu0 0.0
        %v1169 = vand.u32 %v289, 4294901760
        %1170 = vmatmul.mubr.f32.gmra.mrb[0].mxu0 %v1169
        %v1171 = vpop.f32.mrb[0].mxu0
        %v1172 = vadd.f32 %v978, %v1171
        %v1173 = vpop.f32.mrb[0].mxu0
        %1174 = vmatprep.mubr.f32.mxu0 0.0
        %v1175 = vand.u32 %v292, 4294901760
        %1176 = vmatmul.mubr.f32.gmra.mrb[0].mxu0 %v1175
        %v1177 = vpop.f32.mrb[0].mxu0
        %v1178 = vadd.f32 %v986, %v1177
        %v1179 = vpop.f32.mrb[0].mxu0
        %1180 = vmatprep.mubr.f32.mxu0 0.0
        %v1181 = vand.u32 %v295, 4294901760
        %1182 = vmatmul.mubr.f32.gmra.mrb[0].mxu0 %v1181
        %v1183 = vpop.f32.mrb[0].mxu0
        %v1184 = vadd.f32 %v994, %v1183
        %v1185 = vpop.f32.mrb[0].mxu0
        %1186 = vmatprep.mubr.f32.mxu0 0.0
        %v1187 = vand.u32 %v298, 4294901760
        %1188 = vmatmul.mubr.f32.gmra.mrb[0].mxu0 %v1187
        %v1189 = vpop.f32.mrb[0].mxu0
        %v1190 = vadd.f32 %v1002, %v1189
        %v1191 = vpop.f32.mrb[0].mxu0
        %1192 = vmatprep.mubr.f32.mxu0 0.0
        %v1193 = vand.u32 %v301, 4294901760
        %1194 = vmatmul.mubr.f32.gmra.mrb[0].mxu0 %v1193
        %v1195 = vpop.f32.mrb[0].mxu0
        %v1196 = vadd.f32 %v1010, %v1195
        %v1197 = vpop.f32.mrb[0].mxu0
        %1198 = vmatprep.mubr.f32.mxu0 0.0
        %v1199 = vand.u32 %v304, 4294901760
        %1200 = vmatmul.mubr.f32.gmra.mrb[0].mxu0 %v1199
        %v1201 = vpop.f32.mrb[0].mxu0
        %v1202 = vadd.f32 %v1018, %v1201
        %v1203 = vpop.f32.mrb[0].mxu0
        %1204 = vmatprep.mubr.f32.mxu0 0.0
        %v1205 = vand.u32 %v307, 4294901760
        %1206 = vmatmul.mubr.f32.gmra.mrb[0].mxu0 %v1205
        %v1207 = vpop.f32.mrb[0].mxu0
        %v1208 = vadd.f32 %v1026, %v1207
        %v1209 = vpop.f32.mrb[0].mxu0
        %1210 = vmatprep.mubr.f32.mxu0 0.0
        %v1211 = vand.u32 %v310, 4294901760
        %1212 = vmatmul.mubr.f32.gmra.mrb[0].mxu0 %v1211
        %v1213 = vpop.f32.mrb[0].mxu0
        %v1214 = vadd.f32 %v1034, %v1213
        %v1215 = vpop.f32.mrb[0].mxu0
        %1216 = vmatprep.mubr.f32.mxu0 0.0
        %v1217 = vand.u32 %v313, 4294901760
        %1218 = vmatmul.mubr.f32.gmra.mrb[0].mxu0 %v1217
        %v1219 = vpop.f32.mrb[0].mxu0
        %v1220 = vadd.f32 %v1042, %v1219
        %v1221 = vpop.f32.mrb[0].mxu0
        %1222 = vmatprep.mubr.f32.mxu0 0.0
        %v1223 = vand.u32 %v316, 4294901760
        %1224 = vmatmul.mubr.f32.gmra.mrb[0].mxu0 %v1223
        %v1225 = vpop.f32.mrb[0].mxu0
        %v1226 = vadd.f32 %v1050, %v1225
        %v1227 = vpop.f32.mrb[0].mxu0
        %1228 = vmatprep.mubr.f32.mxu0 0.0
        %v1229 = vand.u32 %v319, 4294901760
        %1230 = vmatmul.mubr.f32.gmra.mrb[0].mxu0 %v1229
        %v1231 = vpop.f32.mrb[0].mxu0
        %v1232 = vadd.f32 %v1058, %v1231
        %v1233 = vpop.f32.mrb[0].mxu0
        %1234 = vmatprep.mubr.f32.mxu0 0.0
        %v1235 = vand.u32 %v322, 4294901760
        %1236 = vmatmul.mubr.f32.gmra.mrb[0].mxu0 %v1235
        %v1237 = vpop.f32.mrb[0].mxu0
        %v1238 = vadd.f32 %v1066, %v1237
        %v1239 = vpop.f32.mrb[0].mxu0
        %1240 = vmatprep.mubr.f32.mxu0 0.0
        %v1241 = vand.u32 %v325, 4294901760
        %1242 = vmatmul.mubr.f32.gmra.mrb[0].mxu0 %v1241
        %v1243 = vpop.f32.mrb[0].mxu0
        %v1244 = vadd.f32 %v1074, %v1243
        %v1245 = vpop.f32.mrb[0].mxu0
        %1246 = vmatprep.mubr.f32.mxu0 0.0
        %v1247 = vand.u32 %v328, 4294901760
        %1248 = vmatmul.mubr.f32.gmra.mrb[0].mxu0 %v1247
        %v1249 = vpop.f32.mrb[0].mxu0
        %v1250 = vadd.f32 %v1082, %v1249
        %v1251 = vpop.f32.mrb[0].mxu0
        %1252 = vmatprep.mubr.f32.mxu0 0.0
        %v1253 = vand.u32 %v331, 4294901760
        %1254 = vmatmul.mubr.f32.gmra.mrb[0].mxu0 %v1253
        %v1255 = vpop.f32.mrb[0].mxu0
        %v1256 = vadd.f32 %v1090, %v1255
        %v1257 = vpop.f32.mrb[0].mxu0
        %1258 = vmatprep.mubr.f32.mxu0 0.0
        %v1259 = vand.u32 %v334, 4294901760
        %1260 = vmatmul.mubr.f32.gmra.mrb[0].mxu0 %v1259
        %v1261 = vpop.f32.mrb[0].mxu0
        %v1262 = vadd.f32 %v1098, %v1261
        %v1263 = vpop.f32.mrb[0].mxu0
        %1264 = vdwg.mxu0
        %1265 = vmatprep.subr.mxu0 0.0
        %v1266 = vand.u32 %v253, 4294901760
        %1267 = vmatpush1.msra.mxu0 %v1266
        %1268 = vmatprep.subr.mxu0 0.0
        %1269 = vmatpush1.msra.mxu0 0.0
        %1270 = vmatprep.subr.mxu0 0.0
        %1271 = vmatpush1.msra.mxu0 0.0
        %1272 = vmatprep.subr.mxu0 0.0
        %1273 = vmatpush1.msra.mxu0 0.0
        %1274 = vmatprep.subr.mxu0 0.0
        %1275 = vmatpush1.msra.mxu0 0.0
        %1276 = vmatprep.subr.mxu0 0.0
        %1277 = vmatpush1.msra.mxu0 0.0
        %1278 = vmatprep.subr.mxu0 0.0
        %1279 = vmatpush1.msra.mxu0 0.0
        %1280 = vmatprep.subr.mxu0 0.0
        %1281 = vmatpush1.msra.mxu0 0.0
        %1282 = vmatprep.subr.mxu0 0.0
        %1283 = vmatpush1.msra.mxu0 0.0
        %1284 = vmatprep.subr.mxu0 0.0
        %1285 = vmatpush1.msra.mxu0 0.0
        %1286 = vmatprep.subr.mxu0 0.0
        %1287 = vmatpush1.msra.mxu0 0.0
        %1288 = vmatprep.subr.mxu0 0.0
        %1289 = vmatpush1.msra.mxu0 0.0
        %1290 = vmatprep.subr.mxu0 0.0
        %1291 = vmatpush1.msra.mxu0 0.0
        %1292 = vmatprep.subr.mxu0 0.0
        %1293 = vmatpush1.msra.mxu0 0.0
        %1294 = vmatprep.subr.mxu0 0.0
        %1295 = vmatpush1.msra.mxu0 0.0
        %1296 = vmatprep.subr.mxu0 0.0
        %1297 = vmatpush1.msra.mxu0 0.0
        %1298 = vmatprep.subr.mxu0 0.0
        %1299 = vmatpush1.msra.mxu0 0.0
        %1300 = vmatprep.subr.mxu0 0.0
        %1301 = vmatpush1.msra.mxu0 0.0
        %1302 = vmatprep.subr.mxu0 0.0
        %1303 = vmatpush1.msra.mxu0 0.0
        %1304 = vmatprep.subr.mxu0 0.0
        %1305 = vmatpush1.msra.mxu0 0.0
        %1306 = vmatprep.subr.mxu0 0.0
        %1307 = vmatpush1.msra.mxu0 0.0
        %1308 = vmatprep.subr.mxu0 0.0
        %1309 = vmatpush1.msra.mxu0 0.0
        %1310 = vmatprep.subr.mxu0 0.0
        %1311 = vmatpush1.msra.mxu0 0.0
        %1312 = vmatprep.subr.mxu0 0.0
        %1313 = vmatpush1.msra.mxu0 0.0
        %1314 = vmatprep.subr.mxu0 0.0
        %1315 = vmatpush1.msra.mxu0 0.0
        %1316 = vmatprep.subr.mxu0 0.0
        %1317 = vmatpush1.msra.mxu0 0.0
        %1318 = vmatprep.subr.mxu0 0.0
        %1319 = vmatpush1.msra.mxu0 0.0
        %1320 = vmatprep.subr.mxu0 0.0
        %1321 = vmatpush1.msra.mxu0 0.0
        %1322 = vmatprep.subr.mxu0 0.0
        %1323 = vmatpush1.msra.mxu0 0.0
        %1324 = vmatprep.subr.mxu0 0.0
        %1325 = vmatpush1.msra.mxu0 0.0
        %1326 = vmatprep.subr.mxu0 0.0
        %1327 = vmatpush1.msra.mxu0 0.0
        %1328 = vmatprep.subr.mxu0 0.0
        %1329 = vmatpush1.msra.mxu0 0.0
        %1330 = vmatprep.mubr.f32.mxu0 0.0
        %v1331 = vand.u32 %v289, 4294901760
        %1332 = vmatmul.mubr.f32.gmra.mrb[0].mxu0 %v1331
        %v1333 = vpop.f32.mrb[0].mxu0
        %v1334 = vadd.f32 %v1172, %v1333
        %v1335 = vpop.f32.mrb[0].mxu0
        %1336 = vmatprep.mubr.f32.mxu0 0.0
        %v1337 = vand.u32 %v292, 4294901760
        %1338 = vmatmul.mubr.f32.gmra.mrb[0].mxu0 %v1337
        %v1339 = vpop.f32.mrb[0].mxu0
        %v1340 = vadd.f32 %v1178, %v1339
        %v1341 = vpop.f32.mrb[0].mxu0
        %1342 = vmatprep.mubr.f32.mxu0 0.0
        %v1343 = vand.u32 %v295, 4294901760
        %1344 = vmatmul.mubr.f32.gmra.mrb[0].mxu0 %v1343
        %v1345 = vpop.f32.mrb[0].mxu0
        %v1346 = vadd.f32 %v1184, %v1345
        %v1347 = vpop.f32.mrb[0].mxu0
        %1348 = vmatprep.mubr.f32.mxu0 0.0
        %v1349 = vand.u32 %v298, 4294901760
        %1350 = vmatmul.mubr.f32.gmra.mrb[0].mxu0 %v1349
        %v1351 = vpop.f32.mrb[0].mxu0
        %v1352 = vadd.f32 %v1190, %v1351
        %v1353 = vpop.f32.mrb[0].mxu0
        %1354 = vmatprep.mubr.f32.mxu0 0.0
        %v1355 = vand.u32 %v301, 4294901760
        %1356 = vmatmul.mubr.f32.gmra.mrb[0].mxu0 %v1355
        %v1357 = vpop.f32.mrb[0].mxu0
        %v1358 = vadd.f32 %v1196, %v1357
        %v1359 = vpop.f32.mrb[0].mxu0
        %1360 = vmatprep.mubr.f32.mxu0 0.0
        %v1361 = vand.u32 %v304, 4294901760
        %1362 = vmatmul.mubr.f32.gmra.mrb[0].mxu0 %v1361
        %v1363 = vpop.f32.mrb[0].mxu0
        %v1364 = vadd.f32 %v1202, %v1363
        %v1365 = vpop.f32.mrb[0].mxu0
        %1366 = vmatprep.mubr.f32.mxu0 0.0
        %v1367 = vand.u32 %v307, 4294901760
        %1368 = vmatmul.mubr.f32.gmra.mrb[0].mxu0 %v1367
        %v1369 = vpop.f32.mrb[0].mxu0
        %v1370 = vadd.f32 %v1208, %v1369
        %v1371 = vpop.f32.mrb[0].mxu0
        %1372 = vmatprep.mubr.f32.mxu0 0.0
        %v1373 = vand.u32 %v310, 4294901760
        %1374 = vmatmul.mubr.f32.gmra.mrb[0].mxu0 %v1373
        %v1375 = vpop.f32.mrb[0].mxu0
        %v1376 = vadd.f32 %v1214, %v1375
        %v1377 = vpop.f32.mrb[0].mxu0
        %1378 = vmatprep.mubr.f32.mxu0 0.0
        %v1379 = vand.u32 %v313, 4294901760
        %1380 = vmatmul.mubr.f32.gmra.mrb[0].mxu0 %v1379
        %v1381 = vpop.f32.mrb[0].mxu0
        %v1382 = vadd.f32 %v1220, %v1381
        %v1383 = vpop.f32.mrb[0].mxu0
        %1384 = vmatprep.mubr.f32.mxu0 0.0
        %v1385 = vand.u32 %v316, 4294901760
        %1386 = vmatmul.mubr.f32.gmra.mrb[0].mxu0 %v1385
        %v1387 = vpop.f32.mrb[0].mxu0
        %v1388 = vadd.f32 %v1226, %v1387
        %v1389 = vpop.f32.mrb[0].mxu0
        %1390 = vmatprep.mubr.f32.mxu0 0.0
        %v1391 = vand.u32 %v319, 4294901760
        %1392 = vmatmul.mubr.f32.gmra.mrb[0].mxu0 %v1391
        %v1393 = vpop.f32.mrb[0].mxu0
        %v1394 = vadd.f32 %v1232, %v1393
        %v1395 = vpop.f32.mrb[0].mxu0
        %1396 = vmatprep.mubr.f32.mxu0 0.0
        %v1397 = vand.u32 %v322, 4294901760
        %1398 = vmatmul.mubr.f32.gmra.mrb[0].mxu0 %v1397
        %v1399 = vpop.f32.mrb[0].mxu0
        %v1400 = vadd.f32 %v1238, %v1399
        %v1401 = vpop.f32.mrb[0].mxu0
        %1402 = vmatprep.mubr.f32.mxu0 0.0
        %v1403 = vand.u32 %v325, 4294901760
        %1404 = vmatmul.mubr.f32.gmra.mrb[0].mxu0 %v1403
        %v1405 = vpop.f32.mrb[0].mxu0
        %v1406 = vadd.f32 %v1244, %v1405
        %v1407 = vpop.f32.mrb[0].mxu0
        %1408 = vmatprep.mubr.f32.mxu0 0.0
        %v1409 = vand.u32 %v328, 4294901760
        %1410 = vmatmul.mubr.f32.gmra.mrb[0].mxu0 %v1409
        %v1411 = vpop.f32.mrb[0].mxu0
        %v1412 = vadd.f32 %v1250, %v1411
        %v1413 = vpop.f32.mrb[0].mxu0
        %1414 = vmatprep.mubr.f32.mxu0 0.0
        %v1415 = vand.u32 %v331, 4294901760
        %1416 = vmatmul.mubr.f32.gmra.mrb[0].mxu0 %v1415
        %v1417 = vpop.f32.mrb[0].mxu0
        %v1418 = vadd.f32 %v1256, %v1417
        %v1419 = vpop.f32.mrb[0].mxu0
        %1420 = vmatprep.mubr.f32.mxu0 0.0
        %v1421 = vand.u32 %v334, 4294901760
        %1422 = vmatmul.mubr.f32.gmra.mrb[0].mxu0 %v1421
        %v1423 = vpop.f32.mrb[0].mxu0
        %v1424 = vadd.f32 %v1262, %v1423
        %v1425 = vpop.f32.mrb[0].mxu0
        %1426 = vdwg.mxu0
        %vm1427 = vcmask 130048
        %v1428 = vsel %vm1427, %v1334, inf
        %1429 = vmin.xlane.f32.xlu0 %v1428
        %v1430 = vpop.xlane.xlu0 %1429
        %v1431 = vsel %vm1427, %v1340, inf
        %1432 = vmin.xlane.f32.xlu0 %v1431
        %v1433 = vpop.xlane.xlu0 %1432
        %v1434 = vsel %vm1427, %v1346, inf
        %1435 = vmin.xlane.f32.xlu0 %v1434
        %v1436 = vpop.xlane.xlu0 %1435
        %v1437 = vsel %vm1427, %v1352, inf
        %1438 = vmin.xlane.f32.xlu0 %v1437
        %v1439 = vpop.xlane.xlu0 %1438
        %v1440 = vsel %vm1427, %v1358, inf
        %1441 = vmin.xlane.f32.xlu0 %v1440
        %v1442 = vpop.xlane.xlu0 %1441
        %v1443 = vsel %vm1427, %v1364, inf
        %1444 = vmin.xlane.f32.xlu0 %v1443
        %v1445 = vpop.xlane.xlu0 %1444
        %v1446 = vsel %vm1427, %v1370, inf
        %1447 = vmin.xlane.f32.xlu0 %v1446
        %v1448 = vpop.xlane.xlu0 %1447
        %v1449 = vsel %vm1427, %v1376, inf
        %1450 = vmin.xlane.f32.xlu0 %v1449
        %v1451 = vpop.xlane.xlu0 %1450
        %v1452 = vsel %vm1427, %v1382, inf
        %1453 = vmin.xlane.f32.xlu0 %v1452
        %v1454 = vpop.xlane.xlu0 %1453
        %v1455 = vsel %vm1427, %v1388, inf
        %1456 = vmin.xlane.f32.xlu0 %v1455
        %v1457 = vpop.xlane.xlu0 %1456
        %v1458 = vsel %vm1427, %v1394, inf
        %1459 = vmin.xlane.f32.xlu0 %v1458
        %v1460 = vpop.xlane.xlu0 %1459
        %v1461 = vsel %vm1427, %v1400, inf
        %1462 = vmin.xlane.f32.xlu0 %v1461
        %v1463 = vpop.xlane.xlu0 %1462
        %v1464 = vsel %vm1427, %v1406, inf
        %1465 = vmin.xlane.f32.xlu0 %v1464
        %v1466 = vpop.xlane.xlu0 %1465
        %v1467 = vsel %vm1427, %v1412, inf
        %1468 = vmin.xlane.f32.xlu0 %v1467
        %v1469 = vpop.xlane.xlu0 %1468
        %v1470 = vsel %vm1427, %v1418, inf
        %1471 = vmin.xlane.f32.xlu0 %v1470
        %v1472 = vpop.xlane.xlu0 %1471
        %v1473 = vsel %vm1427, %v1424, inf
        %1474 = vmin.xlane.f32.xlu0 %v1473
        %v1475 = vpop.xlane.xlu0 %1474
        %vm1476 = vcmp.le.f32.partialorder %v1334, %v1430
        %vm1477 = vcmp.le.f32.partialorder %v1340, %v1433
        %vm1478 = vcmp.le.f32.partialorder %v1346, %v1436
        %vm1479 = vcmp.le.f32.partialorder %v1352, %v1439
        %vm1480 = vcmp.le.f32.partialorder %v1358, %v1442
        %vm1481 = vcmp.le.f32.partialorder %v1364, %v1445
        %vm1482 = vcmp.le.f32.partialorder %v1370, %v1448
        %vm1483 = vcmp.le.f32.partialorder %v1376, %v1451
        %vm1484 = vcmp.le.f32.partialorder %v1382, %v1454
        %vm1485 = vcmp.le.f32.partialorder %v1388, %v1457
        %vm1486 = vcmp.le.f32.partialorder %v1394, %v1460
        %vm1487 = vcmp.le.f32.partialorder %v1400, %v1463
        %vm1488 = vcmp.le.f32.partialorder %v1406, %v1466
        %vm1489 = vcmp.le.f32.partialorder %v1412, %v1469
        %vm1490 = vcmp.le.f32.partialorder %v1418, %v1472
        %vm1491 = vcmp.le.f32.partialorder %v1424, %v1475
        %v1492 = vlaneseq
        %v1493 = vshrl.u32 %v1492, 7
        %v1494 = vsub.s32 5, %v1493
        %v1495 = vrot.slane %v253, %v1494
        %v1496 = vsel %vm1476, %v1495, 16.0
        %v1497 = vsel %vm1477, %v1495, 16.0
        %v1498 = vsel %vm1478, %v1495, 16.0
        %v1499 = vsel %vm1479, %v1495, 16.0
        %v1500 = vsel %vm1480, %v1495, 16.0
        %v1501 = vsel %vm1481, %v1495, 16.0
        %v1502 = vsel %vm1482, %v1495, 16.0
        %v1503 = vsel %vm1483, %v1495, 16.0
        %v1504 = vsel %vm1484, %v1495, 16.0
        %v1505 = vsel %vm1485, %v1495, 16.0
        %v1506 = vsel %vm1486, %v1495, 16.0
        %v1507 = vsel %vm1487, %v1495, 16.0
        %v1508 = vsel %vm1488, %v1495, 16.0
        %v1509 = vsel %vm1489, %v1495, 16.0
        %v1510 = vsel %vm1490, %v1495, 16.0
        %v1511 = vsel %vm1491, %v1495, 16.0
        %v1512 = vsel %vm1427, %v1496, inf
        %1513 = vmin.xlane.f32.xlu0 %v1512
        %v1514 = vpop.xlane.xlu0 %1513
        %v1515 = vsel %vm1427, %v1497, inf
        %1516 = vmin.xlane.f32.xlu0 %v1515
        %v1517 = vpop.xlane.xlu0 %1516
        %v1518 = vsel %vm1427, %v1498, inf
        %1519 = vmin.xlane.f32.xlu0 %v1518
        %v1520 = vpop.xlane.xlu0 %1519
        %v1521 = vsel %vm1427, %v1499, inf
        %1522 = vmin.xlane.f32.xlu0 %v1521
        %v1523 = vpop.xlane.xlu0 %1522
        %v1524 = vsel %vm1427, %v1500, inf
        %1525 = vmin.xlane.f32.xlu0 %v1524
        %v1526 = vpop.xlane.xlu0 %1525
        %v1527 = vsel %vm1427, %v1501, inf
        %1528 = vmin.xlane.f32.xlu0 %v1527
        %v1529 = vpop.xlane.xlu0 %1528
        %v1530 = vsel %vm1427, %v1502, inf
        %1531 = vmin.xlane.f32.xlu0 %v1530
        %v1532 = vpop.xlane.xlu0 %1531
        %v1533 = vsel %vm1427, %v1503, inf
        %1534 = vmin.xlane.f32.xlu0 %v1533
        %v1535 = vpop.xlane.xlu0 %1534
        %v1536 = vsel %vm1427, %v1504, inf
        %1537 = vmin.xlane.f32.xlu0 %v1536
        %v1538 = vpop.xlane.xlu0 %1537
        %v1539 = vsel %vm1427, %v1505, inf
        %1540 = vmin.xlane.f32.xlu0 %v1539
        %v1541 = vpop.xlane.xlu0 %1540
        %v1542 = vsel %vm1427, %v1506, inf
        %1543 = vmin.xlane.f32.xlu0 %v1542
        %v1544 = vpop.xlane.xlu0 %1543
        %v1545 = vsel %vm1427, %v1507, inf
        %1546 = vmin.xlane.f32.xlu0 %v1545
        %v1547 = vpop.xlane.xlu0 %1546
        %v1548 = vsel %vm1427, %v1508, inf
        %1549 = vmin.xlane.f32.xlu0 %v1548
        %v1550 = vpop.xlane.xlu0 %1549
        %v1551 = vsel %vm1427, %v1509, inf
        %1552 = vmin.xlane.f32.xlu0 %v1551
        %v1553 = vpop.xlane.xlu0 %1552
        %v1554 = vsel %vm1427, %v1510, inf
        %1555 = vmin.xlane.f32.xlu0 %v1554
        %v1556 = vpop.xlane.xlu0 %1555
        %v1557 = vsel %vm1427, %v1511, inf
        %1558 = vmin.xlane.f32.xlu0 %v1557
        %v1559 = vpop.xlane.xlu0 %1558
        %vm1560 = vcmp.eq.f32.partialorder %v1495, %v1514
        %vm1561 = vcmp.eq.f32.partialorder %v1495, %v1517
        %vm1562 = vcmp.eq.f32.partialorder %v1495, %v1520
        %vm1563 = vcmp.eq.f32.partialorder %v1495, %v1523
        %vm1564 = vcmp.eq.f32.partialorder %v1495, %v1526
        %vm1565 = vcmp.eq.f32.partialorder %v1495, %v1529
        %vm1566 = vcmp.eq.f32.partialorder %v1495, %v1532
        %vm1567 = vcmp.eq.f32.partialorder %v1495, %v1535
        %vm1568 = vcmp.eq.f32.partialorder %v1495, %v1538
        %vm1569 = vcmp.eq.f32.partialorder %v1495, %v1541
        %vm1570 = vcmp.eq.f32.partialorder %v1495, %v1544
        %vm1571 = vcmp.eq.f32.partialorder %v1495, %v1547
        %vm1572 = vcmp.eq.f32.partialorder %v1495, %v1550
        %vm1573 = vcmp.eq.f32.partialorder %v1495, %v1553
        %vm1574 = vcmp.eq.f32.partialorder %v1495, %v1556
        %vm1575 = vcmp.eq.f32.partialorder %v1495, %v1559
        %v1576 = vsel %vm1560, 1, 0
        %v1577 = vsel %vm1561, 1, 0
        %v1578 = vsel %vm1562, 1, 0
        %v1579 = vsel %vm1563, 1, 0
        %v1580 = vsel %vm1564, 1, 0
        %v1581 = vsel %vm1565, 1, 0
        %v1582 = vsel %vm1566, 1, 0
        %v1583 = vsel %vm1567, 1, 0
        %v1584 = vsel %vm1568, 1, 0
        %v1585 = vsel %vm1569, 1, 0
        %v1586 = vsel %vm1570, 1, 0
        %v1587 = vsel %vm1571, 1, 0
        %v1588 = vsel %vm1572, 1, 0
        %v1589 = vsel %vm1573, 1, 0
        %v1590 = vsel %vm1574, 1, 0
        %v1591 = vsel %vm1575, 1, 0
        %v1592 = vcvt.s32.f32 %v1576
        %v1593 = vcvt.s32.f32 %v1577
        %v1594 = vcvt.s32.f32 %v1578
        %v1595 = vcvt.s32.f32 %v1579
        %v1596 = vcvt.s32.f32 %v1580
        %v1597 = vcvt.s32.f32 %v1581
        %v1598 = vcvt.s32.f32 %v1582
        %v1599 = vcvt.s32.f32 %v1583
        %v1600 = vcvt.s32.f32 %v1584
        %v1601 = vcvt.s32.f32 %v1585
        %v1602 = vcvt.s32.f32 %v1586
        %v1603 = vcvt.s32.f32 %v1587
        %v1604 = vcvt.s32.f32 %v1588
        %v1605 = vcvt.s32.f32 %v1589
        %v1606 = vcvt.s32.f32 %v1590
        %v1607 = vcvt.s32.f32 %v1591
        %v1609 = vsel %vm1427, %v253, 0
        %v1612 = vsel %vm1427, %v1592, 0
        %v1615 = vsel %vm1427, %v1593, 0
        %v1618 = vsel %vm1427, %v1594, 0
        %v1621 = vsel %vm1427, %v1595, 0
        %v1624 = vsel %vm1427, %v1596, 0
        %v1627 = vsel %vm1427, %v1597, 0
        %v1630 = vsel %vm1427, %v1598, 0
        %v1633 = vsel %vm1427, %v1599, 0
        %v1636 = vsel %vm1427, %v1600, 0
        %v1639 = vsel %vm1427, %v1601, 0
        %v1642 = vsel %vm1427, %v1602, 0
        %v1645 = vsel %vm1427, %v1603, 0
        %v1648 = vsel %vm1427, %v1604, 0
        %v1651 = vsel %vm1427, %v1605, 0
        %v1654 = vsel %vm1427, %v1606, 0
        %v1657 = vsel %vm1427, %v1607, 0
        %1659 = vmatprep.subr.mxu0 0.0
        %v1660 = vand.u32 %v1612, 4294901760
        %1661 = vmatpush1.xpose.msra.mxu0 %v1660
        %1662 = vmatprep.subr.mxu0 0.0
        %v1663 = vand.u32 %v1615, 4294901760
        %1664 = vmatpush1.xpose.msra.mxu0 %v1663
        %1665 = vmatprep.subr.mxu0 0.0
        %v1666 = vand.u32 %v1618, 4294901760
        %1667 = vmatpush1.xpose.msra.mxu0 %v1666
        %1668 = vmatprep.subr.mxu0 0.0
        %v1669 = vand.u32 %v1621, 4294901760
        %1670 = vmatpush1.xpose.msra.mxu0 %v1669
        %1671 = vmatprep.subr.mxu0 0.0
        %v1672 = vand.u32 %v1624, 4294901760
        %1673 = vmatpush1.xpose.msra.mxu0 %v1672
        %1674 = vmatprep.subr.mxu0 0.0
        %v1675 = vand.u32 %v1627, 4294901760
        %1676 = vmatpush1.xpose.msra.mxu0 %v1675
        %1677 = vmatprep.subr.mxu0 0.0
        %v1678 = vand.u32 %v1630, 4294901760
        %1679 = vmatpush1.xpose.msra.mxu0 %v1678
        %1680 = vmatprep.subr.mxu0 0.0
        %v1681 = vand.u32 %v1633, 4294901760
        %1682 = vmatpush1.xpose.msra.mxu0 %v1681
        %1683 = vmatprep.subr.mxu0 0.0
        %v1684 = vand.u32 %v1636, 4294901760
        %1685 = vmatpush1.xpose.msra.mxu0 %v1684
        %1686 = vmatprep.subr.mxu0 0.0
        %v1687 = vand.u32 %v1639, 4294901760
        %1688 = vmatpush1.xpose.msra.mxu0 %v1687
        %1689 = vmatprep.subr.mxu0 0.0
        %v1690 = vand.u32 %v1642, 4294901760
        %1691 = vmatpush1.xpose.msra.mxu0 %v1690
        %1692 = vmatprep.subr.mxu0 0.0
        %v1693 = vand.u32 %v1645, 4294901760
        %1694 = vmatpush1.xpose.msra.mxu0 %v1693
        %1695 = vmatprep.subr.mxu0 0.0
        %v1696 = vand.u32 %v1648, 4294901760
        %1697 = vmatpush1.xpose.msra.mxu0 %v1696
        %1698 = vmatprep.subr.mxu0 0.0
        %v1699 = vand.u32 %v1651, 4294901760
        %1700 = vmatpush1.xpose.msra.mxu0 %v1699
        %1701 = vmatprep.subr.mxu0 0.0
        %v1702 = vand.u32 %v1654, 4294901760
        %1703 = vmatpush1.xpose.msra.mxu0 %v1702
        %1704 = vmatprep.subr.mxu0 0.0
        %v1705 = vand.u32 %v1657, 4294901760
        %1706 = vmatpush1.xpose.msra.mxu0 %v1705
        %1707 = vmatprep.subr.mxu0 0.0
        %1708 = vmatpush1.xpose.msra.mxu0 0.0
        %1709 = vmatprep.subr.mxu0 0.0
        %1710 = vmatpush1.xpose.msra.mxu0 0.0
        %1711 = vmatprep.subr.mxu0 0.0
        %1712 = vmatpush1.xpose.msra.mxu0 0.0
        %1713 = vmatprep.subr.mxu0 0.0
        %1714 = vmatpush1.xpose.msra.mxu0 0.0
        %1715 = vmatprep.subr.mxu0 0.0
        %1716 = vmatpush1.xpose.msra.mxu0 0.0
        %1717 = vmatprep.subr.mxu0 0.0
        %1718 = vmatpush1.xpose.msra.mxu0 0.0
        %1719 = vmatprep.subr.mxu0 0.0
        %1720 = vmatpush1.xpose.msra.mxu0 0.0
        %1721 = vmatprep.subr.mxu0 0.0
        %1722 = vmatpush1.xpose.msra.mxu0 0.0
        %1723 = vmatprep.subr.mxu0 0.0
        %1724 = vmatpush1.xpose.msra.mxu0 0.0
        %1725 = vmatprep.subr.mxu0 0.0
        %1726 = vmatpush1.xpose.msra.mxu0 0.0
        %1727 = vmatprep.subr.mxu0 0.0
        %1728 = vmatpush1.xpose.msra.mxu0 0.0
        %1729 = vmatprep.subr.mxu0 0.0
        %1730 = vmatpush1.xpose.msra.mxu0 0.0
        %1731 = vmatprep.subr.mxu0 0.0
        %1732 = vmatpush1.xpose.msra.mxu0 0.0
        %1733 = vmatprep.subr.mxu0 0.0
        %1734 = vmatpush1.xpose.msra.mxu0 0.0
        %1735 = vmatprep.subr.mxu0 0.0
        %1736 = vmatpush1.xpose.msra.mxu0 0.0
        %1737 = vmatprep.subr.mxu0 0.0
        %1738 = vmatpush1.xpose.msra.mxu0 0.0
        %1739 = vmatprep.mubr.f32.mxu0 0.0
        %v1740 = vand.u32 %v1609, 4294901760
        %v1741 = vsub.f32 %v1609, %v1740
        %v1742 = vand.u32 %v1741, 4294901760
        %v1743 = vsub.f32 %v1741, %v1742
        %v1744 = vand.u32 %v1743, 4294901760
        %1745 = vmatmul.mubr.f32.gmra.mrb[0].mxu0 %v1744
        %v1746 = vpop.f32.mrb[0].mxu0
        %v1747 = vadd.f32 0.0, %v1746
        %v1748 = vpop.f32.mrb[0].mxu0
        %1749 = vdwg.mxu0
        %1750 = vmatprep.subr.mxu0 0.0
        %v1751 = vand.u32 %v1612, 4294901760
        %v1752 = vsub.f32 %v1612, %v1751
        %v1753 = vand.u32 %v1752, 4294901760
        %v1754 = vsub.f32 %v1752, %v1753
        %v1755 = vand.u32 %v1754, 4294901760
        %1756 = vmatpush1.xpose.msra.mxu0 %v1755
        %1757 = vmatprep.subr.mxu0 0.0
        %v1758 = vand.u32 %v1615, 4294901760
        %v1759 = vsub.f32 %v1615, %v1758
        %v1760 = vand.u32 %v1759, 4294901760
        %v1761 = vsub.f32 %v1759, %v1760
        %v1762 = vand.u32 %v1761, 4294901760
        %1763 = vmatpush1.xpose.msra.mxu0 %v1762
        %1764 = vmatprep.subr.mxu0 0.0
        %v1765 = vand.u32 %v1618, 4294901760
        %v1766 = vsub.f32 %v1618, %v1765
        %v1767 = vand.u32 %v1766, 4294901760
        %v1768 = vsub.f32 %v1766, %v1767
        %v1769 = vand.u32 %v1768, 4294901760
        %1770 = vmatpush1.xpose.msra.mxu0 %v1769
        %1771 = vmatprep.subr.mxu0 0.0
        %v1772 = vand.u32 %v1621, 4294901760
        %v1773 = vsub.f32 %v1621, %v1772
        %v1774 = vand.u32 %v1773, 4294901760
        %v1775 = vsub.f32 %v1773, %v1774
        %v1776 = vand.u32 %v1775, 4294901760
        %1777 = vmatpush1.xpose.msra.mxu0 %v1776
        %1778 = vmatprep.subr.mxu0 0.0
        %v1779 = vand.u32 %v1624, 4294901760
        %v1780 = vsub.f32 %v1624, %v1779
        %v1781 = vand.u32 %v1780, 4294901760
        %v1782 = vsub.f32 %v1780, %v1781
        %v1783 = vand.u32 %v1782, 4294901760
        %1784 = vmatpush1.xpose.msra.mxu0 %v1783
        %1785 = vmatprep.subr.mxu0 0.0
        %v1786 = vand.u32 %v1627, 4294901760
        %v1787 = vsub.f32 %v1627, %v1786
        %v1788 = vand.u32 %v1787, 4294901760
        %v1789 = vsub.f32 %v1787, %v1788
        %v1790 = vand.u32 %v1789, 4294901760
        %1791 = vmatpush1.xpose.msra.mxu0 %v1790
        %1792 = vmatprep.subr.mxu0 0.0
        %v1793 = vand.u32 %v1630, 4294901760
        %v1794 = vsub.f32 %v1630, %v1793
        %v1795 = vand.u32 %v1794, 4294901760
        %v1796 = vsub.f32 %v1794, %v1795
        %v1797 = vand.u32 %v1796, 4294901760
        %1798 = vmatpush1.xpose.msra.mxu0 %v1797
        %1799 = vmatprep.subr.mxu0 0.0
        %v1800 = vand.u32 %v1633, 4294901760
        %v1801 = vsub.f32 %v1633, %v1800
        %v1802 = vand.u32 %v1801, 4294901760
        %v1803 = vsub.f32 %v1801, %v1802
        %v1804 = vand.u32 %v1803, 4294901760
        %1805 = vmatpush1.xpose.msra.mxu0 %v1804
        %1806 = vmatprep.subr.mxu0 0.0
        %v1807 = vand.u32 %v1636, 4294901760
        %v1808 = vsub.f32 %v1636, %v1807
        %v1809 = vand.u32 %v1808, 4294901760
        %v1810 = vsub.f32 %v1808, %v1809
        %v1811 = vand.u32 %v1810, 4294901760
        %1812 = vmatpush1.xpose.msra.mxu0 %v1811
        %1813 = vmatprep.subr.mxu0 0.0
        %v1814 = vand.u32 %v1639, 4294901760
        %v1815 = vsub.f32 %v1639, %v1814
        %v1816 = vand.u32 %v1815, 4294901760
        %v1817 = vsub.f32 %v1815, %v1816
        %v1818 = vand.u32 %v1817, 4294901760
        %1819 = vmatpush1.xpose.msra.mxu0 %v1818
        %1820 = vmatprep.subr.mxu0 0.0
        %v1821 = vand.u32 %v1642, 4294901760
        %v1822 = vsub.f32 %v1642, %v1821
        %v1823 = vand.u32 %v1822, 4294901760
        %v1824 = vsub.f32 %v1822, %v1823
        %v1825 = vand.u32 %v1824, 4294901760
        %1826 = vmatpush1.xpose.msra.mxu0 %v1825
        %1827 = vmatprep.subr.mxu0 0.0
        %v1828 = vand.u32 %v1645, 4294901760
        %v1829 = vsub.f32 %v1645, %v1828
        %v1830 = vand.u32 %v1829, 4294901760
        %v1831 = vsub.f32 %v1829, %v1830
        %v1832 = vand.u32 %v1831, 4294901760
        %1833 = vmatpush1.xpose.msra.mxu0 %v1832
        %1834 = vmatprep.subr.mxu0 0.0
        %v1835 = vand.u32 %v1648, 4294901760
        %v1836 = vsub.f32 %v1648, %v1835
        %v1837 = vand.u32 %v1836, 4294901760
        %v1838 = vsub.f32 %v1836, %v1837
        %v1839 = vand.u32 %v1838, 4294901760
        %1840 = vmatpush1.xpose.msra.mxu0 %v1839
        %1841 = vmatprep.subr.mxu0 0.0
        %v1842 = vand.u32 %v1651, 4294901760
        %v1843 = vsub.f32 %v1651, %v1842
        %v1844 = vand.u32 %v1843, 4294901760
        %v1845 = vsub.f32 %v1843, %v1844
        %v1846 = vand.u32 %v1845, 4294901760
        %1847 = vmatpush1.xpose.msra.mxu0 %v1846
        %1848 = vmatprep.subr.mxu0 0.0
        %v1849 = vand.u32 %v1654, 4294901760
        %v1850 = vsub.f32 %v1654, %v1849
        %v1851 = vand.u32 %v1850, 4294901760
        %v1852 = vsub.f32 %v1850, %v1851
        %v1853 = vand.u32 %v1852, 4294901760
        %1854 = vmatpush1.xpose.msra.mxu0 %v1853
        %1855 = vmatprep.subr.mxu0 0.0
        %v1856 = vand.u32 %v1657, 4294901760
        %v1857 = vsub.f32 %v1657, %v1856
        %v1858 = vand.u32 %v1857, 4294901760
        %v1859 = vsub.f32 %v1857, %v1858
        %v1860 = vand.u32 %v1859, 4294901760
        %1861 = vmatpush1.xpose.msra.mxu0 %v1860
        %1862 = vmatprep.subr.mxu0 0.0
        %1863 = vmatpush1.xpose.msra.mxu0 0.0
        %1864 = vmatprep.subr.mxu0 0.0
        %1865 = vmatpush1.xpose.msra.mxu0 0.0
        %1866 = vmatprep.subr.mxu0 0.0
        %1867 = vmatpush1.xpose.msra.mxu0 0.0
        %1868 = vmatprep.subr.mxu0 0.0
        %1869 = vmatpush1.xpose.msra.mxu0 0.0
        %1870 = vmatprep.subr.mxu0 0.0
        %1871 = vmatpush1.xpose.msra.mxu0 0.0
        %1872 = vmatprep.subr.mxu0 0.0
        %1873 = vmatpush1.xpose.msra.mxu0 0.0
        %1874 = vmatprep.subr.mxu0 0.0
        %1875 = vmatpush1.xpose.msra.mxu0 0.0
        %1876 = vmatprep.subr.mxu0 0.0
        %1877 = vmatpush1.xpose.msra.mxu0 0.0
        %1878 = vmatprep.subr.mxu0 0.0
        %1879 = vmatpush1.xpose.msra.mxu0 0.0
        %1880 = vmatprep.subr.mxu0 0.0
        %1881 = vmatpush1.xpose.msra.mxu0 0.0
        %1882 = vmatprep.subr.mxu0 0.0
        %1883 = vmatpush1.xpose.msra.mxu0 0.0
        %1884 = vmatprep.subr.mxu0 0.0
        %1885 = vmatpush1.xpose.msra.mxu0 0.0
        %1886 = vmatprep.subr.mxu0 0.0
        %1887 = vmatpush1.xpose.msra.mxu0 0.0
        %1888 = vmatprep.subr.mxu0 0.0
        %1889 = vmatpush1.xpose.msra.mxu0 0.0
        %1890 = vmatprep.subr.mxu0 0.0
        %1891 = vmatpush1.xpose.msra.mxu0 0.0
        %1892 = vmatprep.subr.mxu0 0.0
        %1893 = vmatpush1.xpose.msra.mxu0 0.0
        %1894 = vmatprep.mubr.f32.mxu0 0.0
        %v1895 = vand.u32 %v1609, 4294901760
        %1896 = vmatmul.mubr.f32.gmra.mrb[0].mxu0 %v1895
        %v1897 = vpop.f32.mrb[0].mxu0
        %v1898 = vadd.f32 %v1747, %v1897
        %v1899 = vpop.f32.mrb[0].mxu0
        %1900 = vdwg.mxu0
        %1901 = vmatprep.subr.mxu0 0.0
        %v1902 = vand.u32 %v1612, 4294901760
        %v1903 = vsub.f32 %v1612, %v1902
        %1904 = vmatpush1.xpose.msra.mxu0 %v1903
        %1905 = vmatprep.subr.mxu0 0.0
        %v1906 = vand.u32 %v1615, 4294901760
        %v1907 = vsub.f32 %v1615, %v1906
        %1908 = vmatpush1.xpose.msra.mxu0 %v1907
        %1909 = vmatprep.subr.mxu0 0.0
        %v1910 = vand.u32 %v1618, 4294901760
        %v1911 = vsub.f32 %v1618, %v1910
        %1912 = vmatpush1.xpose.msra.mxu0 %v1911
        %1913 = vmatprep.subr.mxu0 0.0
        %v1914 = vand.u32 %v1621, 4294901760
        %v1915 = vsub.f32 %v1621, %v1914
        %1916 = vmatpush1.xpose.msra.mxu0 %v1915
        %1917 = vmatprep.subr.mxu0 0.0
        %v1918 = vand.u32 %v1624, 4294901760
        %v1919 = vsub.f32 %v1624, %v1918
        %1920 = vmatpush1.xpose.msra.mxu0 %v1919
        %1921 = vmatprep.subr.mxu0 0.0
        %v1922 = vand.u32 %v1627, 4294901760
        %v1923 = vsub.f32 %v1627, %v1922
        %1924 = vmatpush1.xpose.msra.mxu0 %v1923
        %1925 = vmatprep.subr.mxu0 0.0
        %v1926 = vand.u32 %v1630, 4294901760
        %v1927 = vsub.f32 %v1630, %v1926
        %1928 = vmatpush1.xpose.msra.mxu0 %v1927
        %1929 = vmatprep.subr.mxu0 0.0
        %v1930 = vand.u32 %v1633, 4294901760
        %v1931 = vsub.f32 %v1633, %v1930
        %1932 = vmatpush1.xpose.msra.mxu0 %v1931
        %1933 = vmatprep.subr.mxu0 0.0
        %v1934 = vand.u32 %v1636, 4294901760
        %v1935 = vsub.f32 %v1636, %v1934
        %1936 = vmatpush1.xpose.msra.mxu0 %v1935
        %1937 = vmatprep.subr.mxu0 0.0
        %v1938 = vand.u32 %v1639, 4294901760
        %v1939 = vsub.f32 %v1639, %v1938
        %1940 = vmatpush1.xpose.msra.mxu0 %v1939
        %1941 = vmatprep.subr.mxu0 0.0
        %v1942 = vand.u32 %v1642, 4294901760
        %v1943 = vsub.f32 %v1642, %v1942
        %1944 = vmatpush1.xpose.msra.mxu0 %v1943
        %1945 = vmatprep.subr.mxu0 0.0
        %v1946 = vand.u32 %v1645, 4294901760
        %v1947 = vsub.f32 %v1645, %v1946
        %1948 = vmatpush1.xpose.msra.mxu0 %v1947
        %1949 = vmatprep.subr.mxu0 0.0
        %v1950 = vand.u32 %v1648, 4294901760
        %v1951 = vsub.f32 %v1648, %v1950
        %1952 = vmatpush1.xpose.msra.mxu0 %v1951
        %1953 = vmatprep.subr.mxu0 0.0
        %v1954 = vand.u32 %v1651, 4294901760
        %v1955 = vsub.f32 %v1651, %v1954
        %1956 = vmatpush1.xpose.msra.mxu0 %v1955
        %1957 = vmatprep.subr.mxu0 0.0
        %v1958 = vand.u32 %v1654, 4294901760
        %v1959 = vsub.f32 %v1654, %v1958
        %1960 = vmatpush1.xpose.msra.mxu0 %v1959
        %1961 = vmatprep.subr.mxu0 0.0
        %v1962 = vand.u32 %v1657, 4294901760
        %v1963 = vsub.f32 %v1657, %v1962
        %1964 = vmatpush1.xpose.msra.mxu0 %v1963
        %1965 = vmatprep.subr.mxu0 0.0
        %1966 = vmatpush1.xpose.msra.mxu0 0.0
        %1967 = vmatprep.subr.mxu0 0.0
        %1968 = vmatpush1.xpose.msra.mxu0 0.0
        %1969 = vmatprep.subr.mxu0 0.0
        %1970 = vmatpush1.xpose.msra.mxu0 0.0
        %1971 = vmatprep.subr.mxu0 0.0
        %1972 = vmatpush1.xpose.msra.mxu0 0.0
        %1973 = vmatprep.subr.mxu0 0.0
        %1974 = vmatpush1.xpose.msra.mxu0 0.0
        %1975 = vmatprep.subr.mxu0 0.0
        %1976 = vmatpush1.xpose.msra.mxu0 0.0
        %1977 = vmatprep.subr.mxu0 0.0
        %1978 = vmatpush1.xpose.msra.mxu0 0.0
        %1979 = vmatprep.subr.mxu0 0.0
        %1980 = vmatpush1.xpose.msra.mxu0 0.0
        %1981 = vmatprep.subr.mxu0 0.0
        %1982 = vmatpush1.xpose.msra.mxu0 0.0
        %1983 = vmatprep.subr.mxu0 0.0
        %1984 = vmatpush1.xpose.msra.mxu0 0.0
        %1985 = vmatprep.subr.mxu0 0.0
        %1986 = vmatpush1.xpose.msra.mxu0 0.0
        %1987 = vmatprep.subr.mxu0 0.0
        %1988 = vmatpush1.xpose.msra.mxu0 0.0
        %1989 = vmatprep.subr.mxu0 0.0
        %1990 = vmatpush1.xpose.msra.mxu0 0.0
        %1991 = vmatprep.subr.mxu0 0.0
        %1992 = vmatpush1.xpose.msra.mxu0 0.0
        %1993 = vmatprep.subr.mxu0 0.0
        %1994 = vmatpush1.xpose.msra.mxu0 0.0
        %1995 = vmatprep.subr.mxu0 0.0
        %1996 = vmatpush1.xpose.msra.mxu0 0.0
        %1997 = vmatprep.mubr.f32.mxu0 0.0
        %v1998 = vand.u32 %v1609, 4294901760
        %v1999 = vsub.f32 %v1609, %v1998
        %2000 = vmatmul.mubr.f32.gmra.mrb[0].mxu0 %v1999
        %v2001 = vpop.f32.mrb[0].mxu0
        %v2002 = vadd.f32 %v1898, %v2001
        %v2003 = vpop.f32.mrb[0].mxu0
        %2004 = vdwg.mxu0
        %2005 = vmatprep.subr.mxu0 0.0
        %v2006 = vand.u32 %v1612, 4294901760
        %2007 = vmatpush1.xpose.msra.mxu0 %v2006
        %2008 = vmatprep.subr.mxu0 0.0
        %v2009 = vand.u32 %v1615, 4294901760
        %2010 = vmatpush1.xpose.msra.mxu0 %v2009
        %2011 = vmatprep.subr.mxu0 0.0
        %v2012 = vand.u32 %v1618, 4294901760
        %2013 = vmatpush1.xpose.msra.mxu0 %v2012
        %2014 = vmatprep.subr.mxu0 0.0
        %v2015 = vand.u32 %v1621, 4294901760
        %2016 = vmatpush1.xpose.msra.mxu0 %v2015
        %2017 = vmatprep.subr.mxu0 0.0
        %v2018 = vand.u32 %v1624, 4294901760
        %2019 = vmatpush1.xpose.msra.mxu0 %v2018
        %2020 = vmatprep.subr.mxu0 0.0
        %v2021 = vand.u32 %v1627, 4294901760
        %2022 = vmatpush1.xpose.msra.mxu0 %v2021
        %2023 = vmatprep.subr.mxu0 0.0
        %v2024 = vand.u32 %v1630, 4294901760
        %2025 = vmatpush1.xpose.msra.mxu0 %v2024
        %2026 = vmatprep.subr.mxu0 0.0
        %v2027 = vand.u32 %v1633, 4294901760
        %2028 = vmatpush1.xpose.msra.mxu0 %v2027
        %2029 = vmatprep.subr.mxu0 0.0
        %v2030 = vand.u32 %v1636, 4294901760
        %2031 = vmatpush1.xpose.msra.mxu0 %v2030
        %2032 = vmatprep.subr.mxu0 0.0
        %v2033 = vand.u32 %v1639, 4294901760
        %2034 = vmatpush1.xpose.msra.mxu0 %v2033
        %2035 = vmatprep.subr.mxu0 0.0
        %v2036 = vand.u32 %v1642, 4294901760
        %2037 = vmatpush1.xpose.msra.mxu0 %v2036
        %2038 = vmatprep.subr.mxu0 0.0
        %v2039 = vand.u32 %v1645, 4294901760
        %2040 = vmatpush1.xpose.msra.mxu0 %v2039
        %2041 = vmatprep.subr.mxu0 0.0
        %v2042 = vand.u32 %v1648, 4294901760
        %2043 = vmatpush1.xpose.msra.mxu0 %v2042
        %2044 = vmatprep.subr.mxu0 0.0
        %v2045 = vand.u32 %v1651, 4294901760
        %2046 = vmatpush1.xpose.msra.mxu0 %v2045
        %2047 = vmatprep.subr.mxu0 0.0
        %v2048 = vand.u32 %v1654, 4294901760
        %2049 = vmatpush1.xpose.msra.mxu0 %v2048
        %2050 = vmatprep.subr.mxu0 0.0
        %v2051 = vand.u32 %v1657, 4294901760
        %2052 = vmatpush1.xpose.msra.mxu0 %v2051
        %2053 = vmatprep.subr.mxu0 0.0
        %2054 = vmatpush1.xpose.msra.mxu0 0.0
        %2055 = vmatprep.subr.mxu0 0.0
        %2056 = vmatpush1.xpose.msra.mxu0 0.0
        %2057 = vmatprep.subr.mxu0 0.0
        %2058 = vmatpush1.xpose.msra.mxu0 0.0
        %2059 = vmatprep.subr.mxu0 0.0
        %2060 = vmatpush1.xpose.msra.mxu0 0.0
        %2061 = vmatprep.subr.mxu0 0.0
        %2062 = vmatpush1.xpose.msra.mxu0 0.0
        %2063 = vmatprep.subr.mxu0 0.0
        %2064 = vmatpush1.xpose.msra.mxu0 0.0
        %2065 = vmatprep.subr.mxu0 0.0
        %2066 = vmatpush1.xpose.msra.mxu0 0.0
        %2067 = vmatprep.subr.mxu0 0.0
        %2068 = vmatpush1.xpose.msra.mxu0 0.0
        %2069 = vmatprep.subr.mxu0 0.0
        %2070 = vmatpush1.xpose.msra.mxu0 0.0
        %2071 = vmatprep.subr.mxu0 0.0
        %2072 = vmatpush1.xpose.msra.mxu0 0.0
        %2073 = vmatprep.subr.mxu0 0.0
        %2074 = vmatpush1.xpose.msra.mxu0 0.0
        %2075 = vmatprep.subr.mxu0 0.0
        %2076 = vmatpush1.xpose.msra.mxu0 0.0
        %2077 = vmatprep.subr.mxu0 0.0
        %2078 = vmatpush1.xpose.msra.mxu0 0.0
        %2079 = vmatprep.subr.mxu0 0.0
        %2080 = vmatpush1.xpose.msra.mxu0 0.0
        %2081 = vmatprep.subr.mxu0 0.0
        %2082 = vmatpush1.xpose.msra.mxu0 0.0
        %2083 = vmatprep.subr.mxu0 0.0
        %2084 = vmatpush1.xpose.msra.mxu0 0.0
        %2085 = vmatprep.mubr.f32.mxu0 0.0
        %v2086 = vand.u32 %v1609, 4294901760
        %v2087 = vsub.f32 %v1609, %v2086
        %v2088 = vand.u32 %v2087, 4294901760
        %2089 = vmatmul.mubr.f32.gmra.mrb[0].mxu0 %v2088
        %v2090 = vpop.f32.mrb[0].mxu0
        %v2091 = vadd.f32 %v2002, %v2090
        %v2092 = vpop.f32.mrb[0].mxu0
        %2093 = vdwg.mxu0
        %2094 = vmatprep.subr.mxu0 0.0
        %v2095 = vand.u32 %v1612, 4294901760
        %v2096 = vsub.f32 %v1612, %v2095
        %v2097 = vand.u32 %v2096, 4294901760
        %2098 = vmatpush1.xpose.msra.mxu0 %v2097
        %2099 = vmatprep.subr.mxu0 0.0
        %v2100 = vand.u32 %v1615, 4294901760
        %v2101 = vsub.f32 %v1615, %v2100
        %v2102 = vand.u32 %v2101, 4294901760
        %2103 = vmatpush1.xpose.msra.mxu0 %v2102
        %2104 = vmatprep.subr.mxu0 0.0
        %v2105 = vand.u32 %v1618, 4294901760
        %v2106 = vsub.f32 %v1618, %v2105
        %v2107 = vand.u32 %v2106, 4294901760
        %2108 = vmatpush1.xpose.msra.mxu0 %v2107
        %2109 = vmatprep.subr.mxu0 0.0
        %v2110 = vand.u32 %v1621, 4294901760
        %v2111 = vsub.f32 %v1621, %v2110
        %v2112 = vand.u32 %v2111, 4294901760
        %2113 = vmatpush1.xpose.msra.mxu0 %v2112
        %2114 = vmatprep.subr.mxu0 0.0
        %v2115 = vand.u32 %v1624, 4294901760
        %v2116 = vsub.f32 %v1624, %v2115
        %v2117 = vand.u32 %v2116, 4294901760
        %2118 = vmatpush1.xpose.msra.mxu0 %v2117
        %2119 = vmatprep.subr.mxu0 0.0
        %v2120 = vand.u32 %v1627, 4294901760
        %v2121 = vsub.f32 %v1627, %v2120
        %v2122 = vand.u32 %v2121, 4294901760
        %2123 = vmatpush1.xpose.msra.mxu0 %v2122
        %2124 = vmatprep.subr.mxu0 0.0
        %v2125 = vand.u32 %v1630, 4294901760
        %v2126 = vsub.f32 %v1630, %v2125
        %v2127 = vand.u32 %v2126, 4294901760
        %2128 = vmatpush1.xpose.msra.mxu0 %v2127
        %2129 = vmatprep.subr.mxu0 0.0
        %v2130 = vand.u32 %v1633, 4294901760
        %v2131 = vsub.f32 %v1633, %v2130
        %v2132 = vand.u32 %v2131, 4294901760
        %2133 = vmatpush1.xpose.msra.mxu0 %v2132
        %2134 = vmatprep.subr.mxu0 0.0
        %v2135 = vand.u32 %v1636, 4294901760
        %v2136 = vsub.f32 %v1636, %v2135
        %v2137 = vand.u32 %v2136, 4294901760
        %2138 = vmatpush1.xpose.msra.mxu0 %v2137
        %2139 = vmatprep.subr.mxu0 0.0
        %v2140 = vand.u32 %v1639, 4294901760
        %v2141 = vsub.f32 %v1639, %v2140
        %v2142 = vand.u32 %v2141, 4294901760
        %2143 = vmatpush1.xpose.msra.mxu0 %v2142
        %2144 = vmatprep.subr.mxu0 0.0
        %v2145 = vand.u32 %v1642, 4294901760
        %v2146 = vsub.f32 %v1642, %v2145
        %v2147 = vand.u32 %v2146, 4294901760
        %2148 = vmatpush1.xpose.msra.mxu0 %v2147
        %2149 = vmatprep.subr.mxu0 0.0
        %v2150 = vand.u32 %v1645, 4294901760
        %v2151 = vsub.f32 %v1645, %v2150
        %v2152 = vand.u32 %v2151, 4294901760
        %2153 = vmatpush1.xpose.msra.mxu0 %v2152
        %2154 = vmatprep.subr.mxu0 0.0
        %v2155 = vand.u32 %v1648, 4294901760
        %v2156 = vsub.f32 %v1648, %v2155
        %v2157 = vand.u32 %v2156, 4294901760
        %2158 = vmatpush1.xpose.msra.mxu0 %v2157
        %2159 = vmatprep.subr.mxu0 0.0
        %v2160 = vand.u32 %v1651, 4294901760
        %v2161 = vsub.f32 %v1651, %v2160
        %v2162 = vand.u32 %v2161, 4294901760
        %2163 = vmatpush1.xpose.msra.mxu0 %v2162
        %2164 = vmatprep.subr.mxu0 0.0
        %v2165 = vand.u32 %v1654, 4294901760
        %v2166 = vsub.f32 %v1654, %v2165
        %v2167 = vand.u32 %v2166, 4294901760
        %2168 = vmatpush1.xpose.msra.mxu0 %v2167
        %2169 = vmatprep.subr.mxu0 0.0
        %v2170 = vand.u32 %v1657, 4294901760
        %v2171 = vsub.f32 %v1657, %v2170
        %v2172 = vand.u32 %v2171, 4294901760
        %2173 = vmatpush1.xpose.msra.mxu0 %v2172
        %2174 = vmatprep.subr.mxu0 0.0
        %2175 = vmatpush1.xpose.msra.mxu0 0.0
        %2176 = vmatprep.subr.mxu0 0.0
        %2177 = vmatpush1.xpose.msra.mxu0 0.0
        %2178 = vmatprep.subr.mxu0 0.0
        %2179 = vmatpush1.xpose.msra.mxu0 0.0
        %2180 = vmatprep.subr.mxu0 0.0
        %2181 = vmatpush1.xpose.msra.mxu0 0.0
        %2182 = vmatprep.subr.mxu0 0.0
        %2183 = vmatpush1.xpose.msra.mxu0 0.0
        %2184 = vmatprep.subr.mxu0 0.0
        %2185 = vmatpush1.xpose.msra.mxu0 0.0
        %2186 = vmatprep.subr.mxu0 0.0
        %2187 = vmatpush1.xpose.msra.mxu0 0.0
        %2188 = vmatprep.subr.mxu0 0.0
        %2189 = vmatpush1.xpose.msra.mxu0 0.0
        %2190 = vmatprep.subr.mxu0 0.0
        %2191 = vmatpush1.xpose.msra.mxu0 0.0
        %2192 = vmatprep.subr.mxu0 0.0
        %2193 = vmatpush1.xpose.msra.mxu0 0.0
        %2194 = vmatprep.subr.mxu0 0.0
        %2195 = vmatpush1.xpose.msra.mxu0 0.0
        %2196 = vmatprep.subr.mxu0 0.0
        %2197 = vmatpush1.xpose.msra.mxu0 0.0
        %2198 = vmatprep.subr.mxu0 0.0
        %2199 = vmatpush1.xpose.msra.mxu0 0.0
        %2200 = vmatprep.subr.mxu0 0.0
        %2201 = vmatpush1.xpose.msra.mxu0 0.0
        %2202 = vmatprep.subr.mxu0 0.0
        %2203 = vmatpush1.xpose.msra.mxu0 0.0
        %2204 = vmatprep.subr.mxu0 0.0
        %2205 = vmatpush1.xpose.msra.mxu0 0.0
        %2206 = vmatprep.mubr.f32.mxu0 0.0
        %v2207 = vand.u32 %v1609, 4294901760
        %2208 = vmatmul.mubr.f32.gmra.mrb[0].mxu0 %v2207
        %v2209 = vpop.f32.mrb[0].mxu0
        %v2210 = vadd.f32 %v2091, %v2209
        %v2211 = vpop.f32.mrb[0].mxu0
        %2212 = vdwg.mxu0
        %2213 = vmatprep.subr.mxu0 0.0
        %v2214 = vand.u32 %v1612, 4294901760
        %2215 = vmatpush1.xpose.msra.mxu0 %v2214
        %2216 = vmatprep.subr.mxu0 0.0
        %v2217 = vand.u32 %v1615, 4294901760
        %2218 = vmatpush1.xpose.msra.mxu0 %v2217
        %2219 = vmatprep.subr.mxu0 0.0
        %v2220 = vand.u32 %v1618, 4294901760
        %2221 = vmatpush1.xpose.msra.mxu0 %v2220
        %2222 = vmatprep.subr.mxu0 0.0
        %v2223 = vand.u32 %v1621, 4294901760
        %2224 = vmatpush1.xpose.msra.mxu0 %v2223
        %2225 = vmatprep.subr.mxu0 0.0
        %v2226 = vand.u32 %v1624, 4294901760
        %2227 = vmatpush1.xpose.msra.mxu0 %v2226
        %2228 = vmatprep.subr.mxu0 0.0
        %v2229 = vand.u32 %v1627, 4294901760
        %2230 = vmatpush1.xpose.msra.mxu0 %v2229
        %2231 = vmatprep.subr.mxu0 0.0
        %v2232 = vand.u32 %v1630, 4294901760
        %2233 = vmatpush1.xpose.msra.mxu0 %v2232
        %2234 = vmatprep.subr.mxu0 0.0
        %v2235 = vand.u32 %v1633, 4294901760
        %2236 = vmatpush1.xpose.msra.mxu0 %v2235
        %2237 = vmatprep.subr.mxu0 0.0
        %v2238 = vand.u32 %v1636, 4294901760
        %2239 = vmatpush1.xpose.msra.mxu0 %v2238
        %2240 = vmatprep.subr.mxu0 0.0
        %v2241 = vand.u32 %v1639, 4294901760
        %2242 = vmatpush1.xpose.msra.mxu0 %v2241
        %2243 = vmatprep.subr.mxu0 0.0
        %v2244 = vand.u32 %v1642, 4294901760
        %2245 = vmatpush1.xpose.msra.mxu0 %v2244
        %2246 = vmatprep.subr.mxu0 0.0
        %v2247 = vand.u32 %v1645, 4294901760
        %2248 = vmatpush1.xpose.msra.mxu0 %v2247
        %2249 = vmatprep.subr.mxu0 0.0
        %v2250 = vand.u32 %v1648, 4294901760
        %2251 = vmatpush1.xpose.msra.mxu0 %v2250
        %2252 = vmatprep.subr.mxu0 0.0
        %v2253 = vand.u32 %v1651, 4294901760
        %2254 = vmatpush1.xpose.msra.mxu0 %v2253
        %2255 = vmatprep.subr.mxu0 0.0
        %v2256 = vand.u32 %v1654, 4294901760
        %2257 = vmatpush1.xpose.msra.mxu0 %v2256
        %2258 = vmatprep.subr.mxu0 0.0
        %v2259 = vand.u32 %v1657, 4294901760
        %2260 = vmatpush1.xpose.msra.mxu0 %v2259
        %2261 = vmatprep.subr.mxu0 0.0
        %2262 = vmatpush1.xpose.msra.mxu0 0.0
        %2263 = vmatprep.subr.mxu0 0.0
        %2264 = vmatpush1.xpose.msra.mxu0 0.0
        %2265 = vmatprep.subr.mxu0 0.0
        %2266 = vmatpush1.xpose.msra.mxu0 0.0
        %2267 = vmatprep.subr.mxu0 0.0
        %2268 = vmatpush1.xpose.msra.mxu0 0.0
        %2269 = vmatprep.subr.mxu0 0.0
        %2270 = vmatpush1.xpose.msra.mxu0 0.0
        %2271 = vmatprep.subr.mxu0 0.0
        %2272 = vmatpush1.xpose.msra.mxu0 0.0
        %2273 = vmatprep.subr.mxu0 0.0
        %2274 = vmatpush1.xpose.msra.mxu0 0.0
        %2275 = vmatprep.subr.mxu0 0.0
        %2276 = vmatpush1.xpose.msra.mxu0 0.0
        %2277 = vmatprep.subr.mxu0 0.0
        %2278 = vmatpush1.xpose.msra.mxu0 0.0
        %2279 = vmatprep.subr.mxu0 0.0
        %2280 = vmatpush1.xpose.msra.mxu0 0.0
        %2281 = vmatprep.subr.mxu0 0.0
        %2282 = vmatpush1.xpose.msra.mxu0 0.0
        %2283 = vmatprep.subr.mxu0 0.0
        %2284 = vmatpush1.xpose.msra.mxu0 0.0
        %2285 = vmatprep.subr.mxu0 0.0
        %2286 = vmatpush1.xpose.msra.mxu0 0.0
        %2287 = vmatprep.subr.mxu0 0.0
        %2288 = vmatpush1.xpose.msra.mxu0 0.0
        %2289 = vmatprep.subr.mxu0 0.0
        %2290 = vmatpush1.xpose.msra.mxu0 0.0
        %2291 = vmatprep.subr.mxu0 0.0
        %2292 = vmatpush1.xpose.msra.mxu0 0.0
        %2293 = vmatprep.mubr.f32.mxu0 0.0
        %v2294 = vand.u32 %v1609, 4294901760
        %2295 = vmatmul.mubr.f32.gmra.mrb[0].mxu0 %v2294
        %v2296 = vpop.f32.mrb[0].mxu0
        %v2297 = vadd.f32 %v2210, %v2296
        %v2298 = vpop.f32.mrb[0].mxu0
        %2299 = vdwg.mxu0
        %v2300 = vsel %vm1560, 3.4028235e+38, %v1334
        %v2301 = vsel %vm1561, 3.4028235e+38, %v1340
        %v2302 = vsel %vm1562, 3.4028235e+38, %v1346
        %v2303 = vsel %vm1563, 3.4028235e+38, %v1352
        %v2304 = vsel %vm1564, 3.4028235e+38, %v1358
        %v2305 = vsel %vm1565, 3.4028235e+38, %v1364
        %v2306 = vsel %vm1566, 3.4028235e+38, %v1370
        %v2307 = vsel %vm1567, 3.4028235e+38, %v1376
        %v2308 = vsel %vm1568, 3.4028235e+38, %v1382
        %v2309 = vsel %vm1569, 3.4028235e+38, %v1388
        %v2310 = vsel %vm1570, 3.4028235e+38, %v1394
        %v2311 = vsel %vm1571, 3.4028235e+38, %v1400
        %v2312 = vsel %vm1572, 3.4028235e+38, %v1406
        %v2313 = vsel %vm1573, 3.4028235e+38, %v1412
        %v2314 = vsel %vm1574, 3.4028235e+38, %v1418
        %v2315 = vsel %vm1575, 3.4028235e+38, %v1424
        %v2316 = vsel %vm1427, %v2300, inf
        %2317 = vmin.xlane.f32.xlu0 %v2316
        %v2318 = vpop.xlane.xlu0 %2317
        %v2319 = vsel %vm1427, %v2301, inf
        %2320 = vmin.xlane.f32.xlu0 %v2319
        %v2321 = vpop.xlane.xlu0 %2320
        %v2322 = vsel %vm1427, %v2302, inf
        %2323 = vmin.xlane.f32.xlu0 %v2322
        %v2324 = vpop.xlane.xlu0 %2323
        %v2325 = vsel %vm1427, %v2303, inf
        %2326 = vmin.xlane.f32.xlu0 %v2325
        %v2327 = vpop.xlane.xlu0 %2326
        %v2328 = vsel %vm1427, %v2304, inf
        %2329 = vmin.xlane.f32.xlu0 %v2328
        %v2330 = vpop.xlane.xlu0 %2329
        %v2331 = vsel %vm1427, %v2305, inf
        %2332 = vmin.xlane.f32.xlu0 %v2331
        %v2333 = vpop.xlane.xlu0 %2332
        %v2334 = vsel %vm1427, %v2306, inf
        %2335 = vmin.xlane.f32.xlu0 %v2334
        %v2336 = vpop.xlane.xlu0 %2335
        %v2337 = vsel %vm1427, %v2307, inf
        %2338 = vmin.xlane.f32.xlu0 %v2337
        %v2339 = vpop.xlane.xlu0 %2338
        %v2340 = vsel %vm1427, %v2308, inf
        %2341 = vmin.xlane.f32.xlu0 %v2340
        %v2342 = vpop.xlane.xlu0 %2341
        %v2343 = vsel %vm1427, %v2309, inf
        %2344 = vmin.xlane.f32.xlu0 %v2343
        %v2345 = vpop.xlane.xlu0 %2344
        %v2346 = vsel %vm1427, %v2310, inf
        %2347 = vmin.xlane.f32.xlu0 %v2346
        %v2348 = vpop.xlane.xlu0 %2347
        %v2349 = vsel %vm1427, %v2311, inf
        %2350 = vmin.xlane.f32.xlu0 %v2349
        %v2351 = vpop.xlane.xlu0 %2350
        %v2352 = vsel %vm1427, %v2312, inf
        %2353 = vmin.xlane.f32.xlu0 %v2352
        %v2354 = vpop.xlane.xlu0 %2353
        %v2355 = vsel %vm1427, %v2313, inf
        %2356 = vmin.xlane.f32.xlu0 %v2355
        %v2357 = vpop.xlane.xlu0 %2356
        %v2358 = vsel %vm1427, %v2314, inf
        %2359 = vmin.xlane.f32.xlu0 %v2358
        %v2360 = vpop.xlane.xlu0 %2359
        %v2361 = vsel %vm1427, %v2315, inf
        %2362 = vmin.xlane.f32.xlu0 %v2361
        %v2363 = vpop.xlane.xlu0 %2362
        %vm2364 = vcmp.le.f32.partialorder %v2300, %v2318
        %vm2365 = vcmp.le.f32.partialorder %v2301, %v2321
        %vm2366 = vcmp.le.f32.partialorder %v2302, %v2324
        %vm2367 = vcmp.le.f32.partialorder %v2303, %v2327
        %vm2368 = vcmp.le.f32.partialorder %v2304, %v2330
        %vm2369 = vcmp.le.f32.partialorder %v2305, %v2333
        %vm2370 = vcmp.le.f32.partialorder %v2306, %v2336
        %vm2371 = vcmp.le.f32.partialorder %v2307, %v2339
        %vm2372 = vcmp.le.f32.partialorder %v2308, %v2342
        %vm2373 = vcmp.le.f32.partialorder %v2309, %v2345
        %vm2374 = vcmp.le.f32.partialorder %v2310, %v2348
        %vm2375 = vcmp.le.f32.partialorder %v2311, %v2351
        %vm2376 = vcmp.le.f32.partialorder %v2312, %v2354
        %vm2377 = vcmp.le.f32.partialorder %v2313, %v2357
        %vm2378 = vcmp.le.f32.partialorder %v2314, %v2360
        %vm2379 = vcmp.le.f32.partialorder %v2315, %v2363
        %v2380 = vsel %vm2364, %v1495, 16.0
        %v2381 = vsel %vm2365, %v1495, 16.0
        %v2382 = vsel %vm2366, %v1495, 16.0
        %v2383 = vsel %vm2367, %v1495, 16.0
        %v2384 = vsel %vm2368, %v1495, 16.0
        %v2385 = vsel %vm2369, %v1495, 16.0
        %v2386 = vsel %vm2370, %v1495, 16.0
        %v2387 = vsel %vm2371, %v1495, 16.0
        %v2388 = vsel %vm2372, %v1495, 16.0
        %v2389 = vsel %vm2373, %v1495, 16.0
        %v2390 = vsel %vm2374, %v1495, 16.0
        %v2391 = vsel %vm2375, %v1495, 16.0
        %v2392 = vsel %vm2376, %v1495, 16.0
        %v2393 = vsel %vm2377, %v1495, 16.0
        %v2394 = vsel %vm2378, %v1495, 16.0
        %v2395 = vsel %vm2379, %v1495, 16.0
        %v2396 = vsel %vm1427, %v2380, inf
        %2397 = vmin.xlane.f32.xlu0 %v2396
        %v2398 = vpop.xlane.xlu0 %2397
        %v2399 = vsel %vm1427, %v2381, inf
        %2400 = vmin.xlane.f32.xlu0 %v2399
        %v2401 = vpop.xlane.xlu0 %2400
        %v2402 = vsel %vm1427, %v2382, inf
        %2403 = vmin.xlane.f32.xlu0 %v2402
        %v2404 = vpop.xlane.xlu0 %2403
        %v2405 = vsel %vm1427, %v2383, inf
        %2406 = vmin.xlane.f32.xlu0 %v2405
        %v2407 = vpop.xlane.xlu0 %2406
        %v2408 = vsel %vm1427, %v2384, inf
        %2409 = vmin.xlane.f32.xlu0 %v2408
        %v2410 = vpop.xlane.xlu0 %2409
        %v2411 = vsel %vm1427, %v2385, inf
        %2412 = vmin.xlane.f32.xlu0 %v2411
        %v2413 = vpop.xlane.xlu0 %2412
        %v2414 = vsel %vm1427, %v2386, inf
        %2415 = vmin.xlane.f32.xlu0 %v2414
        %v2416 = vpop.xlane.xlu0 %2415
        %v2417 = vsel %vm1427, %v2387, inf
        %2418 = vmin.xlane.f32.xlu0 %v2417
        %v2419 = vpop.xlane.xlu0 %2418
        %v2420 = vsel %vm1427, %v2388, inf
        %2421 = vmin.xlane.f32.xlu0 %v2420
        %v2422 = vpop.xlane.xlu0 %2421
        %v2423 = vsel %vm1427, %v2389, inf
        %2424 = vmin.xlane.f32.xlu0 %v2423
        %v2425 = vpop.xlane.xlu0 %2424
        %v2426 = vsel %vm1427, %v2390, inf
        %2427 = vmin.xlane.f32.xlu0 %v2426
        %v2428 = vpop.xlane.xlu0 %2427
        %v2429 = vsel %vm1427, %v2391, inf
        %2430 = vmin.xlane.f32.xlu0 %v2429
        %v2431 = vpop.xlane.xlu0 %2430
        %v2432 = vsel %vm1427, %v2392, inf
        %2433 = vmin.xlane.f32.xlu0 %v2432
        %v2434 = vpop.xlane.xlu0 %2433
        %v2435 = vsel %vm1427, %v2393, inf
        %2436 = vmin.xlane.f32.xlu0 %v2435
        %v2437 = vpop.xlane.xlu0 %2436
        %v2438 = vsel %vm1427, %v2394, inf
        %2439 = vmin.xlane.f32.xlu0 %v2438
        %v2440 = vpop.xlane.xlu0 %2439
        %v2441 = vsel %vm1427, %v2395, inf
        %2442 = vmin.xlane.f32.xlu0 %v2441
        %v2443 = vpop.xlane.xlu0 %2442
        %vm2444 = vcmp.eq.f32.partialorder %v1495, %v2398
        %vm2445 = vcmp.eq.f32.partialorder %v1495, %v2401
        %vm2446 = vcmp.eq.f32.partialorder %v1495, %v2404
        %vm2447 = vcmp.eq.f32.partialorder %v1495, %v2407
        %vm2448 = vcmp.eq.f32.partialorder %v1495, %v2410
        %vm2449 = vcmp.eq.f32.partialorder %v1495, %v2413
        %vm2450 = vcmp.eq.f32.partialorder %v1495, %v2416
        %vm2451 = vcmp.eq.f32.partialorder %v1495, %v2419
        %vm2452 = vcmp.eq.f32.partialorder %v1495, %v2422
        %vm2453 = vcmp.eq.f32.partialorder %v1495, %v2425
        %vm2454 = vcmp.eq.f32.partialorder %v1495, %v2428
        %vm2455 = vcmp.eq.f32.partialorder %v1495, %v2431
        %vm2456 = vcmp.eq.f32.partialorder %v1495, %v2434
        %vm2457 = vcmp.eq.f32.partialorder %v1495, %v2437
        %vm2458 = vcmp.eq.f32.partialorder %v1495, %v2440
        %vm2459 = vcmp.eq.f32.partialorder %v1495, %v2443
        %v2460 = vsel %vm2444, 1, 0
        %v2461 = vsel %vm2445, 1, 0
        %v2462 = vsel %vm2446, 1, 0
        %v2463 = vsel %vm2447, 1, 0
        %v2464 = vsel %vm2448, 1, 0
        %v2465 = vsel %vm2449, 1, 0
        %v2466 = vsel %vm2450, 1, 0
        %v2467 = vsel %vm2451, 1, 0
        %v2468 = vsel %vm2452, 1, 0
        %v2469 = vsel %vm2453, 1, 0
        %v2470 = vsel %vm2454, 1, 0
        %v2471 = vsel %vm2455, 1, 0
        %v2472 = vsel %vm2456, 1, 0
        %v2473 = vsel %vm2457, 1, 0
        %v2474 = vsel %vm2458, 1, 0
        %v2475 = vsel %vm2459, 1, 0
        %v2476 = vcvt.s32.f32 %v2460
        %v2477 = vcvt.s32.f32 %v2461
        %v2478 = vcvt.s32.f32 %v2462
        %v2479 = vcvt.s32.f32 %v2463
        %v2480 = vcvt.s32.f32 %v2464
        %v2481 = vcvt.s32.f32 %v2465
        %v2482 = vcvt.s32.f32 %v2466
        %v2483 = vcvt.s32.f32 %v2467
        %v2484 = vcvt.s32.f32 %v2468
        %v2485 = vcvt.s32.f32 %v2469
        %v2486 = vcvt.s32.f32 %v2470
        %v2487 = vcvt.s32.f32 %v2471
        %v2488 = vcvt.s32.f32 %v2472
        %v2489 = vcvt.s32.f32 %v2473
        %v2490 = vcvt.s32.f32 %v2474
        %v2491 = vcvt.s32.f32 %v2475
        %v2493 = vsel %vm1427, %v2476, 0
        %v2496 = vsel %vm1427, %v2477, 0
        %v2499 = vsel %vm1427, %v2478, 0
        %v2502 = vsel %vm1427, %v2479, 0
        %v2505 = vsel %vm1427, %v2480, 0
        %v2508 = vsel %vm1427, %v2481, 0
        %v2511 = vsel %vm1427, %v2482, 0
        %v2514 = vsel %vm1427, %v2483, 0
        %v2517 = vsel %vm1427, %v2484, 0
        %v2520 = vsel %vm1427, %v2485, 0
        %v2523 = vsel %vm1427, %v2486, 0
        %v2526 = vsel %vm1427, %v2487, 0
        %v2529 = vsel %vm1427, %v2488, 0
        %v2532 = vsel %vm1427, %v2489, 0
        %v2535 = vsel %vm1427, %v2490, 0
        %v2538 = vsel %vm1427, %v2491, 0
        %2540 = vmatprep.subr.mxu0 0.0
        %v2541 = vand.u32 %v2493, 4294901760
        %2542 = vmatpush1.xpose.msra.mxu0 %v2541
        %2543 = vmatprep.subr.mxu0 0.0
        %v2544 = vand.u32 %v2496, 4294901760
        %2545 = vmatpush1.xpose.msra.mxu0 %v2544
        %2546 = vmatprep.subr.mxu0 0.0
        %v2547 = vand.u32 %v2499, 4294901760
        %2548 = vmatpush1.xpose.msra.mxu0 %v2547
        %2549 = vmatprep.subr.mxu0 0.0
        %v2550 = vand.u32 %v2502, 4294901760
        %2551 = vmatpush1.xpose.msra.mxu0 %v2550
        %2552 = vmatprep.subr.mxu0 0.0
        %v2553 = vand.u32 %v2505, 4294901760
        %2554 = vmatpush1.xpose.msra.mxu0 %v2553
        %2555 = vmatprep.subr.mxu0 0.0
        %v2556 = vand.u32 %v2508, 4294901760
        %2557 = vmatpush1.xpose.msra.mxu0 %v2556
        %2558 = vmatprep.subr.mxu0 0.0
        %v2559 = vand.u32 %v2511, 4294901760
        %2560 = vmatpush1.xpose.msra.mxu0 %v2559
        %2561 = vmatprep.subr.mxu0 0.0
        %v2562 = vand.u32 %v2514, 4294901760
        %2563 = vmatpush1.xpose.msra.mxu0 %v2562
        %2564 = vmatprep.subr.mxu0 0.0
        %v2565 = vand.u32 %v2517, 4294901760
        %2566 = vmatpush1.xpose.msra.mxu0 %v2565
        %2567 = vmatprep.subr.mxu0 0.0
        %v2568 = vand.u32 %v2520, 4294901760
        %2569 = vmatpush1.xpose.msra.mxu0 %v2568
        %2570 = vmatprep.subr.mxu0 0.0
        %v2571 = vand.u32 %v2523, 4294901760
        %2572 = vmatpush1.xpose.msra.mxu0 %v2571
        %2573 = vmatprep.subr.mxu0 0.0
        %v2574 = vand.u32 %v2526, 4294901760
        %2575 = vmatpush1.xpose.msra.mxu0 %v2574
        %2576 = vmatprep.subr.mxu0 0.0
        %v2577 = vand.u32 %v2529, 4294901760
        %2578 = vmatpush1.xpose.msra.mxu0 %v2577
        %2579 = vmatprep.subr.mxu0 0.0
        %v2580 = vand.u32 %v2532, 4294901760
        %2581 = vmatpush1.xpose.msra.mxu0 %v2580
        %2582 = vmatprep.subr.mxu0 0.0
        %v2583 = vand.u32 %v2535, 4294901760
        %2584 = vmatpush1.xpose.msra.mxu0 %v2583
        %2585 = vmatprep.subr.mxu0 0.0
        %v2586 = vand.u32 %v2538, 4294901760
        %2587 = vmatpush1.xpose.msra.mxu0 %v2586
        %2588 = vmatprep.subr.mxu0 0.0
        %2589 = vmatpush1.xpose.msra.mxu0 0.0
        %2590 = vmatprep.subr.mxu0 0.0
        %2591 = vmatpush1.xpose.msra.mxu0 0.0
        %2592 = vmatprep.subr.mxu0 0.0
        %2593 = vmatpush1.xpose.msra.mxu0 0.0
        %2594 = vmatprep.subr.mxu0 0.0
        %2595 = vmatpush1.xpose.msra.mxu0 0.0
        %2596 = vmatprep.subr.mxu0 0.0
        %2597 = vmatpush1.xpose.msra.mxu0 0.0
        %2598 = vmatprep.subr.mxu0 0.0
        %2599 = vmatpush1.xpose.msra.mxu0 0.0
        %2600 = vmatprep.subr.mxu0 0.0
        %2601 = vmatpush1.xpose.msra.mxu0 0.0
        %2602 = vmatprep.subr.mxu0 0.0
        %2603 = vmatpush1.xpose.msra.mxu0 0.0
        %2604 = vmatprep.subr.mxu0 0.0
        %2605 = vmatpush1.xpose.msra.mxu0 0.0
        %2606 = vmatprep.subr.mxu0 0.0
        %2607 = vmatpush1.xpose.msra.mxu0 0.0
        %2608 = vmatprep.subr.mxu0 0.0
        %2609 = vmatpush1.xpose.msra.mxu0 0.0
        %2610 = vmatprep.subr.mxu0 0.0
        %2611 = vmatpush1.xpose.msra.mxu0 0.0
        %2612 = vmatprep.subr.mxu0 0.0
        %2613 = vmatpush1.xpose.msra.mxu0 0.0
        %2614 = vmatprep.subr.mxu0 0.0
        %2615 = vmatpush1.xpose.msra.mxu0 0.0
        %2616 = vmatprep.subr.mxu0 0.0
        %2617 = vmatpush1.xpose.msra.mxu0 0.0
        %2618 = vmatprep.subr.mxu0 0.0
        %2619 = vmatpush1.xpose.msra.mxu0 0.0
        %2620 = vmatprep.mubr.f32.mxu0 0.0
        %v2621 = vand.u32 %v1609, 4294901760
        %v2622 = vsub.f32 %v1609, %v2621
        %v2623 = vand.u32 %v2622, 4294901760
        %v2624 = vsub.f32 %v2622, %v2623
        %v2625 = vand.u32 %v2624, 4294901760
        %2626 = vmatmul.mubr.f32.gmra.mrb[0].mxu0 %v2625
        %v2627 = vpop.f32.mrb[0].mxu0
        %v2628 = vadd.f32 0.0, %v2627
        %v2629 = vpop.f32.mrb[0].mxu0
        %2630 = vdwg.mxu0
        %2631 = vmatprep.subr.mxu0 0.0
        %v2632 = vand.u32 %v2493, 4294901760
        %v2633 = vsub.f32 %v2493, %v2632
        %v2634 = vand.u32 %v2633, 4294901760
        %v2635 = vsub.f32 %v2633, %v2634
        %v2636 = vand.u32 %v2635, 4294901760
        %2637 = vmatpush1.xpose.msra.mxu0 %v2636
        %2638 = vmatprep.subr.mxu0 0.0
        %v2639 = vand.u32 %v2496, 4294901760
        %v2640 = vsub.f32 %v2496, %v2639
        %v2641 = vand.u32 %v2640, 4294901760
        %v2642 = vsub.f32 %v2640, %v2641
        %v2643 = vand.u32 %v2642, 4294901760
        %2644 = vmatpush1.xpose.msra.mxu0 %v2643
        %2645 = vmatprep.subr.mxu0 0.0
        %v2646 = vand.u32 %v2499, 4294901760
        %v2647 = vsub.f32 %v2499, %v2646
        %v2648 = vand.u32 %v2647, 4294901760
        %v2649 = vsub.f32 %v2647, %v2648
        %v2650 = vand.u32 %v2649, 4294901760
        %2651 = vmatpush1.xpose.msra.mxu0 %v2650
        %2652 = vmatprep.subr.mxu0 0.0
        %v2653 = vand.u32 %v2502, 4294901760
        %v2654 = vsub.f32 %v2502, %v2653
        %v2655 = vand.u32 %v2654, 4294901760
        %v2656 = vsub.f32 %v2654, %v2655
        %v2657 = vand.u32 %v2656, 4294901760
        %2658 = vmatpush1.xpose.msra.mxu0 %v2657
        %2659 = vmatprep.subr.mxu0 0.0
        %v2660 = vand.u32 %v2505, 4294901760
        %v2661 = vsub.f32 %v2505, %v2660
        %v2662 = vand.u32 %v2661, 4294901760
        %v2663 = vsub.f32 %v2661, %v2662
        %v2664 = vand.u32 %v2663, 4294901760
        %2665 = vmatpush1.xpose.msra.mxu0 %v2664
        %2666 = vmatprep.subr.mxu0 0.0
        %v2667 = vand.u32 %v2508, 4294901760
        %v2668 = vsub.f32 %v2508, %v2667
        %v2669 = vand.u32 %v2668, 4294901760
        %v2670 = vsub.f32 %v2668, %v2669
        %v2671 = vand.u32 %v2670, 4294901760
        %2672 = vmatpush1.xpose.msra.mxu0 %v2671
        %2673 = vmatprep.subr.mxu0 0.0
        %v2674 = vand.u32 %v2511, 4294901760
        %v2675 = vsub.f32 %v2511, %v2674
        %v2676 = vand.u32 %v2675, 4294901760
        %v2677 = vsub.f32 %v2675, %v2676
        %v2678 = vand.u32 %v2677, 4294901760
        %2679 = vmatpush1.xpose.msra.mxu0 %v2678
        %2680 = vmatprep.subr.mxu0 0.0
        %v2681 = vand.u32 %v2514, 4294901760
        %v2682 = vsub.f32 %v2514, %v2681
        %v2683 = vand.u32 %v2682, 4294901760
        %v2684 = vsub.f32 %v2682, %v2683
        %v2685 = vand.u32 %v2684, 4294901760
        %2686 = vmatpush1.xpose.msra.mxu0 %v2685
        %2687 = vmatprep.subr.mxu0 0.0
        %v2688 = vand.u32 %v2517, 4294901760
        %v2689 = vsub.f32 %v2517, %v2688
        %v2690 = vand.u32 %v2689, 4294901760
        %v2691 = vsub.f32 %v2689, %v2690
        %v2692 = vand.u32 %v2691, 4294901760
        %2693 = vmatpush1.xpose.msra.mxu0 %v2692
        %2694 = vmatprep.subr.mxu0 0.0
        %v2695 = vand.u32 %v2520, 4294901760
        %v2696 = vsub.f32 %v2520, %v2695
        %v2697 = vand.u32 %v2696, 4294901760
        %v2698 = vsub.f32 %v2696, %v2697
        %v2699 = vand.u32 %v2698, 4294901760
        %2700 = vmatpush1.xpose.msra.mxu0 %v2699
        %2701 = vmatprep.subr.mxu0 0.0
        %v2702 = vand.u32 %v2523, 4294901760
        %v2703 = vsub.f32 %v2523, %v2702
        %v2704 = vand.u32 %v2703, 4294901760
        %v2705 = vsub.f32 %v2703, %v2704
        %v2706 = vand.u32 %v2705, 4294901760
        %2707 = vmatpush1.xpose.msra.mxu0 %v2706
        %2708 = vmatprep.subr.mxu0 0.0
        %v2709 = vand.u32 %v2526, 4294901760
        %v2710 = vsub.f32 %v2526, %v2709
        %v2711 = vand.u32 %v2710, 4294901760
        %v2712 = vsub.f32 %v2710, %v2711
        %v2713 = vand.u32 %v2712, 4294901760
        %2714 = vmatpush1.xpose.msra.mxu0 %v2713
        %2715 = vmatprep.subr.mxu0 0.0
        %v2716 = vand.u32 %v2529, 4294901760
        %v2717 = vsub.f32 %v2529, %v2716
        %v2718 = vand.u32 %v2717, 4294901760
        %v2719 = vsub.f32 %v2717, %v2718
        %v2720 = vand.u32 %v2719, 4294901760
        %2721 = vmatpush1.xpose.msra.mxu0 %v2720
        %2722 = vmatprep.subr.mxu0 0.0
        %v2723 = vand.u32 %v2532, 4294901760
        %v2724 = vsub.f32 %v2532, %v2723
        %v2725 = vand.u32 %v2724, 4294901760
        %v2726 = vsub.f32 %v2724, %v2725
        %v2727 = vand.u32 %v2726, 4294901760
        %2728 = vmatpush1.xpose.msra.mxu0 %v2727
        %2729 = vmatprep.subr.mxu0 0.0
        %v2730 = vand.u32 %v2535, 4294901760
        %v2731 = vsub.f32 %v2535, %v2730
        %v2732 = vand.u32 %v2731, 4294901760
        %v2733 = vsub.f32 %v2731, %v2732
        %v2734 = vand.u32 %v2733, 4294901760
        %2735 = vmatpush1.xpose.msra.mxu0 %v2734
        %2736 = vmatprep.subr.mxu0 0.0
        %v2737 = vand.u32 %v2538, 4294901760
        %v2738 = vsub.f32 %v2538, %v2737
        %v2739 = vand.u32 %v2738, 4294901760
        %v2740 = vsub.f32 %v2738, %v2739
        %v2741 = vand.u32 %v2740, 4294901760
        %2742 = vmatpush1.xpose.msra.mxu0 %v2741
        %2743 = vmatprep.subr.mxu0 0.0
        %2744 = vmatpush1.xpose.msra.mxu0 0.0
        %2745 = vmatprep.subr.mxu0 0.0
        %2746 = vmatpush1.xpose.msra.mxu0 0.0
        %2747 = vmatprep.subr.mxu0 0.0
        %2748 = vmatpush1.xpose.msra.mxu0 0.0
        %2749 = vmatprep.subr.mxu0 0.0
        %2750 = vmatpush1.xpose.msra.mxu0 0.0
        %2751 = vmatprep.subr.mxu0 0.0
        %2752 = vmatpush1.xpose.msra.mxu0 0.0
        %2753 = vmatprep.subr.mxu0 0.0
        %2754 = vmatpush1.xpose.msra.mxu0 0.0
        %2755 = vmatprep.subr.mxu0 0.0
        %2756 = vmatpush1.xpose.msra.mxu0 0.0
        %2757 = vmatprep.subr.mxu0 0.0
        %2758 = vmatpush1.xpose.msra.mxu0 0.0
        %2759 = vmatprep.subr.mxu0 0.0
        %2760 = vmatpush1.xpose.msra.mxu0 0.0
        %2761 = vmatprep.subr.mxu0 0.0
        %2762 = vmatpush1.xpose.msra.mxu0 0.0
        %2763 = vmatprep.subr.mxu0 0.0
        %2764 = vmatpush1.xpose.msra.mxu0 0.0
        %2765 = vmatprep.subr.mxu0 0.0
        %2766 = vmatpush1.xpose.msra.mxu0 0.0
        %2767 = vmatprep.subr.mxu0 0.0
        %2768 = vmatpush1.xpose.msra.mxu0 0.0
        %2769 = vmatprep.subr.mxu0 0.0
        %2770 = vmatpush1.xpose.msra.mxu0 0.0
        %2771 = vmatprep.subr.mxu0 0.0
        %2772 = vmatpush1.xpose.msra.mxu0 0.0
        %2773 = vmatprep.subr.mxu0 0.0
        %2774 = vmatpush1.xpose.msra.mxu0 0.0
        %2775 = vmatprep.mubr.f32.mxu0 0.0
        %v2776 = vand.u32 %v1609, 4294901760
        %2777 = vmatmul.mubr.f32.gmra.mrb[0].mxu0 %v2776
        %v2778 = vpop.f32.mrb[0].mxu0
        %v2779 = vadd.f32 %v2628, %v2778
        %v2780 = vpop.f32.mrb[0].mxu0
        %2781 = vdwg.mxu0
        %2782 = vmatprep.subr.mxu0 0.0
        %v2783 = vand.u32 %v2493, 4294901760
        %v2784 = vsub.f32 %v2493, %v2783
        %2785 = vmatpush1.xpose.msra.mxu0 %v2784
        %2786 = vmatprep.subr.mxu0 0.0
        %v2787 = vand.u32 %v2496, 4294901760
        %v2788 = vsub.f32 %v2496, %v2787
        %2789 = vmatpush1.xpose.msra.mxu0 %v2788
        %2790 = vmatprep.subr.mxu0 0.0
        %v2791 = vand.u32 %v2499, 4294901760
        %v2792 = vsub.f32 %v2499, %v2791
        %2793 = vmatpush1.xpose.msra.mxu0 %v2792
        %2794 = vmatprep.subr.mxu0 0.0
        %v2795 = vand.u32 %v2502, 4294901760
        %v2796 = vsub.f32 %v2502, %v2795
        %2797 = vmatpush1.xpose.msra.mxu0 %v2796
        %2798 = vmatprep.subr.mxu0 0.0
        %v2799 = vand.u32 %v2505, 4294901760
        %v2800 = vsub.f32 %v2505, %v2799
        %2801 = vmatpush1.xpose.msra.mxu0 %v2800
        %2802 = vmatprep.subr.mxu0 0.0
        %v2803 = vand.u32 %v2508, 4294901760
        %v2804 = vsub.f32 %v2508, %v2803
        %2805 = vmatpush1.xpose.msra.mxu0 %v2804
        %2806 = vmatprep.subr.mxu0 0.0
        %v2807 = vand.u32 %v2511, 4294901760
        %v2808 = vsub.f32 %v2511, %v2807
        %2809 = vmatpush1.xpose.msra.mxu0 %v2808
        %2810 = vmatprep.subr.mxu0 0.0
        %v2811 = vand.u32 %v2514, 4294901760
        %v2812 = vsub.f32 %v2514, %v2811
        %2813 = vmatpush1.xpose.msra.mxu0 %v2812
        %2814 = vmatprep.subr.mxu0 0.0
        %v2815 = vand.u32 %v2517, 4294901760
        %v2816 = vsub.f32 %v2517, %v2815
        %2817 = vmatpush1.xpose.msra.mxu0 %v2816
        %2818 = vmatprep.subr.mxu0 0.0
        %v2819 = vand.u32 %v2520, 4294901760
        %v2820 = vsub.f32 %v2520, %v2819
        %2821 = vmatpush1.xpose.msra.mxu0 %v2820
        %2822 = vmatprep.subr.mxu0 0.0
        %v2823 = vand.u32 %v2523, 4294901760
        %v2824 = vsub.f32 %v2523, %v2823
        %2825 = vmatpush1.xpose.msra.mxu0 %v2824
        %2826 = vmatprep.subr.mxu0 0.0
        %v2827 = vand.u32 %v2526, 4294901760
        %v2828 = vsub.f32 %v2526, %v2827
        %2829 = vmatpush1.xpose.msra.mxu0 %v2828
        %2830 = vmatprep.subr.mxu0 0.0
        %v2831 = vand.u32 %v2529, 4294901760
        %v2832 = vsub.f32 %v2529, %v2831
        %2833 = vmatpush1.xpose.msra.mxu0 %v2832
        %2834 = vmatprep.subr.mxu0 0.0
        %v2835 = vand.u32 %v2532, 4294901760
        %v2836 = vsub.f32 %v2532, %v2835
        %2837 = vmatpush1.xpose.msra.mxu0 %v2836
        %2838 = vmatprep.subr.mxu0 0.0
        %v2839 = vand.u32 %v2535, 4294901760
        %v2840 = vsub.f32 %v2535, %v2839
        %2841 = vmatpush1.xpose.msra.mxu0 %v2840
        %2842 = vmatprep.subr.mxu0 0.0
        %v2843 = vand.u32 %v2538, 4294901760
        %v2844 = vsub.f32 %v2538, %v2843
        %2845 = vmatpush1.xpose.msra.mxu0 %v2844
        %2846 = vmatprep.subr.mxu0 0.0
        %2847 = vmatpush1.xpose.msra.mxu0 0.0
        %2848 = vmatprep.subr.mxu0 0.0
        %2849 = vmatpush1.xpose.msra.mxu0 0.0
        %2850 = vmatprep.subr.mxu0 0.0
        %2851 = vmatpush1.xpose.msra.mxu0 0.0
        %2852 = vmatprep.subr.mxu0 0.0
        %2853 = vmatpush1.xpose.msra.mxu0 0.0
        %2854 = vmatprep.subr.mxu0 0.0
        %2855 = vmatpush1.xpose.msra.mxu0 0.0
        %2856 = vmatprep.subr.mxu0 0.0
        %2857 = vmatpush1.xpose.msra.mxu0 0.0
        %2858 = vmatprep.subr.mxu0 0.0
        %2859 = vmatpush1.xpose.msra.mxu0 0.0
        %2860 = vmatprep.subr.mxu0 0.0
        %2861 = vmatpush1.xpose.msra.mxu0 0.0
        %2862 = vmatprep.subr.mxu0 0.0
        %2863 = vmatpush1.xpose.msra.mxu0 0.0
        %2864 = vmatprep.subr.mxu0 0.0
        %2865 = vmatpush1.xpose.msra.mxu0 0.0
        %2866 = vmatprep.subr.mxu0 0.0
        %2867 = vmatpush1.xpose.msra.mxu0 0.0
        %2868 = vmatprep.subr.mxu0 0.0
        %2869 = vmatpush1.xpose.msra.mxu0 0.0
        %2870 = vmatprep.subr.mxu0 0.0
        %2871 = vmatpush1.xpose.msra.mxu0 0.0
        %2872 = vmatprep.subr.mxu0 0.0
        %2873 = vmatpush1.xpose.msra.mxu0 0.0
        %2874 = vmatprep.subr.mxu0 0.0
        %2875 = vmatpush1.xpose.msra.mxu0 0.0
        %2876 = vmatprep.subr.mxu0 0.0
        %2877 = vmatpush1.xpose.msra.mxu0 0.0
        %2878 = vmatprep.mubr.f32.mxu0 0.0
        %v2879 = vand.u32 %v1609, 4294901760
        %v2880 = vsub.f32 %v1609, %v2879
        %2881 = vmatmul.mubr.f32.gmra.mrb[0].mxu0 %v2880
        %v2882 = vpop.f32.mrb[0].mxu0
        %v2883 = vadd.f32 %v2779, %v2882
        %v2884 = vpop.f32.mrb[0].mxu0
        %2885 = vdwg.mxu0
        %2886 = vmatprep.subr.mxu0 0.0
        %v2887 = vand.u32 %v2493, 4294901760
        %2888 = vmatpush1.xpose.msra.mxu0 %v2887
        %2889 = vmatprep.subr.mxu0 0.0
        %v2890 = vand.u32 %v2496, 4294901760
        %2891 = vmatpush1.xpose.msra.mxu0 %v2890
        %2892 = vmatprep.subr.mxu0 0.0
        %v2893 = vand.u32 %v2499, 4294901760
        %2894 = vmatpush1.xpose.msra.mxu0 %v2893
        %2895 = vmatprep.subr.mxu0 0.0
        %v2896 = vand.u32 %v2502, 4294901760
        %2897 = vmatpush1.xpose.msra.mxu0 %v2896
        %2898 = vmatprep.subr.mxu0 0.0
        %v2899 = vand.u32 %v2505, 4294901760
        %2900 = vmatpush1.xpose.msra.mxu0 %v2899
        %2901 = vmatprep.subr.mxu0 0.0
        %v2902 = vand.u32 %v2508, 4294901760
        %2903 = vmatpush1.xpose.msra.mxu0 %v2902
        %2904 = vmatprep.subr.mxu0 0.0
        %v2905 = vand.u32 %v2511, 4294901760
        %2906 = vmatpush1.xpose.msra.mxu0 %v2905
        %2907 = vmatprep.subr.mxu0 0.0
        %v2908 = vand.u32 %v2514, 4294901760
        %2909 = vmatpush1.xpose.msra.mxu0 %v2908
        %2910 = vmatprep.subr.mxu0 0.0
        %v2911 = vand.u32 %v2517, 4294901760
        %2912 = vmatpush1.xpose.msra.mxu0 %v2911
        %2913 = vmatprep.subr.mxu0 0.0
        %v2914 = vand.u32 %v2520, 4294901760
        %2915 = vmatpush1.xpose.msra.mxu0 %v2914
        %2916 = vmatprep.subr.mxu0 0.0
        %v2917 = vand.u32 %v2523, 4294901760
        %2918 = vmatpush1.xpose.msra.mxu0 %v2917
        %2919 = vmatprep.subr.mxu0 0.0
        %v2920 = vand.u32 %v2526, 4294901760
        %2921 = vmatpush1.xpose.msra.mxu0 %v2920
        %2922 = vmatprep.subr.mxu0 0.0
        %v2923 = vand.u32 %v2529, 4294901760
        %2924 = vmatpush1.xpose.msra.mxu0 %v2923
        %2925 = vmatprep.subr.mxu0 0.0
        %v2926 = vand.u32 %v2532, 4294901760
        %2927 = vmatpush1.xpose.msra.mxu0 %v2926
        %2928 = vmatprep.subr.mxu0 0.0
        %v2929 = vand.u32 %v2535, 4294901760
        %2930 = vmatpush1.xpose.msra.mxu0 %v2929
        %2931 = vmatprep.subr.mxu0 0.0
        %v2932 = vand.u32 %v2538, 4294901760
        %2933 = vmatpush1.xpose.msra.mxu0 %v2932
        %2934 = vmatprep.subr.mxu0 0.0
        %2935 = vmatpush1.xpose.msra.mxu0 0.0
        %2936 = vmatprep.subr.mxu0 0.0
        %2937 = vmatpush1.xpose.msra.mxu0 0.0
        %2938 = vmatprep.subr.mxu0 0.0
        %2939 = vmatpush1.xpose.msra.mxu0 0.0
        %2940 = vmatprep.subr.mxu0 0.0
        %2941 = vmatpush1.xpose.msra.mxu0 0.0
        %2942 = vmatprep.subr.mxu0 0.0
        %2943 = vmatpush1.xpose.msra.mxu0 0.0
        %2944 = vmatprep.subr.mxu0 0.0
        %2945 = vmatpush1.xpose.msra.mxu0 0.0
        %2946 = vmatprep.subr.mxu0 0.0
        %2947 = vmatpush1.xpose.msra.mxu0 0.0
        %2948 = vmatprep.subr.mxu0 0.0
        %2949 = vmatpush1.xpose.msra.mxu0 0.0
        %2950 = vmatprep.subr.mxu0 0.0
        %2951 = vmatpush1.xpose.msra.mxu0 0.0
        %2952 = vmatprep.subr.mxu0 0.0
        %2953 = vmatpush1.xpose.msra.mxu0 0.0
        %2954 = vmatprep.subr.mxu0 0.0
        %2955 = vmatpush1.xpose.msra.mxu0 0.0
        %2956 = vmatprep.subr.mxu0 0.0
        %2957 = vmatpush1.xpose.msra.mxu0 0.0
        %2958 = vmatprep.subr.mxu0 0.0
        %2959 = vmatpush1.xpose.msra.mxu0 0.0
        %2960 = vmatprep.subr.mxu0 0.0
        %2961 = vmatpush1.xpose.msra.mxu0 0.0
        %2962 = vmatprep.subr.mxu0 0.0
        %2963 = vmatpush1.xpose.msra.mxu0 0.0
        %2964 = vmatprep.subr.mxu0 0.0
        %2965 = vmatpush1.xpose.msra.mxu0 0.0
        %2966 = vmatprep.mubr.f32.mxu0 0.0
        %v2967 = vand.u32 %v1609, 4294901760
        %v2968 = vsub.f32 %v1609, %v2967
        %v2969 = vand.u32 %v2968, 4294901760
        %2970 = vmatmul.mubr.f32.gmra.mrb[0].mxu0 %v2969
        %v2971 = vpop.f32.mrb[0].mxu0
        %v2972 = vadd.f32 %v2883, %v2971
        %v2973 = vpop.f32.mrb[0].mxu0
        %2974 = vdwg.mxu0
        %2975 = vmatprep.subr.mxu0 0.0
        %v2976 = vand.u32 %v2493, 4294901760
        %v2977 = vsub.f32 %v2493, %v2976
        %v2978 = vand.u32 %v2977, 4294901760
        %2979 = vmatpush1.xpose.msra.mxu0 %v2978
        %2980 = vmatprep.subr.mxu0 0.0
        %v2981 = vand.u32 %v2496, 4294901760
        %v2982 = vsub.f32 %v2496, %v2981
        %v2983 = vand.u32 %v2982, 4294901760
        %2984 = vmatpush1.xpose.msra.mxu0 %v2983
        %2985 = vmatprep.subr.mxu0 0.0
        %v2986 = vand.u32 %v2499, 4294901760
        %v2987 = vsub.f32 %v2499, %v2986
        %v2988 = vand.u32 %v2987, 4294901760
        %2989 = vmatpush1.xpose.msra.mxu0 %v2988
        %2990 = vmatprep.subr.mxu0 0.0
        %v2991 = vand.u32 %v2502, 4294901760
        %v2992 = vsub.f32 %v2502, %v2991
        %v2993 = vand.u32 %v2992, 4294901760
        %2994 = vmatpush1.xpose.msra.mxu0 %v2993
        %2995 = vmatprep.subr.mxu0 0.0
        %v2996 = vand.u32 %v2505, 4294901760
        %v2997 = vsub.f32 %v2505, %v2996
        %v2998 = vand.u32 %v2997, 4294901760
        %2999 = vmatpush1.xpose.msra.mxu0 %v2998
        %3000 = vmatprep.subr.mxu0 0.0
        %v3001 = vand.u32 %v2508, 4294901760
        %v3002 = vsub.f32 %v2508, %v3001
        %v3003 = vand.u32 %v3002, 4294901760
        %3004 = vmatpush1.xpose.msra.mxu0 %v3003
        %3005 = vmatprep.subr.mxu0 0.0
        %v3006 = vand.u32 %v2511, 4294901760
        %v3007 = vsub.f32 %v2511, %v3006
        %v3008 = vand.u32 %v3007, 4294901760
        %3009 = vmatpush1.xpose.msra.mxu0 %v3008
        %3010 = vmatprep.subr.mxu0 0.0
        %v3011 = vand.u32 %v2514, 4294901760
        %v3012 = vsub.f32 %v2514, %v3011
        %v3013 = vand.u32 %v3012, 4294901760
        %3014 = vmatpush1.xpose.msra.mxu0 %v3013
        %3015 = vmatprep.subr.mxu0 0.0
        %v3016 = vand.u32 %v2517, 4294901760
        %v3017 = vsub.f32 %v2517, %v3016
        %v3018 = vand.u32 %v3017, 4294901760
        %3019 = vmatpush1.xpose.msra.mxu0 %v3018
        %3020 = vmatprep.subr.mxu0 0.0
        %v3021 = vand.u32 %v2520, 4294901760
        %v3022 = vsub.f32 %v2520, %v3021
        %v3023 = vand.u32 %v3022, 4294901760
        %3024 = vmatpush1.xpose.msra.mxu0 %v3023
        %3025 = vmatprep.subr.mxu0 0.0
        %v3026 = vand.u32 %v2523, 4294901760
        %v3027 = vsub.f32 %v2523, %v3026
        %v3028 = vand.u32 %v3027, 4294901760
        %3029 = vmatpush1.xpose.msra.mxu0 %v3028
        %3030 = vmatprep.subr.mxu0 0.0
        %v3031 = vand.u32 %v2526, 4294901760
        %v3032 = vsub.f32 %v2526, %v3031
        %v3033 = vand.u32 %v3032, 4294901760
        %3034 = vmatpush1.xpose.msra.mxu0 %v3033
        %3035 = vmatprep.subr.mxu0 0.0
        %v3036 = vand.u32 %v2529, 4294901760
        %v3037 = vsub.f32 %v2529, %v3036
        %v3038 = vand.u32 %v3037, 4294901760
        %3039 = vmatpush1.xpose.msra.mxu0 %v3038
        %3040 = vmatprep.subr.mxu0 0.0
        %v3041 = vand.u32 %v2532, 4294901760
        %v3042 = vsub.f32 %v2532, %v3041
        %v3043 = vand.u32 %v3042, 4294901760
        %3044 = vmatpush1.xpose.msra.mxu0 %v3043
        %3045 = vmatprep.subr.mxu0 0.0
        %v3046 = vand.u32 %v2535, 4294901760
        %v3047 = vsub.f32 %v2535, %v3046
        %v3048 = vand.u32 %v3047, 4294901760
        %3049 = vmatpush1.xpose.msra.mxu0 %v3048
        %3050 = vmatprep.subr.mxu0 0.0
        %v3051 = vand.u32 %v2538, 4294901760
        %v3052 = vsub.f32 %v2538, %v3051
        %v3053 = vand.u32 %v3052, 4294901760
        %3054 = vmatpush1.xpose.msra.mxu0 %v3053
        %3055 = vmatprep.subr.mxu0 0.0
        %3056 = vmatpush1.xpose.msra.mxu0 0.0
        %3057 = vmatprep.subr.mxu0 0.0
        %3058 = vmatpush1.xpose.msra.mxu0 0.0
        %3059 = vmatprep.subr.mxu0 0.0
        %3060 = vmatpush1.xpose.msra.mxu0 0.0
        %3061 = vmatprep.subr.mxu0 0.0
        %3062 = vmatpush1.xpose.msra.mxu0 0.0
        %3063 = vmatprep.subr.mxu0 0.0
        %3064 = vmatpush1.xpose.msra.mxu0 0.0
        %3065 = vmatprep.subr.mxu0 0.0
        %3066 = vmatpush1.xpose.msra.mxu0 0.0
        %3067 = vmatprep.subr.mxu0 0.0
        %3068 = vmatpush1.xpose.msra.mxu0 0.0
        %3069 = vmatprep.subr.mxu0 0.0
        %3070 = vmatpush1.xpose.msra.mxu0 0.0
        %3071 = vmatprep.subr.mxu0 0.0
        %3072 = vmatpush1.xpose.msra.mxu0 0.0
        %3073 = vmatprep.subr.mxu0 0.0
        %3074 = vmatpush1.xpose.msra.mxu0 0.0
        %3075 = vmatprep.subr.mxu0 0.0
        %3076 = vmatpush1.xpose.msra.mxu0 0.0
        %3077 = vmatprep.subr.mxu0 0.0
        %3078 = vmatpush1.xpose.msra.mxu0 0.0
        %3079 = vmatprep.subr.mxu0 0.0
        %3080 = vmatpush1.xpose.msra.mxu0 0.0
        %3081 = vmatprep.subr.mxu0 0.0
        %3082 = vmatpush1.xpose.msra.mxu0 0.0
        %3083 = vmatprep.subr.mxu0 0.0
        %3084 = vmatpush1.xpose.msra.mxu0 0.0
        %3085 = vmatprep.subr.mxu0 0.0
        %3086 = vmatpush1.xpose.msra.mxu0 0.0
        %3087 = vmatprep.mubr.f32.mxu0 0.0
        %v3088 = vand.u32 %v1609, 4294901760
        %3089 = vmatmul.mubr.f32.gmra.mrb[0].mxu0 %v3088
        %v3090 = vpop.f32.mrb[0].mxu0
        %v3091 = vadd.f32 %v2972, %v3090
        %v3092 = vpop.f32.mrb[0].mxu0
        %3093 = vdwg.mxu0
        %3094 = vmatprep.subr.mxu0 0.0
        %v3095 = vand.u32 %v2493, 4294901760
        %3096 = vmatpush1.xpose.msra.mxu0 %v3095
        %3097 = vmatprep.subr.mxu0 0.0
        %v3098 = vand.u32 %v2496, 4294901760
        %3099 = vmatpush1.xpose.msra.mxu0 %v3098
        %3100 = vmatprep.subr.mxu0 0.0
        %v3101 = vand.u32 %v2499, 4294901760
        %3102 = vmatpush1.xpose.msra.mxu0 %v3101
        %3103 = vmatprep.subr.mxu0 0.0
        %v3104 = vand.u32 %v2502, 4294901760
        %3105 = vmatpush1.xpose.msra.mxu0 %v3104
        %3106 = vmatprep.subr.mxu0 0.0
        %v3107 = vand.u32 %v2505, 4294901760
        %3108 = vmatpush1.xpose.msra.mxu0 %v3107
        %3109 = vmatprep.subr.mxu0 0.0
        %v3110 = vand.u32 %v2508, 4294901760
        %3111 = vmatpush1.xpose.msra.mxu0 %v3110
        %3112 = vmatprep.subr.mxu0 0.0
        %v3113 = vand.u32 %v2511, 4294901760
        %3114 = vmatpush1.xpose.msra.mxu0 %v3113
        %3115 = vmatprep.subr.mxu0 0.0
        %v3116 = vand.u32 %v2514, 4294901760
        %3117 = vmatpush1.xpose.msra.mxu0 %v3116
        %3118 = vmatprep.subr.mxu0 0.0
        %v3119 = vand.u32 %v2517, 4294901760
        %3120 = vmatpush1.xpose.msra.mxu0 %v3119
        %3121 = vmatprep.subr.mxu0 0.0
        %v3122 = vand.u32 %v2520, 4294901760
        %3123 = vmatpush1.xpose.msra.mxu0 %v3122
        %3124 = vmatprep.subr.mxu0 0.0
        %v3125 = vand.u32 %v2523, 4294901760
        %3126 = vmatpush1.xpose.msra.mxu0 %v3125
        %3127 = vmatprep.subr.mxu0 0.0
        %v3128 = vand.u32 %v2526, 4294901760
        %3129 = vmatpush1.xpose.msra.mxu0 %v3128
        %3130 = vmatprep.subr.mxu0 0.0
        %v3131 = vand.u32 %v2529, 4294901760
        %3132 = vmatpush1.xpose.msra.mxu0 %v3131
        %3133 = vmatprep.subr.mxu0 0.0
        %v3134 = vand.u32 %v2532, 4294901760
        %3135 = vmatpush1.xpose.msra.mxu0 %v3134
        %3136 = vmatprep.subr.mxu0 0.0
        %v3137 = vand.u32 %v2535, 4294901760
        %3138 = vmatpush1.xpose.msra.mxu0 %v3137
        %3139 = vmatprep.subr.mxu0 0.0
        %v3140 = vand.u32 %v2538, 4294901760
        %3141 = vmatpush1.xpose.msra.mxu0 %v3140
        %3142 = vmatprep.subr.mxu0 0.0
        %3143 = vmatpush1.xpose.msra.mxu0 0.0
        %3144 = vmatprep.subr.mxu0 0.0
        %3145 = vmatpush1.xpose.msra.mxu0 0.0
        %3146 = vmatprep.subr.mxu0 0.0
        %3147 = vmatpush1.xpose.msra.mxu0 0.0
        %3148 = vmatprep.subr.mxu0 0.0
        %3149 = vmatpush1.xpose.msra.mxu0 0.0
        %3150 = vmatprep.subr.mxu0 0.0
        %3151 = vmatpush1.xpose.msra.mxu0 0.0
        %3152 = vmatprep.subr.mxu0 0.0
        %3153 = vmatpush1.xpose.msra.mxu0 0.0
        %3154 = vmatprep.subr.mxu0 0.0
        %3155 = vmatpush1.xpose.msra.mxu0 0.0
        %3156 = vmatprep.subr.mxu0 0.0
        %3157 = vmatpush1.xpose.msra.mxu0 0.0
        %3158 = vmatprep.subr.mxu0 0.0
        %3159 = vmatpush1.xpose.msra.mxu0 0.0
        %3160 = vmatprep.subr.mxu0 0.0
        %3161 = vmatpush1.xpose.msra.mxu0 0.0
        %3162 = vmatprep.subr.mxu0 0.0
        %3163 = vmatpush1.xpose.msra.mxu0 0.0
        %3164 = vmatprep.subr.mxu0 0.0
        %3165 = vmatpush1.xpose.msra.mxu0 0.0
        %3166 = vmatprep.subr.mxu0 0.0
        %3167 = vmatpush1.xpose.msra.mxu0 0.0
        %3168 = vmatprep.subr.mxu0 0.0
        %3169 = vmatpush1.xpose.msra.mxu0 0.0
        %3170 = vmatprep.subr.mxu0 0.0
        %3171 = vmatpush1.xpose.msra.mxu0 0.0
        %3172 = vmatprep.subr.mxu0 0.0
        %3173 = vmatpush1.xpose.msra.mxu0 0.0
        %3174 = vmatprep.mubr.f32.mxu0 0.0
        %v3175 = vand.u32 %v1609, 4294901760
        %3176 = vmatmul.mubr.f32.gmra.mrb[0].mxu0 %v3175
        %v3177 = vpop.f32.mrb[0].mxu0
        %v3178 = vadd.f32 %v3091, %v3177
        %v3179 = vpop.f32.mrb[0].mxu0
        %3180 = vdwg.mxu0
        %v3181 = vsel %vm2444, 3.4028235e+38, %v2300
        %v3182 = vsel %vm2445, 3.4028235e+38, %v2301
        %v3183 = vsel %vm2446, 3.4028235e+38, %v2302
        %v3184 = vsel %vm2447, 3.4028235e+38, %v2303
        %v3185 = vsel %vm2448, 3.4028235e+38, %v2304
        %v3186 = vsel %vm2449, 3.4028235e+38, %v2305
        %v3187 = vsel %vm2450, 3.4028235e+38, %v2306
        %v3188 = vsel %vm2451, 3.4028235e+38, %v2307
        %v3189 = vsel %vm2452, 3.4028235e+38, %v2308
        %v3190 = vsel %vm2453, 3.4028235e+38, %v2309
        %v3191 = vsel %vm2454, 3.4028235e+38, %v2310
        %v3192 = vsel %vm2455, 3.4028235e+38, %v2311
        %v3193 = vsel %vm2456, 3.4028235e+38, %v2312
        %v3194 = vsel %vm2457, 3.4028235e+38, %v2313
        %v3195 = vsel %vm2458, 3.4028235e+38, %v2314
        %v3196 = vsel %vm2459, 3.4028235e+38, %v2315
        %v3197 = vsel %vm1427, %v3181, inf
        %3198 = vmin.xlane.f32.xlu0 %v3197
        %v3199 = vpop.xlane.xlu0 %3198
        %v3200 = vsel %vm1427, %v3182, inf
        %3201 = vmin.xlane.f32.xlu0 %v3200
        %v3202 = vpop.xlane.xlu0 %3201
        %v3203 = vsel %vm1427, %v3183, inf
        %3204 = vmin.xlane.f32.xlu0 %v3203
        %v3205 = vpop.xlane.xlu0 %3204
        %v3206 = vsel %vm1427, %v3184, inf
        %3207 = vmin.xlane.f32.xlu0 %v3206
        %v3208 = vpop.xlane.xlu0 %3207
        %v3209 = vsel %vm1427, %v3185, inf
        %3210 = vmin.xlane.f32.xlu0 %v3209
        %v3211 = vpop.xlane.xlu0 %3210
        %v3212 = vsel %vm1427, %v3186, inf
        %3213 = vmin.xlane.f32.xlu0 %v3212
        %v3214 = vpop.xlane.xlu0 %3213
        %v3215 = vsel %vm1427, %v3187, inf
        %3216 = vmin.xlane.f32.xlu0 %v3215
        %v3217 = vpop.xlane.xlu0 %3216
        %v3218 = vsel %vm1427, %v3188, inf
        %3219 = vmin.xlane.f32.xlu0 %v3218
        %v3220 = vpop.xlane.xlu0 %3219
        %v3221 = vsel %vm1427, %v3189, inf
        %3222 = vmin.xlane.f32.xlu0 %v3221
        %v3223 = vpop.xlane.xlu0 %3222
        %v3224 = vsel %vm1427, %v3190, inf
        %3225 = vmin.xlane.f32.xlu0 %v3224
        %v3226 = vpop.xlane.xlu0 %3225
        %v3227 = vsel %vm1427, %v3191, inf
        %3228 = vmin.xlane.f32.xlu0 %v3227
        %v3229 = vpop.xlane.xlu0 %3228
        %v3230 = vsel %vm1427, %v3192, inf
        %3231 = vmin.xlane.f32.xlu0 %v3230
        %v3232 = vpop.xlane.xlu0 %3231
        %v3233 = vsel %vm1427, %v3193, inf
        %3234 = vmin.xlane.f32.xlu0 %v3233
        %v3235 = vpop.xlane.xlu0 %3234
        %v3236 = vsel %vm1427, %v3194, inf
        %3237 = vmin.xlane.f32.xlu0 %v3236
        %v3238 = vpop.xlane.xlu0 %3237
        %v3239 = vsel %vm1427, %v3195, inf
        %3240 = vmin.xlane.f32.xlu0 %v3239
        %v3241 = vpop.xlane.xlu0 %3240
        %v3242 = vsel %vm1427, %v3196, inf
        %3243 = vmin.xlane.f32.xlu0 %v3242
        %v3244 = vpop.xlane.xlu0 %3243
        %vm3245 = vcmp.le.f32.partialorder %v3181, %v3199
        %vm3246 = vcmp.le.f32.partialorder %v3182, %v3202
        %vm3247 = vcmp.le.f32.partialorder %v3183, %v3205
        %vm3248 = vcmp.le.f32.partialorder %v3184, %v3208
        %vm3249 = vcmp.le.f32.partialorder %v3185, %v3211
        %vm3250 = vcmp.le.f32.partialorder %v3186, %v3214
        %vm3251 = vcmp.le.f32.partialorder %v3187, %v3217
        %vm3252 = vcmp.le.f32.partialorder %v3188, %v3220
        %vm3253 = vcmp.le.f32.partialorder %v3189, %v3223
        %vm3254 = vcmp.le.f32.partialorder %v3190, %v3226
        %vm3255 = vcmp.le.f32.partialorder %v3191, %v3229
        %vm3256 = vcmp.le.f32.partialorder %v3192, %v3232
        %vm3257 = vcmp.le.f32.partialorder %v3193, %v3235
        %vm3258 = vcmp.le.f32.partialorder %v3194, %v3238
        %vm3259 = vcmp.le.f32.partialorder %v3195, %v3241
        %vm3260 = vcmp.le.f32.partialorder %v3196, %v3244
        %v3261 = vsel %vm3245, %v1495, 16.0
        %v3262 = vsel %vm3246, %v1495, 16.0
        %v3263 = vsel %vm3247, %v1495, 16.0
        %v3264 = vsel %vm3248, %v1495, 16.0
        %v3265 = vsel %vm3249, %v1495, 16.0
        %v3266 = vsel %vm3250, %v1495, 16.0
        %v3267 = vsel %vm3251, %v1495, 16.0
        %v3268 = vsel %vm3252, %v1495, 16.0
        %v3269 = vsel %vm3253, %v1495, 16.0
        %v3270 = vsel %vm3254, %v1495, 16.0
        %v3271 = vsel %vm3255, %v1495, 16.0
        %v3272 = vsel %vm3256, %v1495, 16.0
        %v3273 = vsel %vm3257, %v1495, 16.0
        %v3274 = vsel %vm3258, %v1495, 16.0
        %v3275 = vsel %vm3259, %v1495, 16.0
        %v3276 = vsel %vm3260, %v1495, 16.0
        %v3277 = vsel %vm1427, %v3261, inf
        %3278 = vmin.xlane.f32.xlu0 %v3277
        %v3279 = vpop.xlane.xlu0 %3278
        %v3280 = vsel %vm1427, %v3262, inf
        %3281 = vmin.xlane.f32.xlu0 %v3280
        %v3282 = vpop.xlane.xlu0 %3281
        %v3283 = vsel %vm1427, %v3263, inf
        %3284 = vmin.xlane.f32.xlu0 %v3283
        %v3285 = vpop.xlane.xlu0 %3284
        %v3286 = vsel %vm1427, %v3264, inf
        %3287 = vmin.xlane.f32.xlu0 %v3286
        %v3288 = vpop.xlane.xlu0 %3287
        %v3289 = vsel %vm1427, %v3265, inf
        %3290 = vmin.xlane.f32.xlu0 %v3289
        %v3291 = vpop.xlane.xlu0 %3290
        %v3292 = vsel %vm1427, %v3266, inf
        %3293 = vmin.xlane.f32.xlu0 %v3292
        %v3294 = vpop.xlane.xlu0 %3293
        %v3295 = vsel %vm1427, %v3267, inf
        %3296 = vmin.xlane.f32.xlu0 %v3295
        %v3297 = vpop.xlane.xlu0 %3296
        %v3298 = vsel %vm1427, %v3268, inf
        %3299 = vmin.xlane.f32.xlu0 %v3298
        %v3300 = vpop.xlane.xlu0 %3299
        %v3301 = vsel %vm1427, %v3269, inf
        %3302 = vmin.xlane.f32.xlu0 %v3301
        %v3303 = vpop.xlane.xlu0 %3302
        %v3304 = vsel %vm1427, %v3270, inf
        %3305 = vmin.xlane.f32.xlu0 %v3304
        %v3306 = vpop.xlane.xlu0 %3305
        %v3307 = vsel %vm1427, %v3271, inf
        %3308 = vmin.xlane.f32.xlu0 %v3307
        %v3309 = vpop.xlane.xlu0 %3308
        %v3310 = vsel %vm1427, %v3272, inf
        %3311 = vmin.xlane.f32.xlu0 %v3310
        %v3312 = vpop.xlane.xlu0 %3311
        %v3313 = vsel %vm1427, %v3273, inf
        %3314 = vmin.xlane.f32.xlu0 %v3313
        %v3315 = vpop.xlane.xlu0 %3314
        %v3316 = vsel %vm1427, %v3274, inf
        %3317 = vmin.xlane.f32.xlu0 %v3316
        %v3318 = vpop.xlane.xlu0 %3317
        %v3319 = vsel %vm1427, %v3275, inf
        %3320 = vmin.xlane.f32.xlu0 %v3319
        %v3321 = vpop.xlane.xlu0 %3320
        %v3322 = vsel %vm1427, %v3276, inf
        %3323 = vmin.xlane.f32.xlu0 %v3322
        %v3324 = vpop.xlane.xlu0 %3323
        %vm3325 = vcmp.eq.f32.partialorder %v1495, %v3279
        %vm3326 = vcmp.eq.f32.partialorder %v1495, %v3282
        %vm3327 = vcmp.eq.f32.partialorder %v1495, %v3285
        %vm3328 = vcmp.eq.f32.partialorder %v1495, %v3288
        %vm3329 = vcmp.eq.f32.partialorder %v1495, %v3291
        %vm3330 = vcmp.eq.f32.partialorder %v1495, %v3294
        %vm3331 = vcmp.eq.f32.partialorder %v1495, %v3297
        %vm3332 = vcmp.eq.f32.partialorder %v1495, %v3300
        %vm3333 = vcmp.eq.f32.partialorder %v1495, %v3303
        %vm3334 = vcmp.eq.f32.partialorder %v1495, %v3306
        %vm3335 = vcmp.eq.f32.partialorder %v1495, %v3309
        %vm3336 = vcmp.eq.f32.partialorder %v1495, %v3312
        %vm3337 = vcmp.eq.f32.partialorder %v1495, %v3315
        %vm3338 = vcmp.eq.f32.partialorder %v1495, %v3318
        %vm3339 = vcmp.eq.f32.partialorder %v1495, %v3321
        %vm3340 = vcmp.eq.f32.partialorder %v1495, %v3324
        %v3341 = vsel %vm3325, 1, 0
        %v3342 = vsel %vm3326, 1, 0
        %v3343 = vsel %vm3327, 1, 0
        %v3344 = vsel %vm3328, 1, 0
        %v3345 = vsel %vm3329, 1, 0
        %v3346 = vsel %vm3330, 1, 0
        %v3347 = vsel %vm3331, 1, 0
        %v3348 = vsel %vm3332, 1, 0
        %v3349 = vsel %vm3333, 1, 0
        %v3350 = vsel %vm3334, 1, 0
        %v3351 = vsel %vm3335, 1, 0
        %v3352 = vsel %vm3336, 1, 0
        %v3353 = vsel %vm3337, 1, 0
        %v3354 = vsel %vm3338, 1, 0
        %v3355 = vsel %vm3339, 1, 0
        %v3356 = vsel %vm3340, 1, 0
        %v3357 = vcvt.s32.f32 %v3341
        %v3358 = vcvt.s32.f32 %v3342
        %v3359 = vcvt.s32.f32 %v3343
        %v3360 = vcvt.s32.f32 %v3344
        %v3361 = vcvt.s32.f32 %v3345
        %v3362 = vcvt.s32.f32 %v3346
        %v3363 = vcvt.s32.f32 %v3347
        %v3364 = vcvt.s32.f32 %v3348
        %v3365 = vcvt.s32.f32 %v3349
        %v3366 = vcvt.s32.f32 %v3350
        %v3367 = vcvt.s32.f32 %v3351
        %v3368 = vcvt.s32.f32 %v3352
        %v3369 = vcvt.s32.f32 %v3353
        %v3370 = vcvt.s32.f32 %v3354
        %v3371 = vcvt.s32.f32 %v3355
        %v3372 = vcvt.s32.f32 %v3356
        %v3374 = vsel %vm1427, %v3357, 0
        %v3377 = vsel %vm1427, %v3358, 0
        %v3380 = vsel %vm1427, %v3359, 0
        %v3383 = vsel %vm1427, %v3360, 0
        %v3386 = vsel %vm1427, %v3361, 0
        %v3389 = vsel %vm1427, %v3362, 0
        %v3392 = vsel %vm1427, %v3363, 0
        %v3395 = vsel %vm1427, %v3364, 0
        %v3398 = vsel %vm1427, %v3365, 0
        %v3401 = vsel %vm1427, %v3366, 0
        %v3404 = vsel %vm1427, %v3367, 0
        %v3407 = vsel %vm1427, %v3368, 0
        %v3410 = vsel %vm1427, %v3369, 0
        %v3413 = vsel %vm1427, %v3370, 0
        %v3416 = vsel %vm1427, %v3371, 0
        %v3419 = vsel %vm1427, %v3372, 0
        %3421 = vmatprep.subr.mxu0 0.0
        %v3422 = vand.u32 %v3374, 4294901760
        %3423 = vmatpush1.xpose.msra.mxu0 %v3422
        %3424 = vmatprep.subr.mxu0 0.0
        %v3425 = vand.u32 %v3377, 4294901760
        %3426 = vmatpush1.xpose.msra.mxu0 %v3425
        %3427 = vmatprep.subr.mxu0 0.0
        %v3428 = vand.u32 %v3380, 4294901760
        %3429 = vmatpush1.xpose.msra.mxu0 %v3428
        %3430 = vmatprep.subr.mxu0 0.0
        %v3431 = vand.u32 %v3383, 4294901760
        %3432 = vmatpush1.xpose.msra.mxu0 %v3431
        %3433 = vmatprep.subr.mxu0 0.0
        %v3434 = vand.u32 %v3386, 4294901760
        %3435 = vmatpush1.xpose.msra.mxu0 %v3434
        %3436 = vmatprep.subr.mxu0 0.0
        %v3437 = vand.u32 %v3389, 4294901760
        %3438 = vmatpush1.xpose.msra.mxu0 %v3437
        %3439 = vmatprep.subr.mxu0 0.0
        %v3440 = vand.u32 %v3392, 4294901760
        %3441 = vmatpush1.xpose.msra.mxu0 %v3440
        %3442 = vmatprep.subr.mxu0 0.0
        %v3443 = vand.u32 %v3395, 4294901760
        %3444 = vmatpush1.xpose.msra.mxu0 %v3443
        %3445 = vmatprep.subr.mxu0 0.0
        %v3446 = vand.u32 %v3398, 4294901760
        %3447 = vmatpush1.xpose.msra.mxu0 %v3446
        %3448 = vmatprep.subr.mxu0 0.0
        %v3449 = vand.u32 %v3401, 4294901760
        %3450 = vmatpush1.xpose.msra.mxu0 %v3449
        %3451 = vmatprep.subr.mxu0 0.0
        %v3452 = vand.u32 %v3404, 4294901760
        %3453 = vmatpush1.xpose.msra.mxu0 %v3452
        %3454 = vmatprep.subr.mxu0 0.0
        %v3455 = vand.u32 %v3407, 4294901760
        %3456 = vmatpush1.xpose.msra.mxu0 %v3455
        %3457 = vmatprep.subr.mxu0 0.0
        %v3458 = vand.u32 %v3410, 4294901760
        %3459 = vmatpush1.xpose.msra.mxu0 %v3458
        %3460 = vmatprep.subr.mxu0 0.0
        %v3461 = vand.u32 %v3413, 4294901760
        %3462 = vmatpush1.xpose.msra.mxu0 %v3461
        %3463 = vmatprep.subr.mxu0 0.0
        %v3464 = vand.u32 %v3416, 4294901760
        %3465 = vmatpush1.xpose.msra.mxu0 %v3464
        %3466 = vmatprep.subr.mxu0 0.0
        %v3467 = vand.u32 %v3419, 4294901760
        %3468 = vmatpush1.xpose.msra.mxu0 %v3467
        %3469 = vmatprep.subr.mxu0 0.0
        %3470 = vmatpush1.xpose.msra.mxu0 0.0
        %3471 = vmatprep.subr.mxu0 0.0
        %3472 = vmatpush1.xpose.msra.mxu0 0.0
        %3473 = vmatprep.subr.mxu0 0.0
        %3474 = vmatpush1.xpose.msra.mxu0 0.0
        %3475 = vmatprep.subr.mxu0 0.0
        %3476 = vmatpush1.xpose.msra.mxu0 0.0
        %3477 = vmatprep.subr.mxu0 0.0
        %3478 = vmatpush1.xpose.msra.mxu0 0.0
        %3479 = vmatprep.subr.mxu0 0.0
        %3480 = vmatpush1.xpose.msra.mxu0 0.0
        %3481 = vmatprep.subr.mxu0 0.0
        %3482 = vmatpush1.xpose.msra.mxu0 0.0
        %3483 = vmatprep.subr.mxu0 0.0
        %3484 = vmatpush1.xpose.msra.mxu0 0.0
        %3485 = vmatprep.subr.mxu0 0.0
        %3486 = vmatpush1.xpose.msra.mxu0 0.0
        %3487 = vmatprep.subr.mxu0 0.0
        %3488 = vmatpush1.xpose.msra.mxu0 0.0
        %3489 = vmatprep.subr.mxu0 0.0
        %3490 = vmatpush1.xpose.msra.mxu0 0.0
        %3491 = vmatprep.subr.mxu0 0.0
        %3492 = vmatpush1.xpose.msra.mxu0 0.0
        %3493 = vmatprep.subr.mxu0 0.0
        %3494 = vmatpush1.xpose.msra.mxu0 0.0
        %3495 = vmatprep.subr.mxu0 0.0
        %3496 = vmatpush1.xpose.msra.mxu0 0.0
        %3497 = vmatprep.subr.mxu0 0.0
        %3498 = vmatpush1.xpose.msra.mxu0 0.0
        %3499 = vmatprep.subr.mxu0 0.0
        %3500 = vmatpush1.xpose.msra.mxu0 0.0
        %3501 = vmatprep.mubr.f32.mxu0 0.0
        %v3502 = vand.u32 %v1609, 4294901760
        %v3503 = vsub.f32 %v1609, %v3502
        %v3504 = vand.u32 %v3503, 4294901760
        %v3505 = vsub.f32 %v3503, %v3504
        %v3506 = vand.u32 %v3505, 4294901760
        %3507 = vmatmul.mubr.f32.gmra.mrb[0].mxu0 %v3506
        %v3508 = vpop.f32.mrb[0].mxu0
        %v3509 = vadd.f32 0.0, %v3508
        %v3510 = vpop.f32.mrb[0].mxu0
        %3511 = vdwg.mxu0
        %3512 = vmatprep.subr.mxu0 0.0
        %v3513 = vand.u32 %v3374, 4294901760
        %v3514 = vsub.f32 %v3374, %v3513
        %v3515 = vand.u32 %v3514, 4294901760
        %v3516 = vsub.f32 %v3514, %v3515
        %v3517 = vand.u32 %v3516, 4294901760
        %3518 = vmatpush1.xpose.msra.mxu0 %v3517
        %3519 = vmatprep.subr.mxu0 0.0
        %v3520 = vand.u32 %v3377, 4294901760
        %v3521 = vsub.f32 %v3377, %v3520
        %v3522 = vand.u32 %v3521, 4294901760
        %v3523 = vsub.f32 %v3521, %v3522
        %v3524 = vand.u32 %v3523, 4294901760
        %3525 = vmatpush1.xpose.msra.mxu0 %v3524
        %3526 = vmatprep.subr.mxu0 0.0
        %v3527 = vand.u32 %v3380, 4294901760
        %v3528 = vsub.f32 %v3380, %v3527
        %v3529 = vand.u32 %v3528, 4294901760
        %v3530 = vsub.f32 %v3528, %v3529
        %v3531 = vand.u32 %v3530, 4294901760
        %3532 = vmatpush1.xpose.msra.mxu0 %v3531
        %3533 = vmatprep.subr.mxu0 0.0
        %v3534 = vand.u32 %v3383, 4294901760
        %v3535 = vsub.f32 %v3383, %v3534
        %v3536 = vand.u32 %v3535, 4294901760
        %v3537 = vsub.f32 %v3535, %v3536
        %v3538 = vand.u32 %v3537, 4294901760
        %3539 = vmatpush1.xpose.msra.mxu0 %v3538
        %3540 = vmatprep.subr.mxu0 0.0
        %v3541 = vand.u32 %v3386, 4294901760
        %v3542 = vsub.f32 %v3386, %v3541
        %v3543 = vand.u32 %v3542, 4294901760
        %v3544 = vsub.f32 %v3542, %v3543
        %v3545 = vand.u32 %v3544, 4294901760
        %3546 = vmatpush1.xpose.msra.mxu0 %v3545
        %3547 = vmatprep.subr.mxu0 0.0
        %v3548 = vand.u32 %v3389, 4294901760
        %v3549 = vsub.f32 %v3389, %v3548
        %v3550 = vand.u32 %v3549, 4294901760
        %v3551 = vsub.f32 %v3549, %v3550
        %v3552 = vand.u32 %v3551, 4294901760
        %3553 = vmatpush1.xpose.msra.mxu0 %v3552
        %3554 = vmatprep.subr.mxu0 0.0
        %v3555 = vand.u32 %v3392, 4294901760
        %v3556 = vsub.f32 %v3392, %v3555
        %v3557 = vand.u32 %v3556, 4294901760
        %v3558 = vsub.f32 %v3556, %v3557
        %v3559 = vand.u32 %v3558, 4294901760
        %3560 = vmatpush1.xpose.msra.mxu0 %v3559
        %3561 = vmatprep.subr.mxu0 0.0
        %v3562 = vand.u32 %v3395, 4294901760
        %v3563 = vsub.f32 %v3395, %v3562
        %v3564 = vand.u32 %v3563, 4294901760
        %v3565 = vsub.f32 %v3563, %v3564
        %v3566 = vand.u32 %v3565, 4294901760
        %3567 = vmatpush1.xpose.msra.mxu0 %v3566
        %3568 = vmatprep.subr.mxu0 0.0
        %v3569 = vand.u32 %v3398, 4294901760
        %v3570 = vsub.f32 %v3398, %v3569
        %v3571 = vand.u32 %v3570, 4294901760
        %v3572 = vsub.f32 %v3570, %v3571
        %v3573 = vand.u32 %v3572, 4294901760
        %3574 = vmatpush1.xpose.msra.mxu0 %v3573
        %3575 = vmatprep.subr.mxu0 0.0
        %v3576 = vand.u32 %v3401, 4294901760
        %v3577 = vsub.f32 %v3401, %v3576
        %v3578 = vand.u32 %v3577, 4294901760
        %v3579 = vsub.f32 %v3577, %v3578
        %v3580 = vand.u32 %v3579, 4294901760
        %3581 = vmatpush1.xpose.msra.mxu0 %v3580
        %3582 = vmatprep.subr.mxu0 0.0
        %v3583 = vand.u32 %v3404, 4294901760
        %v3584 = vsub.f32 %v3404, %v3583
        %v3585 = vand.u32 %v3584, 4294901760
        %v3586 = vsub.f32 %v3584, %v3585
        %v3587 = vand.u32 %v3586, 4294901760
        %3588 = vmatpush1.xpose.msra.mxu0 %v3587
        %3589 = vmatprep.subr.mxu0 0.0
        %v3590 = vand.u32 %v3407, 4294901760
        %v3591 = vsub.f32 %v3407, %v3590
        %v3592 = vand.u32 %v3591, 4294901760
        %v3593 = vsub.f32 %v3591, %v3592
        %v3594 = vand.u32 %v3593, 4294901760
        %3595 = vmatpush1.xpose.msra.mxu0 %v3594
        %3596 = vmatprep.subr.mxu0 0.0
        %v3597 = vand.u32 %v3410, 4294901760
        %v3598 = vsub.f32 %v3410, %v3597
        %v3599 = vand.u32 %v3598, 4294901760
        %v3600 = vsub.f32 %v3598, %v3599
        %v3601 = vand.u32 %v3600, 4294901760
        %3602 = vmatpush1.xpose.msra.mxu0 %v3601
        %3603 = vmatprep.subr.mxu0 0.0
        %v3604 = vand.u32 %v3413, 4294901760
        %v3605 = vsub.f32 %v3413, %v3604
        %v3606 = vand.u32 %v3605, 4294901760
        %v3607 = vsub.f32 %v3605, %v3606
        %v3608 = vand.u32 %v3607, 4294901760
        %3609 = vmatpush1.xpose.msra.mxu0 %v3608
        %3610 = vmatprep.subr.mxu0 0.0
        %v3611 = vand.u32 %v3416, 4294901760
        %v3612 = vsub.f32 %v3416, %v3611
        %v3613 = vand.u32 %v3612, 4294901760
        %v3614 = vsub.f32 %v3612, %v3613
        %v3615 = vand.u32 %v3614, 4294901760
        %3616 = vmatpush1.xpose.msra.mxu0 %v3615
        %3617 = vmatprep.subr.mxu0 0.0
        %v3618 = vand.u32 %v3419, 4294901760
        %v3619 = vsub.f32 %v3419, %v3618
        %v3620 = vand.u32 %v3619, 4294901760
        %v3621 = vsub.f32 %v3619, %v3620
        %v3622 = vand.u32 %v3621, 4294901760
        %3623 = vmatpush1.xpose.msra.mxu0 %v3622
        %3624 = vmatprep.subr.mxu0 0.0
        %3625 = vmatpush1.xpose.msra.mxu0 0.0
        %3626 = vmatprep.subr.mxu0 0.0
        %3627 = vmatpush1.xpose.msra.mxu0 0.0
        %3628 = vmatprep.subr.mxu0 0.0
        %3629 = vmatpush1.xpose.msra.mxu0 0.0
        %3630 = vmatprep.subr.mxu0 0.0
        %3631 = vmatpush1.xpose.msra.mxu0 0.0
        %3632 = vmatprep.subr.mxu0 0.0
        %3633 = vmatpush1.xpose.msra.mxu0 0.0
        %3634 = vmatprep.subr.mxu0 0.0
        %3635 = vmatpush1.xpose.msra.mxu0 0.0
        %3636 = vmatprep.subr.mxu0 0.0
        %3637 = vmatpush1.xpose.msra.mxu0 0.0
        %3638 = vmatprep.subr.mxu0 0.0
        %3639 = vmatpush1.xpose.msra.mxu0 0.0
        %3640 = vmatprep.subr.mxu0 0.0
        %3641 = vmatpush1.xpose.msra.mxu0 0.0
        %3642 = vmatprep.subr.mxu0 0.0
        %3643 = vmatpush1.xpose.msra.mxu0 0.0
        %3644 = vmatprep.subr.mxu0 0.0
        %3645 = vmatpush1.xpose.msra.mxu0 0.0
        %3646 = vmatprep.subr.mxu0 0.0
        %3647 = vmatpush1.xpose.msra.mxu0 0.0
        %3648 = vmatprep.subr.mxu0 0.0
        %3649 = vmatpush1.xpose.msra.mxu0 0.0
        %3650 = vmatprep.subr.mxu0 0.0
        %3651 = vmatpush1.xpose.msra.mxu0 0.0
        %3652 = vmatprep.subr.mxu0 0.0
        %3653 = vmatpush1.xpose.msra.mxu0 0.0
        %3654 = vmatprep.subr.mxu0 0.0
        %3655 = vmatpush1.xpose.msra.mxu0 0.0
        %3656 = vmatprep.mubr.f32.mxu0 0.0
        %v3657 = vand.u32 %v1609, 4294901760
        %3658 = vmatmul.mubr.f32.gmra.mrb[0].mxu0 %v3657
        %v3659 = vpop.f32.mrb[0].mxu0
        %v3660 = vadd.f32 %v3509, %v3659
        %v3661 = vpop.f32.mrb[0].mxu0
        %3662 = vdwg.mxu0
        %3663 = vmatprep.subr.mxu0 0.0
        %v3664 = vand.u32 %v3374, 4294901760
        %v3665 = vsub.f32 %v3374, %v3664
        %3666 = vmatpush1.xpose.msra.mxu0 %v3665
        %3667 = vmatprep.subr.mxu0 0.0
        %v3668 = vand.u32 %v3377, 4294901760
        %v3669 = vsub.f32 %v3377, %v3668
        %3670 = vmatpush1.xpose.msra.mxu0 %v3669
        %3671 = vmatprep.subr.mxu0 0.0
        %v3672 = vand.u32 %v3380, 4294901760
        %v3673 = vsub.f32 %v3380, %v3672
        %3674 = vmatpush1.xpose.msra.mxu0 %v3673
        %3675 = vmatprep.subr.mxu0 0.0
        %v3676 = vand.u32 %v3383, 4294901760
        %v3677 = vsub.f32 %v3383, %v3676
        %3678 = vmatpush1.xpose.msra.mxu0 %v3677
        %3679 = vmatprep.subr.mxu0 0.0
        %v3680 = vand.u32 %v3386, 4294901760
        %v3681 = vsub.f32 %v3386, %v3680
        %3682 = vmatpush1.xpose.msra.mxu0 %v3681
        %3683 = vmatprep.subr.mxu0 0.0
        %v3684 = vand.u32 %v3389, 4294901760
        %v3685 = vsub.f32 %v3389, %v3684
        %3686 = vmatpush1.xpose.msra.mxu0 %v3685
        %3687 = vmatprep.subr.mxu0 0.0
        %v3688 = vand.u32 %v3392, 4294901760
        %v3689 = vsub.f32 %v3392, %v3688
        %3690 = vmatpush1.xpose.msra.mxu0 %v3689
        %3691 = vmatprep.subr.mxu0 0.0
        %v3692 = vand.u32 %v3395, 4294901760
        %v3693 = vsub.f32 %v3395, %v3692
        %3694 = vmatpush1.xpose.msra.mxu0 %v3693
        %3695 = vmatprep.subr.mxu0 0.0
        %v3696 = vand.u32 %v3398, 4294901760
        %v3697 = vsub.f32 %v3398, %v3696
        %3698 = vmatpush1.xpose.msra.mxu0 %v3697
        %3699 = vmatprep.subr.mxu0 0.0
        %v3700 = vand.u32 %v3401, 4294901760
        %v3701 = vsub.f32 %v3401, %v3700
        %3702 = vmatpush1.xpose.msra.mxu0 %v3701
        %3703 = vmatprep.subr.mxu0 0.0
        %v3704 = vand.u32 %v3404, 4294901760
        %v3705 = vsub.f32 %v3404, %v3704
        %3706 = vmatpush1.xpose.msra.mxu0 %v3705
        %3707 = vmatprep.subr.mxu0 0.0
        %v3708 = vand.u32 %v3407, 4294901760
        %v3709 = vsub.f32 %v3407, %v3708
        %3710 = vmatpush1.xpose.msra.mxu0 %v3709
        %3711 = vmatprep.subr.mxu0 0.0
        %v3712 = vand.u32 %v3410, 4294901760
        %v3713 = vsub.f32 %v3410, %v3712
        %3714 = vmatpush1.xpose.msra.mxu0 %v3713
        %3715 = vmatprep.subr.mxu0 0.0
        %v3716 = vand.u32 %v3413, 4294901760
        %v3717 = vsub.f32 %v3413, %v3716
        %3718 = vmatpush1.xpose.msra.mxu0 %v3717
        %3719 = vmatprep.subr.mxu0 0.0
        %v3720 = vand.u32 %v3416, 4294901760
        %v3721 = vsub.f32 %v3416, %v3720
        %3722 = vmatpush1.xpose.msra.mxu0 %v3721
        %3723 = vmatprep.subr.mxu0 0.0
        %v3724 = vand.u32 %v3419, 4294901760
        %v3725 = vsub.f32 %v3419, %v3724
        %3726 = vmatpush1.xpose.msra.mxu0 %v3725
        %3727 = vmatprep.subr.mxu0 0.0
        %3728 = vmatpush1.xpose.msra.mxu0 0.0
        %3729 = vmatprep.subr.mxu0 0.0
        %3730 = vmatpush1.xpose.msra.mxu0 0.0
        %3731 = vmatprep.subr.mxu0 0.0
        %3732 = vmatpush1.xpose.msra.mxu0 0.0
        %3733 = vmatprep.subr.mxu0 0.0
        %3734 = vmatpush1.xpose.msra.mxu0 0.0
        %3735 = vmatprep.subr.mxu0 0.0
        %3736 = vmatpush1.xpose.msra.mxu0 0.0
        %3737 = vmatprep.subr.mxu0 0.0
        %3738 = vmatpush1.xpose.msra.mxu0 0.0
        %3739 = vmatprep.subr.mxu0 0.0
        %3740 = vmatpush1.xpose.msra.mxu0 0.0
        %3741 = vmatprep.subr.mxu0 0.0
        %3742 = vmatpush1.xpose.msra.mxu0 0.0
        %3743 = vmatprep.subr.mxu0 0.0
        %3744 = vmatpush1.xpose.msra.mxu0 0.0
        %3745 = vmatprep.subr.mxu0 0.0
        %3746 = vmatpush1.xpose.msra.mxu0 0.0
        %3747 = vmatprep.subr.mxu0 0.0
        %3748 = vmatpush1.xpose.msra.mxu0 0.0
        %3749 = vmatprep.subr.mxu0 0.0
        %3750 = vmatpush1.xpose.msra.mxu0 0.0
        %3751 = vmatprep.subr.mxu0 0.0
        %3752 = vmatpush1.xpose.msra.mxu0 0.0
        %3753 = vmatprep.subr.mxu0 0.0
        %3754 = vmatpush1.xpose.msra.mxu0 0.0
        %3755 = vmatprep.subr.mxu0 0.0
        %3756 = vmatpush1.xpose.msra.mxu0 0.0
        %3757 = vmatprep.subr.mxu0 0.0
        %3758 = vmatpush1.xpose.msra.mxu0 0.0
        %3759 = vmatprep.mubr.f32.mxu0 0.0
        %v3760 = vand.u32 %v1609, 4294901760
        %v3761 = vsub.f32 %v1609, %v3760
        %3762 = vmatmul.mubr.f32.gmra.mrb[0].mxu0 %v3761
        %v3763 = vpop.f32.mrb[0].mxu0
        %v3764 = vadd.f32 %v3660, %v3763
        %v3765 = vpop.f32.mrb[0].mxu0
        %3766 = vdwg.mxu0
        %3767 = vmatprep.subr.mxu0 0.0
        %v3768 = vand.u32 %v3374, 4294901760
        %3769 = vmatpush1.xpose.msra.mxu0 %v3768
        %3770 = vmatprep.subr.mxu0 0.0
        %v3771 = vand.u32 %v3377, 4294901760
        %3772 = vmatpush1.xpose.msra.mxu0 %v3771
        %3773 = vmatprep.subr.mxu0 0.0
        %v3774 = vand.u32 %v3380, 4294901760
        %3775 = vmatpush1.xpose.msra.mxu0 %v3774
        %3776 = vmatprep.subr.mxu0 0.0
        %v3777 = vand.u32 %v3383, 4294901760
        %3778 = vmatpush1.xpose.msra.mxu0 %v3777
        %3779 = vmatprep.subr.mxu0 0.0
        %v3780 = vand.u32 %v3386, 4294901760
        %3781 = vmatpush1.xpose.msra.mxu0 %v3780
        %3782 = vmatprep.subr.mxu0 0.0
        %v3783 = vand.u32 %v3389, 4294901760
        %3784 = vmatpush1.xpose.msra.mxu0 %v3783
        %3785 = vmatprep.subr.mxu0 0.0
        %v3786 = vand.u32 %v3392, 4294901760
        %3787 = vmatpush1.xpose.msra.mxu0 %v3786
        %3788 = vmatprep.subr.mxu0 0.0
        %v3789 = vand.u32 %v3395, 4294901760
        %3790 = vmatpush1.xpose.msra.mxu0 %v3789
        %3791 = vmatprep.subr.mxu0 0.0
        %v3792 = vand.u32 %v3398, 4294901760
        %3793 = vmatpush1.xpose.msra.mxu0 %v3792
        %3794 = vmatprep.subr.mxu0 0.0
        %v3795 = vand.u32 %v3401, 4294901760
        %3796 = vmatpush1.xpose.msra.mxu0 %v3795
        %3797 = vmatprep.subr.mxu0 0.0
        %v3798 = vand.u32 %v3404, 4294901760
        %3799 = vmatpush1.xpose.msra.mxu0 %v3798
        %3800 = vmatprep.subr.mxu0 0.0
        %v3801 = vand.u32 %v3407, 4294901760
        %3802 = vmatpush1.xpose.msra.mxu0 %v3801
        %3803 = vmatprep.subr.mxu0 0.0
        %v3804 = vand.u32 %v3410, 4294901760
        %3805 = vmatpush1.xpose.msra.mxu0 %v3804
        %3806 = vmatprep.subr.mxu0 0.0
        %v3807 = vand.u32 %v3413, 4294901760
        %3808 = vmatpush1.xpose.msra.mxu0 %v3807
        %3809 = vmatprep.subr.mxu0 0.0
        %v3810 = vand.u32 %v3416, 4294901760
        %3811 = vmatpush1.xpose.msra.mxu0 %v3810
        %3812 = vmatprep.subr.mxu0 0.0
        %v3813 = vand.u32 %v3419, 4294901760
        %3814 = vmatpush1.xpose.msra.mxu0 %v3813
        %3815 = vmatprep.subr.mxu0 0.0
        %3816 = vmatpush1.xpose.msra.mxu0 0.0
        %3817 = vmatprep.subr.mxu0 0.0
        %3818 = vmatpush1.xpose.msra.mxu0 0.0
        %3819 = vmatprep.subr.mxu0 0.0
        %3820 = vmatpush1.xpose.msra.mxu0 0.0
        %3821 = vmatprep.subr.mxu0 0.0
        %3822 = vmatpush1.xpose.msra.mxu0 0.0
        %3823 = vmatprep.subr.mxu0 0.0
        %3824 = vmatpush1.xpose.msra.mxu0 0.0
        %3825 = vmatprep.subr.mxu0 0.0
        %3826 = vmatpush1.xpose.msra.mxu0 0.0
        %3827 = vmatprep.subr.mxu0 0.0
        %3828 = vmatpush1.xpose.msra.mxu0 0.0
        %3829 = vmatprep.subr.mxu0 0.0
        %3830 = vmatpush1.xpose.msra.mxu0 0.0
        %3831 = vmatprep.subr.mxu0 0.0
        %3832 = vmatpush1.xpose.msra.mxu0 0.0
        %3833 = vmatprep.subr.mxu0 0.0
        %3834 = vmatpush1.xpose.msra.mxu0 0.0
        %3835 = vmatprep.subr.mxu0 0.0
        %3836 = vmatpush1.xpose.msra.mxu0 0.0
        %3837 = vmatprep.subr.mxu0 0.0
        %3838 = vmatpush1.xpose.msra.mxu0 0.0
        %3839 = vmatprep.subr.mxu0 0.0
        %3840 = vmatpush1.xpose.msra.mxu0 0.0
        %3841 = vmatprep.subr.mxu0 0.0
        %3842 = vmatpush1.xpose.msra.mxu0 0.0
        %3843 = vmatprep.subr.mxu0 0.0
        %3844 = vmatpush1.xpose.msra.mxu0 0.0
        %3845 = vmatprep.subr.mxu0 0.0
        %3846 = vmatpush1.xpose.msra.mxu0 0.0
        %3847 = vmatprep.mubr.f32.mxu0 0.0
        %v3848 = vand.u32 %v1609, 4294901760
        %v3849 = vsub.f32 %v1609, %v3848
        %v3850 = vand.u32 %v3849, 4294901760
        %3851 = vmatmul.mubr.f32.gmra.mrb[0].mxu0 %v3850
        %v3852 = vpop.f32.mrb[0].mxu0
        %v3853 = vadd.f32 %v3764, %v3852
        %v3854 = vpop.f32.mrb[0].mxu0
        %3855 = vdwg.mxu0
        %3856 = vmatprep.subr.mxu0 0.0
        %v3857 = vand.u32 %v3374, 4294901760
        %v3858 = vsub.f32 %v3374, %v3857
        %v3859 = vand.u32 %v3858, 4294901760
        %3860 = vmatpush1.xpose.msra.mxu0 %v3859
        %3861 = vmatprep.subr.mxu0 0.0
        %v3862 = vand.u32 %v3377, 4294901760
        %v3863 = vsub.f32 %v3377, %v3862
        %v3864 = vand.u32 %v3863, 4294901760
        %3865 = vmatpush1.xpose.msra.mxu0 %v3864
        %3866 = vmatprep.subr.mxu0 0.0
        %v3867 = vand.u32 %v3380, 4294901760
        %v3868 = vsub.f32 %v3380, %v3867
        %v3869 = vand.u32 %v3868, 4294901760
        %3870 = vmatpush1.xpose.msra.mxu0 %v3869
        %3871 = vmatprep.subr.mxu0 0.0
        %v3872 = vand.u32 %v3383, 4294901760
        %v3873 = vsub.f32 %v3383, %v3872
        %v3874 = vand.u32 %v3873, 4294901760
        %3875 = vmatpush1.xpose.msra.mxu0 %v3874
        %3876 = vmatprep.subr.mxu0 0.0
        %v3877 = vand.u32 %v3386, 4294901760
        %v3878 = vsub.f32 %v3386, %v3877
        %v3879 = vand.u32 %v3878, 4294901760
        %3880 = vmatpush1.xpose.msra.mxu0 %v3879
        %3881 = vmatprep.subr.mxu0 0.0
        %v3882 = vand.u32 %v3389, 4294901760
        %v3883 = vsub.f32 %v3389, %v3882
        %v3884 = vand.u32 %v3883, 4294901760
        %3885 = vmatpush1.xpose.msra.mxu0 %v3884
        %3886 = vmatprep.subr.mxu0 0.0
        %v3887 = vand.u32 %v3392, 4294901760
        %v3888 = vsub.f32 %v3392, %v3887
        %v3889 = vand.u32 %v3888, 4294901760
        %3890 = vmatpush1.xpose.msra.mxu0 %v3889
        %3891 = vmatprep.subr.mxu0 0.0
        %v3892 = vand.u32 %v3395, 4294901760
        %v3893 = vsub.f32 %v3395, %v3892
        %v3894 = vand.u32 %v3893, 4294901760
        %3895 = vmatpush1.xpose.msra.mxu0 %v3894
        %3896 = vmatprep.subr.mxu0 0.0
        %v3897 = vand.u32 %v3398, 4294901760
        %v3898 = vsub.f32 %v3398, %v3897
        %v3899 = vand.u32 %v3898, 4294901760
        %3900 = vmatpush1.xpose.msra.mxu0 %v3899
        %3901 = vmatprep.subr.mxu0 0.0
        %v3902 = vand.u32 %v3401, 4294901760
        %v3903 = vsub.f32 %v3401, %v3902
        %v3904 = vand.u32 %v3903, 4294901760
        %3905 = vmatpush1.xpose.msra.mxu0 %v3904
        %3906 = vmatprep.subr.mxu0 0.0
        %v3907 = vand.u32 %v3404, 4294901760
        %v3908 = vsub.f32 %v3404, %v3907
        %v3909 = vand.u32 %v3908, 4294901760
        %3910 = vmatpush1.xpose.msra.mxu0 %v3909
        %3911 = vmatprep.subr.mxu0 0.0
        %v3912 = vand.u32 %v3407, 4294901760
        %v3913 = vsub.f32 %v3407, %v3912
        %v3914 = vand.u32 %v3913, 4294901760
        %3915 = vmatpush1.xpose.msra.mxu0 %v3914
        %3916 = vmatprep.subr.mxu0 0.0
        %v3917 = vand.u32 %v3410, 4294901760
        %v3918 = vsub.f32 %v3410, %v3917
        %v3919 = vand.u32 %v3918, 4294901760
        %3920 = vmatpush1.xpose.msra.mxu0 %v3919
        %3921 = vmatprep.subr.mxu0 0.0
        %v3922 = vand.u32 %v3413, 4294901760
        %v3923 = vsub.f32 %v3413, %v3922
        %v3924 = vand.u32 %v3923, 4294901760
        %3925 = vmatpush1.xpose.msra.mxu0 %v3924
        %3926 = vmatprep.subr.mxu0 0.0
        %v3927 = vand.u32 %v3416, 4294901760
        %v3928 = vsub.f32 %v3416, %v3927
        %v3929 = vand.u32 %v3928, 4294901760
        %3930 = vmatpush1.xpose.msra.mxu0 %v3929
        %3931 = vmatprep.subr.mxu0 0.0
        %v3932 = vand.u32 %v3419, 4294901760
        %v3933 = vsub.f32 %v3419, %v3932
        %v3934 = vand.u32 %v3933, 4294901760
        %3935 = vmatpush1.xpose.msra.mxu0 %v3934
        %3936 = vmatprep.subr.mxu0 0.0
        %3937 = vmatpush1.xpose.msra.mxu0 0.0
        %3938 = vmatprep.subr.mxu0 0.0
        %3939 = vmatpush1.xpose.msra.mxu0 0.0
        %3940 = vmatprep.subr.mxu0 0.0
        %3941 = vmatpush1.xpose.msra.mxu0 0.0
        %3942 = vmatprep.subr.mxu0 0.0
        %3943 = vmatpush1.xpose.msra.mxu0 0.0
        %3944 = vmatprep.subr.mxu0 0.0
        %3945 = vmatpush1.xpose.msra.mxu0 0.0
        %3946 = vmatprep.subr.mxu0 0.0
        %3947 = vmatpush1.xpose.msra.mxu0 0.0
        %3948 = vmatprep.subr.mxu0 0.0
        %3949 = vmatpush1.xpose.msra.mxu0 0.0
        %3950 = vmatprep.subr.mxu0 0.0
        %3951 = vmatpush1.xpose.msra.mxu0 0.0
        %3952 = vmatprep.subr.mxu0 0.0
        %3953 = vmatpush1.xpose.msra.mxu0 0.0
        %3954 = vmatprep.subr.mxu0 0.0
        %3955 = vmatpush1.xpose.msra.mxu0 0.0
        %3956 = vmatprep.subr.mxu0 0.0
        %3957 = vmatpush1.xpose.msra.mxu0 0.0
        %3958 = vmatprep.subr.mxu0 0.0
        %3959 = vmatpush1.xpose.msra.mxu0 0.0
        %3960 = vmatprep.subr.mxu0 0.0
        %3961 = vmatpush1.xpose.msra.mxu0 0.0
        %3962 = vmatprep.subr.mxu0 0.0
        %3963 = vmatpush1.xpose.msra.mxu0 0.0
        %3964 = vmatprep.subr.mxu0 0.0
        %3965 = vmatpush1.xpose.msra.mxu0 0.0
        %3966 = vmatprep.subr.mxu0 0.0
        %3967 = vmatpush1.xpose.msra.mxu0 0.0
        %3968 = vmatprep.mubr.f32.mxu0 0.0
        %v3969 = vand.u32 %v1609, 4294901760
        %3970 = vmatmul.mubr.f32.gmra.mrb[0].mxu0 %v3969
        %v3971 = vpop.f32.mrb[0].mxu0
        %v3972 = vadd.f32 %v3853, %v3971
        %v3973 = vpop.f32.mrb[0].mxu0
        %3974 = vdwg.mxu0
        %3975 = vmatprep.subr.mxu0 0.0
        %v3976 = vand.u32 %v3374, 4294901760
        %3977 = vmatpush1.xpose.msra.mxu0 %v3976
        %3978 = vmatprep.subr.mxu0 0.0
        %v3979 = vand.u32 %v3377, 4294901760
        %3980 = vmatpush1.xpose.msra.mxu0 %v3979
        %3981 = vmatprep.subr.mxu0 0.0
        %v3982 = vand.u32 %v3380, 4294901760
        %3983 = vmatpush1.xpose.msra.mxu0 %v3982
        %3984 = vmatprep.subr.mxu0 0.0
        %v3985 = vand.u32 %v3383, 4294901760
        %3986 = vmatpush1.xpose.msra.mxu0 %v3985
        %3987 = vmatprep.subr.mxu0 0.0
        %v3988 = vand.u32 %v3386, 4294901760
        %3989 = vmatpush1.xpose.msra.mxu0 %v3988
        %3990 = vmatprep.subr.mxu0 0.0
        %v3991 = vand.u32 %v3389, 4294901760
        %3992 = vmatpush1.xpose.msra.mxu0 %v3991
        %3993 = vmatprep.subr.mxu0 0.0
        %v3994 = vand.u32 %v3392, 4294901760
        %3995 = vmatpush1.xpose.msra.mxu0 %v3994
        %3996 = vmatprep.subr.mxu0 0.0
        %v3997 = vand.u32 %v3395, 4294901760
        %3998 = vmatpush1.xpose.msra.mxu0 %v3997
        %3999 = vmatprep.subr.mxu0 0.0
        %v4000 = vand.u32 %v3398, 4294901760
        %4001 = vmatpush1.xpose.msra.mxu0 %v4000
        %4002 = vmatprep.subr.mxu0 0.0
        %v4003 = vand.u32 %v3401, 4294901760
        %4004 = vmatpush1.xpose.msra.mxu0 %v4003
        %4005 = vmatprep.subr.mxu0 0.0
        %v4006 = vand.u32 %v3404, 4294901760
        %4007 = vmatpush1.xpose.msra.mxu0 %v4006
        %4008 = vmatprep.subr.mxu0 0.0
        %v4009 = vand.u32 %v3407, 4294901760
        %4010 = vmatpush1.xpose.msra.mxu0 %v4009
        %4011 = vmatprep.subr.mxu0 0.0
        %v4012 = vand.u32 %v3410, 4294901760
        %4013 = vmatpush1.xpose.msra.mxu0 %v4012
        %4014 = vmatprep.subr.mxu0 0.0
        %v4015 = vand.u32 %v3413, 4294901760
        %4016 = vmatpush1.xpose.msra.mxu0 %v4015
        %4017 = vmatprep.subr.mxu0 0.0
        %v4018 = vand.u32 %v3416, 4294901760
        %4019 = vmatpush1.xpose.msra.mxu0 %v4018
        %4020 = vmatprep.subr.mxu0 0.0
        %v4021 = vand.u32 %v3419, 4294901760
        %4022 = vmatpush1.xpose.msra.mxu0 %v4021
        %4023 = vmatprep.subr.mxu0 0.0
        %4024 = vmatpush1.xpose.msra.mxu0 0.0
        %4025 = vmatprep.subr.mxu0 0.0
        %4026 = vmatpush1.xpose.msra.mxu0 0.0
        %4027 = vmatprep.subr.mxu0 0.0
        %4028 = vmatpush1.xpose.msra.mxu0 0.0
        %4029 = vmatprep.subr.mxu0 0.0
        %4030 = vmatpush1.xpose.msra.mxu0 0.0
        %4031 = vmatprep.subr.mxu0 0.0
        %4032 = vmatpush1.xpose.msra.mxu0 0.0
        %4033 = vmatprep.subr.mxu0 0.0
        %4034 = vmatpush1.xpose.msra.mxu0 0.0
        %4035 = vmatprep.subr.mxu0 0.0
        %4036 = vmatpush1.xpose.msra.mxu0 0.0
        %4037 = vmatprep.subr.mxu0 0.0
        %4038 = vmatpush1.xpose.msra.mxu0 0.0
        %4039 = vmatprep.subr.mxu0 0.0
        %4040 = vmatpush1.xpose.msra.mxu0 0.0
        %4041 = vmatprep.subr.mxu0 0.0
        %4042 = vmatpush1.xpose.msra.mxu0 0.0
        %4043 = vmatprep.subr.mxu0 0.0
        %4044 = vmatpush1.xpose.msra.mxu0 0.0
        %4045 = vmatprep.subr.mxu0 0.0
        %4046 = vmatpush1.xpose.msra.mxu0 0.0
        %4047 = vmatprep.subr.mxu0 0.0
        %4048 = vmatpush1.xpose.msra.mxu0 0.0
        %4049 = vmatprep.subr.mxu0 0.0
        %4050 = vmatpush1.xpose.msra.mxu0 0.0
        %4051 = vmatprep.subr.mxu0 0.0
        %4052 = vmatpush1.xpose.msra.mxu0 0.0
        %4053 = vmatprep.subr.mxu0 0.0
        %4054 = vmatpush1.xpose.msra.mxu0 0.0
        %4055 = vmatprep.mubr.f32.mxu0 0.0
        %v4056 = vand.u32 %v1609, 4294901760
        %4057 = vmatmul.mubr.f32.gmra.mrb[0].mxu0 %v4056
        %v4058 = vpop.f32.mrb[0].mxu0
        %v4059 = vadd.f32 %v3972, %v4058
        %v4060 = vpop.f32.mrb[0].mxu0
        %4061 = vdwg.mxu0
        %v4062 = vsel %vm3325, 3.4028235e+38, %v3181
        %v4063 = vsel %vm3326, 3.4028235e+38, %v3182
        %v4064 = vsel %vm3327, 3.4028235e+38, %v3183
        %v4065 = vsel %vm3328, 3.4028235e+38, %v3184
        %v4066 = vsel %vm3329, 3.4028235e+38, %v3185
        %v4067 = vsel %vm3330, 3.4028235e+38, %v3186
        %v4068 = vsel %vm3331, 3.4028235e+38, %v3187
        %v4069 = vsel %vm3332, 3.4028235e+38, %v3188
        %v4070 = vsel %vm3333, 3.4028235e+38, %v3189
        %v4071 = vsel %vm3334, 3.4028235e+38, %v3190
        %v4072 = vsel %vm3335, 3.4028235e+38, %v3191
        %v4073 = vsel %vm3336, 3.4028235e+38, %v3192
        %v4074 = vsel %vm3337, 3.4028235e+38, %v3193
        %v4075 = vsel %vm3338, 3.4028235e+38, %v3194
        %v4076 = vsel %vm3339, 3.4028235e+38, %v3195
        %v4077 = vsel %vm3340, 3.4028235e+38, %v3196
        %v4078 = vsel %vm1427, %v4062, inf
        %4079 = vmin.xlane.f32.xlu0 %v4078
        %v4080 = vpop.xlane.xlu0 %4079
        %v4081 = vsel %vm1427, %v4063, inf
        %4082 = vmin.xlane.f32.xlu0 %v4081
        %v4083 = vpop.xlane.xlu0 %4082
        %v4084 = vsel %vm1427, %v4064, inf
        %4085 = vmin.xlane.f32.xlu0 %v4084
        %v4086 = vpop.xlane.xlu0 %4085
        %v4087 = vsel %vm1427, %v4065, inf
        %4088 = vmin.xlane.f32.xlu0 %v4087
        %v4089 = vpop.xlane.xlu0 %4088
        %v4090 = vsel %vm1427, %v4066, inf
        %4091 = vmin.xlane.f32.xlu0 %v4090
        %v4092 = vpop.xlane.xlu0 %4091
        %v4093 = vsel %vm1427, %v4067, inf
        %4094 = vmin.xlane.f32.xlu0 %v4093
        %v4095 = vpop.xlane.xlu0 %4094
        %v4096 = vsel %vm1427, %v4068, inf
        %4097 = vmin.xlane.f32.xlu0 %v4096
        %v4098 = vpop.xlane.xlu0 %4097
        %v4099 = vsel %vm1427, %v4069, inf
        %4100 = vmin.xlane.f32.xlu0 %v4099
        %v4101 = vpop.xlane.xlu0 %4100
        %v4102 = vsel %vm1427, %v4070, inf
        %4103 = vmin.xlane.f32.xlu0 %v4102
        %v4104 = vpop.xlane.xlu0 %4103
        %v4105 = vsel %vm1427, %v4071, inf
        %4106 = vmin.xlane.f32.xlu0 %v4105
        %v4107 = vpop.xlane.xlu0 %4106
        %v4108 = vsel %vm1427, %v4072, inf
        %4109 = vmin.xlane.f32.xlu0 %v4108
        %v4110 = vpop.xlane.xlu0 %4109
        %v4111 = vsel %vm1427, %v4073, inf
        %4112 = vmin.xlane.f32.xlu0 %v4111
        %v4113 = vpop.xlane.xlu0 %4112
        %v4114 = vsel %vm1427, %v4074, inf
        %4115 = vmin.xlane.f32.xlu0 %v4114
        %v4116 = vpop.xlane.xlu0 %4115
        %v4117 = vsel %vm1427, %v4075, inf
        %4118 = vmin.xlane.f32.xlu0 %v4117
        %v4119 = vpop.xlane.xlu0 %4118
        %v4120 = vsel %vm1427, %v4076, inf
        %4121 = vmin.xlane.f32.xlu0 %v4120
        %v4122 = vpop.xlane.xlu0 %4121
        %v4123 = vsel %vm1427, %v4077, inf
        %4124 = vmin.xlane.f32.xlu0 %v4123
        %v4125 = vpop.xlane.xlu0 %4124
        %vm4126 = vcmp.le.f32.partialorder %v4062, %v4080
        %vm4127 = vcmp.le.f32.partialorder %v4063, %v4083
        %vm4128 = vcmp.le.f32.partialorder %v4064, %v4086
        %vm4129 = vcmp.le.f32.partialorder %v4065, %v4089
        %vm4130 = vcmp.le.f32.partialorder %v4066, %v4092
        %vm4131 = vcmp.le.f32.partialorder %v4067, %v4095
        %vm4132 = vcmp.le.f32.partialorder %v4068, %v4098
        %vm4133 = vcmp.le.f32.partialorder %v4069, %v4101
        %vm4134 = vcmp.le.f32.partialorder %v4070, %v4104
        %vm4135 = vcmp.le.f32.partialorder %v4071, %v4107
        %vm4136 = vcmp.le.f32.partialorder %v4072, %v4110
        %vm4137 = vcmp.le.f32.partialorder %v4073, %v4113
        %vm4138 = vcmp.le.f32.partialorder %v4074, %v4116
        %vm4139 = vcmp.le.f32.partialorder %v4075, %v4119
        %vm4140 = vcmp.le.f32.partialorder %v4076, %v4122
        %vm4141 = vcmp.le.f32.partialorder %v4077, %v4125
        %v4142 = vsel %vm4126, %v1495, 16.0
        %v4143 = vsel %vm4127, %v1495, 16.0
        %v4144 = vsel %vm4128, %v1495, 16.0
        %v4145 = vsel %vm4129, %v1495, 16.0
        %v4146 = vsel %vm4130, %v1495, 16.0
        %v4147 = vsel %vm4131, %v1495, 16.0
        %v4148 = vsel %vm4132, %v1495, 16.0
        %v4149 = vsel %vm4133, %v1495, 16.0
        %v4150 = vsel %vm4134, %v1495, 16.0
        %v4151 = vsel %vm4135, %v1495, 16.0
        %v4152 = vsel %vm4136, %v1495, 16.0
        %v4153 = vsel %vm4137, %v1495, 16.0
        %v4154 = vsel %vm4138, %v1495, 16.0
        %v4155 = vsel %vm4139, %v1495, 16.0
        %v4156 = vsel %vm4140, %v1495, 16.0
        %v4157 = vsel %vm4141, %v1495, 16.0
        %v4158 = vsel %vm1427, %v4142, inf
        %4159 = vmin.xlane.f32.xlu0 %v4158
        %v4160 = vpop.xlane.xlu0 %4159
        %v4161 = vsel %vm1427, %v4143, inf
        %4162 = vmin.xlane.f32.xlu0 %v4161
        %v4163 = vpop.xlane.xlu0 %4162
        %v4164 = vsel %vm1427, %v4144, inf
        %4165 = vmin.xlane.f32.xlu0 %v4164
        %v4166 = vpop.xlane.xlu0 %4165
        %v4167 = vsel %vm1427, %v4145, inf
        %4168 = vmin.xlane.f32.xlu0 %v4167
        %v4169 = vpop.xlane.xlu0 %4168
        %v4170 = vsel %vm1427, %v4146, inf
        %4171 = vmin.xlane.f32.xlu0 %v4170
        %v4172 = vpop.xlane.xlu0 %4171
        %v4173 = vsel %vm1427, %v4147, inf
        %4174 = vmin.xlane.f32.xlu0 %v4173
        %v4175 = vpop.xlane.xlu0 %4174
        %v4176 = vsel %vm1427, %v4148, inf
        %4177 = vmin.xlane.f32.xlu0 %v4176
        %v4178 = vpop.xlane.xlu0 %4177
        %v4179 = vsel %vm1427, %v4149, inf
        %4180 = vmin.xlane.f32.xlu0 %v4179
        %v4181 = vpop.xlane.xlu0 %4180
        %v4182 = vsel %vm1427, %v4150, inf
        %4183 = vmin.xlane.f32.xlu0 %v4182
        %v4184 = vpop.xlane.xlu0 %4183
        %v4185 = vsel %vm1427, %v4151, inf
        %4186 = vmin.xlane.f32.xlu0 %v4185
        %v4187 = vpop.xlane.xlu0 %4186
        %v4188 = vsel %vm1427, %v4152, inf
        %4189 = vmin.xlane.f32.xlu0 %v4188
        %v4190 = vpop.xlane.xlu0 %4189
        %v4191 = vsel %vm1427, %v4153, inf
        %4192 = vmin.xlane.f32.xlu0 %v4191
        %v4193 = vpop.xlane.xlu0 %4192
        %v4194 = vsel %vm1427, %v4154, inf
        %4195 = vmin.xlane.f32.xlu0 %v4194
        %v4196 = vpop.xlane.xlu0 %4195
        %v4197 = vsel %vm1427, %v4155, inf
        %4198 = vmin.xlane.f32.xlu0 %v4197
        %v4199 = vpop.xlane.xlu0 %4198
        %v4200 = vsel %vm1427, %v4156, inf
        %4201 = vmin.xlane.f32.xlu0 %v4200
        %v4202 = vpop.xlane.xlu0 %4201
        %v4203 = vsel %vm1427, %v4157, inf
        %4204 = vmin.xlane.f32.xlu0 %v4203
        %v4205 = vpop.xlane.xlu0 %4204
        %vm4206 = vcmp.eq.f32.partialorder %v1495, %v4160
        %vm4207 = vcmp.eq.f32.partialorder %v1495, %v4163
        %vm4208 = vcmp.eq.f32.partialorder %v1495, %v4166
        %vm4209 = vcmp.eq.f32.partialorder %v1495, %v4169
        %vm4210 = vcmp.eq.f32.partialorder %v1495, %v4172
        %vm4211 = vcmp.eq.f32.partialorder %v1495, %v4175
        %vm4212 = vcmp.eq.f32.partialorder %v1495, %v4178
        %vm4213 = vcmp.eq.f32.partialorder %v1495, %v4181
        %vm4214 = vcmp.eq.f32.partialorder %v1495, %v4184
        %vm4215 = vcmp.eq.f32.partialorder %v1495, %v4187
        %vm4216 = vcmp.eq.f32.partialorder %v1495, %v4190
        %vm4217 = vcmp.eq.f32.partialorder %v1495, %v4193
        %vm4218 = vcmp.eq.f32.partialorder %v1495, %v4196
        %vm4219 = vcmp.eq.f32.partialorder %v1495, %v4199
        %vm4220 = vcmp.eq.f32.partialorder %v1495, %v4202
        %vm4221 = vcmp.eq.f32.partialorder %v1495, %v4205
        %v4222 = vsel %vm4206, 1, 0
        %v4223 = vsel %vm4207, 1, 0
        %v4224 = vsel %vm4208, 1, 0
        %v4225 = vsel %vm4209, 1, 0
        %v4226 = vsel %vm4210, 1, 0
        %v4227 = vsel %vm4211, 1, 0
        %v4228 = vsel %vm4212, 1, 0
        %v4229 = vsel %vm4213, 1, 0
        %v4230 = vsel %vm4214, 1, 0
        %v4231 = vsel %vm4215, 1, 0
        %v4232 = vsel %vm4216, 1, 0
        %v4233 = vsel %vm4217, 1, 0
        %v4234 = vsel %vm4218, 1, 0
        %v4235 = vsel %vm4219, 1, 0
        %v4236 = vsel %vm4220, 1, 0
        %v4237 = vsel %vm4221, 1, 0
        %v4238 = vcvt.s32.f32 %v4222
        %v4239 = vcvt.s32.f32 %v4223
        %v4240 = vcvt.s32.f32 %v4224
        %v4241 = vcvt.s32.f32 %v4225
        %v4242 = vcvt.s32.f32 %v4226
        %v4243 = vcvt.s32.f32 %v4227
        %v4244 = vcvt.s32.f32 %v4228
        %v4245 = vcvt.s32.f32 %v4229
        %v4246 = vcvt.s32.f32 %v4230
        %v4247 = vcvt.s32.f32 %v4231
        %v4248 = vcvt.s32.f32 %v4232
        %v4249 = vcvt.s32.f32 %v4233
        %v4250 = vcvt.s32.f32 %v4234
        %v4251 = vcvt.s32.f32 %v4235
        %v4252 = vcvt.s32.f32 %v4236
        %v4253 = vcvt.s32.f32 %v4237
        %v4255 = vsel %vm1427, %v4238, 0
        %v4258 = vsel %vm1427, %v4239, 0
        %v4261 = vsel %vm1427, %v4240, 0
        %v4264 = vsel %vm1427, %v4241, 0
        %v4267 = vsel %vm1427, %v4242, 0
        %v4270 = vsel %vm1427, %v4243, 0
        %v4273 = vsel %vm1427, %v4244, 0
        %v4276 = vsel %vm1427, %v4245, 0
        %v4279 = vsel %vm1427, %v4246, 0
        %v4282 = vsel %vm1427, %v4247, 0
        %v4285 = vsel %vm1427, %v4248, 0
        %v4288 = vsel %vm1427, %v4249, 0
        %v4291 = vsel %vm1427, %v4250, 0
        %v4294 = vsel %vm1427, %v4251, 0
        %v4297 = vsel %vm1427, %v4252, 0
        %v4300 = vsel %vm1427, %v4253, 0
        %4302 = vmatprep.subr.mxu0 0.0
        %v4303 = vand.u32 %v4255, 4294901760
        %4304 = vmatpush1.xpose.msra.mxu0 %v4303
        %4305 = vmatprep.subr.mxu0 0.0
        %v4306 = vand.u32 %v4258, 4294901760
        %4307 = vmatpush1.xpose.msra.mxu0 %v4306
        %4308 = vmatprep.subr.mxu0 0.0
        %v4309 = vand.u32 %v4261, 4294901760
        %4310 = vmatpush1.xpose.msra.mxu0 %v4309
        %4311 = vmatprep.subr.mxu0 0.0
        %v4312 = vand.u32 %v4264, 4294901760
        %4313 = vmatpush1.xpose.msra.mxu0 %v4312
        %4314 = vmatprep.subr.mxu0 0.0
        %v4315 = vand.u32 %v4267, 4294901760
        %4316 = vmatpush1.xpose.msra.mxu0 %v4315
        %4317 = vmatprep.subr.mxu0 0.0
        %v4318 = vand.u32 %v4270, 4294901760
        %4319 = vmatpush1.xpose.msra.mxu0 %v4318
        %4320 = vmatprep.subr.mxu0 0.0
        %v4321 = vand.u32 %v4273, 4294901760
        %4322 = vmatpush1.xpose.msra.mxu0 %v4321
        %4323 = vmatprep.subr.mxu0 0.0
        %v4324 = vand.u32 %v4276, 4294901760
        %4325 = vmatpush1.xpose.msra.mxu0 %v4324
        %4326 = vmatprep.subr.mxu0 0.0
        %v4327 = vand.u32 %v4279, 4294901760
        %4328 = vmatpush1.xpose.msra.mxu0 %v4327
        %4329 = vmatprep.subr.mxu0 0.0
        %v4330 = vand.u32 %v4282, 4294901760
        %4331 = vmatpush1.xpose.msra.mxu0 %v4330
        %4332 = vmatprep.subr.mxu0 0.0
        %v4333 = vand.u32 %v4285, 4294901760
        %4334 = vmatpush1.xpose.msra.mxu0 %v4333
        %4335 = vmatprep.subr.mxu0 0.0
        %v4336 = vand.u32 %v4288, 4294901760
        %4337 = vmatpush1.xpose.msra.mxu0 %v4336
        %4338 = vmatprep.subr.mxu0 0.0
        %v4339 = vand.u32 %v4291, 4294901760
        %4340 = vmatpush1.xpose.msra.mxu0 %v4339
        %4341 = vmatprep.subr.mxu0 0.0
        %v4342 = vand.u32 %v4294, 4294901760
        %4343 = vmatpush1.xpose.msra.mxu0 %v4342
        %4344 = vmatprep.subr.mxu0 0.0
        %v4345 = vand.u32 %v4297, 4294901760
        %4346 = vmatpush1.xpose.msra.mxu0 %v4345
        %4347 = vmatprep.subr.mxu0 0.0
        %v4348 = vand.u32 %v4300, 4294901760
        %4349 = vmatpush1.xpose.msra.mxu0 %v4348
        %4350 = vmatprep.subr.mxu0 0.0
        %4351 = vmatpush1.xpose.msra.mxu0 0.0
        %4352 = vmatprep.subr.mxu0 0.0
        %4353 = vmatpush1.xpose.msra.mxu0 0.0
        %4354 = vmatprep.subr.mxu0 0.0
        %4355 = vmatpush1.xpose.msra.mxu0 0.0
        %4356 = vmatprep.subr.mxu0 0.0
        %4357 = vmatpush1.xpose.msra.mxu0 0.0
        %4358 = vmatprep.subr.mxu0 0.0
        %4359 = vmatpush1.xpose.msra.mxu0 0.0
        %4360 = vmatprep.subr.mxu0 0.0
        %4361 = vmatpush1.xpose.msra.mxu0 0.0
        %4362 = vmatprep.subr.mxu0 0.0
        %4363 = vmatpush1.xpose.msra.mxu0 0.0
        %4364 = vmatprep.subr.mxu0 0.0
        %4365 = vmatpush1.xpose.msra.mxu0 0.0
        %4366 = vmatprep.subr.mxu0 0.0
        %4367 = vmatpush1.xpose.msra.mxu0 0.0
        %4368 = vmatprep.subr.mxu0 0.0
        %4369 = vmatpush1.xpose.msra.mxu0 0.0
        %4370 = vmatprep.subr.mxu0 0.0
        %4371 = vmatpush1.xpose.msra.mxu0 0.0
        %4372 = vmatprep.subr.mxu0 0.0
        %4373 = vmatpush1.xpose.msra.mxu0 0.0
        %4374 = vmatprep.subr.mxu0 0.0
        %4375 = vmatpush1.xpose.msra.mxu0 0.0
        %4376 = vmatprep.subr.mxu0 0.0
        %4377 = vmatpush1.xpose.msra.mxu0 0.0
        %4378 = vmatprep.subr.mxu0 0.0
        %4379 = vmatpush1.xpose.msra.mxu0 0.0
        %4380 = vmatprep.subr.mxu0 0.0
        %4381 = vmatpush1.xpose.msra.mxu0 0.0
        %4382 = vmatprep.mubr.f32.mxu0 0.0
        %v4383 = vand.u32 %v1609, 4294901760
        %v4384 = vsub.f32 %v1609, %v4383
        %v4385 = vand.u32 %v4384, 4294901760
        %v4386 = vsub.f32 %v4384, %v4385
        %v4387 = vand.u32 %v4386, 4294901760
        %4388 = vmatmul.mubr.f32.gmra.mrb[0].mxu0 %v4387
        %v4389 = vpop.f32.mrb[0].mxu0
        %v4390 = vadd.f32 0.0, %v4389
        %v4391 = vpop.f32.mrb[0].mxu0
        %4392 = vdwg.mxu0
        %4393 = vmatprep.subr.mxu0 0.0
        %v4394 = vand.u32 %v4255, 4294901760
        %v4395 = vsub.f32 %v4255, %v4394
        %v4396 = vand.u32 %v4395, 4294901760
        %v4397 = vsub.f32 %v4395, %v4396
        %v4398 = vand.u32 %v4397, 4294901760
        %4399 = vmatpush1.xpose.msra.mxu0 %v4398
        %4400 = vmatprep.subr.mxu0 0.0
        %v4401 = vand.u32 %v4258, 4294901760
        %v4402 = vsub.f32 %v4258, %v4401
        %v4403 = vand.u32 %v4402, 4294901760
        %v4404 = vsub.f32 %v4402, %v4403
        %v4405 = vand.u32 %v4404, 4294901760
        %4406 = vmatpush1.xpose.msra.mxu0 %v4405
        %4407 = vmatprep.subr.mxu0 0.0
        %v4408 = vand.u32 %v4261, 4294901760
        %v4409 = vsub.f32 %v4261, %v4408
        %v4410 = vand.u32 %v4409, 4294901760
        %v4411 = vsub.f32 %v4409, %v4410
        %v4412 = vand.u32 %v4411, 4294901760
        %4413 = vmatpush1.xpose.msra.mxu0 %v4412
        %4414 = vmatprep.subr.mxu0 0.0
        %v4415 = vand.u32 %v4264, 4294901760
        %v4416 = vsub.f32 %v4264, %v4415
        %v4417 = vand.u32 %v4416, 4294901760
        %v4418 = vsub.f32 %v4416, %v4417
        %v4419 = vand.u32 %v4418, 4294901760
        %4420 = vmatpush1.xpose.msra.mxu0 %v4419
        %4421 = vmatprep.subr.mxu0 0.0
        %v4422 = vand.u32 %v4267, 4294901760
        %v4423 = vsub.f32 %v4267, %v4422
        %v4424 = vand.u32 %v4423, 4294901760
        %v4425 = vsub.f32 %v4423, %v4424
        %v4426 = vand.u32 %v4425, 4294901760
        %4427 = vmatpush1.xpose.msra.mxu0 %v4426
        %4428 = vmatprep.subr.mxu0 0.0
        %v4429 = vand.u32 %v4270, 4294901760
        %v4430 = vsub.f32 %v4270, %v4429
        %v4431 = vand.u32 %v4430, 4294901760
        %v4432 = vsub.f32 %v4430, %v4431
        %v4433 = vand.u32 %v4432, 4294901760
        %4434 = vmatpush1.xpose.msra.mxu0 %v4433
        %4435 = vmatprep.subr.mxu0 0.0
        %v4436 = vand.u32 %v4273, 4294901760
        %v4437 = vsub.f32 %v4273, %v4436
        %v4438 = vand.u32 %v4437, 4294901760
        %v4439 = vsub.f32 %v4437, %v4438
        %v4440 = vand.u32 %v4439, 4294901760
        %4441 = vmatpush1.xpose.msra.mxu0 %v4440
        %4442 = vmatprep.subr.mxu0 0.0
        %v4443 = vand.u32 %v4276, 4294901760
        %v4444 = vsub.f32 %v4276, %v4443
        %v4445 = vand.u32 %v4444, 4294901760
        %v4446 = vsub.f32 %v4444, %v4445
        %v4447 = vand.u32 %v4446, 4294901760
        %4448 = vmatpush1.xpose.msra.mxu0 %v4447
        %4449 = vmatprep.subr.mxu0 0.0
        %v4450 = vand.u32 %v4279, 4294901760
        %v4451 = vsub.f32 %v4279, %v4450
        %v4452 = vand.u32 %v4451, 4294901760
        %v4453 = vsub.f32 %v4451, %v4452
        %v4454 = vand.u32 %v4453, 4294901760
        %4455 = vmatpush1.xpose.msra.mxu0 %v4454
        %4456 = vmatprep.subr.mxu0 0.0
        %v4457 = vand.u32 %v4282, 4294901760
        %v4458 = vsub.f32 %v4282, %v4457
        %v4459 = vand.u32 %v4458, 4294901760
        %v4460 = vsub.f32 %v4458, %v4459
        %v4461 = vand.u32 %v4460, 4294901760
        %4462 = vmatpush1.xpose.msra.mxu0 %v4461
        %4463 = vmatprep.subr.mxu0 0.0
        %v4464 = vand.u32 %v4285, 4294901760
        %v4465 = vsub.f32 %v4285, %v4464
        %v4466 = vand.u32 %v4465, 4294901760
        %v4467 = vsub.f32 %v4465, %v4466
        %v4468 = vand.u32 %v4467, 4294901760
        %4469 = vmatpush1.xpose.msra.mxu0 %v4468
        %4470 = vmatprep.subr.mxu0 0.0
        %v4471 = vand.u32 %v4288, 4294901760
        %v4472 = vsub.f32 %v4288, %v4471
        %v4473 = vand.u32 %v4472, 4294901760
        %v4474 = vsub.f32 %v4472, %v4473
        %v4475 = vand.u32 %v4474, 4294901760
        %4476 = vmatpush1.xpose.msra.mxu0 %v4475
        %4477 = vmatprep.subr.mxu0 0.0
        %v4478 = vand.u32 %v4291, 4294901760
        %v4479 = vsub.f32 %v4291, %v4478
        %v4480 = vand.u32 %v4479, 4294901760
        %v4481 = vsub.f32 %v4479, %v4480
        %v4482 = vand.u32 %v4481, 4294901760
        %4483 = vmatpush1.xpose.msra.mxu0 %v4482
        %4484 = vmatprep.subr.mxu0 0.0
        %v4485 = vand.u32 %v4294, 4294901760
        %v4486 = vsub.f32 %v4294, %v4485
        %v4487 = vand.u32 %v4486, 4294901760
        %v4488 = vsub.f32 %v4486, %v4487
        %v4489 = vand.u32 %v4488, 4294901760
        %4490 = vmatpush1.xpose.msra.mxu0 %v4489
        %4491 = vmatprep.subr.mxu0 0.0
        %v4492 = vand.u32 %v4297, 4294901760
        %v4493 = vsub.f32 %v4297, %v4492
        %v4494 = vand.u32 %v4493, 4294901760
        %v4495 = vsub.f32 %v4493, %v4494
        %v4496 = vand.u32 %v4495, 4294901760
        %4497 = vmatpush1.xpose.msra.mxu0 %v4496
        %4498 = vmatprep.subr.mxu0 0.0
        %v4499 = vand.u32 %v4300, 4294901760
        %v4500 = vsub.f32 %v4300, %v4499
        %v4501 = vand.u32 %v4500, 4294901760
        %v4502 = vsub.f32 %v4500, %v4501
        %v4503 = vand.u32 %v4502, 4294901760
        %4504 = vmatpush1.xpose.msra.mxu0 %v4503
        %4505 = vmatprep.subr.mxu0 0.0
        %4506 = vmatpush1.xpose.msra.mxu0 0.0
        %4507 = vmatprep.subr.mxu0 0.0
        %4508 = vmatpush1.xpose.msra.mxu0 0.0
        %4509 = vmatprep.subr.mxu0 0.0
        %4510 = vmatpush1.xpose.msra.mxu0 0.0
        %4511 = vmatprep.subr.mxu0 0.0
        %4512 = vmatpush1.xpose.msra.mxu0 0.0
        %4513 = vmatprep.subr.mxu0 0.0
        %4514 = vmatpush1.xpose.msra.mxu0 0.0
        %4515 = vmatprep.subr.mxu0 0.0
        %4516 = vmatpush1.xpose.msra.mxu0 0.0
        %4517 = vmatprep.subr.mxu0 0.0
        %4518 = vmatpush1.xpose.msra.mxu0 0.0
        %4519 = vmatprep.subr.mxu0 0.0
        %4520 = vmatpush1.xpose.msra.mxu0 0.0
        %4521 = vmatprep.subr.mxu0 0.0
        %4522 = vmatpush1.xpose.msra.mxu0 0.0
        %4523 = vmatprep.subr.mxu0 0.0
        %4524 = vmatpush1.xpose.msra.mxu0 0.0
        %4525 = vmatprep.subr.mxu0 0.0
        %4526 = vmatpush1.xpose.msra.mxu0 0.0
        %4527 = vmatprep.subr.mxu0 0.0
        %4528 = vmatpush1.xpose.msra.mxu0 0.0
        %4529 = vmatprep.subr.mxu0 0.0
        %4530 = vmatpush1.xpose.msra.mxu0 0.0
        %4531 = vmatprep.subr.mxu0 0.0
        %4532 = vmatpush1.xpose.msra.mxu0 0.0
        %4533 = vmatprep.subr.mxu0 0.0
        %4534 = vmatpush1.xpose.msra.mxu0 0.0
        %4535 = vmatprep.subr.mxu0 0.0
        %4536 = vmatpush1.xpose.msra.mxu0 0.0
        %4537 = vmatprep.mubr.f32.mxu0 0.0
        %v4538 = vand.u32 %v1609, 4294901760
        %4539 = vmatmul.mubr.f32.gmra.mrb[0].mxu0 %v4538
        %v4540 = vpop.f32.mrb[0].mxu0
        %v4541 = vadd.f32 %v4390, %v4540
        %v4542 = vpop.f32.mrb[0].mxu0
        %4543 = vdwg.mxu0
        %4544 = vmatprep.subr.mxu0 0.0
        %v4545 = vand.u32 %v4255, 4294901760
        %v4546 = vsub.f32 %v4255, %v4545
        %4547 = vmatpush1.xpose.msra.mxu0 %v4546
        %4548 = vmatprep.subr.mxu0 0.0
        %v4549 = vand.u32 %v4258, 4294901760
        %v4550 = vsub.f32 %v4258, %v4549
        %4551 = vmatpush1.xpose.msra.mxu0 %v4550
        %4552 = vmatprep.subr.mxu0 0.0
        %v4553 = vand.u32 %v4261, 4294901760
        %v4554 = vsub.f32 %v4261, %v4553
        %4555 = vmatpush1.xpose.msra.mxu0 %v4554
        %4556 = vmatprep.subr.mxu0 0.0
        %v4557 = vand.u32 %v4264, 4294901760
        %v4558 = vsub.f32 %v4264, %v4557
        %4559 = vmatpush1.xpose.msra.mxu0 %v4558
        %4560 = vmatprep.subr.mxu0 0.0
        %v4561 = vand.u32 %v4267, 4294901760
        %v4562 = vsub.f32 %v4267, %v4561
        %4563 = vmatpush1.xpose.msra.mxu0 %v4562
        %4564 = vmatprep.subr.mxu0 0.0
        %v4565 = vand.u32 %v4270, 4294901760
        %v4566 = vsub.f32 %v4270, %v4565
        %4567 = vmatpush1.xpose.msra.mxu0 %v4566
        %4568 = vmatprep.subr.mxu0 0.0
        %v4569 = vand.u32 %v4273, 4294901760
        %v4570 = vsub.f32 %v4273, %v4569
        %4571 = vmatpush1.xpose.msra.mxu0 %v4570
        %4572 = vmatprep.subr.mxu0 0.0
        %v4573 = vand.u32 %v4276, 4294901760
        %v4574 = vsub.f32 %v4276, %v4573
        %4575 = vmatpush1.xpose.msra.mxu0 %v4574
        %4576 = vmatprep.subr.mxu0 0.0
        %v4577 = vand.u32 %v4279, 4294901760
        %v4578 = vsub.f32 %v4279, %v4577
        %4579 = vmatpush1.xpose.msra.mxu0 %v4578
        %4580 = vmatprep.subr.mxu0 0.0
        %v4581 = vand.u32 %v4282, 4294901760
        %v4582 = vsub.f32 %v4282, %v4581
        %4583 = vmatpush1.xpose.msra.mxu0 %v4582
        %4584 = vmatprep.subr.mxu0 0.0
        %v4585 = vand.u32 %v4285, 4294901760
        %v4586 = vsub.f32 %v4285, %v4585
        %4587 = vmatpush1.xpose.msra.mxu0 %v4586
        %4588 = vmatprep.subr.mxu0 0.0
        %v4589 = vand.u32 %v4288, 4294901760
        %v4590 = vsub.f32 %v4288, %v4589
        %4591 = vmatpush1.xpose.msra.mxu0 %v4590
        %4592 = vmatprep.subr.mxu0 0.0
        %v4593 = vand.u32 %v4291, 4294901760
        %v4594 = vsub.f32 %v4291, %v4593
        %4595 = vmatpush1.xpose.msra.mxu0 %v4594
        %4596 = vmatprep.subr.mxu0 0.0
        %v4597 = vand.u32 %v4294, 4294901760
        %v4598 = vsub.f32 %v4294, %v4597
        %4599 = vmatpush1.xpose.msra.mxu0 %v4598
        %4600 = vmatprep.subr.mxu0 0.0
        %v4601 = vand.u32 %v4297, 4294901760
        %v4602 = vsub.f32 %v4297, %v4601
        %4603 = vmatpush1.xpose.msra.mxu0 %v4602
        %4604 = vmatprep.subr.mxu0 0.0
        %v4605 = vand.u32 %v4300, 4294901760
        %v4606 = vsub.f32 %v4300, %v4605
        %4607 = vmatpush1.xpose.msra.mxu0 %v4606
        %4608 = vmatprep.subr.mxu0 0.0
        %4609 = vmatpush1.xpose.msra.mxu0 0.0
        %4610 = vmatprep.subr.mxu0 0.0
        %4611 = vmatpush1.xpose.msra.mxu0 0.0
        %4612 = vmatprep.subr.mxu0 0.0
        %4613 = vmatpush1.xpose.msra.mxu0 0.0
        %4614 = vmatprep.subr.mxu0 0.0
        %4615 = vmatpush1.xpose.msra.mxu0 0.0
        %4616 = vmatprep.subr.mxu0 0.0
        %4617 = vmatpush1.xpose.msra.mxu0 0.0
        %4618 = vmatprep.subr.mxu0 0.0
        %4619 = vmatpush1.xpose.msra.mxu0 0.0
        %4620 = vmatprep.subr.mxu0 0.0
        %4621 = vmatpush1.xpose.msra.mxu0 0.0
        %4622 = vmatprep.subr.mxu0 0.0
        %4623 = vmatpush1.xpose.msra.mxu0 0.0
        %4624 = vmatprep.subr.mxu0 0.0
        %4625 = vmatpush1.xpose.msra.mxu0 0.0
        %4626 = vmatprep.subr.mxu0 0.0
        %4627 = vmatpush1.xpose.msra.mxu0 0.0
        %4628 = vmatprep.subr.mxu0 0.0
        %4629 = vmatpush1.xpose.msra.mxu0 0.0
        %4630 = vmatprep.subr.mxu0 0.0
        %4631 = vmatpush1.xpose.msra.mxu0 0.0
        %4632 = vmatprep.subr.mxu0 0.0
        %4633 = vmatpush1.xpose.msra.mxu0 0.0
        %4634 = vmatprep.subr.mxu0 0.0
        %4635 = vmatpush1.xpose.msra.mxu0 0.0
        %4636 = vmatprep.subr.mxu0 0.0
        %4637 = vmatpush1.xpose.msra.mxu0 0.0
        %4638 = vmatprep.subr.mxu0 0.0
        %4639 = vmatpush1.xpose.msra.mxu0 0.0
        %4640 = vmatprep.mubr.f32.mxu0 0.0
        %v4641 = vand.u32 %v1609, 4294901760
        %v4642 = vsub.f32 %v1609, %v4641
        %4643 = vmatmul.mubr.f32.gmra.mrb[0].mxu0 %v4642
        %v4644 = vpop.f32.mrb[0].mxu0
        %v4645 = vadd.f32 %v4541, %v4644
        %v4646 = vpop.f32.mrb[0].mxu0
        %4647 = vdwg.mxu0
        %4648 = vmatprep.subr.mxu0 0.0
        %v4649 = vand.u32 %v4255, 4294901760
        %4650 = vmatpush1.xpose.msra.mxu0 %v4649
        %4651 = vmatprep.subr.mxu0 0.0
        %v4652 = vand.u32 %v4258, 4294901760
        %4653 = vmatpush1.xpose.msra.mxu0 %v4652
        %4654 = vmatprep.subr.mxu0 0.0
        %v4655 = vand.u32 %v4261, 4294901760
        %4656 = vmatpush1.xpose.msra.mxu0 %v4655
        %4657 = vmatprep.subr.mxu0 0.0
        %v4658 = vand.u32 %v4264, 4294901760
        %4659 = vmatpush1.xpose.msra.mxu0 %v4658
        %4660 = vmatprep.subr.mxu0 0.0
        %v4661 = vand.u32 %v4267, 4294901760
        %4662 = vmatpush1.xpose.msra.mxu0 %v4661
        %4663 = vmatprep.subr.mxu0 0.0
        %v4664 = vand.u32 %v4270, 4294901760
        %4665 = vmatpush1.xpose.msra.mxu0 %v4664
        %4666 = vmatprep.subr.mxu0 0.0
        %v4667 = vand.u32 %v4273, 4294901760
        %4668 = vmatpush1.xpose.msra.mxu0 %v4667
        %4669 = vmatprep.subr.mxu0 0.0
        %v4670 = vand.u32 %v4276, 4294901760
        %4671 = vmatpush1.xpose.msra.mxu0 %v4670
        %4672 = vmatprep.subr.mxu0 0.0
        %v4673 = vand.u32 %v4279, 4294901760
        %4674 = vmatpush1.xpose.msra.mxu0 %v4673
        %4675 = vmatprep.subr.mxu0 0.0
        %v4676 = vand.u32 %v4282, 4294901760
        %4677 = vmatpush1.xpose.msra.mxu0 %v4676
        %4678 = vmatprep.subr.mxu0 0.0
        %v4679 = vand.u32 %v4285, 4294901760
        %4680 = vmatpush1.xpose.msra.mxu0 %v4679
        %4681 = vmatprep.subr.mxu0 0.0
        %v4682 = vand.u32 %v4288, 4294901760
        %4683 = vmatpush1.xpose.msra.mxu0 %v4682
        %4684 = vmatprep.subr.mxu0 0.0
        %v4685 = vand.u32 %v4291, 4294901760
        %4686 = vmatpush1.xpose.msra.mxu0 %v4685
        %4687 = vmatprep.subr.mxu0 0.0
        %v4688 = vand.u32 %v4294, 4294901760
        %4689 = vmatpush1.xpose.msra.mxu0 %v4688
        %4690 = vmatprep.subr.mxu0 0.0
        %v4691 = vand.u32 %v4297, 4294901760
        %4692 = vmatpush1.xpose.msra.mxu0 %v4691
        %4693 = vmatprep.subr.mxu0 0.0
        %v4694 = vand.u32 %v4300, 4294901760
        %4695 = vmatpush1.xpose.msra.mxu0 %v4694
        %4696 = vmatprep.subr.mxu0 0.0
        %4697 = vmatpush1.xpose.msra.mxu0 0.0
        %4698 = vmatprep.subr.mxu0 0.0
        %4699 = vmatpush1.xpose.msra.mxu0 0.0
        %4700 = vmatprep.subr.mxu0 0.0
        %4701 = vmatpush1.xpose.msra.mxu0 0.0
        %4702 = vmatprep.subr.mxu0 0.0
        %4703 = vmatpush1.xpose.msra.mxu0 0.0
        %4704 = vmatprep.subr.mxu0 0.0
        %4705 = vmatpush1.xpose.msra.mxu0 0.0
        %4706 = vmatprep.subr.mxu0 0.0
        %4707 = vmatpush1.xpose.msra.mxu0 0.0
        %4708 = vmatprep.subr.mxu0 0.0
        %4709 = vmatpush1.xpose.msra.mxu0 0.0
        %4710 = vmatprep.subr.mxu0 0.0
        %4711 = vmatpush1.xpose.msra.mxu0 0.0
        %4712 = vmatprep.subr.mxu0 0.0
        %4713 = vmatpush1.xpose.msra.mxu0 0.0
        %4714 = vmatprep.subr.mxu0 0.0
        %4715 = vmatpush1.xpose.msra.mxu0 0.0
        %4716 = vmatprep.subr.mxu0 0.0
        %4717 = vmatpush1.xpose.msra.mxu0 0.0
        %4718 = vmatprep.subr.mxu0 0.0
        %4719 = vmatpush1.xpose.msra.mxu0 0.0
        %4720 = vmatprep.subr.mxu0 0.0
        %4721 = vmatpush1.xpose.msra.mxu0 0.0
        %4722 = vmatprep.subr.mxu0 0.0
        %4723 = vmatpush1.xpose.msra.mxu0 0.0
        %4724 = vmatprep.subr.mxu0 0.0
        %4725 = vmatpush1.xpose.msra.mxu0 0.0
        %4726 = vmatprep.subr.mxu0 0.0
        %4727 = vmatpush1.xpose.msra.mxu0 0.0
        %4728 = vmatprep.mubr.f32.mxu0 0.0
        %v4729 = vand.u32 %v1609, 4294901760
        %v4730 = vsub.f32 %v1609, %v4729
        %v4731 = vand.u32 %v4730, 4294901760
        %4732 = vmatmul.mubr.f32.gmra.mrb[0].mxu0 %v4731
        %v4733 = vpop.f32.mrb[0].mxu0
        %v4734 = vadd.f32 %v4645, %v4733
        %v4735 = vpop.f32.mrb[0].mxu0
        %4736 = vdwg.mxu0
        %4737 = vmatprep.subr.mxu0 0.0
        %v4738 = vand.u32 %v4255, 4294901760
        %v4739 = vsub.f32 %v4255, %v4738
        %v4740 = vand.u32 %v4739, 4294901760
        %4741 = vmatpush1.xpose.msra.mxu0 %v4740
        %4742 = vmatprep.subr.mxu0 0.0
        %v4743 = vand.u32 %v4258, 4294901760
        %v4744 = vsub.f32 %v4258, %v4743
        %v4745 = vand.u32 %v4744, 4294901760
        %4746 = vmatpush1.xpose.msra.mxu0 %v4745
        %4747 = vmatprep.subr.mxu0 0.0
        %v4748 = vand.u32 %v4261, 4294901760
        %v4749 = vsub.f32 %v4261, %v4748
        %v4750 = vand.u32 %v4749, 4294901760
        %4751 = vmatpush1.xpose.msra.mxu0 %v4750
        %4752 = vmatprep.subr.mxu0 0.0
        %v4753 = vand.u32 %v4264, 4294901760
        %v4754 = vsub.f32 %v4264, %v4753
        %v4755 = vand.u32 %v4754, 4294901760
        %4756 = vmatpush1.xpose.msra.mxu0 %v4755
        %4757 = vmatprep.subr.mxu0 0.0
        %v4758 = vand.u32 %v4267, 4294901760
        %v4759 = vsub.f32 %v4267, %v4758
        %v4760 = vand.u32 %v4759, 4294901760
        %4761 = vmatpush1.xpose.msra.mxu0 %v4760
        %4762 = vmatprep.subr.mxu0 0.0
        %v4763 = vand.u32 %v4270, 4294901760
        %v4764 = vsub.f32 %v4270, %v4763
        %v4765 = vand.u32 %v4764, 4294901760
        %4766 = vmatpush1.xpose.msra.mxu0 %v4765
        %4767 = vmatprep.subr.mxu0 0.0
        %v4768 = vand.u32 %v4273, 4294901760
        %v4769 = vsub.f32 %v4273, %v4768
        %v4770 = vand.u32 %v4769, 4294901760
        %4771 = vmatpush1.xpose.msra.mxu0 %v4770
        %4772 = vmatprep.subr.mxu0 0.0
        %v4773 = vand.u32 %v4276, 4294901760
        %v4774 = vsub.f32 %v4276, %v4773
        %v4775 = vand.u32 %v4774, 4294901760
        %4776 = vmatpush1.xpose.msra.mxu0 %v4775
        %4777 = vmatprep.subr.mxu0 0.0
        %v4778 = vand.u32 %v4279, 4294901760
        %v4779 = vsub.f32 %v4279, %v4778
        %v4780 = vand.u32 %v4779, 4294901760
        %4781 = vmatpush1.xpose.msra.mxu0 %v4780
        %4782 = vmatprep.subr.mxu0 0.0
        %v4783 = vand.u32 %v4282, 4294901760
        %v4784 = vsub.f32 %v4282, %v4783
        %v4785 = vand.u32 %v4784, 4294901760
        %4786 = vmatpush1.xpose.msra.mxu0 %v4785
        %4787 = vmatprep.subr.mxu0 0.0
        %v4788 = vand.u32 %v4285, 4294901760
        %v4789 = vsub.f32 %v4285, %v4788
        %v4790 = vand.u32 %v4789, 4294901760
        %4791 = vmatpush1.xpose.msra.mxu0 %v4790
        %4792 = vmatprep.subr.mxu0 0.0
        %v4793 = vand.u32 %v4288, 4294901760
        %v4794 = vsub.f32 %v4288, %v4793
        %v4795 = vand.u32 %v4794, 4294901760
        %4796 = vmatpush1.xpose.msra.mxu0 %v4795
        %4797 = vmatprep.subr.mxu0 0.0
        %v4798 = vand.u32 %v4291, 4294901760
        %v4799 = vsub.f32 %v4291, %v4798
        %v4800 = vand.u32 %v4799, 4294901760
        %4801 = vmatpush1.xpose.msra.mxu0 %v4800
        %4802 = vmatprep.subr.mxu0 0.0
        %v4803 = vand.u32 %v4294, 4294901760
        %v4804 = vsub.f32 %v4294, %v4803
        %v4805 = vand.u32 %v4804, 4294901760
        %4806 = vmatpush1.xpose.msra.mxu0 %v4805
        %4807 = vmatprep.subr.mxu0 0.0
        %v4808 = vand.u32 %v4297, 4294901760
        %v4809 = vsub.f32 %v4297, %v4808
        %v4810 = vand.u32 %v4809, 4294901760
        %4811 = vmatpush1.xpose.msra.mxu0 %v4810
        %4812 = vmatprep.subr.mxu0 0.0
        %v4813 = vand.u32 %v4300, 4294901760
        %v4814 = vsub.f32 %v4300, %v4813
        %v4815 = vand.u32 %v4814, 4294901760
        %4816 = vmatpush1.xpose.msra.mxu0 %v4815
        %4817 = vmatprep.subr.mxu0 0.0
        %4818 = vmatpush1.xpose.msra.mxu0 0.0
        %4819 = vmatprep.subr.mxu0 0.0
        %4820 = vmatpush1.xpose.msra.mxu0 0.0
        %4821 = vmatprep.subr.mxu0 0.0
        %4822 = vmatpush1.xpose.msra.mxu0 0.0
        %4823 = vmatprep.subr.mxu0 0.0
        %4824 = vmatpush1.xpose.msra.mxu0 0.0
        %4825 = vmatprep.subr.mxu0 0.0
        %4826 = vmatpush1.xpose.msra.mxu0 0.0
        %4827 = vmatprep.subr.mxu0 0.0
        %4828 = vmatpush1.xpose.msra.mxu0 0.0
        %4829 = vmatprep.subr.mxu0 0.0
        %4830 = vmatpush1.xpose.msra.mxu0 0.0
        %4831 = vmatprep.subr.mxu0 0.0
        %4832 = vmatpush1.xpose.msra.mxu0 0.0
        %4833 = vmatprep.subr.mxu0 0.0
        %4834 = vmatpush1.xpose.msra.mxu0 0.0
        %4835 = vmatprep.subr.mxu0 0.0
        %4836 = vmatpush1.xpose.msra.mxu0 0.0
        %4837 = vmatprep.subr.mxu0 0.0
        %4838 = vmatpush1.xpose.msra.mxu0 0.0
        %4839 = vmatprep.subr.mxu0 0.0
        %4840 = vmatpush1.xpose.msra.mxu0 0.0
        %4841 = vmatprep.subr.mxu0 0.0
        %4842 = vmatpush1.xpose.msra.mxu0 0.0
        %4843 = vmatprep.subr.mxu0 0.0
        %4844 = vmatpush1.xpose.msra.mxu0 0.0
        %4845 = vmatprep.subr.mxu0 0.0
        %4846 = vmatpush1.xpose.msra.mxu0 0.0
        %4847 = vmatprep.subr.mxu0 0.0
        %4848 = vmatpush1.xpose.msra.mxu0 0.0
        %4849 = vmatprep.mubr.f32.mxu0 0.0
        %v4850 = vand.u32 %v1609, 4294901760
        %4851 = vmatmul.mubr.f32.gmra.mrb[0].mxu0 %v4850
        %v4852 = vpop.f32.mrb[0].mxu0
        %v4853 = vadd.f32 %v4734, %v4852
        %v4854 = vpop.f32.mrb[0].mxu0
        %4855 = vdwg.mxu0
        %4856 = vmatprep.subr.mxu0 0.0
        %v4857 = vand.u32 %v4255, 4294901760
        %4858 = vmatpush1.xpose.msra.mxu0 %v4857
        %4859 = vmatprep.subr.mxu0 0.0
        %v4860 = vand.u32 %v4258, 4294901760
        %4861 = vmatpush1.xpose.msra.mxu0 %v4860
        %4862 = vmatprep.subr.mxu0 0.0
        %v4863 = vand.u32 %v4261, 4294901760
        %4864 = vmatpush1.xpose.msra.mxu0 %v4863
        %4865 = vmatprep.subr.mxu0 0.0
        %v4866 = vand.u32 %v4264, 4294901760
        %4867 = vmatpush1.xpose.msra.mxu0 %v4866
        %4868 = vmatprep.subr.mxu0 0.0
        %v4869 = vand.u32 %v4267, 4294901760
        %4870 = vmatpush1.xpose.msra.mxu0 %v4869
        %4871 = vmatprep.subr.mxu0 0.0
        %v4872 = vand.u32 %v4270, 4294901760
        %4873 = vmatpush1.xpose.msra.mxu0 %v4872
        %4874 = vmatprep.subr.mxu0 0.0
        %v4875 = vand.u32 %v4273, 4294901760
        %4876 = vmatpush1.xpose.msra.mxu0 %v4875
        %4877 = vmatprep.subr.mxu0 0.0
        %v4878 = vand.u32 %v4276, 4294901760
        %4879 = vmatpush1.xpose.msra.mxu0 %v4878
        %4880 = vmatprep.subr.mxu0 0.0
        %v4881 = vand.u32 %v4279, 4294901760
        %4882 = vmatpush1.xpose.msra.mxu0 %v4881
        %4883 = vmatprep.subr.mxu0 0.0
        %v4884 = vand.u32 %v4282, 4294901760
        %4885 = vmatpush1.xpose.msra.mxu0 %v4884
        %4886 = vmatprep.subr.mxu0 0.0
        %v4887 = vand.u32 %v4285, 4294901760
        %4888 = vmatpush1.xpose.msra.mxu0 %v4887
        %4889 = vmatprep.subr.mxu0 0.0
        %v4890 = vand.u32 %v4288, 4294901760
        %4891 = vmatpush1.xpose.msra.mxu0 %v4890
        %4892 = vmatprep.subr.mxu0 0.0
        %v4893 = vand.u32 %v4291, 4294901760
        %4894 = vmatpush1.xpose.msra.mxu0 %v4893
        %4895 = vmatprep.subr.mxu0 0.0
        %v4896 = vand.u32 %v4294, 4294901760
        %4897 = vmatpush1.xpose.msra.mxu0 %v4896
        %4898 = vmatprep.subr.mxu0 0.0
        %v4899 = vand.u32 %v4297, 4294901760
        %4900 = vmatpush1.xpose.msra.mxu0 %v4899
        %4901 = vmatprep.subr.mxu0 0.0
        %v4902 = vand.u32 %v4300, 4294901760
        %4903 = vmatpush1.xpose.msra.mxu0 %v4902
        %4904 = vmatprep.subr.mxu0 0.0
        %4905 = vmatpush1.xpose.msra.mxu0 0.0
        %4906 = vmatprep.subr.mxu0 0.0
        %4907 = vmatpush1.xpose.msra.mxu0 0.0
        %4908 = vmatprep.subr.mxu0 0.0
        %4909 = vmatpush1.xpose.msra.mxu0 0.0
        %4910 = vmatprep.subr.mxu0 0.0
        %4911 = vmatpush1.xpose.msra.mxu0 0.0
        %4912 = vmatprep.subr.mxu0 0.0
        %4913 = vmatpush1.xpose.msra.mxu0 0.0
        %4914 = vmatprep.subr.mxu0 0.0
        %4915 = vmatpush1.xpose.msra.mxu0 0.0
        %4916 = vmatprep.subr.mxu0 0.0
        %4917 = vmatpush1.xpose.msra.mxu0 0.0
        %4918 = vmatprep.subr.mxu0 0.0
        %4919 = vmatpush1.xpose.msra.mxu0 0.0
        %4920 = vmatprep.subr.mxu0 0.0
        %4921 = vmatpush1.xpose.msra.mxu0 0.0
        %4922 = vmatprep.subr.mxu0 0.0
        %4923 = vmatpush1.xpose.msra.mxu0 0.0
        %4924 = vmatprep.subr.mxu0 0.0
        %4925 = vmatpush1.xpose.msra.mxu0 0.0
        %4926 = vmatprep.subr.mxu0 0.0
        %4927 = vmatpush1.xpose.msra.mxu0 0.0
        %4928 = vmatprep.subr.mxu0 0.0
        %4929 = vmatpush1.xpose.msra.mxu0 0.0
        %4930 = vmatprep.subr.mxu0 0.0
        %4931 = vmatpush1.xpose.msra.mxu0 0.0
        %4932 = vmatprep.subr.mxu0 0.0
        %4933 = vmatpush1.xpose.msra.mxu0 0.0
        %4934 = vmatprep.subr.mxu0 0.0
        %4935 = vmatpush1.xpose.msra.mxu0 0.0
        %4936 = vmatprep.mubr.f32.mxu0 0.0
        %v4937 = vand.u32 %v1609, 4294901760
        %4938 = vmatmul.mubr.f32.gmra.mrb[0].mxu0 %v4937
        %v4939 = vpop.f32.mrb[0].mxu0
        %v4940 = vadd.f32 %v4853, %v4939
        %v4941 = vpop.f32.mrb[0].mxu0
        %4942 = vdwg.mxu0
        %v4943 = vsel %vm4206, 3.4028235e+38, %v4062
        %v4944 = vsel %vm4207, 3.4028235e+38, %v4063
        %v4945 = vsel %vm4208, 3.4028235e+38, %v4064
        %v4946 = vsel %vm4209, 3.4028235e+38, %v4065
        %v4947 = vsel %vm4210, 3.4028235e+38, %v4066
        %v4948 = vsel %vm4211, 3.4028235e+38, %v4067
        %v4949 = vsel %vm4212, 3.4028235e+38, %v4068
        %v4950 = vsel %vm4213, 3.4028235e+38, %v4069
        %v4951 = vsel %vm4214, 3.4028235e+38, %v4070
        %v4952 = vsel %vm4215, 3.4028235e+38, %v4071
        %v4953 = vsel %vm4216, 3.4028235e+38, %v4072
        %v4954 = vsel %vm4217, 3.4028235e+38, %v4073
        %v4955 = vsel %vm4218, 3.4028235e+38, %v4074
        %v4956 = vsel %vm4219, 3.4028235e+38, %v4075
        %v4957 = vsel %vm4220, 3.4028235e+38, %v4076
        %v4958 = vsel %vm4221, 3.4028235e+38, %v4077
        %v4959 = vsel %vm1427, %v4943, inf
        %4960 = vmin.xlane.f32.xlu0 %v4959
        %v4961 = vpop.xlane.xlu0 %4960
        %v4962 = vsel %vm1427, %v4944, inf
        %4963 = vmin.xlane.f32.xlu0 %v4962
        %v4964 = vpop.xlane.xlu0 %4963
        %v4965 = vsel %vm1427, %v4945, inf
        %4966 = vmin.xlane.f32.xlu0 %v4965
        %v4967 = vpop.xlane.xlu0 %4966
        %v4968 = vsel %vm1427, %v4946, inf
        %4969 = vmin.xlane.f32.xlu0 %v4968
        %v4970 = vpop.xlane.xlu0 %4969
        %v4971 = vsel %vm1427, %v4947, inf
        %4972 = vmin.xlane.f32.xlu0 %v4971
        %v4973 = vpop.xlane.xlu0 %4972
        %v4974 = vsel %vm1427, %v4948, inf
        %4975 = vmin.xlane.f32.xlu0 %v4974
        %v4976 = vpop.xlane.xlu0 %4975
        %v4977 = vsel %vm1427, %v4949, inf
        %4978 = vmin.xlane.f32.xlu0 %v4977
        %v4979 = vpop.xlane.xlu0 %4978
        %v4980 = vsel %vm1427, %v4950, inf
        %4981 = vmin.xlane.f32.xlu0 %v4980
        %v4982 = vpop.xlane.xlu0 %4981
        %v4983 = vsel %vm1427, %v4951, inf
        %4984 = vmin.xlane.f32.xlu0 %v4983
        %v4985 = vpop.xlane.xlu0 %4984
        %v4986 = vsel %vm1427, %v4952, inf
        %4987 = vmin.xlane.f32.xlu0 %v4986
        %v4988 = vpop.xlane.xlu0 %4987
        %v4989 = vsel %vm1427, %v4953, inf
        %4990 = vmin.xlane.f32.xlu0 %v4989
        %v4991 = vpop.xlane.xlu0 %4990
        %v4992 = vsel %vm1427, %v4954, inf
        %4993 = vmin.xlane.f32.xlu0 %v4992
        %v4994 = vpop.xlane.xlu0 %4993
        %v4995 = vsel %vm1427, %v4955, inf
        %4996 = vmin.xlane.f32.xlu0 %v4995
        %v4997 = vpop.xlane.xlu0 %4996
        %v4998 = vsel %vm1427, %v4956, inf
        %4999 = vmin.xlane.f32.xlu0 %v4998
        %v5000 = vpop.xlane.xlu0 %4999
        %v5001 = vsel %vm1427, %v4957, inf
        %5002 = vmin.xlane.f32.xlu0 %v5001
        %v5003 = vpop.xlane.xlu0 %5002
        %v5004 = vsel %vm1427, %v4958, inf
        %5005 = vmin.xlane.f32.xlu0 %v5004
        %v5006 = vpop.xlane.xlu0 %5005
        %vm5007 = vcmp.le.f32.partialorder %v4943, %v4961
        %vm5008 = vcmp.le.f32.partialorder %v4944, %v4964
        %vm5009 = vcmp.le.f32.partialorder %v4945, %v4967
        %vm5010 = vcmp.le.f32.partialorder %v4946, %v4970
        %vm5011 = vcmp.le.f32.partialorder %v4947, %v4973
        %vm5012 = vcmp.le.f32.partialorder %v4948, %v4976
        %vm5013 = vcmp.le.f32.partialorder %v4949, %v4979
        %vm5014 = vcmp.le.f32.partialorder %v4950, %v4982
        %vm5015 = vcmp.le.f32.partialorder %v4951, %v4985
        %vm5016 = vcmp.le.f32.partialorder %v4952, %v4988
        %vm5017 = vcmp.le.f32.partialorder %v4953, %v4991
        %vm5018 = vcmp.le.f32.partialorder %v4954, %v4994
        %vm5019 = vcmp.le.f32.partialorder %v4955, %v4997
        %vm5020 = vcmp.le.f32.partialorder %v4956, %v5000
        %vm5021 = vcmp.le.f32.partialorder %v4957, %v5003
        %vm5022 = vcmp.le.f32.partialorder %v4958, %v5006
        %v5023 = vsel %vm5007, %v1495, 16.0
        %v5024 = vsel %vm5008, %v1495, 16.0
        %v5025 = vsel %vm5009, %v1495, 16.0
        %v5026 = vsel %vm5010, %v1495, 16.0
        %v5027 = vsel %vm5011, %v1495, 16.0
        %v5028 = vsel %vm5012, %v1495, 16.0
        %v5029 = vsel %vm5013, %v1495, 16.0
        %v5030 = vsel %vm5014, %v1495, 16.0
        %v5031 = vsel %vm5015, %v1495, 16.0
        %v5032 = vsel %vm5016, %v1495, 16.0
        %v5033 = vsel %vm5017, %v1495, 16.0
        %v5034 = vsel %vm5018, %v1495, 16.0
        %v5035 = vsel %vm5019, %v1495, 16.0
        %v5036 = vsel %vm5020, %v1495, 16.0
        %v5037 = vsel %vm5021, %v1495, 16.0
        %v5038 = vsel %vm5022, %v1495, 16.0
        %v5039 = vsel %vm1427, %v5023, inf
        %5040 = vmin.xlane.f32.xlu0 %v5039
        %v5041 = vpop.xlane.xlu0 %5040
        %v5042 = vsel %vm1427, %v5024, inf
        %5043 = vmin.xlane.f32.xlu0 %v5042
        %v5044 = vpop.xlane.xlu0 %5043
        %v5045 = vsel %vm1427, %v5025, inf
        %5046 = vmin.xlane.f32.xlu0 %v5045
        %v5047 = vpop.xlane.xlu0 %5046
        %v5048 = vsel %vm1427, %v5026, inf
        %5049 = vmin.xlane.f32.xlu0 %v5048
        %v5050 = vpop.xlane.xlu0 %5049
        %v5051 = vsel %vm1427, %v5027, inf
        %5052 = vmin.xlane.f32.xlu0 %v5051
        %v5053 = vpop.xlane.xlu0 %5052
        %v5054 = vsel %vm1427, %v5028, inf
        %5055 = vmin.xlane.f32.xlu0 %v5054
        %v5056 = vpop.xlane.xlu0 %5055
        %v5057 = vsel %vm1427, %v5029, inf
        %5058 = vmin.xlane.f32.xlu0 %v5057
        %v5059 = vpop.xlane.xlu0 %5058
        %v5060 = vsel %vm1427, %v5030, inf
        %5061 = vmin.xlane.f32.xlu0 %v5060
        %v5062 = vpop.xlane.xlu0 %5061
        %v5063 = vsel %vm1427, %v5031, inf
        %5064 = vmin.xlane.f32.xlu0 %v5063
        %v5065 = vpop.xlane.xlu0 %5064
        %v5066 = vsel %vm1427, %v5032, inf
        %5067 = vmin.xlane.f32.xlu0 %v5066
        %v5068 = vpop.xlane.xlu0 %5067
        %v5069 = vsel %vm1427, %v5033, inf
        %5070 = vmin.xlane.f32.xlu0 %v5069
        %v5071 = vpop.xlane.xlu0 %5070
        %v5072 = vsel %vm1427, %v5034, inf
        %5073 = vmin.xlane.f32.xlu0 %v5072
        %v5074 = vpop.xlane.xlu0 %5073
        %v5075 = vsel %vm1427, %v5035, inf
        %5076 = vmin.xlane.f32.xlu0 %v5075
        %v5077 = vpop.xlane.xlu0 %5076
        %v5078 = vsel %vm1427, %v5036, inf
        %5079 = vmin.xlane.f32.xlu0 %v5078
        %v5080 = vpop.xlane.xlu0 %5079
        %v5081 = vsel %vm1427, %v5037, inf
        %5082 = vmin.xlane.f32.xlu0 %v5081
        %v5083 = vpop.xlane.xlu0 %5082
        %v5084 = vsel %vm1427, %v5038, inf
        %5085 = vmin.xlane.f32.xlu0 %v5084
        %v5086 = vpop.xlane.xlu0 %5085
        %vm5087 = vcmp.eq.f32.partialorder %v1495, %v5041
        %vm5088 = vcmp.eq.f32.partialorder %v1495, %v5044
        %vm5089 = vcmp.eq.f32.partialorder %v1495, %v5047
        %vm5090 = vcmp.eq.f32.partialorder %v1495, %v5050
        %vm5091 = vcmp.eq.f32.partialorder %v1495, %v5053
        %vm5092 = vcmp.eq.f32.partialorder %v1495, %v5056
        %vm5093 = vcmp.eq.f32.partialorder %v1495, %v5059
        %vm5094 = vcmp.eq.f32.partialorder %v1495, %v5062
        %vm5095 = vcmp.eq.f32.partialorder %v1495, %v5065
        %vm5096 = vcmp.eq.f32.partialorder %v1495, %v5068
        %vm5097 = vcmp.eq.f32.partialorder %v1495, %v5071
        %vm5098 = vcmp.eq.f32.partialorder %v1495, %v5074
        %vm5099 = vcmp.eq.f32.partialorder %v1495, %v5077
        %vm5100 = vcmp.eq.f32.partialorder %v1495, %v5080
        %vm5101 = vcmp.eq.f32.partialorder %v1495, %v5083
        %vm5102 = vcmp.eq.f32.partialorder %v1495, %v5086
        %v5103 = vsel %vm5087, 1, 0
        %v5104 = vsel %vm5088, 1, 0
        %v5105 = vsel %vm5089, 1, 0
        %v5106 = vsel %vm5090, 1, 0
        %v5107 = vsel %vm5091, 1, 0
        %v5108 = vsel %vm5092, 1, 0
        %v5109 = vsel %vm5093, 1, 0
        %v5110 = vsel %vm5094, 1, 0
        %v5111 = vsel %vm5095, 1, 0
        %v5112 = vsel %vm5096, 1, 0
        %v5113 = vsel %vm5097, 1, 0
        %v5114 = vsel %vm5098, 1, 0
        %v5115 = vsel %vm5099, 1, 0
        %v5116 = vsel %vm5100, 1, 0
        %v5117 = vsel %vm5101, 1, 0
        %v5118 = vsel %vm5102, 1, 0
        %v5119 = vcvt.s32.f32 %v5103
        %v5120 = vcvt.s32.f32 %v5104
        %v5121 = vcvt.s32.f32 %v5105
        %v5122 = vcvt.s32.f32 %v5106
        %v5123 = vcvt.s32.f32 %v5107
        %v5124 = vcvt.s32.f32 %v5108
        %v5125 = vcvt.s32.f32 %v5109
        %v5126 = vcvt.s32.f32 %v5110
        %v5127 = vcvt.s32.f32 %v5111
        %v5128 = vcvt.s32.f32 %v5112
        %v5129 = vcvt.s32.f32 %v5113
        %v5130 = vcvt.s32.f32 %v5114
        %v5131 = vcvt.s32.f32 %v5115
        %v5132 = vcvt.s32.f32 %v5116
        %v5133 = vcvt.s32.f32 %v5117
        %v5134 = vcvt.s32.f32 %v5118
        %v5136 = vsel %vm1427, %v5119, 0
        %v5139 = vsel %vm1427, %v5120, 0
        %v5142 = vsel %vm1427, %v5121, 0
        %v5145 = vsel %vm1427, %v5122, 0
        %v5148 = vsel %vm1427, %v5123, 0
        %v5151 = vsel %vm1427, %v5124, 0
        %v5154 = vsel %vm1427, %v5125, 0
        %v5157 = vsel %vm1427, %v5126, 0
        %v5160 = vsel %vm1427, %v5127, 0
        %v5163 = vsel %vm1427, %v5128, 0
        %v5166 = vsel %vm1427, %v5129, 0
        %v5169 = vsel %vm1427, %v5130, 0
        %v5172 = vsel %vm1427, %v5131, 0
        %v5175 = vsel %vm1427, %v5132, 0
        %v5178 = vsel %vm1427, %v5133, 0
        %v5181 = vsel %vm1427, %v5134, 0
        %5183 = vmatprep.subr.mxu0 0.0
        %v5184 = vand.u32 %v5136, 4294901760
        %5185 = vmatpush1.xpose.msra.mxu0 %v5184
        %5186 = vmatprep.subr.mxu0 0.0
        %v5187 = vand.u32 %v5139, 4294901760
        %5188 = vmatpush1.xpose.msra.mxu0 %v5187
        %5189 = vmatprep.subr.mxu0 0.0
        %v5190 = vand.u32 %v5142, 4294901760
        %5191 = vmatpush1.xpose.msra.mxu0 %v5190
        %5192 = vmatprep.subr.mxu0 0.0
        %v5193 = vand.u32 %v5145, 4294901760
        %5194 = vmatpush1.xpose.msra.mxu0 %v5193
        %5195 = vmatprep.subr.mxu0 0.0
        %v5196 = vand.u32 %v5148, 4294901760
        %5197 = vmatpush1.xpose.msra.mxu0 %v5196
        %5198 = vmatprep.subr.mxu0 0.0
        %v5199 = vand.u32 %v5151, 4294901760
        %5200 = vmatpush1.xpose.msra.mxu0 %v5199
        %5201 = vmatprep.subr.mxu0 0.0
        %v5202 = vand.u32 %v5154, 4294901760
        %5203 = vmatpush1.xpose.msra.mxu0 %v5202
        %5204 = vmatprep.subr.mxu0 0.0
        %v5205 = vand.u32 %v5157, 4294901760
        %5206 = vmatpush1.xpose.msra.mxu0 %v5205
        %5207 = vmatprep.subr.mxu0 0.0
        %v5208 = vand.u32 %v5160, 4294901760
        %5209 = vmatpush1.xpose.msra.mxu0 %v5208
        %5210 = vmatprep.subr.mxu0 0.0
        %v5211 = vand.u32 %v5163, 4294901760
        %5212 = vmatpush1.xpose.msra.mxu0 %v5211
        %5213 = vmatprep.subr.mxu0 0.0
        %v5214 = vand.u32 %v5166, 4294901760
        %5215 = vmatpush1.xpose.msra.mxu0 %v5214
        %5216 = vmatprep.subr.mxu0 0.0
        %v5217 = vand.u32 %v5169, 4294901760
        %5218 = vmatpush1.xpose.msra.mxu0 %v5217
        %5219 = vmatprep.subr.mxu0 0.0
        %v5220 = vand.u32 %v5172, 4294901760
        %5221 = vmatpush1.xpose.msra.mxu0 %v5220
        %5222 = vmatprep.subr.mxu0 0.0
        %v5223 = vand.u32 %v5175, 4294901760
        %5224 = vmatpush1.xpose.msra.mxu0 %v5223
        %5225 = vmatprep.subr.mxu0 0.0
        %v5226 = vand.u32 %v5178, 4294901760
        %5227 = vmatpush1.xpose.msra.mxu0 %v5226
        %5228 = vmatprep.subr.mxu0 0.0
        %v5229 = vand.u32 %v5181, 4294901760
        %5230 = vmatpush1.xpose.msra.mxu0 %v5229
        %5231 = vmatprep.subr.mxu0 0.0
        %5232 = vmatpush1.xpose.msra.mxu0 0.0
        %5233 = vmatprep.subr.mxu0 0.0
        %5234 = vmatpush1.xpose.msra.mxu0 0.0
        %5235 = vmatprep.subr.mxu0 0.0
        %5236 = vmatpush1.xpose.msra.mxu0 0.0
        %5237 = vmatprep.subr.mxu0 0.0
        %5238 = vmatpush1.xpose.msra.mxu0 0.0
        %5239 = vmatprep.subr.mxu0 0.0
        %5240 = vmatpush1.xpose.msra.mxu0 0.0
        %5241 = vmatprep.subr.mxu0 0.0
        %5242 = vmatpush1.xpose.msra.mxu0 0.0
        %5243 = vmatprep.subr.mxu0 0.0
        %5244 = vmatpush1.xpose.msra.mxu0 0.0
        %5245 = vmatprep.subr.mxu0 0.0
        %5246 = vmatpush1.xpose.msra.mxu0 0.0
        %5247 = vmatprep.subr.mxu0 0.0
        %5248 = vmatpush1.xpose.msra.mxu0 0.0
        %5249 = vmatprep.subr.mxu0 0.0
        %5250 = vmatpush1.xpose.msra.mxu0 0.0
        %5251 = vmatprep.subr.mxu0 0.0
        %5252 = vmatpush1.xpose.msra.mxu0 0.0
        %5253 = vmatprep.subr.mxu0 0.0
        %5254 = vmatpush1.xpose.msra.mxu0 0.0
        %5255 = vmatprep.subr.mxu0 0.0
        %5256 = vmatpush1.xpose.msra.mxu0 0.0
        %5257 = vmatprep.subr.mxu0 0.0
        %5258 = vmatpush1.xpose.msra.mxu0 0.0
        %5259 = vmatprep.subr.mxu0 0.0
        %5260 = vmatpush1.xpose.msra.mxu0 0.0
        %5261 = vmatprep.subr.mxu0 0.0
        %5262 = vmatpush1.xpose.msra.mxu0 0.0
        %5263 = vmatprep.mubr.f32.mxu0 0.0
        %v5264 = vand.u32 %v1609, 4294901760
        %v5265 = vsub.f32 %v1609, %v5264
        %v5266 = vand.u32 %v5265, 4294901760
        %v5267 = vsub.f32 %v5265, %v5266
        %v5268 = vand.u32 %v5267, 4294901760
        %5269 = vmatmul.mubr.f32.gmra.mrb[0].mxu0 %v5268
        %v5270 = vpop.f32.mrb[0].mxu0
        %v5271 = vadd.f32 0.0, %v5270
        %v5272 = vpop.f32.mrb[0].mxu0
        %5273 = vdwg.mxu0
        %5274 = vmatprep.subr.mxu0 0.0
        %v5275 = vand.u32 %v5136, 4294901760
        %v5276 = vsub.f32 %v5136, %v5275
        %v5277 = vand.u32 %v5276, 4294901760
        %v5278 = vsub.f32 %v5276, %v5277
        %v5279 = vand.u32 %v5278, 4294901760
        %5280 = vmatpush1.xpose.msra.mxu0 %v5279
        %5281 = vmatprep.subr.mxu0 0.0
        %v5282 = vand.u32 %v5139, 4294901760
        %v5283 = vsub.f32 %v5139, %v5282
        %v5284 = vand.u32 %v5283, 4294901760
        %v5285 = vsub.f32 %v5283, %v5284
        %v5286 = vand.u32 %v5285, 4294901760
        %5287 = vmatpush1.xpose.msra.mxu0 %v5286
        %5288 = vmatprep.subr.mxu0 0.0
        %v5289 = vand.u32 %v5142, 4294901760
        %v5290 = vsub.f32 %v5142, %v5289
        %v5291 = vand.u32 %v5290, 4294901760
        %v5292 = vsub.f32 %v5290, %v5291
        %v5293 = vand.u32 %v5292, 4294901760
        %5294 = vmatpush1.xpose.msra.mxu0 %v5293
        %5295 = vmatprep.subr.mxu0 0.0
        %v5296 = vand.u32 %v5145, 4294901760
        %v5297 = vsub.f32 %v5145, %v5296
        %v5298 = vand.u32 %v5297, 4294901760
        %v5299 = vsub.f32 %v5297, %v5298
        %v5300 = vand.u32 %v5299, 4294901760
        %5301 = vmatpush1.xpose.msra.mxu0 %v5300
        %5302 = vmatprep.subr.mxu0 0.0
        %v5303 = vand.u32 %v5148, 4294901760
        %v5304 = vsub.f32 %v5148, %v5303
        %v5305 = vand.u32 %v5304, 4294901760
        %v5306 = vsub.f32 %v5304, %v5305
        %v5307 = vand.u32 %v5306, 4294901760
        %5308 = vmatpush1.xpose.msra.mxu0 %v5307
        %5309 = vmatprep.subr.mxu0 0.0
        %v5310 = vand.u32 %v5151, 4294901760
        %v5311 = vsub.f32 %v5151, %v5310
        %v5312 = vand.u32 %v5311, 4294901760
        %v5313 = vsub.f32 %v5311, %v5312
        %v5314 = vand.u32 %v5313, 4294901760
        %5315 = vmatpush1.xpose.msra.mxu0 %v5314
        %5316 = vmatprep.subr.mxu0 0.0
        %v5317 = vand.u32 %v5154, 4294901760
        %v5318 = vsub.f32 %v5154, %v5317
        %v5319 = vand.u32 %v5318, 4294901760
        %v5320 = vsub.f32 %v5318, %v5319
        %v5321 = vand.u32 %v5320, 4294901760
        %5322 = vmatpush1.xpose.msra.mxu0 %v5321
        %5323 = vmatprep.subr.mxu0 0.0
        %v5324 = vand.u32 %v5157, 4294901760
        %v5325 = vsub.f32 %v5157, %v5324
        %v5326 = vand.u32 %v5325, 4294901760
        %v5327 = vsub.f32 %v5325, %v5326
        %v5328 = vand.u32 %v5327, 4294901760
        %5329 = vmatpush1.xpose.msra.mxu0 %v5328
        %5330 = vmatprep.subr.mxu0 0.0
        %v5331 = vand.u32 %v5160, 4294901760
        %v5332 = vsub.f32 %v5160, %v5331
        %v5333 = vand.u32 %v5332, 4294901760
        %v5334 = vsub.f32 %v5332, %v5333
        %v5335 = vand.u32 %v5334, 4294901760
        %5336 = vmatpush1.xpose.msra.mxu0 %v5335
        %5337 = vmatprep.subr.mxu0 0.0
        %v5338 = vand.u32 %v5163, 4294901760
        %v5339 = vsub.f32 %v5163, %v5338
        %v5340 = vand.u32 %v5339, 4294901760
        %v5341 = vsub.f32 %v5339, %v5340
        %v5342 = vand.u32 %v5341, 4294901760
        %5343 = vmatpush1.xpose.msra.mxu0 %v5342
        %5344 = vmatprep.subr.mxu0 0.0
        %v5345 = vand.u32 %v5166, 4294901760
        %v5346 = vsub.f32 %v5166, %v5345
        %v5347 = vand.u32 %v5346, 4294901760
        %v5348 = vsub.f32 %v5346, %v5347
        %v5349 = vand.u32 %v5348, 4294901760
        %5350 = vmatpush1.xpose.msra.mxu0 %v5349
        %5351 = vmatprep.subr.mxu0 0.0
        %v5352 = vand.u32 %v5169, 4294901760
        %v5353 = vsub.f32 %v5169, %v5352
        %v5354 = vand.u32 %v5353, 4294901760
        %v5355 = vsub.f32 %v5353, %v5354
        %v5356 = vand.u32 %v5355, 4294901760
        %5357 = vmatpush1.xpose.msra.mxu0 %v5356
        %5358 = vmatprep.subr.mxu0 0.0
        %v5359 = vand.u32 %v5172, 4294901760
        %v5360 = vsub.f32 %v5172, %v5359
        %v5361 = vand.u32 %v5360, 4294901760
        %v5362 = vsub.f32 %v5360, %v5361
        %v5363 = vand.u32 %v5362, 4294901760
        %5364 = vmatpush1.xpose.msra.mxu0 %v5363
        %5365 = vmatprep.subr.mxu0 0.0
        %v5366 = vand.u32 %v5175, 4294901760
        %v5367 = vsub.f32 %v5175, %v5366
        %v5368 = vand.u32 %v5367, 4294901760
        %v5369 = vsub.f32 %v5367, %v5368
        %v5370 = vand.u32 %v5369, 4294901760
        %5371 = vmatpush1.xpose.msra.mxu0 %v5370
        %5372 = vmatprep.subr.mxu0 0.0
        %v5373 = vand.u32 %v5178, 4294901760
        %v5374 = vsub.f32 %v5178, %v5373
        %v5375 = vand.u32 %v5374, 4294901760
        %v5376 = vsub.f32 %v5374, %v5375
        %v5377 = vand.u32 %v5376, 4294901760
        %5378 = vmatpush1.xpose.msra.mxu0 %v5377
        %5379 = vmatprep.subr.mxu0 0.0
        %v5380 = vand.u32 %v5181, 4294901760
        %v5381 = vsub.f32 %v5181, %v5380
        %v5382 = vand.u32 %v5381, 4294901760
        %v5383 = vsub.f32 %v5381, %v5382
        %v5384 = vand.u32 %v5383, 4294901760
        %5385 = vmatpush1.xpose.msra.mxu0 %v5384
        %5386 = vmatprep.subr.mxu0 0.0
        %5387 = vmatpush1.xpose.msra.mxu0 0.0
        %5388 = vmatprep.subr.mxu0 0.0
        %5389 = vmatpush1.xpose.msra.mxu0 0.0
        %5390 = vmatprep.subr.mxu0 0.0
        %5391 = vmatpush1.xpose.msra.mxu0 0.0
        %5392 = vmatprep.subr.mxu0 0.0
        %5393 = vmatpush1.xpose.msra.mxu0 0.0
        %5394 = vmatprep.subr.mxu0 0.0
        %5395 = vmatpush1.xpose.msra.mxu0 0.0
        %5396 = vmatprep.subr.mxu0 0.0
        %5397 = vmatpush1.xpose.msra.mxu0 0.0
        %5398 = vmatprep.subr.mxu0 0.0
        %5399 = vmatpush1.xpose.msra.mxu0 0.0
        %5400 = vmatprep.subr.mxu0 0.0
        %5401 = vmatpush1.xpose.msra.mxu0 0.0
        %5402 = vmatprep.subr.mxu0 0.0
        %5403 = vmatpush1.xpose.msra.mxu0 0.0
        %5404 = vmatprep.subr.mxu0 0.0
        %5405 = vmatpush1.xpose.msra.mxu0 0.0
        %5406 = vmatprep.subr.mxu0 0.0
        %5407 = vmatpush1.xpose.msra.mxu0 0.0
        %5408 = vmatprep.subr.mxu0 0.0
        %5409 = vmatpush1.xpose.msra.mxu0 0.0
        %5410 = vmatprep.subr.mxu0 0.0
        %5411 = vmatpush1.xpose.msra.mxu0 0.0
        %5412 = vmatprep.subr.mxu0 0.0
        %5413 = vmatpush1.xpose.msra.mxu0 0.0
        %5414 = vmatprep.subr.mxu0 0.0
        %5415 = vmatpush1.xpose.msra.mxu0 0.0
        %5416 = vmatprep.subr.mxu0 0.0
        %5417 = vmatpush1.xpose.msra.mxu0 0.0
        %5418 = vmatprep.mubr.f32.mxu0 0.0
        %v5419 = vand.u32 %v1609, 4294901760
        %5420 = vmatmul.mubr.f32.gmra.mrb[0].mxu0 %v5419
        %v5421 = vpop.f32.mrb[0].mxu0
        %v5422 = vadd.f32 %v5271, %v5421
        %v5423 = vpop.f32.mrb[0].mxu0
        %5424 = vdwg.mxu0
        %5425 = vmatprep.subr.mxu0 0.0
        %v5426 = vand.u32 %v5136, 4294901760
        %v5427 = vsub.f32 %v5136, %v5426
        %5428 = vmatpush1.xpose.msra.mxu0 %v5427
        %5429 = vmatprep.subr.mxu0 0.0
        %v5430 = vand.u32 %v5139, 4294901760
        %v5431 = vsub.f32 %v5139, %v5430
        %5432 = vmatpush1.xpose.msra.mxu0 %v5431
        %5433 = vmatprep.subr.mxu0 0.0
        %v5434 = vand.u32 %v5142, 4294901760
        %v5435 = vsub.f32 %v5142, %v5434
        %5436 = vmatpush1.xpose.msra.mxu0 %v5435
        %5437 = vmatprep.subr.mxu0 0.0
        %v5438 = vand.u32 %v5145, 4294901760
        %v5439 = vsub.f32 %v5145, %v5438
        %5440 = vmatpush1.xpose.msra.mxu0 %v5439
        %5441 = vmatprep.subr.mxu0 0.0
        %v5442 = vand.u32 %v5148, 4294901760
        %v5443 = vsub.f32 %v5148, %v5442
        %5444 = vmatpush1.xpose.msra.mxu0 %v5443
        %5445 = vmatprep.subr.mxu0 0.0
        %v5446 = vand.u32 %v5151, 4294901760
        %v5447 = vsub.f32 %v5151, %v5446
        %5448 = vmatpush1.xpose.msra.mxu0 %v5447
        %5449 = vmatprep.subr.mxu0 0.0
        %v5450 = vand.u32 %v5154, 4294901760
        %v5451 = vsub.f32 %v5154, %v5450
        %5452 = vmatpush1.xpose.msra.mxu0 %v5451
        %5453 = vmatprep.subr.mxu0 0.0
        %v5454 = vand.u32 %v5157, 4294901760
        %v5455 = vsub.f32 %v5157, %v5454
        %5456 = vmatpush1.xpose.msra.mxu0 %v5455
        %5457 = vmatprep.subr.mxu0 0.0
        %v5458 = vand.u32 %v5160, 4294901760
        %v5459 = vsub.f32 %v5160, %v5458
        %5460 = vmatpush1.xpose.msra.mxu0 %v5459
        %5461 = vmatprep.subr.mxu0 0.0
        %v5462 = vand.u32 %v5163, 4294901760
        %v5463 = vsub.f32 %v5163, %v5462
        %5464 = vmatpush1.xpose.msra.mxu0 %v5463
        %5465 = vmatprep.subr.mxu0 0.0
        %v5466 = vand.u32 %v5166, 4294901760
        %v5467 = vsub.f32 %v5166, %v5466
        %5468 = vmatpush1.xpose.msra.mxu0 %v5467
        %5469 = vmatprep.subr.mxu0 0.0
        %v5470 = vand.u32 %v5169, 4294901760
        %v5471 = vsub.f32 %v5169, %v5470
        %5472 = vmatpush1.xpose.msra.mxu0 %v5471
        %5473 = vmatprep.subr.mxu0 0.0
        %v5474 = vand.u32 %v5172, 4294901760
        %v5475 = vsub.f32 %v5172, %v5474
        %5476 = vmatpush1.xpose.msra.mxu0 %v5475
        %5477 = vmatprep.subr.mxu0 0.0
        %v5478 = vand.u32 %v5175, 4294901760
        %v5479 = vsub.f32 %v5175, %v5478
        %5480 = vmatpush1.xpose.msra.mxu0 %v5479
        %5481 = vmatprep.subr.mxu0 0.0
        %v5482 = vand.u32 %v5178, 4294901760
        %v5483 = vsub.f32 %v5178, %v5482
        %5484 = vmatpush1.xpose.msra.mxu0 %v5483
        %5485 = vmatprep.subr.mxu0 0.0
        %v5486 = vand.u32 %v5181, 4294901760
        %v5487 = vsub.f32 %v5181, %v5486
        %5488 = vmatpush1.xpose.msra.mxu0 %v5487
        %5489 = vmatprep.subr.mxu0 0.0
        %5490 = vmatpush1.xpose.msra.mxu0 0.0
        %5491 = vmatprep.subr.mxu0 0.0
        %5492 = vmatpush1.xpose.msra.mxu0 0.0
        %5493 = vmatprep.subr.mxu0 0.0
        %5494 = vmatpush1.xpose.msra.mxu0 0.0
        %5495 = vmatprep.subr.mxu0 0.0
        %5496 = vmatpush1.xpose.msra.mxu0 0.0
        %5497 = vmatprep.subr.mxu0 0.0
        %5498 = vmatpush1.xpose.msra.mxu0 0.0
        %5499 = vmatprep.subr.mxu0 0.0
        %5500 = vmatpush1.xpose.msra.mxu0 0.0
        %5501 = vmatprep.subr.mxu0 0.0
        %5502 = vmatpush1.xpose.msra.mxu0 0.0
        %5503 = vmatprep.subr.mxu0 0.0
        %5504 = vmatpush1.xpose.msra.mxu0 0.0
        %5505 = vmatprep.subr.mxu0 0.0
        %5506 = vmatpush1.xpose.msra.mxu0 0.0
        %5507 = vmatprep.subr.mxu0 0.0
        %5508 = vmatpush1.xpose.msra.mxu0 0.0
        %5509 = vmatprep.subr.mxu0 0.0
        %5510 = vmatpush1.xpose.msra.mxu0 0.0
        %5511 = vmatprep.subr.mxu0 0.0
        %5512 = vmatpush1.xpose.msra.mxu0 0.0
        %5513 = vmatprep.subr.mxu0 0.0
        %5514 = vmatpush1.xpose.msra.mxu0 0.0
        %5515 = vmatprep.subr.mxu0 0.0
        %5516 = vmatpush1.xpose.msra.mxu0 0.0
        %5517 = vmatprep.subr.mxu0 0.0
        %5518 = vmatpush1.xpose.msra.mxu0 0.0
        %5519 = vmatprep.subr.mxu0 0.0
        %5520 = vmatpush1.xpose.msra.mxu0 0.0
        %5521 = vmatprep.mubr.f32.mxu0 0.0
        %v5522 = vand.u32 %v1609, 4294901760
        %v5523 = vsub.f32 %v1609, %v5522
        %5524 = vmatmul.mubr.f32.gmra.mrb[0].mxu0 %v5523
        %v5525 = vpop.f32.mrb[0].mxu0
        %v5526 = vadd.f32 %v5422, %v5525
        %v5527 = vpop.f32.mrb[0].mxu0
        %5528 = vdwg.mxu0
        %5529 = vmatprep.subr.mxu0 0.0
        %v5530 = vand.u32 %v5136, 4294901760
        %5531 = vmatpush1.xpose.msra.mxu0 %v5530
        %5532 = vmatprep.subr.mxu0 0.0
        %v5533 = vand.u32 %v5139, 4294901760
        %5534 = vmatpush1.xpose.msra.mxu0 %v5533
        %5535 = vmatprep.subr.mxu0 0.0
        %v5536 = vand.u32 %v5142, 4294901760
        %5537 = vmatpush1.xpose.msra.mxu0 %v5536
        %5538 = vmatprep.subr.mxu0 0.0
        %v5539 = vand.u32 %v5145, 4294901760
        %5540 = vmatpush1.xpose.msra.mxu0 %v5539
        %5541 = vmatprep.subr.mxu0 0.0
        %v5542 = vand.u32 %v5148, 4294901760
        %5543 = vmatpush1.xpose.msra.mxu0 %v5542
        %5544 = vmatprep.subr.mxu0 0.0
        %v5545 = vand.u32 %v5151, 4294901760
        %5546 = vmatpush1.xpose.msra.mxu0 %v5545
        %5547 = vmatprep.subr.mxu0 0.0
        %v5548 = vand.u32 %v5154, 4294901760
        %5549 = vmatpush1.xpose.msra.mxu0 %v5548
        %5550 = vmatprep.subr.mxu0 0.0
        %v5551 = vand.u32 %v5157, 4294901760
        %5552 = vmatpush1.xpose.msra.mxu0 %v5551
        %5553 = vmatprep.subr.mxu0 0.0
        %v5554 = vand.u32 %v5160, 4294901760
        %5555 = vmatpush1.xpose.msra.mxu0 %v5554
        %5556 = vmatprep.subr.mxu0 0.0
        %v5557 = vand.u32 %v5163, 4294901760
        %5558 = vmatpush1.xpose.msra.mxu0 %v5557
        %5559 = vmatprep.subr.mxu0 0.0
        %v5560 = vand.u32 %v5166, 4294901760
        %5561 = vmatpush1.xpose.msra.mxu0 %v5560
        %5562 = vmatprep.subr.mxu0 0.0
        %v5563 = vand.u32 %v5169, 4294901760
        %5564 = vmatpush1.xpose.msra.mxu0 %v5563
        %5565 = vmatprep.subr.mxu0 0.0
        %v5566 = vand.u32 %v5172, 4294901760
        %5567 = vmatpush1.xpose.msra.mxu0 %v5566
        %5568 = vmatprep.subr.mxu0 0.0
        %v5569 = vand.u32 %v5175, 4294901760
        %5570 = vmatpush1.xpose.msra.mxu0 %v5569
        %5571 = vmatprep.subr.mxu0 0.0
        %v5572 = vand.u32 %v5178, 4294901760
        %5573 = vmatpush1.xpose.msra.mxu0 %v5572
        %5574 = vmatprep.subr.mxu0 0.0
        %v5575 = vand.u32 %v5181, 4294901760
        %5576 = vmatpush1.xpose.msra.mxu0 %v5575
        %5577 = vmatprep.subr.mxu0 0.0
        %5578 = vmatpush1.xpose.msra.mxu0 0.0
        %5579 = vmatprep.subr.mxu0 0.0
        %5580 = vmatpush1.xpose.msra.mxu0 0.0
        %5581 = vmatprep.subr.mxu0 0.0
        %5582 = vmatpush1.xpose.msra.mxu0 0.0
        %5583 = vmatprep.subr.mxu0 0.0
        %5584 = vmatpush1.xpose.msra.mxu0 0.0
        %5585 = vmatprep.subr.mxu0 0.0
        %5586 = vmatpush1.xpose.msra.mxu0 0.0
        %5587 = vmatprep.subr.mxu0 0.0
        %5588 = vmatpush1.xpose.msra.mxu0 0.0
        %5589 = vmatprep.subr.mxu0 0.0
        %5590 = vmatpush1.xpose.msra.mxu0 0.0
        %5591 = vmatprep.subr.mxu0 0.0
        %5592 = vmatpush1.xpose.msra.mxu0 0.0
        %5593 = vmatprep.subr.mxu0 0.0
        %5594 = vmatpush1.xpose.msra.mxu0 0.0
        %5595 = vmatprep.subr.mxu0 0.0
        %5596 = vmatpush1.xpose.msra.mxu0 0.0
        %5597 = vmatprep.subr.mxu0 0.0
        %5598 = vmatpush1.xpose.msra.mxu0 0.0
        %5599 = vmatprep.subr.mxu0 0.0
        %5600 = vmatpush1.xpose.msra.mxu0 0.0
        %5601 = vmatprep.subr.mxu0 0.0
        %5602 = vmatpush1.xpose.msra.mxu0 0.0
        %5603 = vmatprep.subr.mxu0 0.0
        %5604 = vmatpush1.xpose.msra.mxu0 0.0
        %5605 = vmatprep.subr.mxu0 0.0
        %5606 = vmatpush1.xpose.msra.mxu0 0.0
        %5607 = vmatprep.subr.mxu0 0.0
        %5608 = vmatpush1.xpose.msra.mxu0 0.0
        %5609 = vmatprep.mubr.f32.mxu0 0.0
        %v5610 = vand.u32 %v1609, 4294901760
        %v5611 = vsub.f32 %v1609, %v5610
        %v5612 = vand.u32 %v5611, 4294901760
        %5613 = vmatmul.mubr.f32.gmra.mrb[0].mxu0 %v5612
        %v5614 = vpop.f32.mrb[0].mxu0
        %v5615 = vadd.f32 %v5526, %v5614
        %v5616 = vpop.f32.mrb[0].mxu0
        %5617 = vdwg.mxu0
        %5618 = vmatprep.subr.mxu0 0.0
        %v5619 = vand.u32 %v5136, 4294901760
        %v5620 = vsub.f32 %v5136, %v5619
        %v5621 = vand.u32 %v5620, 4294901760
        %5622 = vmatpush1.xpose.msra.mxu0 %v5621
        %5623 = vmatprep.subr.mxu0 0.0
        %v5624 = vand.u32 %v5139, 4294901760
        %v5625 = vsub.f32 %v5139, %v5624
        %v5626 = vand.u32 %v5625, 4294901760
        %5627 = vmatpush1.xpose.msra.mxu0 %v5626
        %5628 = vmatprep.subr.mxu0 0.0
        %v5629 = vand.u32 %v5142, 4294901760
        %v5630 = vsub.f32 %v5142, %v5629
        %v5631 = vand.u32 %v5630, 4294901760
        %5632 = vmatpush1.xpose.msra.mxu0 %v5631
        %5633 = vmatprep.subr.mxu0 0.0
        %v5634 = vand.u32 %v5145, 4294901760
        %v5635 = vsub.f32 %v5145, %v5634
        %v5636 = vand.u32 %v5635, 4294901760
        %5637 = vmatpush1.xpose.msra.mxu0 %v5636
        %5638 = vmatprep.subr.mxu0 0.0
        %v5639 = vand.u32 %v5148, 4294901760
        %v5640 = vsub.f32 %v5148, %v5639
        %v5641 = vand.u32 %v5640, 4294901760
        %5642 = vmatpush1.xpose.msra.mxu0 %v5641
        %5643 = vmatprep.subr.mxu0 0.0
        %v5644 = vand.u32 %v5151, 4294901760
        %v5645 = vsub.f32 %v5151, %v5644
        %v5646 = vand.u32 %v5645, 4294901760
        %5647 = vmatpush1.xpose.msra.mxu0 %v5646
        %5648 = vmatprep.subr.mxu0 0.0
        %v5649 = vand.u32 %v5154, 4294901760
        %v5650 = vsub.f32 %v5154, %v5649
        %v5651 = vand.u32 %v5650, 4294901760
        %5652 = vmatpush1.xpose.msra.mxu0 %v5651
        %5653 = vmatprep.subr.mxu0 0.0
        %v5654 = vand.u32 %v5157, 4294901760
        %v5655 = vsub.f32 %v5157, %v5654
        %v5656 = vand.u32 %v5655, 4294901760
        %5657 = vmatpush1.xpose.msra.mxu0 %v5656
        %5658 = vmatprep.subr.mxu0 0.0
        %v5659 = vand.u32 %v5160, 4294901760
        %v5660 = vsub.f32 %v5160, %v5659
        %v5661 = vand.u32 %v5660, 4294901760
        %5662 = vmatpush1.xpose.msra.mxu0 %v5661
        %5663 = vmatprep.subr.mxu0 0.0
        %v5664 = vand.u32 %v5163, 4294901760
        %v5665 = vsub.f32 %v5163, %v5664
        %v5666 = vand.u32 %v5665, 4294901760
        %5667 = vmatpush1.xpose.msra.mxu0 %v5666
        %5668 = vmatprep.subr.mxu0 0.0
        %v5669 = vand.u32 %v5166, 4294901760
        %v5670 = vsub.f32 %v5166, %v5669
        %v5671 = vand.u32 %v5670, 4294901760
        %5672 = vmatpush1.xpose.msra.mxu0 %v5671
        %5673 = vmatprep.subr.mxu0 0.0
        %v5674 = vand.u32 %v5169, 4294901760
        %v5675 = vsub.f32 %v5169, %v5674
        %v5676 = vand.u32 %v5675, 4294901760
        %5677 = vmatpush1.xpose.msra.mxu0 %v5676
        %5678 = vmatprep.subr.mxu0 0.0
        %v5679 = vand.u32 %v5172, 4294901760
        %v5680 = vsub.f32 %v5172, %v5679
        %v5681 = vand.u32 %v5680, 4294901760
        %5682 = vmatpush1.xpose.msra.mxu0 %v5681
        %5683 = vmatprep.subr.mxu0 0.0
        %v5684 = vand.u32 %v5175, 4294901760
        %v5685 = vsub.f32 %v5175, %v5684
        %v5686 = vand.u32 %v5685, 4294901760
        %5687 = vmatpush1.xpose.msra.mxu0 %v5686
        %5688 = vmatprep.subr.mxu0 0.0
        %v5689 = vand.u32 %v5178, 4294901760
        %v5690 = vsub.f32 %v5178, %v5689
        %v5691 = vand.u32 %v5690, 4294901760
        %5692 = vmatpush1.xpose.msra.mxu0 %v5691
        %5693 = vmatprep.subr.mxu0 0.0
        %v5694 = vand.u32 %v5181, 4294901760
        %v5695 = vsub.f32 %v5181, %v5694
        %v5696 = vand.u32 %v5695, 4294901760
        %5697 = vmatpush1.xpose.msra.mxu0 %v5696
        %5698 = vmatprep.subr.mxu0 0.0
        %5699 = vmatpush1.xpose.msra.mxu0 0.0
        %5700 = vmatprep.subr.mxu0 0.0
        %5701 = vmatpush1.xpose.msra.mxu0 0.0
        %5702 = vmatprep.subr.mxu0 0.0
        %5703 = vmatpush1.xpose.msra.mxu0 0.0
        %5704 = vmatprep.subr.mxu0 0.0
        %5705 = vmatpush1.xpose.msra.mxu0 0.0
        %5706 = vmatprep.subr.mxu0 0.0
        %5707 = vmatpush1.xpose.msra.mxu0 0.0
        %5708 = vmatprep.subr.mxu0 0.0
        %5709 = vmatpush1.xpose.msra.mxu0 0.0
        %5710 = vmatprep.subr.mxu0 0.0
        %5711 = vmatpush1.xpose.msra.mxu0 0.0
        %5712 = vmatprep.subr.mxu0 0.0
        %5713 = vmatpush1.xpose.msra.mxu0 0.0
        %5714 = vmatprep.subr.mxu0 0.0
        %5715 = vmatpush1.xpose.msra.mxu0 0.0
        %5716 = vmatprep.subr.mxu0 0.0
        %5717 = vmatpush1.xpose.msra.mxu0 0.0
        %5718 = vmatprep.subr.mxu0 0.0
        %5719 = vmatpush1.xpose.msra.mxu0 0.0
        %5720 = vmatprep.subr.mxu0 0.0
        %5721 = vmatpush1.xpose.msra.mxu0 0.0
        %5722 = vmatprep.subr.mxu0 0.0
        %5723 = vmatpush1.xpose.msra.mxu0 0.0
        %5724 = vmatprep.subr.mxu0 0.0
        %5725 = vmatpush1.xpose.msra.mxu0 0.0
        %5726 = vmatprep.subr.mxu0 0.0
        %5727 = vmatpush1.xpose.msra.mxu0 0.0
        %5728 = vmatprep.subr.mxu0 0.0
        %5729 = vmatpush1.xpose.msra.mxu0 0.0
        %5730 = vmatprep.mubr.f32.mxu0 0.0
        %v5731 = vand.u32 %v1609, 4294901760
        %5732 = vmatmul.mubr.f32.gmra.mrb[0].mxu0 %v5731
        %v5733 = vpop.f32.mrb[0].mxu0
        %v5734 = vadd.f32 %v5615, %v5733
        %v5735 = vpop.f32.mrb[0].mxu0
        %5736 = vdwg.mxu0
        %5737 = vmatprep.subr.mxu0 0.0
        %v5738 = vand.u32 %v5136, 4294901760
        %5739 = vmatpush1.xpose.msra.mxu0 %v5738
        %5740 = vmatprep.subr.mxu0 0.0
        %v5741 = vand.u32 %v5139, 4294901760
        %5742 = vmatpush1.xpose.msra.mxu0 %v5741
        %5743 = vmatprep.subr.mxu0 0.0
        %v5744 = vand.u32 %v5142, 4294901760
        %5745 = vmatpush1.xpose.msra.mxu0 %v5744
        %5746 = vmatprep.subr.mxu0 0.0
        %v5747 = vand.u32 %v5145, 4294901760
        %5748 = vmatpush1.xpose.msra.mxu0 %v5747
        %5749 = vmatprep.subr.mxu0 0.0
        %v5750 = vand.u32 %v5148, 4294901760
        %5751 = vmatpush1.xpose.msra.mxu0 %v5750
        %5752 = vmatprep.subr.mxu0 0.0
        %v5753 = vand.u32 %v5151, 4294901760
        %5754 = vmatpush1.xpose.msra.mxu0 %v5753
        %5755 = vmatprep.subr.mxu0 0.0
        %v5756 = vand.u32 %v5154, 4294901760
        %5757 = vmatpush1.xpose.msra.mxu0 %v5756
        %5758 = vmatprep.subr.mxu0 0.0
        %v5759 = vand.u32 %v5157, 4294901760
        %5760 = vmatpush1.xpose.msra.mxu0 %v5759
        %5761 = vmatprep.subr.mxu0 0.0
        %v5762 = vand.u32 %v5160, 4294901760
        %5763 = vmatpush1.xpose.msra.mxu0 %v5762
        %5764 = vmatprep.subr.mxu0 0.0
        %v5765 = vand.u32 %v5163, 4294901760
        %5766 = vmatpush1.xpose.msra.mxu0 %v5765
        %5767 = vmatprep.subr.mxu0 0.0
        %v5768 = vand.u32 %v5166, 4294901760
        %5769 = vmatpush1.xpose.msra.mxu0 %v5768
        %5770 = vmatprep.subr.mxu0 0.0
        %v5771 = vand.u32 %v5169, 4294901760
        %5772 = vmatpush1.xpose.msra.mxu0 %v5771
        %5773 = vmatprep.subr.mxu0 0.0
        %v5774 = vand.u32 %v5172, 4294901760
        %5775 = vmatpush1.xpose.msra.mxu0 %v5774
        %5776 = vmatprep.subr.mxu0 0.0
        %v5777 = vand.u32 %v5175, 4294901760
        %5778 = vmatpush1.xpose.msra.mxu0 %v5777
        %5779 = vmatprep.subr.mxu0 0.0
        %v5780 = vand.u32 %v5178, 4294901760
        %5781 = vmatpush1.xpose.msra.mxu0 %v5780
        %5782 = vmatprep.subr.mxu0 0.0
        %v5783 = vand.u32 %v5181, 4294901760
        %5784 = vmatpush1.xpose.msra.mxu0 %v5783
        %5785 = vmatprep.subr.mxu0 0.0
        %5786 = vmatpush1.xpose.msra.mxu0 0.0
        %5787 = vmatprep.subr.mxu0 0.0
        %5788 = vmatpush1.xpose.msra.mxu0 0.0
        %5789 = vmatprep.subr.mxu0 0.0
        %5790 = vmatpush1.xpose.msra.mxu0 0.0
        %5791 = vmatprep.subr.mxu0 0.0
        %5792 = vmatpush1.xpose.msra.mxu0 0.0
        %5793 = vmatprep.subr.mxu0 0.0
        %5794 = vmatpush1.xpose.msra.mxu0 0.0
        %5795 = vmatprep.subr.mxu0 0.0
        %5796 = vmatpush1.xpose.msra.mxu0 0.0
        %5797 = vmatprep.subr.mxu0 0.0
        %5798 = vmatpush1.xpose.msra.mxu0 0.0
        %5799 = vmatprep.subr.mxu0 0.0
        %5800 = vmatpush1.xpose.msra.mxu0 0.0
        %5801 = vmatprep.subr.mxu0 0.0
        %5802 = vmatpush1.xpose.msra.mxu0 0.0
        %5803 = vmatprep.subr.mxu0 0.0
        %5804 = vmatpush1.xpose.msra.mxu0 0.0
        %5805 = vmatprep.subr.mxu0 0.0
        %5806 = vmatpush1.xpose.msra.mxu0 0.0
        %5807 = vmatprep.subr.mxu0 0.0
        %5808 = vmatpush1.xpose.msra.mxu0 0.0
        %5809 = vmatprep.subr.mxu0 0.0
        %5810 = vmatpush1.xpose.msra.mxu0 0.0
        %5811 = vmatprep.subr.mxu0 0.0
        %5812 = vmatpush1.xpose.msra.mxu0 0.0
        %5813 = vmatprep.subr.mxu0 0.0
        %5814 = vmatpush1.xpose.msra.mxu0 0.0
        %5815 = vmatprep.subr.mxu0 0.0
        %5816 = vmatpush1.xpose.msra.mxu0 0.0
        %5817 = vmatprep.mubr.f32.mxu0 0.0
        %v5818 = vand.u32 %v1609, 4294901760
        %5819 = vmatmul.mubr.f32.gmra.mrb[0].mxu0 %v5818
        %v5820 = vpop.f32.mrb[0].mxu0
        %v5821 = vadd.f32 %v5734, %v5820
        %v5822 = vpop.f32.mrb[0].mxu0
        %5823 = vdwg.mxu0
        %v5824 = vsel %vm5087, 3.4028235e+38, %v4943
        %v5825 = vsel %vm5088, 3.4028235e+38, %v4944
        %v5826 = vsel %vm5089, 3.4028235e+38, %v4945
        %v5827 = vsel %vm5090, 3.4028235e+38, %v4946
        %v5828 = vsel %vm5091, 3.4028235e+38, %v4947
        %v5829 = vsel %vm5092, 3.4028235e+38, %v4948
        %v5830 = vsel %vm5093, 3.4028235e+38, %v4949
        %v5831 = vsel %vm5094, 3.4028235e+38, %v4950
        %v5832 = vsel %vm5095, 3.4028235e+38, %v4951
        %v5833 = vsel %vm5096, 3.4028235e+38, %v4952
        %v5834 = vsel %vm5097, 3.4028235e+38, %v4953
        %v5835 = vsel %vm5098, 3.4028235e+38, %v4954
        %v5836 = vsel %vm5099, 3.4028235e+38, %v4955
        %v5837 = vsel %vm5100, 3.4028235e+38, %v4956
        %v5838 = vsel %vm5101, 3.4028235e+38, %v4957
        %v5839 = vsel %vm5102, 3.4028235e+38, %v4958
        %v5840 = vsel %vm1427, %v5824, inf
        %5841 = vmin.xlane.f32.xlu0 %v5840
        %v5842 = vpop.xlane.xlu0 %5841
        %v5843 = vsel %vm1427, %v5825, inf
        %5844 = vmin.xlane.f32.xlu0 %v5843
        %v5845 = vpop.xlane.xlu0 %5844
        %v5846 = vsel %vm1427, %v5826, inf
        %5847 = vmin.xlane.f32.xlu0 %v5846
        %v5848 = vpop.xlane.xlu0 %5847
        %v5849 = vsel %vm1427, %v5827, inf
        %5850 = vmin.xlane.f32.xlu0 %v5849
        %v5851 = vpop.xlane.xlu0 %5850
        %v5852 = vsel %vm1427, %v5828, inf
        %5853 = vmin.xlane.f32.xlu0 %v5852
        %v5854 = vpop.xlane.xlu0 %5853
        %v5855 = vsel %vm1427, %v5829, inf
        %5856 = vmin.xlane.f32.xlu0 %v5855
        %v5857 = vpop.xlane.xlu0 %5856
        %v5858 = vsel %vm1427, %v5830, inf
        %5859 = vmin.xlane.f32.xlu0 %v5858
        %v5860 = vpop.xlane.xlu0 %5859
        %v5861 = vsel %vm1427, %v5831, inf
        %5862 = vmin.xlane.f32.xlu0 %v5861
        %v5863 = vpop.xlane.xlu0 %5862
        %v5864 = vsel %vm1427, %v5832, inf
        %5865 = vmin.xlane.f32.xlu0 %v5864
        %v5866 = vpop.xlane.xlu0 %5865
        %v5867 = vsel %vm1427, %v5833, inf
        %5868 = vmin.xlane.f32.xlu0 %v5867
        %v5869 = vpop.xlane.xlu0 %5868
        %v5870 = vsel %vm1427, %v5834, inf
        %5871 = vmin.xlane.f32.xlu0 %v5870
        %v5872 = vpop.xlane.xlu0 %5871
        %v5873 = vsel %vm1427, %v5835, inf
        %5874 = vmin.xlane.f32.xlu0 %v5873
        %v5875 = vpop.xlane.xlu0 %5874
        %v5876 = vsel %vm1427, %v5836, inf
        %5877 = vmin.xlane.f32.xlu0 %v5876
        %v5878 = vpop.xlane.xlu0 %5877
        %v5879 = vsel %vm1427, %v5837, inf
        %5880 = vmin.xlane.f32.xlu0 %v5879
        %v5881 = vpop.xlane.xlu0 %5880
        %v5882 = vsel %vm1427, %v5838, inf
        %5883 = vmin.xlane.f32.xlu0 %v5882
        %v5884 = vpop.xlane.xlu0 %5883
        %v5885 = vsel %vm1427, %v5839, inf
        %5886 = vmin.xlane.f32.xlu0 %v5885
        %v5887 = vpop.xlane.xlu0 %5886
        %vm5888 = vcmp.le.f32.partialorder %v5824, %v5842
        %vm5889 = vcmp.le.f32.partialorder %v5825, %v5845
        %vm5890 = vcmp.le.f32.partialorder %v5826, %v5848
        %vm5891 = vcmp.le.f32.partialorder %v5827, %v5851
        %vm5892 = vcmp.le.f32.partialorder %v5828, %v5854
        %vm5893 = vcmp.le.f32.partialorder %v5829, %v5857
        %vm5894 = vcmp.le.f32.partialorder %v5830, %v5860
        %vm5895 = vcmp.le.f32.partialorder %v5831, %v5863
        %vm5896 = vcmp.le.f32.partialorder %v5832, %v5866
        %vm5897 = vcmp.le.f32.partialorder %v5833, %v5869
        %vm5898 = vcmp.le.f32.partialorder %v5834, %v5872
        %vm5899 = vcmp.le.f32.partialorder %v5835, %v5875
        %vm5900 = vcmp.le.f32.partialorder %v5836, %v5878
        %vm5901 = vcmp.le.f32.partialorder %v5837, %v5881
        %vm5902 = vcmp.le.f32.partialorder %v5838, %v5884
        %vm5903 = vcmp.le.f32.partialorder %v5839, %v5887
        %v5904 = vsel %vm5888, %v1495, 16.0
        %v5905 = vsel %vm5889, %v1495, 16.0
        %v5906 = vsel %vm5890, %v1495, 16.0
        %v5907 = vsel %vm5891, %v1495, 16.0
        %v5908 = vsel %vm5892, %v1495, 16.0
        %v5909 = vsel %vm5893, %v1495, 16.0
        %v5910 = vsel %vm5894, %v1495, 16.0
        %v5911 = vsel %vm5895, %v1495, 16.0
        %v5912 = vsel %vm5896, %v1495, 16.0
        %v5913 = vsel %vm5897, %v1495, 16.0
        %v5914 = vsel %vm5898, %v1495, 16.0
        %v5915 = vsel %vm5899, %v1495, 16.0
        %v5916 = vsel %vm5900, %v1495, 16.0
        %v5917 = vsel %vm5901, %v1495, 16.0
        %v5918 = vsel %vm5902, %v1495, 16.0
        %v5919 = vsel %vm5903, %v1495, 16.0
        %v5920 = vsel %vm1427, %v5904, inf
        %5921 = vmin.xlane.f32.xlu0 %v5920
        %v5922 = vpop.xlane.xlu0 %5921
        %v5923 = vsel %vm1427, %v5905, inf
        %5924 = vmin.xlane.f32.xlu0 %v5923
        %v5925 = vpop.xlane.xlu0 %5924
        %v5926 = vsel %vm1427, %v5906, inf
        %5927 = vmin.xlane.f32.xlu0 %v5926
        %v5928 = vpop.xlane.xlu0 %5927
        %v5929 = vsel %vm1427, %v5907, inf
        %5930 = vmin.xlane.f32.xlu0 %v5929
        %v5931 = vpop.xlane.xlu0 %5930
        %v5932 = vsel %vm1427, %v5908, inf
        %5933 = vmin.xlane.f32.xlu0 %v5932
        %v5934 = vpop.xlane.xlu0 %5933
        %v5935 = vsel %vm1427, %v5909, inf
        %5936 = vmin.xlane.f32.xlu0 %v5935
        %v5937 = vpop.xlane.xlu0 %5936
        %v5938 = vsel %vm1427, %v5910, inf
        %5939 = vmin.xlane.f32.xlu0 %v5938
        %v5940 = vpop.xlane.xlu0 %5939
        %v5941 = vsel %vm1427, %v5911, inf
        %5942 = vmin.xlane.f32.xlu0 %v5941
        %v5943 = vpop.xlane.xlu0 %5942
        %v5944 = vsel %vm1427, %v5912, inf
        %5945 = vmin.xlane.f32.xlu0 %v5944
        %v5946 = vpop.xlane.xlu0 %5945
        %v5947 = vsel %vm1427, %v5913, inf
        %5948 = vmin.xlane.f32.xlu0 %v5947
        %v5949 = vpop.xlane.xlu0 %5948
        %v5950 = vsel %vm1427, %v5914, inf
        %5951 = vmin.xlane.f32.xlu0 %v5950
        %v5952 = vpop.xlane.xlu0 %5951
        %v5953 = vsel %vm1427, %v5915, inf
        %5954 = vmin.xlane.f32.xlu0 %v5953
        %v5955 = vpop.xlane.xlu0 %5954
        %v5956 = vsel %vm1427, %v5916, inf
        %5957 = vmin.xlane.f32.xlu0 %v5956
        %v5958 = vpop.xlane.xlu0 %5957
        %v5959 = vsel %vm1427, %v5917, inf
        %5960 = vmin.xlane.f32.xlu0 %v5959
        %v5961 = vpop.xlane.xlu0 %5960
        %v5962 = vsel %vm1427, %v5918, inf
        %5963 = vmin.xlane.f32.xlu0 %v5962
        %v5964 = vpop.xlane.xlu0 %5963
        %v5965 = vsel %vm1427, %v5919, inf
        %5966 = vmin.xlane.f32.xlu0 %v5965
        %v5967 = vpop.xlane.xlu0 %5966
        %vm5968 = vcmp.eq.f32.partialorder %v1495, %v5922
        %vm5969 = vcmp.eq.f32.partialorder %v1495, %v5925
        %vm5970 = vcmp.eq.f32.partialorder %v1495, %v5928
        %vm5971 = vcmp.eq.f32.partialorder %v1495, %v5931
        %vm5972 = vcmp.eq.f32.partialorder %v1495, %v5934
        %vm5973 = vcmp.eq.f32.partialorder %v1495, %v5937
        %vm5974 = vcmp.eq.f32.partialorder %v1495, %v5940
        %vm5975 = vcmp.eq.f32.partialorder %v1495, %v5943
        %vm5976 = vcmp.eq.f32.partialorder %v1495, %v5946
        %vm5977 = vcmp.eq.f32.partialorder %v1495, %v5949
        %vm5978 = vcmp.eq.f32.partialorder %v1495, %v5952
        %vm5979 = vcmp.eq.f32.partialorder %v1495, %v5955
        %vm5980 = vcmp.eq.f32.partialorder %v1495, %v5958
        %vm5981 = vcmp.eq.f32.partialorder %v1495, %v5961
        %vm5982 = vcmp.eq.f32.partialorder %v1495, %v5964
        %vm5983 = vcmp.eq.f32.partialorder %v1495, %v5967
        %v5984 = vsel %vm5968, 1, 0
        %v5985 = vsel %vm5969, 1, 0
        %v5986 = vsel %vm5970, 1, 0
        %v5987 = vsel %vm5971, 1, 0
        %v5988 = vsel %vm5972, 1, 0
        %v5989 = vsel %vm5973, 1, 0
        %v5990 = vsel %vm5974, 1, 0
        %v5991 = vsel %vm5975, 1, 0
        %v5992 = vsel %vm5976, 1, 0
        %v5993 = vsel %vm5977, 1, 0
        %v5994 = vsel %vm5978, 1, 0
        %v5995 = vsel %vm5979, 1, 0
        %v5996 = vsel %vm5980, 1, 0
        %v5997 = vsel %vm5981, 1, 0
        %v5998 = vsel %vm5982, 1, 0
        %v5999 = vsel %vm5983, 1, 0
        %v6000 = vcvt.s32.f32 %v5984
        %v6001 = vcvt.s32.f32 %v5985
        %v6002 = vcvt.s32.f32 %v5986
        %v6003 = vcvt.s32.f32 %v5987
        %v6004 = vcvt.s32.f32 %v5988
        %v6005 = vcvt.s32.f32 %v5989
        %v6006 = vcvt.s32.f32 %v5990
        %v6007 = vcvt.s32.f32 %v5991
        %v6008 = vcvt.s32.f32 %v5992
        %v6009 = vcvt.s32.f32 %v5993
        %v6010 = vcvt.s32.f32 %v5994
        %v6011 = vcvt.s32.f32 %v5995
        %v6012 = vcvt.s32.f32 %v5996
        %v6013 = vcvt.s32.f32 %v5997
        %v6014 = vcvt.s32.f32 %v5998
        %v6015 = vcvt.s32.f32 %v5999
        %v6017 = vsel %vm1427, %v6000, 0
        %v6020 = vsel %vm1427, %v6001, 0
        %v6023 = vsel %vm1427, %v6002, 0
        %v6026 = vsel %vm1427, %v6003, 0
        %v6029 = vsel %vm1427, %v6004, 0
        %v6032 = vsel %vm1427, %v6005, 0
        %v6035 = vsel %vm1427, %v6006, 0
        %v6038 = vsel %vm1427, %v6007, 0
        %v6041 = vsel %vm1427, %v6008, 0
        %v6044 = vsel %vm1427, %v6009, 0
        %v6047 = vsel %vm1427, %v6010, 0
        %v6050 = vsel %vm1427, %v6011, 0
        %v6053 = vsel %vm1427, %v6012, 0
        %v6056 = vsel %vm1427, %v6013, 0
        %v6059 = vsel %vm1427, %v6014, 0
        %v6062 = vsel %vm1427, %v6015, 0
        %6064 = vmatprep.subr.mxu0 0.0
        %v6065 = vand.u32 %v6017, 4294901760
        %6066 = vmatpush1.xpose.msra.mxu0 %v6065
        %6067 = vmatprep.subr.mxu0 0.0
        %v6068 = vand.u32 %v6020, 4294901760
        %6069 = vmatpush1.xpose.msra.mxu0 %v6068
        %6070 = vmatprep.subr.mxu0 0.0
        %v6071 = vand.u32 %v6023, 4294901760
        %6072 = vmatpush1.xpose.msra.mxu0 %v6071
        %6073 = vmatprep.subr.mxu0 0.0
        %v6074 = vand.u32 %v6026, 4294901760
        %6075 = vmatpush1.xpose.msra.mxu0 %v6074
        %6076 = vmatprep.subr.mxu0 0.0
        %v6077 = vand.u32 %v6029, 4294901760
        %6078 = vmatpush1.xpose.msra.mxu0 %v6077
        %6079 = vmatprep.subr.mxu0 0.0
        %v6080 = vand.u32 %v6032, 4294901760
        %6081 = vmatpush1.xpose.msra.mxu0 %v6080
        %6082 = vmatprep.subr.mxu0 0.0
        %v6083 = vand.u32 %v6035, 4294901760
        %6084 = vmatpush1.xpose.msra.mxu0 %v6083
        %6085 = vmatprep.subr.mxu0 0.0
        %v6086 = vand.u32 %v6038, 4294901760
        %6087 = vmatpush1.xpose.msra.mxu0 %v6086
        %6088 = vmatprep.subr.mxu0 0.0
        %v6089 = vand.u32 %v6041, 4294901760
        %6090 = vmatpush1.xpose.msra.mxu0 %v6089
        %6091 = vmatprep.subr.mxu0 0.0
        %v6092 = vand.u32 %v6044, 4294901760
        %6093 = vmatpush1.xpose.msra.mxu0 %v6092
        %6094 = vmatprep.subr.mxu0 0.0
        %v6095 = vand.u32 %v6047, 4294901760
        %6096 = vmatpush1.xpose.msra.mxu0 %v6095
        %6097 = vmatprep.subr.mxu0 0.0
        %v6098 = vand.u32 %v6050, 4294901760
        %6099 = vmatpush1.xpose.msra.mxu0 %v6098
        %6100 = vmatprep.subr.mxu0 0.0
        %v6101 = vand.u32 %v6053, 4294901760
        %6102 = vmatpush1.xpose.msra.mxu0 %v6101
        %6103 = vmatprep.subr.mxu0 0.0
        %v6104 = vand.u32 %v6056, 4294901760
        %6105 = vmatpush1.xpose.msra.mxu0 %v6104
        %6106 = vmatprep.subr.mxu0 0.0
        %v6107 = vand.u32 %v6059, 4294901760
        %6108 = vmatpush1.xpose.msra.mxu0 %v6107
        %6109 = vmatprep.subr.mxu0 0.0
        %v6110 = vand.u32 %v6062, 4294901760
        %6111 = vmatpush1.xpose.msra.mxu0 %v6110
        %6112 = vmatprep.subr.mxu0 0.0
        %6113 = vmatpush1.xpose.msra.mxu0 0.0
        %6114 = vmatprep.subr.mxu0 0.0
        %6115 = vmatpush1.xpose.msra.mxu0 0.0
        %6116 = vmatprep.subr.mxu0 0.0
        %6117 = vmatpush1.xpose.msra.mxu0 0.0
        %6118 = vmatprep.subr.mxu0 0.0
        %6119 = vmatpush1.xpose.msra.mxu0 0.0
        %6120 = vmatprep.subr.mxu0 0.0
        %6121 = vmatpush1.xpose.msra.mxu0 0.0
        %6122 = vmatprep.subr.mxu0 0.0
        %6123 = vmatpush1.xpose.msra.mxu0 0.0
        %6124 = vmatprep.subr.mxu0 0.0
        %6125 = vmatpush1.xpose.msra.mxu0 0.0
        %6126 = vmatprep.subr.mxu0 0.0
        %6127 = vmatpush1.xpose.msra.mxu0 0.0
        %6128 = vmatprep.subr.mxu0 0.0
        %6129 = vmatpush1.xpose.msra.mxu0 0.0
        %6130 = vmatprep.subr.mxu0 0.0
        %6131 = vmatpush1.xpose.msra.mxu0 0.0
        %6132 = vmatprep.subr.mxu0 0.0
        %6133 = vmatpush1.xpose.msra.mxu0 0.0
        %6134 = vmatprep.subr.mxu0 0.0
        %6135 = vmatpush1.xpose.msra.mxu0 0.0
        %6136 = vmatprep.subr.mxu0 0.0
        %6137 = vmatpush1.xpose.msra.mxu0 0.0
        %6138 = vmatprep.subr.mxu0 0.0
        %6139 = vmatpush1.xpose.msra.mxu0 0.0
        %6140 = vmatprep.subr.mxu0 0.0
        %6141 = vmatpush1.xpose.msra.mxu0 0.0
        %6142 = vmatprep.subr.mxu0 0.0
        %6143 = vmatpush1.xpose.msra.mxu0 0.0
        %6144 = vmatprep.mubr.f32.mxu0 0.0
        %v6145 = vand.u32 %v1609, 4294901760
        %v6146 = vsub.f32 %v1609, %v6145
        %v6147 = vand.u32 %v6146, 4294901760
        %v6148 = vsub.f32 %v6146, %v6147
        %v6149 = vand.u32 %v6148, 4294901760
        %6150 = vmatmul.mubr.f32.gmra.mrb[0].mxu0 %v6149
        %v6151 = vpop.f32.mrb[0].mxu0
        %v6152 = vadd.f32 0.0, %v6151
        %v6153 = vpop.f32.mrb[0].mxu0
        %6154 = vdwg.mxu0
        %6155 = vmatprep.subr.mxu0 0.0
        %v6156 = vand.u32 %v6017, 4294901760
        %v6157 = vsub.f32 %v6017, %v6156
        %v6158 = vand.u32 %v6157, 4294901760
        %v6159 = vsub.f32 %v6157, %v6158
        %v6160 = vand.u32 %v6159, 4294901760
        %6161 = vmatpush1.xpose.msra.mxu0 %v6160
        %6162 = vmatprep.subr.mxu0 0.0
        %v6163 = vand.u32 %v6020, 4294901760
        %v6164 = vsub.f32 %v6020, %v6163
        %v6165 = vand.u32 %v6164, 4294901760
        %v6166 = vsub.f32 %v6164, %v6165
        %v6167 = vand.u32 %v6166, 4294901760
        %6168 = vmatpush1.xpose.msra.mxu0 %v6167
        %6169 = vmatprep.subr.mxu0 0.0
        %v6170 = vand.u32 %v6023, 4294901760
        %v6171 = vsub.f32 %v6023, %v6170
        %v6172 = vand.u32 %v6171, 4294901760
        %v6173 = vsub.f32 %v6171, %v6172
        %v6174 = vand.u32 %v6173, 4294901760
        %6175 = vmatpush1.xpose.msra.mxu0 %v6174
        %6176 = vmatprep.subr.mxu0 0.0
        %v6177 = vand.u32 %v6026, 4294901760
        %v6178 = vsub.f32 %v6026, %v6177
        %v6179 = vand.u32 %v6178, 4294901760
        %v6180 = vsub.f32 %v6178, %v6179
        %v6181 = vand.u32 %v6180, 4294901760
        %6182 = vmatpush1.xpose.msra.mxu0 %v6181
        %6183 = vmatprep.subr.mxu0 0.0
        %v6184 = vand.u32 %v6029, 4294901760
        %v6185 = vsub.f32 %v6029, %v6184
        %v6186 = vand.u32 %v6185, 4294901760
        %v6187 = vsub.f32 %v6185, %v6186
        %v6188 = vand.u32 %v6187, 4294901760
        %6189 = vmatpush1.xpose.msra.mxu0 %v6188
        %6190 = vmatprep.subr.mxu0 0.0
        %v6191 = vand.u32 %v6032, 4294901760
        %v6192 = vsub.f32 %v6032, %v6191
        %v6193 = vand.u32 %v6192, 4294901760
        %v6194 = vsub.f32 %v6192, %v6193
        %v6195 = vand.u32 %v6194, 4294901760
        %6196 = vmatpush1.xpose.msra.mxu0 %v6195
        %6197 = vmatprep.subr.mxu0 0.0
        %v6198 = vand.u32 %v6035, 4294901760
        %v6199 = vsub.f32 %v6035, %v6198
        %v6200 = vand.u32 %v6199, 4294901760
        %v6201 = vsub.f32 %v6199, %v6200
        %v6202 = vand.u32 %v6201, 4294901760
        %6203 = vmatpush1.xpose.msra.mxu0 %v6202
        %6204 = vmatprep.subr.mxu0 0.0
        %v6205 = vand.u32 %v6038, 4294901760
        %v6206 = vsub.f32 %v6038, %v6205
        %v6207 = vand.u32 %v6206, 4294901760
        %v6208 = vsub.f32 %v6206, %v6207
        %v6209 = vand.u32 %v6208, 4294901760
        %6210 = vmatpush1.xpose.msra.mxu0 %v6209
        %6211 = vmatprep.subr.mxu0 0.0
        %v6212 = vand.u32 %v6041, 4294901760
        %v6213 = vsub.f32 %v6041, %v6212
        %v6214 = vand.u32 %v6213, 4294901760
        %v6215 = vsub.f32 %v6213, %v6214
        %v6216 = vand.u32 %v6215, 4294901760
        %6217 = vmatpush1.xpose.msra.mxu0 %v6216
        %6218 = vmatprep.subr.mxu0 0.0
        %v6219 = vand.u32 %v6044, 4294901760
        %v6220 = vsub.f32 %v6044, %v6219
        %v6221 = vand.u32 %v6220, 4294901760
        %v6222 = vsub.f32 %v6220, %v6221
        %v6223 = vand.u32 %v6222, 4294901760
        %6224 = vmatpush1.xpose.msra.mxu0 %v6223
        %6225 = vmatprep.subr.mxu0 0.0
        %v6226 = vand.u32 %v6047, 4294901760
        %v6227 = vsub.f32 %v6047, %v6226
        %v6228 = vand.u32 %v6227, 4294901760
        %v6229 = vsub.f32 %v6227, %v6228
        %v6230 = vand.u32 %v6229, 4294901760
        %6231 = vmatpush1.xpose.msra.mxu0 %v6230
        %6232 = vmatprep.subr.mxu0 0.0
        %v6233 = vand.u32 %v6050, 4294901760
        %v6234 = vsub.f32 %v6050, %v6233
        %v6235 = vand.u32 %v6234, 4294901760
        %v6236 = vsub.f32 %v6234, %v6235
        %v6237 = vand.u32 %v6236, 4294901760
        %6238 = vmatpush1.xpose.msra.mxu0 %v6237
        %6239 = vmatprep.subr.mxu0 0.0
        %v6240 = vand.u32 %v6053, 4294901760
        %v6241 = vsub.f32 %v6053, %v6240
        %v6242 = vand.u32 %v6241, 4294901760
        %v6243 = vsub.f32 %v6241, %v6242
        %v6244 = vand.u32 %v6243, 4294901760
        %6245 = vmatpush1.xpose.msra.mxu0 %v6244
        %6246 = vmatprep.subr.mxu0 0.0
        %v6247 = vand.u32 %v6056, 4294901760
        %v6248 = vsub.f32 %v6056, %v6247
        %v6249 = vand.u32 %v6248, 4294901760
        %v6250 = vsub.f32 %v6248, %v6249
        %v6251 = vand.u32 %v6250, 4294901760
        %6252 = vmatpush1.xpose.msra.mxu0 %v6251
        %6253 = vmatprep.subr.mxu0 0.0
        %v6254 = vand.u32 %v6059, 4294901760
        %v6255 = vsub.f32 %v6059, %v6254
        %v6256 = vand.u32 %v6255, 4294901760
        %v6257 = vsub.f32 %v6255, %v6256
        %v6258 = vand.u32 %v6257, 4294901760
        %6259 = vmatpush1.xpose.msra.mxu0 %v6258
        %6260 = vmatprep.subr.mxu0 0.0
        %v6261 = vand.u32 %v6062, 4294901760
        %v6262 = vsub.f32 %v6062, %v6261
        %v6263 = vand.u32 %v6262, 4294901760
        %v6264 = vsub.f32 %v6262, %v6263
        %v6265 = vand.u32 %v6264, 4294901760
        %6266 = vmatpush1.xpose.msra.mxu0 %v6265
        %6267 = vmatprep.subr.mxu0 0.0
        %6268 = vmatpush1.xpose.msra.mxu0 0.0
        %6269 = vmatprep.subr.mxu0 0.0
        %6270 = vmatpush1.xpose.msra.mxu0 0.0
        %6271 = vmatprep.subr.mxu0 0.0
        %6272 = vmatpush1.xpose.msra.mxu0 0.0
        %6273 = vmatprep.subr.mxu0 0.0
        %6274 = vmatpush1.xpose.msra.mxu0 0.0
        %6275 = vmatprep.subr.mxu0 0.0
        %6276 = vmatpush1.xpose.msra.mxu0 0.0
        %6277 = vmatprep.subr.mxu0 0.0
        %6278 = vmatpush1.xpose.msra.mxu0 0.0
        %6279 = vmatprep.subr.mxu0 0.0
        %6280 = vmatpush1.xpose.msra.mxu0 0.0
        %6281 = vmatprep.subr.mxu0 0.0
        %6282 = vmatpush1.xpose.msra.mxu0 0.0
        %6283 = vmatprep.subr.mxu0 0.0
        %6284 = vmatpush1.xpose.msra.mxu0 0.0
        %6285 = vmatprep.subr.mxu0 0.0
        %6286 = vmatpush1.xpose.msra.mxu0 0.0
        %6287 = vmatprep.subr.mxu0 0.0
        %6288 = vmatpush1.xpose.msra.mxu0 0.0
        %6289 = vmatprep.subr.mxu0 0.0
        %6290 = vmatpush1.xpose.msra.mxu0 0.0
        %6291 = vmatprep.subr.mxu0 0.0
        %6292 = vmatpush1.xpose.msra.mxu0 0.0
        %6293 = vmatprep.subr.mxu0 0.0
        %6294 = vmatpush1.xpose.msra.mxu0 0.0
        %6295 = vmatprep.subr.mxu0 0.0
        %6296 = vmatpush1.xpose.msra.mxu0 0.0
        %6297 = vmatprep.subr.mxu0 0.0
        %6298 = vmatpush1.xpose.msra.mxu0 0.0
        %6299 = vmatprep.mubr.f32.mxu0 0.0
        %v6300 = vand.u32 %v1609, 4294901760
        %6301 = vmatmul.mubr.f32.gmra.mrb[0].mxu0 %v6300
        %v6302 = vpop.f32.mrb[0].mxu0
        %v6303 = vadd.f32 %v6152, %v6302
        %v6304 = vpop.f32.mrb[0].mxu0
        %6305 = vdwg.mxu0
        %6306 = vmatprep.subr.mxu0 0.0
        %v6307 = vand.u32 %v6017, 4294901760
        %v6308 = vsub.f32 %v6017, %v6307
        %6309 = vmatpush1.xpose.msra.mxu0 %v6308
        %6310 = vmatprep.subr.mxu0 0.0
        %v6311 = vand.u32 %v6020, 4294901760
        %v6312 = vsub.f32 %v6020, %v6311
        %6313 = vmatpush1.xpose.msra.mxu0 %v6312
        %6314 = vmatprep.subr.mxu0 0.0
        %v6315 = vand.u32 %v6023, 4294901760
        %v6316 = vsub.f32 %v6023, %v6315
        %6317 = vmatpush1.xpose.msra.mxu0 %v6316
        %6318 = vmatprep.subr.mxu0 0.0
        %v6319 = vand.u32 %v6026, 4294901760
        %v6320 = vsub.f32 %v6026, %v6319
        %6321 = vmatpush1.xpose.msra.mxu0 %v6320
        %6322 = vmatprep.subr.mxu0 0.0
        %v6323 = vand.u32 %v6029, 4294901760
        %v6324 = vsub.f32 %v6029, %v6323
        %6325 = vmatpush1.xpose.msra.mxu0 %v6324
        %6326 = vmatprep.subr.mxu0 0.0
        %v6327 = vand.u32 %v6032, 4294901760
        %v6328 = vsub.f32 %v6032, %v6327
        %6329 = vmatpush1.xpose.msra.mxu0 %v6328
        %6330 = vmatprep.subr.mxu0 0.0
        %v6331 = vand.u32 %v6035, 4294901760
        %v6332 = vsub.f32 %v6035, %v6331
        %6333 = vmatpush1.xpose.msra.mxu0 %v6332
        %6334 = vmatprep.subr.mxu0 0.0
        %v6335 = vand.u32 %v6038, 4294901760
        %v6336 = vsub.f32 %v6038, %v6335
        %6337 = vmatpush1.xpose.msra.mxu0 %v6336
        %6338 = vmatprep.subr.mxu0 0.0
        %v6339 = vand.u32 %v6041, 4294901760
        %v6340 = vsub.f32 %v6041, %v6339
        %6341 = vmatpush1.xpose.msra.mxu0 %v6340
        %6342 = vmatprep.subr.mxu0 0.0
        %v6343 = vand.u32 %v6044, 4294901760
        %v6344 = vsub.f32 %v6044, %v6343
        %6345 = vmatpush1.xpose.msra.mxu0 %v6344
        %6346 = vmatprep.subr.mxu0 0.0
        %v6347 = vand.u32 %v6047, 4294901760
        %v6348 = vsub.f32 %v6047, %v6347
        %6349 = vmatpush1.xpose.msra.mxu0 %v6348
        %6350 = vmatprep.subr.mxu0 0.0
        %v6351 = vand.u32 %v6050, 4294901760
        %v6352 = vsub.f32 %v6050, %v6351
        %6353 = vmatpush1.xpose.msra.mxu0 %v6352
        %6354 = vmatprep.subr.mxu0 0.0
        %v6355 = vand.u32 %v6053, 4294901760
        %v6356 = vsub.f32 %v6053, %v6355
        %6357 = vmatpush1.xpose.msra.mxu0 %v6356
        %6358 = vmatprep.subr.mxu0 0.0
        %v6359 = vand.u32 %v6056, 4294901760
        %v6360 = vsub.f32 %v6056, %v6359
        %6361 = vmatpush1.xpose.msra.mxu0 %v6360
        %6362 = vmatprep.subr.mxu0 0.0
        %v6363 = vand.u32 %v6059, 4294901760
        %v6364 = vsub.f32 %v6059, %v6363
        %6365 = vmatpush1.xpose.msra.mxu0 %v6364
        %6366 = vmatprep.subr.mxu0 0.0
        %v6367 = vand.u32 %v6062, 4294901760
        %v6368 = vsub.f32 %v6062, %v6367
        %6369 = vmatpush1.xpose.msra.mxu0 %v6368
        %6370 = vmatprep.subr.mxu0 0.0
        %6371 = vmatpush1.xpose.msra.mxu0 0.0
        %6372 = vmatprep.subr.mxu0 0.0
        %6373 = vmatpush1.xpose.msra.mxu0 0.0
        %6374 = vmatprep.subr.mxu0 0.0
        %6375 = vmatpush1.xpose.msra.mxu0 0.0
        %6376 = vmatprep.subr.mxu0 0.0
        %6377 = vmatpush1.xpose.msra.mxu0 0.0
        %6378 = vmatprep.subr.mxu0 0.0
        %6379 = vmatpush1.xpose.msra.mxu0 0.0
        %6380 = vmatprep.subr.mxu0 0.0
        %6381 = vmatpush1.xpose.msra.mxu0 0.0
        %6382 = vmatprep.subr.mxu0 0.0
        %6383 = vmatpush1.xpose.msra.mxu0 0.0
        %6384 = vmatprep.subr.mxu0 0.0
        %6385 = vmatpush1.xpose.msra.mxu0 0.0
        %6386 = vmatprep.subr.mxu0 0.0
        %6387 = vmatpush1.xpose.msra.mxu0 0.0
        %6388 = vmatprep.subr.mxu0 0.0
        %6389 = vmatpush1.xpose.msra.mxu0 0.0
        %6390 = vmatprep.subr.mxu0 0.0
        %6391 = vmatpush1.xpose.msra.mxu0 0.0
        %6392 = vmatprep.subr.mxu0 0.0
        %6393 = vmatpush1.xpose.msra.mxu0 0.0
        %6394 = vmatprep.subr.mxu0 0.0
        %6395 = vmatpush1.xpose.msra.mxu0 0.0
        %6396 = vmatprep.subr.mxu0 0.0
        %6397 = vmatpush1.xpose.msra.mxu0 0.0
        %6398 = vmatprep.subr.mxu0 0.0
        %6399 = vmatpush1.xpose.msra.mxu0 0.0
        %6400 = vmatprep.subr.mxu0 0.0
        %6401 = vmatpush1.xpose.msra.mxu0 0.0
        %6402 = vmatprep.mubr.f32.mxu0 0.0
        %v6403 = vand.u32 %v1609, 4294901760
        %v6404 = vsub.f32 %v1609, %v6403
        %6405 = vmatmul.mubr.f32.gmra.mrb[0].mxu0 %v6404
        %v6406 = vpop.f32.mrb[0].mxu0
        %v6407 = vadd.f32 %v6303, %v6406
        %v6408 = vpop.f32.mrb[0].mxu0
        %6409 = vdwg.mxu0
        %6410 = vmatprep.subr.mxu0 0.0
        %v6411 = vand.u32 %v6017, 4294901760
        %6412 = vmatpush1.xpose.msra.mxu0 %v6411
        %6413 = vmatprep.subr.mxu0 0.0
        %v6414 = vand.u32 %v6020, 4294901760
        %6415 = vmatpush1.xpose.msra.mxu0 %v6414
        %6416 = vmatprep.subr.mxu0 0.0
        %v6417 = vand.u32 %v6023, 4294901760
        %6418 = vmatpush1.xpose.msra.mxu0 %v6417
        %6419 = vmatprep.subr.mxu0 0.0
        %v6420 = vand.u32 %v6026, 4294901760
        %6421 = vmatpush1.xpose.msra.mxu0 %v6420
        %6422 = vmatprep.subr.mxu0 0.0
        %v6423 = vand.u32 %v6029, 4294901760
        %6424 = vmatpush1.xpose.msra.mxu0 %v6423
        %6425 = vmatprep.subr.mxu0 0.0
        %v6426 = vand.u32 %v6032, 4294901760
        %6427 = vmatpush1.xpose.msra.mxu0 %v6426
        %6428 = vmatprep.subr.mxu0 0.0
        %v6429 = vand.u32 %v6035, 4294901760
        %6430 = vmatpush1.xpose.msra.mxu0 %v6429
        %6431 = vmatprep.subr.mxu0 0.0
        %v6432 = vand.u32 %v6038, 4294901760
        %6433 = vmatpush1.xpose.msra.mxu0 %v6432
        %6434 = vmatprep.subr.mxu0 0.0
        %v6435 = vand.u32 %v6041, 4294901760
        %6436 = vmatpush1.xpose.msra.mxu0 %v6435
        %6437 = vmatprep.subr.mxu0 0.0
        %v6438 = vand.u32 %v6044, 4294901760
        %6439 = vmatpush1.xpose.msra.mxu0 %v6438
        %6440 = vmatprep.subr.mxu0 0.0
        %v6441 = vand.u32 %v6047, 4294901760
        %6442 = vmatpush1.xpose.msra.mxu0 %v6441
        %6443 = vmatprep.subr.mxu0 0.0
        %v6444 = vand.u32 %v6050, 4294901760
        %6445 = vmatpush1.xpose.msra.mxu0 %v6444
        %6446 = vmatprep.subr.mxu0 0.0
        %v6447 = vand.u32 %v6053, 4294901760
        %6448 = vmatpush1.xpose.msra.mxu0 %v6447
        %6449 = vmatprep.subr.mxu0 0.0
        %v6450 = vand.u32 %v6056, 4294901760
        %6451 = vmatpush1.xpose.msra.mxu0 %v6450
        %6452 = vmatprep.subr.mxu0 0.0
        %v6453 = vand.u32 %v6059, 4294901760
        %6454 = vmatpush1.xpose.msra.mxu0 %v6453
        %6455 = vmatprep.subr.mxu0 0.0
        %v6456 = vand.u32 %v6062, 4294901760
        %6457 = vmatpush1.xpose.msra.mxu0 %v6456
        %6458 = vmatprep.subr.mxu0 0.0
        %6459 = vmatpush1.xpose.msra.mxu0 0.0
        %6460 = vmatprep.subr.mxu0 0.0
        %6461 = vmatpush1.xpose.msra.mxu0 0.0
        %6462 = vmatprep.subr.mxu0 0.0
        %6463 = vmatpush1.xpose.msra.mxu0 0.0
        %6464 = vmatprep.subr.mxu0 0.0
        %6465 = vmatpush1.xpose.msra.mxu0 0.0
        %6466 = vmatprep.subr.mxu0 0.0
        %6467 = vmatpush1.xpose.msra.mxu0 0.0
        %6468 = vmatprep.subr.mxu0 0.0
        %6469 = vmatpush1.xpose.msra.mxu0 0.0
        %6470 = vmatprep.subr.mxu0 0.0
        %6471 = vmatpush1.xpose.msra.mxu0 0.0
        %6472 = vmatprep.subr.mxu0 0.0
        %6473 = vmatpush1.xpose.msra.mxu0 0.0
        %6474 = vmatprep.subr.mxu0 0.0
        %6475 = vmatpush1.xpose.msra.mxu0 0.0
        %6476 = vmatprep.subr.mxu0 0.0
        %6477 = vmatpush1.xpose.msra.mxu0 0.0
        %6478 = vmatprep.subr.mxu0 0.0
        %6479 = vmatpush1.xpose.msra.mxu0 0.0
        %6480 = vmatprep.subr.mxu0 0.0
        %6481 = vmatpush1.xpose.msra.mxu0 0.0
        %6482 = vmatprep.subr.mxu0 0.0
        %6483 = vmatpush1.xpose.msra.mxu0 0.0
        %6484 = vmatprep.subr.mxu0 0.0
        %6485 = vmatpush1.xpose.msra.mxu0 0.0
        %6486 = vmatprep.subr.mxu0 0.0
        %6487 = vmatpush1.xpose.msra.mxu0 0.0
        %6488 = vmatprep.subr.mxu0 0.0
        %6489 = vmatpush1.xpose.msra.mxu0 0.0
        %6490 = vmatprep.mubr.f32.mxu0 0.0
        %v6491 = vand.u32 %v1609, 4294901760
        %v6492 = vsub.f32 %v1609, %v6491
        %v6493 = vand.u32 %v6492, 4294901760
        %6494 = vmatmul.mubr.f32.gmra.mrb[0].mxu0 %v6493
        %v6495 = vpop.f32.mrb[0].mxu0
        %v6496 = vadd.f32 %v6407, %v6495
        %v6497 = vpop.f32.mrb[0].mxu0
        %6498 = vdwg.mxu0
        %6499 = vmatprep.subr.mxu0 0.0
        %v6500 = vand.u32 %v6017, 4294901760
        %v6501 = vsub.f32 %v6017, %v6500
        %v6502 = vand.u32 %v6501, 4294901760
        %6503 = vmatpush1.xpose.msra.mxu0 %v6502
        %6504 = vmatprep.subr.mxu0 0.0
        %v6505 = vand.u32 %v6020, 4294901760
        %v6506 = vsub.f32 %v6020, %v6505
        %v6507 = vand.u32 %v6506, 4294901760
        %6508 = vmatpush1.xpose.msra.mxu0 %v6507
        %6509 = vmatprep.subr.mxu0 0.0
        %v6510 = vand.u32 %v6023, 4294901760
        %v6511 = vsub.f32 %v6023, %v6510
        %v6512 = vand.u32 %v6511, 4294901760
        %6513 = vmatpush1.xpose.msra.mxu0 %v6512
        %6514 = vmatprep.subr.mxu0 0.0
        %v6515 = vand.u32 %v6026, 4294901760
        %v6516 = vsub.f32 %v6026, %v6515
        %v6517 = vand.u32 %v6516, 4294901760
        %6518 = vmatpush1.xpose.msra.mxu0 %v6517
        %6519 = vmatprep.subr.mxu0 0.0
        %v6520 = vand.u32 %v6029, 4294901760
        %v6521 = vsub.f32 %v6029, %v6520
        %v6522 = vand.u32 %v6521, 4294901760
        %6523 = vmatpush1.xpose.msra.mxu0 %v6522
        %6524 = vmatprep.subr.mxu0 0.0
        %v6525 = vand.u32 %v6032, 4294901760
        %v6526 = vsub.f32 %v6032, %v6525
        %v6527 = vand.u32 %v6526, 4294901760
        %6528 = vmatpush1.xpose.msra.mxu0 %v6527
        %6529 = vmatprep.subr.mxu0 0.0
        %v6530 = vand.u32 %v6035, 4294901760
        %v6531 = vsub.f32 %v6035, %v6530
        %v6532 = vand.u32 %v6531, 4294901760
        %6533 = vmatpush1.xpose.msra.mxu0 %v6532
        %6534 = vmatprep.subr.mxu0 0.0
        %v6535 = vand.u32 %v6038, 4294901760
        %v6536 = vsub.f32 %v6038, %v6535
        %v6537 = vand.u32 %v6536, 4294901760
        %6538 = vmatpush1.xpose.msra.mxu0 %v6537
        %6539 = vmatprep.subr.mxu0 0.0
        %v6540 = vand.u32 %v6041, 4294901760
        %v6541 = vsub.f32 %v6041, %v6540
        %v6542 = vand.u32 %v6541, 4294901760
        %6543 = vmatpush1.xpose.msra.mxu0 %v6542
        %6544 = vmatprep.subr.mxu0 0.0
        %v6545 = vand.u32 %v6044, 4294901760
        %v6546 = vsub.f32 %v6044, %v6545
        %v6547 = vand.u32 %v6546, 4294901760
        %6548 = vmatpush1.xpose.msra.mxu0 %v6547
        %6549 = vmatprep.subr.mxu0 0.0
        %v6550 = vand.u32 %v6047, 4294901760
        %v6551 = vsub.f32 %v6047, %v6550
        %v6552 = vand.u32 %v6551, 4294901760
        %6553 = vmatpush1.xpose.msra.mxu0 %v6552
        %6554 = vmatprep.subr.mxu0 0.0
        %v6555 = vand.u32 %v6050, 4294901760
        %v6556 = vsub.f32 %v6050, %v6555
        %v6557 = vand.u32 %v6556, 4294901760
        %6558 = vmatpush1.xpose.msra.mxu0 %v6557
        %6559 = vmatprep.subr.mxu0 0.0
        %v6560 = vand.u32 %v6053, 4294901760
        %v6561 = vsub.f32 %v6053, %v6560
        %v6562 = vand.u32 %v6561, 4294901760
        %6563 = vmatpush1.xpose.msra.mxu0 %v6562
        %6564 = vmatprep.subr.mxu0 0.0
        %v6565 = vand.u32 %v6056, 4294901760
        %v6566 = vsub.f32 %v6056, %v6565
        %v6567 = vand.u32 %v6566, 4294901760
        %6568 = vmatpush1.xpose.msra.mxu0 %v6567
        %6569 = vmatprep.subr.mxu0 0.0
        %v6570 = vand.u32 %v6059, 4294901760
        %v6571 = vsub.f32 %v6059, %v6570
        %v6572 = vand.u32 %v6571, 4294901760
        %6573 = vmatpush1.xpose.msra.mxu0 %v6572
        %6574 = vmatprep.subr.mxu0 0.0
        %v6575 = vand.u32 %v6062, 4294901760
        %v6576 = vsub.f32 %v6062, %v6575
        %v6577 = vand.u32 %v6576, 4294901760
        %6578 = vmatpush1.xpose.msra.mxu0 %v6577
        %6579 = vmatprep.subr.mxu0 0.0
        %6580 = vmatpush1.xpose.msra.mxu0 0.0
        %6581 = vmatprep.subr.mxu0 0.0
        %6582 = vmatpush1.xpose.msra.mxu0 0.0
        %6583 = vmatprep.subr.mxu0 0.0
        %6584 = vmatpush1.xpose.msra.mxu0 0.0
        %6585 = vmatprep.subr.mxu0 0.0
        %6586 = vmatpush1.xpose.msra.mxu0 0.0
        %6587 = vmatprep.subr.mxu0 0.0
        %6588 = vmatpush1.xpose.msra.mxu0 0.0
        %6589 = vmatprep.subr.mxu0 0.0
        %6590 = vmatpush1.xpose.msra.mxu0 0.0
        %6591 = vmatprep.subr.mxu0 0.0
        %6592 = vmatpush1.xpose.msra.mxu0 0.0
        %6593 = vmatprep.subr.mxu0 0.0
        %6594 = vmatpush1.xpose.msra.mxu0 0.0
        %6595 = vmatprep.subr.mxu0 0.0
        %6596 = vmatpush1.xpose.msra.mxu0 0.0
        %6597 = vmatprep.subr.mxu0 0.0
        %6598 = vmatpush1.xpose.msra.mxu0 0.0
        %6599 = vmatprep.subr.mxu0 0.0
        %6600 = vmatpush1.xpose.msra.mxu0 0.0
        %6601 = vmatprep.subr.mxu0 0.0
        %6602 = vmatpush1.xpose.msra.mxu0 0.0
        %6603 = vmatprep.subr.mxu0 0.0
        %6604 = vmatpush1.xpose.msra.mxu0 0.0
        %6605 = vmatprep.subr.mxu0 0.0
        %6606 = vmatpush1.xpose.msra.mxu0 0.0
        %6607 = vmatprep.subr.mxu0 0.0
        %6608 = vmatpush1.xpose.msra.mxu0 0.0
        %6609 = vmatprep.subr.mxu0 0.0
        %6610 = vmatpush1.xpose.msra.mxu0 0.0
        %6611 = vmatprep.mubr.f32.mxu0 0.0
        %v6612 = vand.u32 %v1609, 4294901760
        %6613 = vmatmul.mubr.f32.gmra.mrb[0].mxu0 %v6612
        %v6614 = vpop.f32.mrb[0].mxu0
        %v6615 = vadd.f32 %v6496, %v6614
        %v6616 = vpop.f32.mrb[0].mxu0
        %6617 = vdwg.mxu0
        %6618 = vmatprep.subr.mxu0 0.0
        %v6619 = vand.u32 %v6017, 4294901760
        %6620 = vmatpush1.xpose.msra.mxu0 %v6619
        %6621 = vmatprep.subr.mxu0 0.0
        %v6622 = vand.u32 %v6020, 4294901760
        %6623 = vmatpush1.xpose.msra.mxu0 %v6622
        %6624 = vmatprep.subr.mxu0 0.0
        %v6625 = vand.u32 %v6023, 4294901760
        %6626 = vmatpush1.xpose.msra.mxu0 %v6625
        %6627 = vmatprep.subr.mxu0 0.0
        %v6628 = vand.u32 %v6026, 4294901760
        %6629 = vmatpush1.xpose.msra.mxu0 %v6628
        %6630 = vmatprep.subr.mxu0 0.0
        %v6631 = vand.u32 %v6029, 4294901760
        %6632 = vmatpush1.xpose.msra.mxu0 %v6631
        %6633 = vmatprep.subr.mxu0 0.0
        %v6634 = vand.u32 %v6032, 4294901760
        %6635 = vmatpush1.xpose.msra.mxu0 %v6634
        %6636 = vmatprep.subr.mxu0 0.0
        %v6637 = vand.u32 %v6035, 4294901760
        %6638 = vmatpush1.xpose.msra.mxu0 %v6637
        %6639 = vmatprep.subr.mxu0 0.0
        %v6640 = vand.u32 %v6038, 4294901760
        %6641 = vmatpush1.xpose.msra.mxu0 %v6640
        %6642 = vmatprep.subr.mxu0 0.0
        %v6643 = vand.u32 %v6041, 4294901760
        %6644 = vmatpush1.xpose.msra.mxu0 %v6643
        %6645 = vmatprep.subr.mxu0 0.0
        %v6646 = vand.u32 %v6044, 4294901760
        %6647 = vmatpush1.xpose.msra.mxu0 %v6646
        %6648 = vmatprep.subr.mxu0 0.0
        %v6649 = vand.u32 %v6047, 4294901760
        %6650 = vmatpush1.xpose.msra.mxu0 %v6649
        %6651 = vmatprep.subr.mxu0 0.0
        %v6652 = vand.u32 %v6050, 4294901760
        %6653 = vmatpush1.xpose.msra.mxu0 %v6652
        %6654 = vmatprep.subr.mxu0 0.0
        %v6655 = vand.u32 %v6053, 4294901760
        %6656 = vmatpush1.xpose.msra.mxu0 %v6655
        %6657 = vmatprep.subr.mxu0 0.0
        %v6658 = vand.u32 %v6056, 4294901760
        %6659 = vmatpush1.xpose.msra.mxu0 %v6658
        %6660 = vmatprep.subr.mxu0 0.0
        %v6661 = vand.u32 %v6059, 4294901760
        %6662 = vmatpush1.xpose.msra.mxu0 %v6661
        %6663 = vmatprep.subr.mxu0 0.0
        %v6664 = vand.u32 %v6062, 4294901760
        %6665 = vmatpush1.xpose.msra.mxu0 %v6664
        %6666 = vmatprep.subr.mxu0 0.0
        %6667 = vmatpush1.xpose.msra.mxu0 0.0
        %6668 = vmatprep.subr.mxu0 0.0
        %6669 = vmatpush1.xpose.msra.mxu0 0.0
        %6670 = vmatprep.subr.mxu0 0.0
        %6671 = vmatpush1.xpose.msra.mxu0 0.0
        %6672 = vmatprep.subr.mxu0 0.0
        %6673 = vmatpush1.xpose.msra.mxu0 0.0
        %6674 = vmatprep.subr.mxu0 0.0
        %6675 = vmatpush1.xpose.msra.mxu0 0.0
        %6676 = vmatprep.subr.mxu0 0.0
        %6677 = vmatpush1.xpose.msra.mxu0 0.0
        %6678 = vmatprep.subr.mxu0 0.0
        %6679 = vmatpush1.xpose.msra.mxu0 0.0
        %6680 = vmatprep.subr.mxu0 0.0
        %6681 = vmatpush1.xpose.msra.mxu0 0.0
        %6682 = vmatprep.subr.mxu0 0.0
        %6683 = vmatpush1.xpose.msra.mxu0 0.0
        %6684 = vmatprep.subr.mxu0 0.0
        %6685 = vmatpush1.xpose.msra.mxu0 0.0
        %6686 = vmatprep.subr.mxu0 0.0
        %6687 = vmatpush1.xpose.msra.mxu0 0.0
        %6688 = vmatprep.subr.mxu0 0.0
        %6689 = vmatpush1.xpose.msra.mxu0 0.0
        %6690 = vmatprep.subr.mxu0 0.0
        %6691 = vmatpush1.xpose.msra.mxu0 0.0
        %6692 = vmatprep.subr.mxu0 0.0
        %6693 = vmatpush1.xpose.msra.mxu0 0.0
        %6694 = vmatprep.subr.mxu0 0.0
        %6695 = vmatpush1.xpose.msra.mxu0 0.0
        %6696 = vmatprep.subr.mxu0 0.0
        %6697 = vmatpush1.xpose.msra.mxu0 0.0
        %6698 = vmatprep.mubr.f32.mxu0 0.0
        %v6699 = vand.u32 %v1609, 4294901760
        %6700 = vmatmul.mubr.f32.gmra.mrb[0].mxu0 %v6699
        %v6701 = vpop.f32.mrb[0].mxu0
        %v6702 = vadd.f32 %v6615, %v6701
        %v6703 = vpop.f32.mrb[0].mxu0
        %6704 = vdwg.mxu0
        %v6705 = vsel %vm5968, 3.4028235e+38, %v5824
        %v6706 = vsel %vm5969, 3.4028235e+38, %v5825
        %v6707 = vsel %vm5970, 3.4028235e+38, %v5826
        %v6708 = vsel %vm5971, 3.4028235e+38, %v5827
        %v6709 = vsel %vm5972, 3.4028235e+38, %v5828
        %v6710 = vsel %vm5973, 3.4028235e+38, %v5829
        %v6711 = vsel %vm5974, 3.4028235e+38, %v5830
        %v6712 = vsel %vm5975, 3.4028235e+38, %v5831
        %v6713 = vsel %vm5976, 3.4028235e+38, %v5832
        %v6714 = vsel %vm5977, 3.4028235e+38, %v5833
        %v6715 = vsel %vm5978, 3.4028235e+38, %v5834
        %v6716 = vsel %vm5979, 3.4028235e+38, %v5835
        %v6717 = vsel %vm5980, 3.4028235e+38, %v5836
        %v6718 = vsel %vm5981, 3.4028235e+38, %v5837
        %v6719 = vsel %vm5982, 3.4028235e+38, %v5838
        %v6720 = vsel %vm5983, 3.4028235e+38, %v5839
        %v6721 = vsel %vm1427, %v6705, inf
        %6722 = vmin.xlane.f32.xlu0 %v6721
        %v6723 = vpop.xlane.xlu0 %6722
        %v6724 = vsel %vm1427, %v6706, inf
        %6725 = vmin.xlane.f32.xlu0 %v6724
        %v6726 = vpop.xlane.xlu0 %6725
        %v6727 = vsel %vm1427, %v6707, inf
        %6728 = vmin.xlane.f32.xlu0 %v6727
        %v6729 = vpop.xlane.xlu0 %6728
        %v6730 = vsel %vm1427, %v6708, inf
        %6731 = vmin.xlane.f32.xlu0 %v6730
        %v6732 = vpop.xlane.xlu0 %6731
        %v6733 = vsel %vm1427, %v6709, inf
        %6734 = vmin.xlane.f32.xlu0 %v6733
        %v6735 = vpop.xlane.xlu0 %6734
        %v6736 = vsel %vm1427, %v6710, inf
        %6737 = vmin.xlane.f32.xlu0 %v6736
        %v6738 = vpop.xlane.xlu0 %6737
        %v6739 = vsel %vm1427, %v6711, inf
        %6740 = vmin.xlane.f32.xlu0 %v6739
        %v6741 = vpop.xlane.xlu0 %6740
        %v6742 = vsel %vm1427, %v6712, inf
        %6743 = vmin.xlane.f32.xlu0 %v6742
        %v6744 = vpop.xlane.xlu0 %6743
        %v6745 = vsel %vm1427, %v6713, inf
        %6746 = vmin.xlane.f32.xlu0 %v6745
        %v6747 = vpop.xlane.xlu0 %6746
        %v6748 = vsel %vm1427, %v6714, inf
        %6749 = vmin.xlane.f32.xlu0 %v6748
        %v6750 = vpop.xlane.xlu0 %6749
        %v6751 = vsel %vm1427, %v6715, inf
        %6752 = vmin.xlane.f32.xlu0 %v6751
        %v6753 = vpop.xlane.xlu0 %6752
        %v6754 = vsel %vm1427, %v6716, inf
        %6755 = vmin.xlane.f32.xlu0 %v6754
        %v6756 = vpop.xlane.xlu0 %6755
        %v6757 = vsel %vm1427, %v6717, inf
        %6758 = vmin.xlane.f32.xlu0 %v6757
        %v6759 = vpop.xlane.xlu0 %6758
        %v6760 = vsel %vm1427, %v6718, inf
        %6761 = vmin.xlane.f32.xlu0 %v6760
        %v6762 = vpop.xlane.xlu0 %6761
        %v6763 = vsel %vm1427, %v6719, inf
        %6764 = vmin.xlane.f32.xlu0 %v6763
        %v6765 = vpop.xlane.xlu0 %6764
        %v6766 = vsel %vm1427, %v6720, inf
        %6767 = vmin.xlane.f32.xlu0 %v6766
        %v6768 = vpop.xlane.xlu0 %6767
        %vm6769 = vcmp.le.f32.partialorder %v6705, %v6723
        %vm6770 = vcmp.le.f32.partialorder %v6706, %v6726
        %vm6771 = vcmp.le.f32.partialorder %v6707, %v6729
        %vm6772 = vcmp.le.f32.partialorder %v6708, %v6732
        %vm6773 = vcmp.le.f32.partialorder %v6709, %v6735
        %vm6774 = vcmp.le.f32.partialorder %v6710, %v6738
        %vm6775 = vcmp.le.f32.partialorder %v6711, %v6741
        %vm6776 = vcmp.le.f32.partialorder %v6712, %v6744
        %vm6777 = vcmp.le.f32.partialorder %v6713, %v6747
        %vm6778 = vcmp.le.f32.partialorder %v6714, %v6750
        %vm6779 = vcmp.le.f32.partialorder %v6715, %v6753
        %vm6780 = vcmp.le.f32.partialorder %v6716, %v6756
        %vm6781 = vcmp.le.f32.partialorder %v6717, %v6759
        %vm6782 = vcmp.le.f32.partialorder %v6718, %v6762
        %vm6783 = vcmp.le.f32.partialorder %v6719, %v6765
        %vm6784 = vcmp.le.f32.partialorder %v6720, %v6768
        %v6785 = vsel %vm6769, %v1495, 16.0
        %v6786 = vsel %vm6770, %v1495, 16.0
        %v6787 = vsel %vm6771, %v1495, 16.0
        %v6788 = vsel %vm6772, %v1495, 16.0
        %v6789 = vsel %vm6773, %v1495, 16.0
        %v6790 = vsel %vm6774, %v1495, 16.0
        %v6791 = vsel %vm6775, %v1495, 16.0
        %v6792 = vsel %vm6776, %v1495, 16.0
        %v6793 = vsel %vm6777, %v1495, 16.0
        %v6794 = vsel %vm6778, %v1495, 16.0
        %v6795 = vsel %vm6779, %v1495, 16.0
        %v6796 = vsel %vm6780, %v1495, 16.0
        %v6797 = vsel %vm6781, %v1495, 16.0
        %v6798 = vsel %vm6782, %v1495, 16.0
        %v6799 = vsel %vm6783, %v1495, 16.0
        %v6800 = vsel %vm6784, %v1495, 16.0
        %v6801 = vsel %vm1427, %v6785, inf
        %6802 = vmin.xlane.f32.xlu0 %v6801
        %v6803 = vpop.xlane.xlu0 %6802
        %v6804 = vsel %vm1427, %v6786, inf
        %6805 = vmin.xlane.f32.xlu0 %v6804
        %v6806 = vpop.xlane.xlu0 %6805
        %v6807 = vsel %vm1427, %v6787, inf
        %6808 = vmin.xlane.f32.xlu0 %v6807
        %v6809 = vpop.xlane.xlu0 %6808
        %v6810 = vsel %vm1427, %v6788, inf
        %6811 = vmin.xlane.f32.xlu0 %v6810
        %v6812 = vpop.xlane.xlu0 %6811
        %v6813 = vsel %vm1427, %v6789, inf
        %6814 = vmin.xlane.f32.xlu0 %v6813
        %v6815 = vpop.xlane.xlu0 %6814
        %v6816 = vsel %vm1427, %v6790, inf
        %6817 = vmin.xlane.f32.xlu0 %v6816
        %v6818 = vpop.xlane.xlu0 %6817
        %v6819 = vsel %vm1427, %v6791, inf
        %6820 = vmin.xlane.f32.xlu0 %v6819
        %v6821 = vpop.xlane.xlu0 %6820
        %v6822 = vsel %vm1427, %v6792, inf
        %6823 = vmin.xlane.f32.xlu0 %v6822
        %v6824 = vpop.xlane.xlu0 %6823
        %v6825 = vsel %vm1427, %v6793, inf
        %6826 = vmin.xlane.f32.xlu0 %v6825
        %v6827 = vpop.xlane.xlu0 %6826
        %v6828 = vsel %vm1427, %v6794, inf
        %6829 = vmin.xlane.f32.xlu0 %v6828
        %v6830 = vpop.xlane.xlu0 %6829
        %v6831 = vsel %vm1427, %v6795, inf
        %6832 = vmin.xlane.f32.xlu0 %v6831
        %v6833 = vpop.xlane.xlu0 %6832
        %v6834 = vsel %vm1427, %v6796, inf
        %6835 = vmin.xlane.f32.xlu0 %v6834
        %v6836 = vpop.xlane.xlu0 %6835
        %v6837 = vsel %vm1427, %v6797, inf
        %6838 = vmin.xlane.f32.xlu0 %v6837
        %v6839 = vpop.xlane.xlu0 %6838
        %v6840 = vsel %vm1427, %v6798, inf
        %6841 = vmin.xlane.f32.xlu0 %v6840
        %v6842 = vpop.xlane.xlu0 %6841
        %v6843 = vsel %vm1427, %v6799, inf
        %6844 = vmin.xlane.f32.xlu0 %v6843
        %v6845 = vpop.xlane.xlu0 %6844
        %v6846 = vsel %vm1427, %v6800, inf
        %6847 = vmin.xlane.f32.xlu0 %v6846
        %v6848 = vpop.xlane.xlu0 %6847
        %vm6849 = vcmp.eq.f32.partialorder %v1495, %v6803
        %vm6850 = vcmp.eq.f32.partialorder %v1495, %v6806
        %vm6851 = vcmp.eq.f32.partialorder %v1495, %v6809
        %vm6852 = vcmp.eq.f32.partialorder %v1495, %v6812
        %vm6853 = vcmp.eq.f32.partialorder %v1495, %v6815
        %vm6854 = vcmp.eq.f32.partialorder %v1495, %v6818
        %vm6855 = vcmp.eq.f32.partialorder %v1495, %v6821
        %vm6856 = vcmp.eq.f32.partialorder %v1495, %v6824
        %vm6857 = vcmp.eq.f32.partialorder %v1495, %v6827
        %vm6858 = vcmp.eq.f32.partialorder %v1495, %v6830
        %vm6859 = vcmp.eq.f32.partialorder %v1495, %v6833
        %vm6860 = vcmp.eq.f32.partialorder %v1495, %v6836
        %vm6861 = vcmp.eq.f32.partialorder %v1495, %v6839
        %vm6862 = vcmp.eq.f32.partialorder %v1495, %v6842
        %vm6863 = vcmp.eq.f32.partialorder %v1495, %v6845
        %vm6864 = vcmp.eq.f32.partialorder %v1495, %v6848
        %v6865 = vsel %vm6849, 1, 0
        %v6866 = vsel %vm6850, 1, 0
        %v6867 = vsel %vm6851, 1, 0
        %v6868 = vsel %vm6852, 1, 0
        %v6869 = vsel %vm6853, 1, 0
        %v6870 = vsel %vm6854, 1, 0
        %v6871 = vsel %vm6855, 1, 0
        %v6872 = vsel %vm6856, 1, 0
        %v6873 = vsel %vm6857, 1, 0
        %v6874 = vsel %vm6858, 1, 0
        %v6875 = vsel %vm6859, 1, 0
        %v6876 = vsel %vm6860, 1, 0
        %v6877 = vsel %vm6861, 1, 0
        %v6878 = vsel %vm6862, 1, 0
        %v6879 = vsel %vm6863, 1, 0
        %v6880 = vsel %vm6864, 1, 0
        %v6881 = vcvt.s32.f32 %v6865
        %v6882 = vcvt.s32.f32 %v6866
        %v6883 = vcvt.s32.f32 %v6867
        %v6884 = vcvt.s32.f32 %v6868
        %v6885 = vcvt.s32.f32 %v6869
        %v6886 = vcvt.s32.f32 %v6870
        %v6887 = vcvt.s32.f32 %v6871
        %v6888 = vcvt.s32.f32 %v6872
        %v6889 = vcvt.s32.f32 %v6873
        %v6890 = vcvt.s32.f32 %v6874
        %v6891 = vcvt.s32.f32 %v6875
        %v6892 = vcvt.s32.f32 %v6876
        %v6893 = vcvt.s32.f32 %v6877
        %v6894 = vcvt.s32.f32 %v6878
        %v6895 = vcvt.s32.f32 %v6879
        %v6896 = vcvt.s32.f32 %v6880
        %v6898 = vsel %vm1427, %v6881, 0
        %v6901 = vsel %vm1427, %v6882, 0
        %v6904 = vsel %vm1427, %v6883, 0
        %v6907 = vsel %vm1427, %v6884, 0
        %v6910 = vsel %vm1427, %v6885, 0
        %v6913 = vsel %vm1427, %v6886, 0
        %v6916 = vsel %vm1427, %v6887, 0
        %v6919 = vsel %vm1427, %v6888, 0
        %v6922 = vsel %vm1427, %v6889, 0
        %v6925 = vsel %vm1427, %v6890, 0
        %v6928 = vsel %vm1427, %v6891, 0
        %v6931 = vsel %vm1427, %v6892, 0
        %v6934 = vsel %vm1427, %v6893, 0
        %v6937 = vsel %vm1427, %v6894, 0
        %v6940 = vsel %vm1427, %v6895, 0
        %v6943 = vsel %vm1427, %v6896, 0
        %6945 = vmatprep.subr.mxu0 0.0
        %v6946 = vand.u32 %v6898, 4294901760
        %6947 = vmatpush1.xpose.msra.mxu0 %v6946
        %6948 = vmatprep.subr.mxu0 0.0
        %v6949 = vand.u32 %v6901, 4294901760
        %6950 = vmatpush1.xpose.msra.mxu0 %v6949
        %6951 = vmatprep.subr.mxu0 0.0
        %v6952 = vand.u32 %v6904, 4294901760
        %6953 = vmatpush1.xpose.msra.mxu0 %v6952
        %6954 = vmatprep.subr.mxu0 0.0
        %v6955 = vand.u32 %v6907, 4294901760
        %6956 = vmatpush1.xpose.msra.mxu0 %v6955
        %6957 = vmatprep.subr.mxu0 0.0
        %v6958 = vand.u32 %v6910, 4294901760
        %6959 = vmatpush1.xpose.msra.mxu0 %v6958
        %6960 = vmatprep.subr.mxu0 0.0
        %v6961 = vand.u32 %v6913, 4294901760
        %6962 = vmatpush1.xpose.msra.mxu0 %v6961
        %6963 = vmatprep.subr.mxu0 0.0
        %v6964 = vand.u32 %v6916, 4294901760
        %6965 = vmatpush1.xpose.msra.mxu0 %v6964
        %6966 = vmatprep.subr.mxu0 0.0
        %v6967 = vand.u32 %v6919, 4294901760
        %6968 = vmatpush1.xpose.msra.mxu0 %v6967
        %6969 = vmatprep.subr.mxu0 0.0
        %v6970 = vand.u32 %v6922, 4294901760
        %6971 = vmatpush1.xpose.msra.mxu0 %v6970
        %6972 = vmatprep.subr.mxu0 0.0
        %v6973 = vand.u32 %v6925, 4294901760
        %6974 = vmatpush1.xpose.msra.mxu0 %v6973
        %6975 = vmatprep.subr.mxu0 0.0
        %v6976 = vand.u32 %v6928, 4294901760
        %6977 = vmatpush1.xpose.msra.mxu0 %v6976
        %6978 = vmatprep.subr.mxu0 0.0
        %v6979 = vand.u32 %v6931, 4294901760
        %6980 = vmatpush1.xpose.msra.mxu0 %v6979
        %6981 = vmatprep.subr.mxu0 0.0
        %v6982 = vand.u32 %v6934, 4294901760
        %6983 = vmatpush1.xpose.msra.mxu0 %v6982
        %6984 = vmatprep.subr.mxu0 0.0
        %v6985 = vand.u32 %v6937, 4294901760
        %6986 = vmatpush1.xpose.msra.mxu0 %v6985
        %6987 = vmatprep.subr.mxu0 0.0
        %v6988 = vand.u32 %v6940, 4294901760
        %6989 = vmatpush1.xpose.msra.mxu0 %v6988
        %6990 = vmatprep.subr.mxu0 0.0
        %v6991 = vand.u32 %v6943, 4294901760
        %6992 = vmatpush1.xpose.msra.mxu0 %v6991
        %6993 = vmatprep.subr.mxu0 0.0
        %6994 = vmatpush1.xpose.msra.mxu0 0.0
        %6995 = vmatprep.subr.mxu0 0.0
        %6996 = vmatpush1.xpose.msra.mxu0 0.0
        %6997 = vmatprep.subr.mxu0 0.0
        %6998 = vmatpush1.xpose.msra.mxu0 0.0
        %6999 = vmatprep.subr.mxu0 0.0
        %7000 = vmatpush1.xpose.msra.mxu0 0.0
        %7001 = vmatprep.subr.mxu0 0.0
        %7002 = vmatpush1.xpose.msra.mxu0 0.0
        %7003 = vmatprep.subr.mxu0 0.0
        %7004 = vmatpush1.xpose.msra.mxu0 0.0
        %7005 = vmatprep.subr.mxu0 0.0
        %7006 = vmatpush1.xpose.msra.mxu0 0.0
        %7007 = vmatprep.subr.mxu0 0.0
        %7008 = vmatpush1.xpose.msra.mxu0 0.0
        %7009 = vmatprep.subr.mxu0 0.0
        %7010 = vmatpush1.xpose.msra.mxu0 0.0
        %7011 = vmatprep.subr.mxu0 0.0
        %7012 = vmatpush1.xpose.msra.mxu0 0.0
        %7013 = vmatprep.subr.mxu0 0.0
        %7014 = vmatpush1.xpose.msra.mxu0 0.0
        %7015 = vmatprep.subr.mxu0 0.0
        %7016 = vmatpush1.xpose.msra.mxu0 0.0
        %7017 = vmatprep.subr.mxu0 0.0
        %7018 = vmatpush1.xpose.msra.mxu0 0.0
        %7019 = vmatprep.subr.mxu0 0.0
        %7020 = vmatpush1.xpose.msra.mxu0 0.0
        %7021 = vmatprep.subr.mxu0 0.0
        %7022 = vmatpush1.xpose.msra.mxu0 0.0
        %7023 = vmatprep.subr.mxu0 0.0
        %7024 = vmatpush1.xpose.msra.mxu0 0.0
        %7025 = vmatprep.mubr.f32.mxu0 0.0
        %v7026 = vand.u32 %v1609, 4294901760
        %v7027 = vsub.f32 %v1609, %v7026
        %v7028 = vand.u32 %v7027, 4294901760
        %v7029 = vsub.f32 %v7027, %v7028
        %v7030 = vand.u32 %v7029, 4294901760
        %7031 = vmatmul.mubr.f32.gmra.mrb[0].mxu0 %v7030
        %v7032 = vpop.f32.mrb[0].mxu0
        %v7033 = vadd.f32 0.0, %v7032
        %v7034 = vpop.f32.mrb[0].mxu0
        %7035 = vdwg.mxu0
        %7036 = vmatprep.subr.mxu0 0.0
        %v7037 = vand.u32 %v6898, 4294901760
        %v7038 = vsub.f32 %v6898, %v7037
        %v7039 = vand.u32 %v7038, 4294901760
        %v7040 = vsub.f32 %v7038, %v7039
        %v7041 = vand.u32 %v7040, 4294901760
        %7042 = vmatpush1.xpose.msra.mxu0 %v7041
        %7043 = vmatprep.subr.mxu0 0.0
        %v7044 = vand.u32 %v6901, 4294901760
        %v7045 = vsub.f32 %v6901, %v7044
        %v7046 = vand.u32 %v7045, 4294901760
        %v7047 = vsub.f32 %v7045, %v7046
        %v7048 = vand.u32 %v7047, 4294901760
        %7049 = vmatpush1.xpose.msra.mxu0 %v7048
        %7050 = vmatprep.subr.mxu0 0.0
        %v7051 = vand.u32 %v6904, 4294901760
        %v7052 = vsub.f32 %v6904, %v7051
        %v7053 = vand.u32 %v7052, 4294901760
        %v7054 = vsub.f32 %v7052, %v7053
        %v7055 = vand.u32 %v7054, 4294901760
        %7056 = vmatpush1.xpose.msra.mxu0 %v7055
        %7057 = vmatprep.subr.mxu0 0.0
        %v7058 = vand.u32 %v6907, 4294901760
        %v7059 = vsub.f32 %v6907, %v7058
        %v7060 = vand.u32 %v7059, 4294901760
        %v7061 = vsub.f32 %v7059, %v7060
        %v7062 = vand.u32 %v7061, 4294901760
        %7063 = vmatpush1.xpose.msra.mxu0 %v7062
        %7064 = vmatprep.subr.mxu0 0.0
        %v7065 = vand.u32 %v6910, 4294901760
        %v7066 = vsub.f32 %v6910, %v7065
        %v7067 = vand.u32 %v7066, 4294901760
        %v7068 = vsub.f32 %v7066, %v7067
        %v7069 = vand.u32 %v7068, 4294901760
        %7070 = vmatpush1.xpose.msra.mxu0 %v7069
        %7071 = vmatprep.subr.mxu0 0.0
        %v7072 = vand.u32 %v6913, 4294901760
        %v7073 = vsub.f32 %v6913, %v7072
        %v7074 = vand.u32 %v7073, 4294901760
        %v7075 = vsub.f32 %v7073, %v7074
        %v7076 = vand.u32 %v7075, 4294901760
        %7077 = vmatpush1.xpose.msra.mxu0 %v7076
        %7078 = vmatprep.subr.mxu0 0.0
        %v7079 = vand.u32 %v6916, 4294901760
        %v7080 = vsub.f32 %v6916, %v7079
        %v7081 = vand.u32 %v7080, 4294901760
        %v7082 = vsub.f32 %v7080, %v7081
        %v7083 = vand.u32 %v7082, 4294901760
        %7084 = vmatpush1.xpose.msra.mxu0 %v7083
        %7085 = vmatprep.subr.mxu0 0.0
        %v7086 = vand.u32 %v6919, 4294901760
        %v7087 = vsub.f32 %v6919, %v7086
        %v7088 = vand.u32 %v7087, 4294901760
        %v7089 = vsub.f32 %v7087, %v7088
        %v7090 = vand.u32 %v7089, 4294901760
        %7091 = vmatpush1.xpose.msra.mxu0 %v7090
        %7092 = vmatprep.subr.mxu0 0.0
        %v7093 = vand.u32 %v6922, 4294901760
        %v7094 = vsub.f32 %v6922, %v7093
        %v7095 = vand.u32 %v7094, 4294901760
        %v7096 = vsub.f32 %v7094, %v7095
        %v7097 = vand.u32 %v7096, 4294901760
        %7098 = vmatpush1.xpose.msra.mxu0 %v7097
        %7099 = vmatprep.subr.mxu0 0.0
        %v7100 = vand.u32 %v6925, 4294901760
        %v7101 = vsub.f32 %v6925, %v7100
        %v7102 = vand.u32 %v7101, 4294901760
        %v7103 = vsub.f32 %v7101, %v7102
        %v7104 = vand.u32 %v7103, 4294901760
        %7105 = vmatpush1.xpose.msra.mxu0 %v7104
        %7106 = vmatprep.subr.mxu0 0.0
        %v7107 = vand.u32 %v6928, 4294901760
        %v7108 = vsub.f32 %v6928, %v7107
        %v7109 = vand.u32 %v7108, 4294901760
        %v7110 = vsub.f32 %v7108, %v7109
        %v7111 = vand.u32 %v7110, 4294901760
        %7112 = vmatpush1.xpose.msra.mxu0 %v7111
        %7113 = vmatprep.subr.mxu0 0.0
        %v7114 = vand.u32 %v6931, 4294901760
        %v7115 = vsub.f32 %v6931, %v7114
        %v7116 = vand.u32 %v7115, 4294901760
        %v7117 = vsub.f32 %v7115, %v7116
        %v7118 = vand.u32 %v7117, 4294901760
        %7119 = vmatpush1.xpose.msra.mxu0 %v7118
        %7120 = vmatprep.subr.mxu0 0.0
        %v7121 = vand.u32 %v6934, 4294901760
        %v7122 = vsub.f32 %v6934, %v7121
        %v7123 = vand.u32 %v7122, 4294901760
        %v7124 = vsub.f32 %v7122, %v7123
        %v7125 = vand.u32 %v7124, 4294901760
        %7126 = vmatpush1.xpose.msra.mxu0 %v7125
        %7127 = vmatprep.subr.mxu0 0.0
        %v7128 = vand.u32 %v6937, 4294901760
        %v7129 = vsub.f32 %v6937, %v7128
        %v7130 = vand.u32 %v7129, 4294901760
        %v7131 = vsub.f32 %v7129, %v7130
        %v7132 = vand.u32 %v7131, 4294901760
        %7133 = vmatpush1.xpose.msra.mxu0 %v7132
        %7134 = vmatprep.subr.mxu0 0.0
        %v7135 = vand.u32 %v6940, 4294901760
        %v7136 = vsub.f32 %v6940, %v7135
        %v7137 = vand.u32 %v7136, 4294901760
        %v7138 = vsub.f32 %v7136, %v7137
        %v7139 = vand.u32 %v7138, 4294901760
        %7140 = vmatpush1.xpose.msra.mxu0 %v7139
        %7141 = vmatprep.subr.mxu0 0.0
        %v7142 = vand.u32 %v6943, 4294901760
        %v7143 = vsub.f32 %v6943, %v7142
        %v7144 = vand.u32 %v7143, 4294901760
        %v7145 = vsub.f32 %v7143, %v7144
        %v7146 = vand.u32 %v7145, 4294901760
        %7147 = vmatpush1.xpose.msra.mxu0 %v7146
        %7148 = vmatprep.subr.mxu0 0.0
        %7149 = vmatpush1.xpose.msra.mxu0 0.0
        %7150 = vmatprep.subr.mxu0 0.0
        %7151 = vmatpush1.xpose.msra.mxu0 0.0
        %7152 = vmatprep.subr.mxu0 0.0
        %7153 = vmatpush1.xpose.msra.mxu0 0.0
        %7154 = vmatprep.subr.mxu0 0.0
        %7155 = vmatpush1.xpose.msra.mxu0 0.0
        %7156 = vmatprep.subr.mxu0 0.0
        %7157 = vmatpush1.xpose.msra.mxu0 0.0
        %7158 = vmatprep.subr.mxu0 0.0
        %7159 = vmatpush1.xpose.msra.mxu0 0.0
        %7160 = vmatprep.subr.mxu0 0.0
        %7161 = vmatpush1.xpose.msra.mxu0 0.0
        %7162 = vmatprep.subr.mxu0 0.0
        %7163 = vmatpush1.xpose.msra.mxu0 0.0
        %7164 = vmatprep.subr.mxu0 0.0
        %7165 = vmatpush1.xpose.msra.mxu0 0.0
        %7166 = vmatprep.subr.mxu0 0.0
        %7167 = vmatpush1.xpose.msra.mxu0 0.0
        %7168 = vmatprep.subr.mxu0 0.0
        %7169 = vmatpush1.xpose.msra.mxu0 0.0
        %7170 = vmatprep.subr.mxu0 0.0
        %7171 = vmatpush1.xpose.msra.mxu0 0.0
        %7172 = vmatprep.subr.mxu0 0.0
        %7173 = vmatpush1.xpose.msra.mxu0 0.0
        %7174 = vmatprep.subr.mxu0 0.0
        %7175 = vmatpush1.xpose.msra.mxu0 0.0
        %7176 = vmatprep.subr.mxu0 0.0
        %7177 = vmatpush1.xpose.msra.mxu0 0.0
        %7178 = vmatprep.subr.mxu0 0.0
        %7179 = vmatpush1.xpose.msra.mxu0 0.0
        %7180 = vmatprep.mubr.f32.mxu0 0.0
        %v7181 = vand.u32 %v1609, 4294901760
        %7182 = vmatmul.mubr.f32.gmra.mrb[0].mxu0 %v7181
        %v7183 = vpop.f32.mrb[0].mxu0
        %v7184 = vadd.f32 %v7033, %v7183
        %v7185 = vpop.f32.mrb[0].mxu0
        %7186 = vdwg.mxu0
        %7187 = vmatprep.subr.mxu0 0.0
        %v7188 = vand.u32 %v6898, 4294901760
        %v7189 = vsub.f32 %v6898, %v7188
        %7190 = vmatpush1.xpose.msra.mxu0 %v7189
        %7191 = vmatprep.subr.mxu0 0.0
        %v7192 = vand.u32 %v6901, 4294901760
        %v7193 = vsub.f32 %v6901, %v7192
        %7194 = vmatpush1.xpose.msra.mxu0 %v7193
        %7195 = vmatprep.subr.mxu0 0.0
        %v7196 = vand.u32 %v6904, 4294901760
        %v7197 = vsub.f32 %v6904, %v7196
        %7198 = vmatpush1.xpose.msra.mxu0 %v7197
        %7199 = vmatprep.subr.mxu0 0.0
        %v7200 = vand.u32 %v6907, 4294901760
        %v7201 = vsub.f32 %v6907, %v7200
        %7202 = vmatpush1.xpose.msra.mxu0 %v7201
        %7203 = vmatprep.subr.mxu0 0.0
        %v7204 = vand.u32 %v6910, 4294901760
        %v7205 = vsub.f32 %v6910, %v7204
        %7206 = vmatpush1.xpose.msra.mxu0 %v7205
        %7207 = vmatprep.subr.mxu0 0.0
        %v7208 = vand.u32 %v6913, 4294901760
        %v7209 = vsub.f32 %v6913, %v7208
        %7210 = vmatpush1.xpose.msra.mxu0 %v7209
        %7211 = vmatprep.subr.mxu0 0.0
        %v7212 = vand.u32 %v6916, 4294901760
        %v7213 = vsub.f32 %v6916, %v7212
        %7214 = vmatpush1.xpose.msra.mxu0 %v7213
        %7215 = vmatprep.subr.mxu0 0.0
        %v7216 = vand.u32 %v6919, 4294901760
        %v7217 = vsub.f32 %v6919, %v7216
        %7218 = vmatpush1.xpose.msra.mxu0 %v7217
        %7219 = vmatprep.subr.mxu0 0.0
        %v7220 = vand.u32 %v6922, 4294901760
        %v7221 = vsub.f32 %v6922, %v7220
        %7222 = vmatpush1.xpose.msra.mxu0 %v7221
        %7223 = vmatprep.subr.mxu0 0.0
        %v7224 = vand.u32 %v6925, 4294901760
        %v7225 = vsub.f32 %v6925, %v7224
        %7226 = vmatpush1.xpose.msra.mxu0 %v7225
        %7227 = vmatprep.subr.mxu0 0.0
        %v7228 = vand.u32 %v6928, 4294901760
        %v7229 = vsub.f32 %v6928, %v7228
        %7230 = vmatpush1.xpose.msra.mxu0 %v7229
        %7231 = vmatprep.subr.mxu0 0.0
        %v7232 = vand.u32 %v6931, 4294901760
        %v7233 = vsub.f32 %v6931, %v7232
        %7234 = vmatpush1.xpose.msra.mxu0 %v7233
        %7235 = vmatprep.subr.mxu0 0.0
        %v7236 = vand.u32 %v6934, 4294901760
        %v7237 = vsub.f32 %v6934, %v7236
        %7238 = vmatpush1.xpose.msra.mxu0 %v7237
        %7239 = vmatprep.subr.mxu0 0.0
        %v7240 = vand.u32 %v6937, 4294901760
        %v7241 = vsub.f32 %v6937, %v7240
        %7242 = vmatpush1.xpose.msra.mxu0 %v7241
        %7243 = vmatprep.subr.mxu0 0.0
        %v7244 = vand.u32 %v6940, 4294901760
        %v7245 = vsub.f32 %v6940, %v7244
        %7246 = vmatpush1.xpose.msra.mxu0 %v7245
        %7247 = vmatprep.subr.mxu0 0.0
        %v7248 = vand.u32 %v6943, 4294901760
        %v7249 = vsub.f32 %v6943, %v7248
        %7250 = vmatpush1.xpose.msra.mxu0 %v7249
        %7251 = vmatprep.subr.mxu0 0.0
        %7252 = vmatpush1.xpose.msra.mxu0 0.0
        %7253 = vmatprep.subr.mxu0 0.0
        %7254 = vmatpush1.xpose.msra.mxu0 0.0
        %7255 = vmatprep.subr.mxu0 0.0
        %7256 = vmatpush1.xpose.msra.mxu0 0.0
        %7257 = vmatprep.subr.mxu0 0.0
        %7258 = vmatpush1.xpose.msra.mxu0 0.0
        %7259 = vmatprep.subr.mxu0 0.0
        %7260 = vmatpush1.xpose.msra.mxu0 0.0
        %7261 = vmatprep.subr.mxu0 0.0
        %7262 = vmatpush1.xpose.msra.mxu0 0.0
        %7263 = vmatprep.subr.mxu0 0.0
        %7264 = vmatpush1.xpose.msra.mxu0 0.0
        %7265 = vmatprep.subr.mxu0 0.0
        %7266 = vmatpush1.xpose.msra.mxu0 0.0
        %7267 = vmatprep.subr.mxu0 0.0
        %7268 = vmatpush1.xpose.msra.mxu0 0.0
        %7269 = vmatprep.subr.mxu0 0.0
        %7270 = vmatpush1.xpose.msra.mxu0 0.0
        %7271 = vmatprep.subr.mxu0 0.0
        %7272 = vmatpush1.xpose.msra.mxu0 0.0
        %7273 = vmatprep.subr.mxu0 0.0
        %7274 = vmatpush1.xpose.msra.mxu0 0.0
        %7275 = vmatprep.subr.mxu0 0.0
        %7276 = vmatpush1.xpose.msra.mxu0 0.0
        %7277 = vmatprep.subr.mxu0 0.0
        %7278 = vmatpush1.xpose.msra.mxu0 0.0
        %7279 = vmatprep.subr.mxu0 0.0
        %7280 = vmatpush1.xpose.msra.mxu0 0.0
        %7281 = vmatprep.subr.mxu0 0.0
        %7282 = vmatpush1.xpose.msra.mxu0 0.0
        %7283 = vmatprep.mubr.f32.mxu0 0.0
        %v7284 = vand.u32 %v1609, 4294901760
        %v7285 = vsub.f32 %v1609, %v7284
        %7286 = vmatmul.mubr.f32.gmra.mrb[0].mxu0 %v7285
        %v7287 = vpop.f32.mrb[0].mxu0
        %v7288 = vadd.f32 %v7184, %v7287
        %v7289 = vpop.f32.mrb[0].mxu0
        %7290 = vdwg.mxu0
        %7291 = vmatprep.subr.mxu0 0.0
        %v7292 = vand.u32 %v6898, 4294901760
        %7293 = vmatpush1.xpose.msra.mxu0 %v7292
        %7294 = vmatprep.subr.mxu0 0.0
        %v7295 = vand.u32 %v6901, 4294901760
        %7296 = vmatpush1.xpose.msra.mxu0 %v7295
        %7297 = vmatprep.subr.mxu0 0.0
        %v7298 = vand.u32 %v6904, 4294901760
        %7299 = vmatpush1.xpose.msra.mxu0 %v7298
        %7300 = vmatprep.subr.mxu0 0.0
        %v7301 = vand.u32 %v6907, 4294901760
        %7302 = vmatpush1.xpose.msra.mxu0 %v7301
        %7303 = vmatprep.subr.mxu0 0.0
        %v7304 = vand.u32 %v6910, 4294901760
        %7305 = vmatpush1.xpose.msra.mxu0 %v7304
        %7306 = vmatprep.subr.mxu0 0.0
        %v7307 = vand.u32 %v6913, 4294901760
        %7308 = vmatpush1.xpose.msra.mxu0 %v7307
        %7309 = vmatprep.subr.mxu0 0.0
        %v7310 = vand.u32 %v6916, 4294901760
        %7311 = vmatpush1.xpose.msra.mxu0 %v7310
        %7312 = vmatprep.subr.mxu0 0.0
        %v7313 = vand.u32 %v6919, 4294901760
        %7314 = vmatpush1.xpose.msra.mxu0 %v7313
        %7315 = vmatprep.subr.mxu0 0.0
        %v7316 = vand.u32 %v6922, 4294901760
        %7317 = vmatpush1.xpose.msra.mxu0 %v7316
        %7318 = vmatprep.subr.mxu0 0.0
        %v7319 = vand.u32 %v6925, 4294901760
        %7320 = vmatpush1.xpose.msra.mxu0 %v7319
        %7321 = vmatprep.subr.mxu0 0.0
        %v7322 = vand.u32 %v6928, 4294901760
        %7323 = vmatpush1.xpose.msra.mxu0 %v7322
        %7324 = vmatprep.subr.mxu0 0.0
        %v7325 = vand.u32 %v6931, 4294901760
        %7326 = vmatpush1.xpose.msra.mxu0 %v7325
        %7327 = vmatprep.subr.mxu0 0.0
        %v7328 = vand.u32 %v6934, 4294901760
        %7329 = vmatpush1.xpose.msra.mxu0 %v7328
        %7330 = vmatprep.subr.mxu0 0.0
        %v7331 = vand.u32 %v6937, 4294901760
        %7332 = vmatpush1.xpose.msra.mxu0 %v7331
        %7333 = vmatprep.subr.mxu0 0.0
        %v7334 = vand.u32 %v6940, 4294901760
        %7335 = vmatpush1.xpose.msra.mxu0 %v7334
        %7336 = vmatprep.subr.mxu0 0.0
        %v7337 = vand.u32 %v6943, 4294901760
        %7338 = vmatpush1.xpose.msra.mxu0 %v7337
        %7339 = vmatprep.subr.mxu0 0.0
        %7340 = vmatpush1.xpose.msra.mxu0 0.0
        %7341 = vmatprep.subr.mxu0 0.0
        %7342 = vmatpush1.xpose.msra.mxu0 0.0
        %7343 = vmatprep.subr.mxu0 0.0
        %7344 = vmatpush1.xpose.msra.mxu0 0.0
        %7345 = vmatprep.subr.mxu0 0.0
        %7346 = vmatpush1.xpose.msra.mxu0 0.0
        %7347 = vmatprep.subr.mxu0 0.0
        %7348 = vmatpush1.xpose.msra.mxu0 0.0
        %7349 = vmatprep.subr.mxu0 0.0
        %7350 = vmatpush1.xpose.msra.mxu0 0.0
        %7351 = vmatprep.subr.mxu0 0.0
        %7352 = vmatpush1.xpose.msra.mxu0 0.0
        %7353 = vmatprep.subr.mxu0 0.0
        %7354 = vmatpush1.xpose.msra.mxu0 0.0
        %7355 = vmatprep.subr.mxu0 0.0
        %7356 = vmatpush1.xpose.msra.mxu0 0.0
        %7357 = vmatprep.subr.mxu0 0.0
        %7358 = vmatpush1.xpose.msra.mxu0 0.0
        %7359 = vmatprep.subr.mxu0 0.0
        %7360 = vmatpush1.xpose.msra.mxu0 0.0
        %7361 = vmatprep.subr.mxu0 0.0
        %7362 = vmatpush1.xpose.msra.mxu0 0.0
        %7363 = vmatprep.subr.mxu0 0.0
        %7364 = vmatpush1.xpose.msra.mxu0 0.0
        %7365 = vmatprep.subr.mxu0 0.0
        %7366 = vmatpush1.xpose.msra.mxu0 0.0
        %7367 = vmatprep.subr.mxu0 0.0
        %7368 = vmatpush1.xpose.msra.mxu0 0.0
        %7369 = vmatprep.subr.mxu0 0.0
        %7370 = vmatpush1.xpose.msra.mxu0 0.0
        %7371 = vmatprep.mubr.f32.mxu0 0.0
        %v7372 = vand.u32 %v1609, 4294901760
        %v7373 = vsub.f32 %v1609, %v7372
        %v7374 = vand.u32 %v7373, 4294901760
        %7375 = vmatmul.mubr.f32.gmra.mrb[0].mxu0 %v7374
        %v7376 = vpop.f32.mrb[0].mxu0
        %v7377 = vadd.f32 %v7288, %v7376
        %v7378 = vpop.f32.mrb[0].mxu0
        %7379 = vdwg.mxu0
        %7380 = vmatprep.subr.mxu0 0.0
        %v7381 = vand.u32 %v6898, 4294901760
        %v7382 = vsub.f32 %v6898, %v7381
        %v7383 = vand.u32 %v7382, 4294901760
        %7384 = vmatpush1.xpose.msra.mxu0 %v7383
        %7385 = vmatprep.subr.mxu0 0.0
        %v7386 = vand.u32 %v6901, 4294901760
        %v7387 = vsub.f32 %v6901, %v7386
        %v7388 = vand.u32 %v7387, 4294901760
        %7389 = vmatpush1.xpose.msra.mxu0 %v7388
        %7390 = vmatprep.subr.mxu0 0.0
        %v7391 = vand.u32 %v6904, 4294901760
        %v7392 = vsub.f32 %v6904, %v7391
        %v7393 = vand.u32 %v7392, 4294901760
        %7394 = vmatpush1.xpose.msra.mxu0 %v7393
        %7395 = vmatprep.subr.mxu0 0.0
        %v7396 = vand.u32 %v6907, 4294901760
        %v7397 = vsub.f32 %v6907, %v7396
        %v7398 = vand.u32 %v7397, 4294901760
        %7399 = vmatpush1.xpose.msra.mxu0 %v7398
        %7400 = vmatprep.subr.mxu0 0.0
        %v7401 = vand.u32 %v6910, 4294901760
        %v7402 = vsub.f32 %v6910, %v7401
        %v7403 = vand.u32 %v7402, 4294901760
        %7404 = vmatpush1.xpose.msra.mxu0 %v7403
        %7405 = vmatprep.subr.mxu0 0.0
        %v7406 = vand.u32 %v6913, 4294901760
        %v7407 = vsub.f32 %v6913, %v7406
        %v7408 = vand.u32 %v7407, 4294901760
        %7409 = vmatpush1.xpose.msra.mxu0 %v7408
        %7410 = vmatprep.subr.mxu0 0.0
        %v7411 = vand.u32 %v6916, 4294901760
        %v7412 = vsub.f32 %v6916, %v7411
        %v7413 = vand.u32 %v7412, 4294901760
        %7414 = vmatpush1.xpose.msra.mxu0 %v7413
        %7415 = vmatprep.subr.mxu0 0.0
        %v7416 = vand.u32 %v6919, 4294901760
        %v7417 = vsub.f32 %v6919, %v7416
        %v7418 = vand.u32 %v7417, 4294901760
        %7419 = vmatpush1.xpose.msra.mxu0 %v7418
        %7420 = vmatprep.subr.mxu0 0.0
        %v7421 = vand.u32 %v6922, 4294901760
        %v7422 = vsub.f32 %v6922, %v7421
        %v7423 = vand.u32 %v7422, 4294901760
        %7424 = vmatpush1.xpose.msra.mxu0 %v7423
        %7425 = vmatprep.subr.mxu0 0.0
        %v7426 = vand.u32 %v6925, 4294901760
        %v7427 = vsub.f32 %v6925, %v7426
        %v7428 = vand.u32 %v7427, 4294901760
        %7429 = vmatpush1.xpose.msra.mxu0 %v7428
        %7430 = vmatprep.subr.mxu0 0.0
        %v7431 = vand.u32 %v6928, 4294901760
        %v7432 = vsub.f32 %v6928, %v7431
        %v7433 = vand.u32 %v7432, 4294901760
        %7434 = vmatpush1.xpose.msra.mxu0 %v7433
        %7435 = vmatprep.subr.mxu0 0.0
        %v7436 = vand.u32 %v6931, 4294901760
        %v7437 = vsub.f32 %v6931, %v7436
        %v7438 = vand.u32 %v7437, 4294901760
        %7439 = vmatpush1.xpose.msra.mxu0 %v7438
        %7440 = vmatprep.subr.mxu0 0.0
        %v7441 = vand.u32 %v6934, 4294901760
        %v7442 = vsub.f32 %v6934, %v7441
        %v7443 = vand.u32 %v7442, 4294901760
        %7444 = vmatpush1.xpose.msra.mxu0 %v7443
        %7445 = vmatprep.subr.mxu0 0.0
        %v7446 = vand.u32 %v6937, 4294901760
        %v7447 = vsub.f32 %v6937, %v7446
        %v7448 = vand.u32 %v7447, 4294901760
        %7449 = vmatpush1.xpose.msra.mxu0 %v7448
        %7450 = vmatprep.subr.mxu0 0.0
        %v7451 = vand.u32 %v6940, 4294901760
        %v7452 = vsub.f32 %v6940, %v7451
        %v7453 = vand.u32 %v7452, 4294901760
        %7454 = vmatpush1.xpose.msra.mxu0 %v7453
        %7455 = vmatprep.subr.mxu0 0.0
        %v7456 = vand.u32 %v6943, 4294901760
        %v7457 = vsub.f32 %v6943, %v7456
        %v7458 = vand.u32 %v7457, 4294901760
        %7459 = vmatpush1.xpose.msra.mxu0 %v7458
        %7460 = vmatprep.subr.mxu0 0.0
        %7461 = vmatpush1.xpose.msra.mxu0 0.0
        %7462 = vmatprep.subr.mxu0 0.0
        %7463 = vmatpush1.xpose.msra.mxu0 0.0
        %7464 = vmatprep.subr.mxu0 0.0
        %7465 = vmatpush1.xpose.msra.mxu0 0.0
        %7466 = vmatprep.subr.mxu0 0.0
        %7467 = vmatpush1.xpose.msra.mxu0 0.0
        %7468 = vmatprep.subr.mxu0 0.0
        %7469 = vmatpush1.xpose.msra.mxu0 0.0
        %7470 = vmatprep.subr.mxu0 0.0
        %7471 = vmatpush1.xpose.msra.mxu0 0.0
        %7472 = vmatprep.subr.mxu0 0.0
        %7473 = vmatpush1.xpose.msra.mxu0 0.0
        %7474 = vmatprep.subr.mxu0 0.0
        %7475 = vmatpush1.xpose.msra.mxu0 0.0
        %7476 = vmatprep.subr.mxu0 0.0
        %7477 = vmatpush1.xpose.msra.mxu0 0.0
        %7478 = vmatprep.subr.mxu0 0.0
        %7479 = vmatpush1.xpose.msra.mxu0 0.0
        %7480 = vmatprep.subr.mxu0 0.0
        %7481 = vmatpush1.xpose.msra.mxu0 0.0
        %7482 = vmatprep.subr.mxu0 0.0
        %7483 = vmatpush1.xpose.msra.mxu0 0.0
        %7484 = vmatprep.subr.mxu0 0.0
        %7485 = vmatpush1.xpose.msra.mxu0 0.0
        %7486 = vmatprep.subr.mxu0 0.0
        %7487 = vmatpush1.xpose.msra.mxu0 0.0
        %7488 = vmatprep.subr.mxu0 0.0
        %7489 = vmatpush1.xpose.msra.mxu0 0.0
        %7490 = vmatprep.subr.mxu0 0.0
        %7491 = vmatpush1.xpose.msra.mxu0 0.0
        %7492 = vmatprep.mubr.f32.mxu0 0.0
        %v7493 = vand.u32 %v1609, 4294901760
        %7494 = vmatmul.mubr.f32.gmra.mrb[0].mxu0 %v7493
        %v7495 = vpop.f32.mrb[0].mxu0
        %v7496 = vadd.f32 %v7377, %v7495
        %v7497 = vpop.f32.mrb[0].mxu0
        %7498 = vdwg.mxu0
        %7499 = vmatprep.subr.mxu0 0.0
        %v7500 = vand.u32 %v6898, 4294901760
        %7501 = vmatpush1.xpose.msra.mxu0 %v7500
        %7502 = vmatprep.subr.mxu0 0.0
        %v7503 = vand.u32 %v6901, 4294901760
        %7504 = vmatpush1.xpose.msra.mxu0 %v7503
        %7505 = vmatprep.subr.mxu0 0.0
        %v7506 = vand.u32 %v6904, 4294901760
        %7507 = vmatpush1.xpose.msra.mxu0 %v7506
        %7508 = vmatprep.subr.mxu0 0.0
        %v7509 = vand.u32 %v6907, 4294901760
        %7510 = vmatpush1.xpose.msra.mxu0 %v7509
        %7511 = vmatprep.subr.mxu0 0.0
        %v7512 = vand.u32 %v6910, 4294901760
        %7513 = vmatpush1.xpose.msra.mxu0 %v7512
        %7514 = vmatprep.subr.mxu0 0.0
        %v7515 = vand.u32 %v6913, 4294901760
        %7516 = vmatpush1.xpose.msra.mxu0 %v7515
        %7517 = vmatprep.subr.mxu0 0.0
        %v7518 = vand.u32 %v6916, 4294901760
        %7519 = vmatpush1.xpose.msra.mxu0 %v7518
        %7520 = vmatprep.subr.mxu0 0.0
        %v7521 = vand.u32 %v6919, 4294901760
        %7522 = vmatpush1.xpose.msra.mxu0 %v7521
        %7523 = vmatprep.subr.mxu0 0.0
        %v7524 = vand.u32 %v6922, 4294901760
        %7525 = vmatpush1.xpose.msra.mxu0 %v7524
        %7526 = vmatprep.subr.mxu0 0.0
        %v7527 = vand.u32 %v6925, 4294901760
        %7528 = vmatpush1.xpose.msra.mxu0 %v7527
        %7529 = vmatprep.subr.mxu0 0.0
        %v7530 = vand.u32 %v6928, 4294901760
        %7531 = vmatpush1.xpose.msra.mxu0 %v7530
        %7532 = vmatprep.subr.mxu0 0.0
        %v7533 = vand.u32 %v6931, 4294901760
        %7534 = vmatpush1.xpose.msra.mxu0 %v7533
        %7535 = vmatprep.subr.mxu0 0.0
        %v7536 = vand.u32 %v6934, 4294901760
        %7537 = vmatpush1.xpose.msra.mxu0 %v7536
        %7538 = vmatprep.subr.mxu0 0.0
        %v7539 = vand.u32 %v6937, 4294901760
        %7540 = vmatpush1.xpose.msra.mxu0 %v7539
        %7541 = vmatprep.subr.mxu0 0.0
        %v7542 = vand.u32 %v6940, 4294901760
        %7543 = vmatpush1.xpose.msra.mxu0 %v7542
        %7544 = vmatprep.subr.mxu0 0.0
        %v7545 = vand.u32 %v6943, 4294901760
        %7546 = vmatpush1.xpose.msra.mxu0 %v7545
        %7547 = vmatprep.subr.mxu0 0.0
        %7548 = vmatpush1.xpose.msra.mxu0 0.0
        %7549 = vmatprep.subr.mxu0 0.0
        %7550 = vmatpush1.xpose.msra.mxu0 0.0
        %7551 = vmatprep.subr.mxu0 0.0
        %7552 = vmatpush1.xpose.msra.mxu0 0.0
        %7553 = vmatprep.subr.mxu0 0.0
        %7554 = vmatpush1.xpose.msra.mxu0 0.0
        %7555 = vmatprep.subr.mxu0 0.0
        %7556 = vmatpush1.xpose.msra.mxu0 0.0
        %7557 = vmatprep.subr.mxu0 0.0
        %7558 = vmatpush1.xpose.msra.mxu0 0.0
        %7559 = vmatprep.subr.mxu0 0.0
        %7560 = vmatpush1.xpose.msra.mxu0 0.0
        %7561 = vmatprep.subr.mxu0 0.0
        %7562 = vmatpush1.xpose.msra.mxu0 0.0
        %7563 = vmatprep.subr.mxu0 0.0
        %7564 = vmatpush1.xpose.msra.mxu0 0.0
        %7565 = vmatprep.subr.mxu0 0.0
        %7566 = vmatpush1.xpose.msra.mxu0 0.0
        %7567 = vmatprep.subr.mxu0 0.0
        %7568 = vmatpush1.xpose.msra.mxu0 0.0
        %7569 = vmatprep.subr.mxu0 0.0
        %7570 = vmatpush1.xpose.msra.mxu0 0.0
        %7571 = vmatprep.subr.mxu0 0.0
        %7572 = vmatpush1.xpose.msra.mxu0 0.0
        %7573 = vmatprep.subr.mxu0 0.0
        %7574 = vmatpush1.xpose.msra.mxu0 0.0
        %7575 = vmatprep.subr.mxu0 0.0
        %7576 = vmatpush1.xpose.msra.mxu0 0.0
        %7577 = vmatprep.subr.mxu0 0.0
        %7578 = vmatpush1.xpose.msra.mxu0 0.0
        %7579 = vmatprep.mubr.f32.mxu0 0.0
        %v7580 = vand.u32 %v1609, 4294901760
        %7581 = vmatmul.mubr.f32.gmra.mrb[0].mxu0 %v7580
        %v7582 = vpop.f32.mrb[0].mxu0
        %v7583 = vadd.f32 %v7496, %v7582
        %v7584 = vpop.f32.mrb[0].mxu0
        %7585 = vdwg.mxu0
        %v7586 = vsel %vm6849, 3.4028235e+38, %v6705
        %v7587 = vsel %vm6850, 3.4028235e+38, %v6706
        %v7588 = vsel %vm6851, 3.4028235e+38, %v6707
        %v7589 = vsel %vm6852, 3.4028235e+38, %v6708
        %v7590 = vsel %vm6853, 3.4028235e+38, %v6709
        %v7591 = vsel %vm6854, 3.4028235e+38, %v6710
        %v7592 = vsel %vm6855, 3.4028235e+38, %v6711
        %v7593 = vsel %vm6856, 3.4028235e+38, %v6712
        %v7594 = vsel %vm6857, 3.4028235e+38, %v6713
        %v7595 = vsel %vm6858, 3.4028235e+38, %v6714
        %v7596 = vsel %vm6859, 3.4028235e+38, %v6715
        %v7597 = vsel %vm6860, 3.4028235e+38, %v6716
        %v7598 = vsel %vm6861, 3.4028235e+38, %v6717
        %v7599 = vsel %vm6862, 3.4028235e+38, %v6718
        %v7600 = vsel %vm6863, 3.4028235e+38, %v6719
        %v7601 = vsel %vm6864, 3.4028235e+38, %v6720
        %v7602 = vsel %vm1427, %v7586, inf
        %7603 = vmin.xlane.f32.xlu0 %v7602
        %v7604 = vpop.xlane.xlu0 %7603
        %v7605 = vsel %vm1427, %v7587, inf
        %7606 = vmin.xlane.f32.xlu0 %v7605
        %v7607 = vpop.xlane.xlu0 %7606
        %v7608 = vsel %vm1427, %v7588, inf
        %7609 = vmin.xlane.f32.xlu0 %v7608
        %v7610 = vpop.xlane.xlu0 %7609
        %v7611 = vsel %vm1427, %v7589, inf
        %7612 = vmin.xlane.f32.xlu0 %v7611
        %v7613 = vpop.xlane.xlu0 %7612
        %v7614 = vsel %vm1427, %v7590, inf
        %7615 = vmin.xlane.f32.xlu0 %v7614
        %v7616 = vpop.xlane.xlu0 %7615
        %v7617 = vsel %vm1427, %v7591, inf
        %7618 = vmin.xlane.f32.xlu0 %v7617
        %v7619 = vpop.xlane.xlu0 %7618
        %v7620 = vsel %vm1427, %v7592, inf
        %7621 = vmin.xlane.f32.xlu0 %v7620
        %v7622 = vpop.xlane.xlu0 %7621
        %v7623 = vsel %vm1427, %v7593, inf
        %7624 = vmin.xlane.f32.xlu0 %v7623
        %v7625 = vpop.xlane.xlu0 %7624
        %v7626 = vsel %vm1427, %v7594, inf
        %7627 = vmin.xlane.f32.xlu0 %v7626
        %v7628 = vpop.xlane.xlu0 %7627
        %v7629 = vsel %vm1427, %v7595, inf
        %7630 = vmin.xlane.f32.xlu0 %v7629
        %v7631 = vpop.xlane.xlu0 %7630
        %v7632 = vsel %vm1427, %v7596, inf
        %7633 = vmin.xlane.f32.xlu0 %v7632
        %v7634 = vpop.xlane.xlu0 %7633
        %v7635 = vsel %vm1427, %v7597, inf
        %7636 = vmin.xlane.f32.xlu0 %v7635
        %v7637 = vpop.xlane.xlu0 %7636
        %v7638 = vsel %vm1427, %v7598, inf
        %7639 = vmin.xlane.f32.xlu0 %v7638
        %v7640 = vpop.xlane.xlu0 %7639
        %v7641 = vsel %vm1427, %v7599, inf
        %7642 = vmin.xlane.f32.xlu0 %v7641
        %v7643 = vpop.xlane.xlu0 %7642
        %v7644 = vsel %vm1427, %v7600, inf
        %7645 = vmin.xlane.f32.xlu0 %v7644
        %v7646 = vpop.xlane.xlu0 %7645
        %v7647 = vsel %vm1427, %v7601, inf
        %7648 = vmin.xlane.f32.xlu0 %v7647
        %v7649 = vpop.xlane.xlu0 %7648
        %vm7650 = vcmp.le.f32.partialorder %v7586, %v7604
        %vm7651 = vcmp.le.f32.partialorder %v7587, %v7607
        %vm7652 = vcmp.le.f32.partialorder %v7588, %v7610
        %vm7653 = vcmp.le.f32.partialorder %v7589, %v7613
        %vm7654 = vcmp.le.f32.partialorder %v7590, %v7616
        %vm7655 = vcmp.le.f32.partialorder %v7591, %v7619
        %vm7656 = vcmp.le.f32.partialorder %v7592, %v7622
        %vm7657 = vcmp.le.f32.partialorder %v7593, %v7625
        %vm7658 = vcmp.le.f32.partialorder %v7594, %v7628
        %vm7659 = vcmp.le.f32.partialorder %v7595, %v7631
        %vm7660 = vcmp.le.f32.partialorder %v7596, %v7634
        %vm7661 = vcmp.le.f32.partialorder %v7597, %v7637
        %vm7662 = vcmp.le.f32.partialorder %v7598, %v7640
        %vm7663 = vcmp.le.f32.partialorder %v7599, %v7643
        %vm7664 = vcmp.le.f32.partialorder %v7600, %v7646
        %vm7665 = vcmp.le.f32.partialorder %v7601, %v7649
        %v7666 = vsel %vm7650, %v1495, 16.0
        %v7667 = vsel %vm7651, %v1495, 16.0
        %v7668 = vsel %vm7652, %v1495, 16.0
        %v7669 = vsel %vm7653, %v1495, 16.0
        %v7670 = vsel %vm7654, %v1495, 16.0
        %v7671 = vsel %vm7655, %v1495, 16.0
        %v7672 = vsel %vm7656, %v1495, 16.0
        %v7673 = vsel %vm7657, %v1495, 16.0
        %v7674 = vsel %vm7658, %v1495, 16.0
        %v7675 = vsel %vm7659, %v1495, 16.0
        %v7676 = vsel %vm7660, %v1495, 16.0
        %v7677 = vsel %vm7661, %v1495, 16.0
        %v7678 = vsel %vm7662, %v1495, 16.0
        %v7679 = vsel %vm7663, %v1495, 16.0
        %v7680 = vsel %vm7664, %v1495, 16.0
        %v7681 = vsel %vm7665, %v1495, 16.0
        %v7682 = vsel %vm1427, %v7666, inf
        %7683 = vmin.xlane.f32.xlu0 %v7682
        %v7684 = vpop.xlane.xlu0 %7683
        %v7685 = vsel %vm1427, %v7667, inf
        %7686 = vmin.xlane.f32.xlu0 %v7685
        %v7687 = vpop.xlane.xlu0 %7686
        %v7688 = vsel %vm1427, %v7668, inf
        %7689 = vmin.xlane.f32.xlu0 %v7688
        %v7690 = vpop.xlane.xlu0 %7689
        %v7691 = vsel %vm1427, %v7669, inf
        %7692 = vmin.xlane.f32.xlu0 %v7691
        %v7693 = vpop.xlane.xlu0 %7692
        %v7694 = vsel %vm1427, %v7670, inf
        %7695 = vmin.xlane.f32.xlu0 %v7694
        %v7696 = vpop.xlane.xlu0 %7695
        %v7697 = vsel %vm1427, %v7671, inf
        %7698 = vmin.xlane.f32.xlu0 %v7697
        %v7699 = vpop.xlane.xlu0 %7698
        %v7700 = vsel %vm1427, %v7672, inf
        %7701 = vmin.xlane.f32.xlu0 %v7700
        %v7702 = vpop.xlane.xlu0 %7701
        %v7703 = vsel %vm1427, %v7673, inf
        %7704 = vmin.xlane.f32.xlu0 %v7703
        %v7705 = vpop.xlane.xlu0 %7704
        %v7706 = vsel %vm1427, %v7674, inf
        %7707 = vmin.xlane.f32.xlu0 %v7706
        %v7708 = vpop.xlane.xlu0 %7707
        %v7709 = vsel %vm1427, %v7675, inf
        %7710 = vmin.xlane.f32.xlu0 %v7709
        %v7711 = vpop.xlane.xlu0 %7710
        %v7712 = vsel %vm1427, %v7676, inf
        %7713 = vmin.xlane.f32.xlu0 %v7712
        %v7714 = vpop.xlane.xlu0 %7713
        %v7715 = vsel %vm1427, %v7677, inf
        %7716 = vmin.xlane.f32.xlu0 %v7715
        %v7717 = vpop.xlane.xlu0 %7716
        %v7718 = vsel %vm1427, %v7678, inf
        %7719 = vmin.xlane.f32.xlu0 %v7718
        %v7720 = vpop.xlane.xlu0 %7719
        %v7721 = vsel %vm1427, %v7679, inf
        %7722 = vmin.xlane.f32.xlu0 %v7721
        %v7723 = vpop.xlane.xlu0 %7722
        %v7724 = vsel %vm1427, %v7680, inf
        %7725 = vmin.xlane.f32.xlu0 %v7724
        %v7726 = vpop.xlane.xlu0 %7725
        %v7727 = vsel %vm1427, %v7681, inf
        %7728 = vmin.xlane.f32.xlu0 %v7727
        %v7729 = vpop.xlane.xlu0 %7728
        %vm7730 = vcmp.eq.f32.partialorder %v1495, %v7684
        %vm7731 = vcmp.eq.f32.partialorder %v1495, %v7687
        %vm7732 = vcmp.eq.f32.partialorder %v1495, %v7690
        %vm7733 = vcmp.eq.f32.partialorder %v1495, %v7693
        %vm7734 = vcmp.eq.f32.partialorder %v1495, %v7696
        %vm7735 = vcmp.eq.f32.partialorder %v1495, %v7699
        %vm7736 = vcmp.eq.f32.partialorder %v1495, %v7702
        %vm7737 = vcmp.eq.f32.partialorder %v1495, %v7705
        %vm7738 = vcmp.eq.f32.partialorder %v1495, %v7708
        %vm7739 = vcmp.eq.f32.partialorder %v1495, %v7711
        %vm7740 = vcmp.eq.f32.partialorder %v1495, %v7714
        %vm7741 = vcmp.eq.f32.partialorder %v1495, %v7717
        %vm7742 = vcmp.eq.f32.partialorder %v1495, %v7720
        %vm7743 = vcmp.eq.f32.partialorder %v1495, %v7723
        %vm7744 = vcmp.eq.f32.partialorder %v1495, %v7726
        %vm7745 = vcmp.eq.f32.partialorder %v1495, %v7729
        %v7746 = vsel %vm7730, 1, 0
        %v7747 = vsel %vm7731, 1, 0
        %v7748 = vsel %vm7732, 1, 0
        %v7749 = vsel %vm7733, 1, 0
        %v7750 = vsel %vm7734, 1, 0
        %v7751 = vsel %vm7735, 1, 0
        %v7752 = vsel %vm7736, 1, 0
        %v7753 = vsel %vm7737, 1, 0
        %v7754 = vsel %vm7738, 1, 0
        %v7755 = vsel %vm7739, 1, 0
        %v7756 = vsel %vm7740, 1, 0
        %v7757 = vsel %vm7741, 1, 0
        %v7758 = vsel %vm7742, 1, 0
        %v7759 = vsel %vm7743, 1, 0
        %v7760 = vsel %vm7744, 1, 0
        %v7761 = vsel %vm7745, 1, 0
        %v7762 = vcvt.s32.f32 %v7746
        %v7763 = vcvt.s32.f32 %v7747
        %v7764 = vcvt.s32.f32 %v7748
        %v7765 = vcvt.s32.f32 %v7749
        %v7766 = vcvt.s32.f32 %v7750
        %v7767 = vcvt.s32.f32 %v7751
        %v7768 = vcvt.s32.f32 %v7752
        %v7769 = vcvt.s32.f32 %v7753
        %v7770 = vcvt.s32.f32 %v7754
        %v7771 = vcvt.s32.f32 %v7755
        %v7772 = vcvt.s32.f32 %v7756
        %v7773 = vcvt.s32.f32 %v7757
        %v7774 = vcvt.s32.f32 %v7758
        %v7775 = vcvt.s32.f32 %v7759
        %v7776 = vcvt.s32.f32 %v7760
        %v7777 = vcvt.s32.f32 %v7761
        %v7779 = vsel %vm1427, %v7762, 0
        %v7782 = vsel %vm1427, %v7763, 0
        %v7785 = vsel %vm1427, %v7764, 0
        %v7788 = vsel %vm1427, %v7765, 0
        %v7791 = vsel %vm1427, %v7766, 0
        %v7794 = vsel %vm1427, %v7767, 0
        %v7797 = vsel %vm1427, %v7768, 0
        %v7800 = vsel %vm1427, %v7769, 0
        %v7803 = vsel %vm1427, %v7770, 0
        %v7806 = vsel %vm1427, %v7771, 0
        %v7809 = vsel %vm1427, %v7772, 0
        %v7812 = vsel %vm1427, %v7773, 0
        %v7815 = vsel %vm1427, %v7774, 0
        %v7818 = vsel %vm1427, %v7775, 0
        %v7821 = vsel %vm1427, %v7776, 0
        %v7824 = vsel %vm1427, %v7777, 0
        %7826 = vmatprep.subr.mxu0 0.0
        %v7827 = vand.u32 %v7779, 4294901760
        %7828 = vmatpush1.xpose.msra.mxu0 %v7827
        %7829 = vmatprep.subr.mxu0 0.0
        %v7830 = vand.u32 %v7782, 4294901760
        %7831 = vmatpush1.xpose.msra.mxu0 %v7830
        %7832 = vmatprep.subr.mxu0 0.0
        %v7833 = vand.u32 %v7785, 4294901760
        %7834 = vmatpush1.xpose.msra.mxu0 %v7833
        %7835 = vmatprep.subr.mxu0 0.0
        %v7836 = vand.u32 %v7788, 4294901760
        %7837 = vmatpush1.xpose.msra.mxu0 %v7836
        %7838 = vmatprep.subr.mxu0 0.0
        %v7839 = vand.u32 %v7791, 4294901760
        %7840 = vmatpush1.xpose.msra.mxu0 %v7839
        %7841 = vmatprep.subr.mxu0 0.0
        %v7842 = vand.u32 %v7794, 4294901760
        %7843 = vmatpush1.xpose.msra.mxu0 %v7842
        %7844 = vmatprep.subr.mxu0 0.0
        %v7845 = vand.u32 %v7797, 4294901760
        %7846 = vmatpush1.xpose.msra.mxu0 %v7845
        %7847 = vmatprep.subr.mxu0 0.0
        %v7848 = vand.u32 %v7800, 4294901760
        %7849 = vmatpush1.xpose.msra.mxu0 %v7848
        %7850 = vmatprep.subr.mxu0 0.0
        %v7851 = vand.u32 %v7803, 4294901760
        %7852 = vmatpush1.xpose.msra.mxu0 %v7851
        %7853 = vmatprep.subr.mxu0 0.0
        %v7854 = vand.u32 %v7806, 4294901760
        %7855 = vmatpush1.xpose.msra.mxu0 %v7854
        %7856 = vmatprep.subr.mxu0 0.0
        %v7857 = vand.u32 %v7809, 4294901760
        %7858 = vmatpush1.xpose.msra.mxu0 %v7857
        %7859 = vmatprep.subr.mxu0 0.0
        %v7860 = vand.u32 %v7812, 4294901760
        %7861 = vmatpush1.xpose.msra.mxu0 %v7860
        %7862 = vmatprep.subr.mxu0 0.0
        %v7863 = vand.u32 %v7815, 4294901760
        %7864 = vmatpush1.xpose.msra.mxu0 %v7863
        %7865 = vmatprep.subr.mxu0 0.0
        %v7866 = vand.u32 %v7818, 4294901760
        %7867 = vmatpush1.xpose.msra.mxu0 %v7866
        %7868 = vmatprep.subr.mxu0 0.0
        %v7869 = vand.u32 %v7821, 4294901760
        %7870 = vmatpush1.xpose.msra.mxu0 %v7869
        %7871 = vmatprep.subr.mxu0 0.0
        %v7872 = vand.u32 %v7824, 4294901760
        %7873 = vmatpush1.xpose.msra.mxu0 %v7872
        %7874 = vmatprep.subr.mxu0 0.0
        %7875 = vmatpush1.xpose.msra.mxu0 0.0
        %7876 = vmatprep.subr.mxu0 0.0
        %7877 = vmatpush1.xpose.msra.mxu0 0.0
        %7878 = vmatprep.subr.mxu0 0.0
        %7879 = vmatpush1.xpose.msra.mxu0 0.0
        %7880 = vmatprep.subr.mxu0 0.0
        %7881 = vmatpush1.xpose.msra.mxu0 0.0
        %7882 = vmatprep.subr.mxu0 0.0
        %7883 = vmatpush1.xpose.msra.mxu0 0.0
        %7884 = vmatprep.subr.mxu0 0.0
        %7885 = vmatpush1.xpose.msra.mxu0 0.0
        %7886 = vmatprep.subr.mxu0 0.0
        %7887 = vmatpush1.xpose.msra.mxu0 0.0
        %7888 = vmatprep.subr.mxu0 0.0
        %7889 = vmatpush1.xpose.msra.mxu0 0.0
        %7890 = vmatprep.subr.mxu0 0.0
        %7891 = vmatpush1.xpose.msra.mxu0 0.0
        %7892 = vmatprep.subr.mxu0 0.0
        %7893 = vmatpush1.xpose.msra.mxu0 0.0
        %7894 = vmatprep.subr.mxu0 0.0
        %7895 = vmatpush1.xpose.msra.mxu0 0.0
        %7896 = vmatprep.subr.mxu0 0.0
        %7897 = vmatpush1.xpose.msra.mxu0 0.0
        %7898 = vmatprep.subr.mxu0 0.0
        %7899 = vmatpush1.xpose.msra.mxu0 0.0
        %7900 = vmatprep.subr.mxu0 0.0
        %7901 = vmatpush1.xpose.msra.mxu0 0.0
        %7902 = vmatprep.subr.mxu0 0.0
        %7903 = vmatpush1.xpose.msra.mxu0 0.0
        %7904 = vmatprep.subr.mxu0 0.0
        %7905 = vmatpush1.xpose.msra.mxu0 0.0
        %7906 = vmatprep.mubr.f32.mxu0 0.0
        %v7907 = vand.u32 %v1609, 4294901760
        %v7908 = vsub.f32 %v1609, %v7907
        %v7909 = vand.u32 %v7908, 4294901760
        %v7910 = vsub.f32 %v7908, %v7909
        %v7911 = vand.u32 %v7910, 4294901760
        %7912 = vmatmul.mubr.f32.gmra.mrb[0].mxu0 %v7911
        %v7913 = vpop.f32.mrb[0].mxu0
        %v7914 = vadd.f32 0.0, %v7913
        %v7915 = vpop.f32.mrb[0].mxu0
        %7916 = vdwg.mxu0
        %7917 = vmatprep.subr.mxu0 0.0
        %v7918 = vand.u32 %v7779, 4294901760
        %v7919 = vsub.f32 %v7779, %v7918
        %v7920 = vand.u32 %v7919, 4294901760
        %v7921 = vsub.f32 %v7919, %v7920
        %v7922 = vand.u32 %v7921, 4294901760
        %7923 = vmatpush1.xpose.msra.mxu0 %v7922
        %7924 = vmatprep.subr.mxu0 0.0
        %v7925 = vand.u32 %v7782, 4294901760
        %v7926 = vsub.f32 %v7782, %v7925
        %v7927 = vand.u32 %v7926, 4294901760
        %v7928 = vsub.f32 %v7926, %v7927
        %v7929 = vand.u32 %v7928, 4294901760
        %7930 = vmatpush1.xpose.msra.mxu0 %v7929
        %7931 = vmatprep.subr.mxu0 0.0
        %v7932 = vand.u32 %v7785, 4294901760
        %v7933 = vsub.f32 %v7785, %v7932
        %v7934 = vand.u32 %v7933, 4294901760
        %v7935 = vsub.f32 %v7933, %v7934
        %v7936 = vand.u32 %v7935, 4294901760
        %7937 = vmatpush1.xpose.msra.mxu0 %v7936
        %7938 = vmatprep.subr.mxu0 0.0
        %v7939 = vand.u32 %v7788, 4294901760
        %v7940 = vsub.f32 %v7788, %v7939
        %v7941 = vand.u32 %v7940, 4294901760
        %v7942 = vsub.f32 %v7940, %v7941
        %v7943 = vand.u32 %v7942, 4294901760
        %7944 = vmatpush1.xpose.msra.mxu0 %v7943
        %7945 = vmatprep.subr.mxu0 0.0
        %v7946 = vand.u32 %v7791, 4294901760
        %v7947 = vsub.f32 %v7791, %v7946
        %v7948 = vand.u32 %v7947, 4294901760
        %v7949 = vsub.f32 %v7947, %v7948
        %v7950 = vand.u32 %v7949, 4294901760
        %7951 = vmatpush1.xpose.msra.mxu0 %v7950
        %7952 = vmatprep.subr.mxu0 0.0
        %v7953 = vand.u32 %v7794, 4294901760
        %v7954 = vsub.f32 %v7794, %v7953
        %v7955 = vand.u32 %v7954, 4294901760
        %v7956 = vsub.f32 %v7954, %v7955
        %v7957 = vand.u32 %v7956, 4294901760
        %7958 = vmatpush1.xpose.msra.mxu0 %v7957
        %7959 = vmatprep.subr.mxu0 0.0
        %v7960 = vand.u32 %v7797, 4294901760
        %v7961 = vsub.f32 %v7797, %v7960
        %v7962 = vand.u32 %v7961, 4294901760
        %v7963 = vsub.f32 %v7961, %v7962
        %v7964 = vand.u32 %v7963, 4294901760
        %7965 = vmatpush1.xpose.msra.mxu0 %v7964
        %7966 = vmatprep.subr.mxu0 0.0
        %v7967 = vand.u32 %v7800, 4294901760
        %v7968 = vsub.f32 %v7800, %v7967
        %v7969 = vand.u32 %v7968, 4294901760
        %v7970 = vsub.f32 %v7968, %v7969
        %v7971 = vand.u32 %v7970, 4294901760
        %7972 = vmatpush1.xpose.msra.mxu0 %v7971
        %7973 = vmatprep.subr.mxu0 0.0
        %v7974 = vand.u32 %v7803, 4294901760
        %v7975 = vsub.f32 %v7803, %v7974
        %v7976 = vand.u32 %v7975, 4294901760
        %v7977 = vsub.f32 %v7975, %v7976
        %v7978 = vand.u32 %v7977, 4294901760
        %7979 = vmatpush1.xpose.msra.mxu0 %v7978
        %7980 = vmatprep.subr.mxu0 0.0
        %v7981 = vand.u32 %v7806, 4294901760
        %v7982 = vsub.f32 %v7806, %v7981
        %v7983 = vand.u32 %v7982, 4294901760
        %v7984 = vsub.f32 %v7982, %v7983
        %v7985 = vand.u32 %v7984, 4294901760
        %7986 = vmatpush1.xpose.msra.mxu0 %v7985
        %7987 = vmatprep.subr.mxu0 0.0
        %v7988 = vand.u32 %v7809, 4294901760
        %v7989 = vsub.f32 %v7809, %v7988
        %v7990 = vand.u32 %v7989, 4294901760
        %v7991 = vsub.f32 %v7989, %v7990
        %v7992 = vand.u32 %v7991, 4294901760
        %7993 = vmatpush1.xpose.msra.mxu0 %v7992
        %7994 = vmatprep.subr.mxu0 0.0
        %v7995 = vand.u32 %v7812, 4294901760
        %v7996 = vsub.f32 %v7812, %v7995
        %v7997 = vand.u32 %v7996, 4294901760
        %v7998 = vsub.f32 %v7996, %v7997
        %v7999 = vand.u32 %v7998, 4294901760
        %8000 = vmatpush1.xpose.msra.mxu0 %v7999
        %8001 = vmatprep.subr.mxu0 0.0
        %v8002 = vand.u32 %v7815, 4294901760
        %v8003 = vsub.f32 %v7815, %v8002
        %v8004 = vand.u32 %v8003, 4294901760
        %v8005 = vsub.f32 %v8003, %v8004
        %v8006 = vand.u32 %v8005, 4294901760
        %8007 = vmatpush1.xpose.msra.mxu0 %v8006
        %8008 = vmatprep.subr.mxu0 0.0
        %v8009 = vand.u32 %v7818, 4294901760
        %v8010 = vsub.f32 %v7818, %v8009
        %v8011 = vand.u32 %v8010, 4294901760
        %v8012 = vsub.f32 %v8010, %v8011
        %v8013 = vand.u32 %v8012, 4294901760
        %8014 = vmatpush1.xpose.msra.mxu0 %v8013
        %8015 = vmatprep.subr.mxu0 0.0
        %v8016 = vand.u32 %v7821, 4294901760
        %v8017 = vsub.f32 %v7821, %v8016
        %v8018 = vand.u32 %v8017, 4294901760
        %v8019 = vsub.f32 %v8017, %v8018
        %v8020 = vand.u32 %v8019, 4294901760
        %8021 = vmatpush1.xpose.msra.mxu0 %v8020
        %8022 = vmatprep.subr.mxu0 0.0
        %v8023 = vand.u32 %v7824, 4294901760
        %v8024 = vsub.f32 %v7824, %v8023
        %v8025 = vand.u32 %v8024, 4294901760
        %v8026 = vsub.f32 %v8024, %v8025
        %v8027 = vand.u32 %v8026, 4294901760
        %8028 = vmatpush1.xpose.msra.mxu0 %v8027
        %8029 = vmatprep.subr.mxu0 0.0
        %8030 = vmatpush1.xpose.msra.mxu0 0.0
        %8031 = vmatprep.subr.mxu0 0.0
        %8032 = vmatpush1.xpose.msra.mxu0 0.0
        %8033 = vmatprep.subr.mxu0 0.0
        %8034 = vmatpush1.xpose.msra.mxu0 0.0
        %8035 = vmatprep.subr.mxu0 0.0
        %8036 = vmatpush1.xpose.msra.mxu0 0.0
        %8037 = vmatprep.subr.mxu0 0.0
        %8038 = vmatpush1.xpose.msra.mxu0 0.0
        %8039 = vmatprep.subr.mxu0 0.0
        %8040 = vmatpush1.xpose.msra.mxu0 0.0
        %8041 = vmatprep.subr.mxu0 0.0
        %8042 = vmatpush1.xpose.msra.mxu0 0.0
        %8043 = vmatprep.subr.mxu0 0.0
        %8044 = vmatpush1.xpose.msra.mxu0 0.0
        %8045 = vmatprep.subr.mxu0 0.0
        %8046 = vmatpush1.xpose.msra.mxu0 0.0
        %8047 = vmatprep.subr.mxu0 0.0
        %8048 = vmatpush1.xpose.msra.mxu0 0.0
        %8049 = vmatprep.subr.mxu0 0.0
        %8050 = vmatpush1.xpose.msra.mxu0 0.0
        %8051 = vmatprep.subr.mxu0 0.0
        %8052 = vmatpush1.xpose.msra.mxu0 0.0
        %8053 = vmatprep.subr.mxu0 0.0
        %8054 = vmatpush1.xpose.msra.mxu0 0.0
        %8055 = vmatprep.subr.mxu0 0.0
        %8056 = vmatpush1.xpose.msra.mxu0 0.0
        %8057 = vmatprep.subr.mxu0 0.0
        %8058 = vmatpush1.xpose.msra.mxu0 0.0
        %8059 = vmatprep.subr.mxu0 0.0
        %8060 = vmatpush1.xpose.msra.mxu0 0.0
        %8061 = vmatprep.mubr.f32.mxu0 0.0
        %v8062 = vand.u32 %v1609, 4294901760
        %8063 = vmatmul.mubr.f32.gmra.mrb[0].mxu0 %v8062
        %v8064 = vpop.f32.mrb[0].mxu0
        %v8065 = vadd.f32 %v7914, %v8064
        %v8066 = vpop.f32.mrb[0].mxu0
        %8067 = vdwg.mxu0
        %8068 = vmatprep.subr.mxu0 0.0
        %v8069 = vand.u32 %v7779, 4294901760
        %v8070 = vsub.f32 %v7779, %v8069
        %8071 = vmatpush1.xpose.msra.mxu0 %v8070
        %8072 = vmatprep.subr.mxu0 0.0
        %v8073 = vand.u32 %v7782, 4294901760
        %v8074 = vsub.f32 %v7782, %v8073
        %8075 = vmatpush1.xpose.msra.mxu0 %v8074
        %8076 = vmatprep.subr.mxu0 0.0
        %v8077 = vand.u32 %v7785, 4294901760
        %v8078 = vsub.f32 %v7785, %v8077
        %8079 = vmatpush1.xpose.msra.mxu0 %v8078
        %8080 = vmatprep.subr.mxu0 0.0
        %v8081 = vand.u32 %v7788, 4294901760
        %v8082 = vsub.f32 %v7788, %v8081
        %8083 = vmatpush1.xpose.msra.mxu0 %v8082
        %8084 = vmatprep.subr.mxu0 0.0
        %v8085 = vand.u32 %v7791, 4294901760
        %v8086 = vsub.f32 %v7791, %v8085
        %8087 = vmatpush1.xpose.msra.mxu0 %v8086
        %8088 = vmatprep.subr.mxu0 0.0
        %v8089 = vand.u32 %v7794, 4294901760
        %v8090 = vsub.f32 %v7794, %v8089
        %8091 = vmatpush1.xpose.msra.mxu0 %v8090
        %8092 = vmatprep.subr.mxu0 0.0
        %v8093 = vand.u32 %v7797, 4294901760
        %v8094 = vsub.f32 %v7797, %v8093
        %8095 = vmatpush1.xpose.msra.mxu0 %v8094
        %8096 = vmatprep.subr.mxu0 0.0
        %v8097 = vand.u32 %v7800, 4294901760
        %v8098 = vsub.f32 %v7800, %v8097
        %8099 = vmatpush1.xpose.msra.mxu0 %v8098
        %8100 = vmatprep.subr.mxu0 0.0
        %v8101 = vand.u32 %v7803, 4294901760
        %v8102 = vsub.f32 %v7803, %v8101
        %8103 = vmatpush1.xpose.msra.mxu0 %v8102
        %8104 = vmatprep.subr.mxu0 0.0
        %v8105 = vand.u32 %v7806, 4294901760
        %v8106 = vsub.f32 %v7806, %v8105
        %8107 = vmatpush1.xpose.msra.mxu0 %v8106
        %8108 = vmatprep.subr.mxu0 0.0
        %v8109 = vand.u32 %v7809, 4294901760
        %v8110 = vsub.f32 %v7809, %v8109
        %8111 = vmatpush1.xpose.msra.mxu0 %v8110
        %8112 = vmatprep.subr.mxu0 0.0
        %v8113 = vand.u32 %v7812, 4294901760
        %v8114 = vsub.f32 %v7812, %v8113
        %8115 = vmatpush1.xpose.msra.mxu0 %v8114
        %8116 = vmatprep.subr.mxu0 0.0
        %v8117 = vand.u32 %v7815, 4294901760
        %v8118 = vsub.f32 %v7815, %v8117
        %8119 = vmatpush1.xpose.msra.mxu0 %v8118
        %8120 = vmatprep.subr.mxu0 0.0
        %v8121 = vand.u32 %v7818, 4294901760
        %v8122 = vsub.f32 %v7818, %v8121
        %8123 = vmatpush1.xpose.msra.mxu0 %v8122
        %8124 = vmatprep.subr.mxu0 0.0
        %v8125 = vand.u32 %v7821, 4294901760
        %v8126 = vsub.f32 %v7821, %v8125
        %8127 = vmatpush1.xpose.msra.mxu0 %v8126
        %8128 = vmatprep.subr.mxu0 0.0
        %v8129 = vand.u32 %v7824, 4294901760
        %v8130 = vsub.f32 %v7824, %v8129
        %8131 = vmatpush1.xpose.msra.mxu0 %v8130
        %8132 = vmatprep.subr.mxu0 0.0
        %8133 = vmatpush1.xpose.msra.mxu0 0.0
        %8134 = vmatprep.subr.mxu0 0.0
        %8135 = vmatpush1.xpose.msra.mxu0 0.0
        %8136 = vmatprep.subr.mxu0 0.0
        %8137 = vmatpush1.xpose.msra.mxu0 0.0
        %8138 = vmatprep.subr.mxu0 0.0
        %8139 = vmatpush1.xpose.msra.mxu0 0.0
        %8140 = vmatprep.subr.mxu0 0.0
        %8141 = vmatpush1.xpose.msra.mxu0 0.0
        %8142 = vmatprep.subr.mxu0 0.0
        %8143 = vmatpush1.xpose.msra.mxu0 0.0
        %8144 = vmatprep.subr.mxu0 0.0
        %8145 = vmatpush1.xpose.msra.mxu0 0.0
        %8146 = vmatprep.subr.mxu0 0.0
        %8147 = vmatpush1.xpose.msra.mxu0 0.0
        %8148 = vmatprep.subr.mxu0 0.0
        %8149 = vmatpush1.xpose.msra.mxu0 0.0
        %8150 = vmatprep.subr.mxu0 0.0
        %8151 = vmatpush1.xpose.msra.mxu0 0.0
        %8152 = vmatprep.subr.mxu0 0.0
        %8153 = vmatpush1.xpose.msra.mxu0 0.0
        %8154 = vmatprep.subr.mxu0 0.0
        %8155 = vmatpush1.xpose.msra.mxu0 0.0
        %8156 = vmatprep.subr.mxu0 0.0
        %8157 = vmatpush1.xpose.msra.mxu0 0.0
        %8158 = vmatprep.subr.mxu0 0.0
        %8159 = vmatpush1.xpose.msra.mxu0 0.0
        %8160 = vmatprep.subr.mxu0 0.0
        %8161 = vmatpush1.xpose.msra.mxu0 0.0
        %8162 = vmatprep.subr.mxu0 0.0
        %8163 = vmatpush1.xpose.msra.mxu0 0.0
        %8164 = vmatprep.mubr.f32.mxu0 0.0
        %v8165 = vand.u32 %v1609, 4294901760
        %v8166 = vsub.f32 %v1609, %v8165
        %8167 = vmatmul.mubr.f32.gmra.mrb[0].mxu0 %v8166
        %v8168 = vpop.f32.mrb[0].mxu0
        %v8169 = vadd.f32 %v8065, %v8168
        %v8170 = vpop.f32.mrb[0].mxu0
        %8171 = vdwg.mxu0
        %8172 = vmatprep.subr.mxu0 0.0
        %v8173 = vand.u32 %v7779, 4294901760
        %8174 = vmatpush1.xpose.msra.mxu0 %v8173
        %8175 = vmatprep.subr.mxu0 0.0
        %v8176 = vand.u32 %v7782, 4294901760
        %8177 = vmatpush1.xpose.msra.mxu0 %v8176
        %8178 = vmatprep.subr.mxu0 0.0
        %v8179 = vand.u32 %v7785, 4294901760
        %8180 = vmatpush1.xpose.msra.mxu0 %v8179
        %8181 = vmatprep.subr.mxu0 0.0
        %v8182 = vand.u32 %v7788, 4294901760
        %8183 = vmatpush1.xpose.msra.mxu0 %v8182
        %8184 = vmatprep.subr.mxu0 0.0
        %v8185 = vand.u32 %v7791, 4294901760
        %8186 = vmatpush1.xpose.msra.mxu0 %v8185
        %8187 = vmatprep.subr.mxu0 0.0
        %v8188 = vand.u32 %v7794, 4294901760
        %8189 = vmatpush1.xpose.msra.mxu0 %v8188
        %8190 = vmatprep.subr.mxu0 0.0
        %v8191 = vand.u32 %v7797, 4294901760
        %8192 = vmatpush1.xpose.msra.mxu0 %v8191
        %8193 = vmatprep.subr.mxu0 0.0
        %v8194 = vand.u32 %v7800, 4294901760
        %8195 = vmatpush1.xpose.msra.mxu0 %v8194
        %8196 = vmatprep.subr.mxu0 0.0
        %v8197 = vand.u32 %v7803, 4294901760
        %8198 = vmatpush1.xpose.msra.mxu0 %v8197
        %8199 = vmatprep.subr.mxu0 0.0
        %v8200 = vand.u32 %v7806, 4294901760
        %8201 = vmatpush1.xpose.msra.mxu0 %v8200
        %8202 = vmatprep.subr.mxu0 0.0
        %v8203 = vand.u32 %v7809, 4294901760
        %8204 = vmatpush1.xpose.msra.mxu0 %v8203
        %8205 = vmatprep.subr.mxu0 0.0
        %v8206 = vand.u32 %v7812, 4294901760
        %8207 = vmatpush1.xpose.msra.mxu0 %v8206
        %8208 = vmatprep.subr.mxu0 0.0
        %v8209 = vand.u32 %v7815, 4294901760
        %8210 = vmatpush1.xpose.msra.mxu0 %v8209
        %8211 = vmatprep.subr.mxu0 0.0
        %v8212 = vand.u32 %v7818, 4294901760
        %8213 = vmatpush1.xpose.msra.mxu0 %v8212
        %8214 = vmatprep.subr.mxu0 0.0
        %v8215 = vand.u32 %v7821, 4294901760
        %8216 = vmatpush1.xpose.msra.mxu0 %v8215
        %8217 = vmatprep.subr.mxu0 0.0
        %v8218 = vand.u32 %v7824, 4294901760
        %8219 = vmatpush1.xpose.msra.mxu0 %v8218
        %8220 = vmatprep.subr.mxu0 0.0
        %8221 = vmatpush1.xpose.msra.mxu0 0.0
        %8222 = vmatprep.subr.mxu0 0.0
        %8223 = vmatpush1.xpose.msra.mxu0 0.0
        %8224 = vmatprep.subr.mxu0 0.0
        %8225 = vmatpush1.xpose.msra.mxu0 0.0
        %8226 = vmatprep.subr.mxu0 0.0
        %8227 = vmatpush1.xpose.msra.mxu0 0.0
        %8228 = vmatprep.subr.mxu0 0.0
        %8229 = vmatpush1.xpose.msra.mxu0 0.0
        %8230 = vmatprep.subr.mxu0 0.0
        %8231 = vmatpush1.xpose.msra.mxu0 0.0
        %8232 = vmatprep.subr.mxu0 0.0
        %8233 = vmatpush1.xpose.msra.mxu0 0.0
        %8234 = vmatprep.subr.mxu0 0.0
        %8235 = vmatpush1.xpose.msra.mxu0 0.0
        %8236 = vmatprep.subr.mxu0 0.0
        %8237 = vmatpush1.xpose.msra.mxu0 0.0
        %8238 = vmatprep.subr.mxu0 0.0
        %8239 = vmatpush1.xpose.msra.mxu0 0.0
        %8240 = vmatprep.subr.mxu0 0.0
        %8241 = vmatpush1.xpose.msra.mxu0 0.0
        %8242 = vmatprep.subr.mxu0 0.0
        %8243 = vmatpush1.xpose.msra.mxu0 0.0
        %8244 = vmatprep.subr.mxu0 0.0
        %8245 = vmatpush1.xpose.msra.mxu0 0.0
        %8246 = vmatprep.subr.mxu0 0.0
        %8247 = vmatpush1.xpose.msra.mxu0 0.0
        %8248 = vmatprep.subr.mxu0 0.0
        %8249 = vmatpush1.xpose.msra.mxu0 0.0
        %8250 = vmatprep.subr.mxu0 0.0
        %8251 = vmatpush1.xpose.msra.mxu0 0.0
        %8252 = vmatprep.mubr.f32.mxu0 0.0
        %v8253 = vand.u32 %v1609, 4294901760
        %v8254 = vsub.f32 %v1609, %v8253
        %v8255 = vand.u32 %v8254, 4294901760
        %8256 = vmatmul.mubr.f32.gmra.mrb[0].mxu0 %v8255
        %v8257 = vpop.f32.mrb[0].mxu0
        %v8258 = vadd.f32 %v8169, %v8257
        %v8259 = vpop.f32.mrb[0].mxu0
        %8260 = vdwg.mxu0
        %8261 = vmatprep.subr.mxu0 0.0
        %v8262 = vand.u32 %v7779, 4294901760
        %v8263 = vsub.f32 %v7779, %v8262
        %v8264 = vand.u32 %v8263, 4294901760
        %8265 = vmatpush1.xpose.msra.mxu0 %v8264
        %8266 = vmatprep.subr.mxu0 0.0
        %v8267 = vand.u32 %v7782, 4294901760
        %v8268 = vsub.f32 %v7782, %v8267
        %v8269 = vand.u32 %v8268, 4294901760
        %8270 = vmatpush1.xpose.msra.mxu0 %v8269
        %8271 = vmatprep.subr.mxu0 0.0
        %v8272 = vand.u32 %v7785, 4294901760
        %v8273 = vsub.f32 %v7785, %v8272
        %v8274 = vand.u32 %v8273, 4294901760
        %8275 = vmatpush1.xpose.msra.mxu0 %v8274
        %8276 = vmatprep.subr.mxu0 0.0
        %v8277 = vand.u32 %v7788, 4294901760
        %v8278 = vsub.f32 %v7788, %v8277
        %v8279 = vand.u32 %v8278, 4294901760
        %8280 = vmatpush1.xpose.msra.mxu0 %v8279
        %8281 = vmatprep.subr.mxu0 0.0
        %v8282 = vand.u32 %v7791, 4294901760
        %v8283 = vsub.f32 %v7791, %v8282
        %v8284 = vand.u32 %v8283, 4294901760
        %8285 = vmatpush1.xpose.msra.mxu0 %v8284
        %8286 = vmatprep.subr.mxu0 0.0
        %v8287 = vand.u32 %v7794, 4294901760
        %v8288 = vsub.f32 %v7794, %v8287
        %v8289 = vand.u32 %v8288, 4294901760
        %8290 = vmatpush1.xpose.msra.mxu0 %v8289
        %8291 = vmatprep.subr.mxu0 0.0
        %v8292 = vand.u32 %v7797, 4294901760
        %v8293 = vsub.f32 %v7797, %v8292
        %v8294 = vand.u32 %v8293, 4294901760
        %8295 = vmatpush1.xpose.msra.mxu0 %v8294
        %8296 = vmatprep.subr.mxu0 0.0
        %v8297 = vand.u32 %v7800, 4294901760
        %v8298 = vsub.f32 %v7800, %v8297
        %v8299 = vand.u32 %v8298, 4294901760
        %8300 = vmatpush1.xpose.msra.mxu0 %v8299
        %8301 = vmatprep.subr.mxu0 0.0
        %v8302 = vand.u32 %v7803, 4294901760
        %v8303 = vsub.f32 %v7803, %v8302
        %v8304 = vand.u32 %v8303, 4294901760
        %8305 = vmatpush1.xpose.msra.mxu0 %v8304
        %8306 = vmatprep.subr.mxu0 0.0
        %v8307 = vand.u32 %v7806, 4294901760
        %v8308 = vsub.f32 %v7806, %v8307
        %v8309 = vand.u32 %v8308, 4294901760
        %8310 = vmatpush1.xpose.msra.mxu0 %v8309
        %8311 = vmatprep.subr.mxu0 0.0
        %v8312 = vand.u32 %v7809, 4294901760
        %v8313 = vsub.f32 %v7809, %v8312
        %v8314 = vand.u32 %v8313, 4294901760
        %8315 = vmatpush1.xpose.msra.mxu0 %v8314
        %8316 = vmatprep.subr.mxu0 0.0
        %v8317 = vand.u32 %v7812, 4294901760
        %v8318 = vsub.f32 %v7812, %v8317
        %v8319 = vand.u32 %v8318, 4294901760
        %8320 = vmatpush1.xpose.msra.mxu0 %v8319
        %8321 = vmatprep.subr.mxu0 0.0
        %v8322 = vand.u32 %v7815, 4294901760
        %v8323 = vsub.f32 %v7815, %v8322
        %v8324 = vand.u32 %v8323, 4294901760
        %8325 = vmatpush1.xpose.msra.mxu0 %v8324
        %8326 = vmatprep.subr.mxu0 0.0
        %v8327 = vand.u32 %v7818, 4294901760
        %v8328 = vsub.f32 %v7818, %v8327
        %v8329 = vand.u32 %v8328, 4294901760
        %8330 = vmatpush1.xpose.msra.mxu0 %v8329
        %8331 = vmatprep.subr.mxu0 0.0
        %v8332 = vand.u32 %v7821, 4294901760
        %v8333 = vsub.f32 %v7821, %v8332
        %v8334 = vand.u32 %v8333, 4294901760
        %8335 = vmatpush1.xpose.msra.mxu0 %v8334
        %8336 = vmatprep.subr.mxu0 0.0
        %v8337 = vand.u32 %v7824, 4294901760
        %v8338 = vsub.f32 %v7824, %v8337
        %v8339 = vand.u32 %v8338, 4294901760
        %8340 = vmatpush1.xpose.msra.mxu0 %v8339
        %8341 = vmatprep.subr.mxu0 0.0
        %8342 = vmatpush1.xpose.msra.mxu0 0.0
        %8343 = vmatprep.subr.mxu0 0.0
        %8344 = vmatpush1.xpose.msra.mxu0 0.0
        %8345 = vmatprep.subr.mxu0 0.0
        %8346 = vmatpush1.xpose.msra.mxu0 0.0
        %8347 = vmatprep.subr.mxu0 0.0
        %8348 = vmatpush1.xpose.msra.mxu0 0.0
        %8349 = vmatprep.subr.mxu0 0.0
        %8350 = vmatpush1.xpose.msra.mxu0 0.0
        %8351 = vmatprep.subr.mxu0 0.0
        %8352 = vmatpush1.xpose.msra.mxu0 0.0
        %8353 = vmatprep.subr.mxu0 0.0
        %8354 = vmatpush1.xpose.msra.mxu0 0.0
        %8355 = vmatprep.subr.mxu0 0.0
        %8356 = vmatpush1.xpose.msra.mxu0 0.0
        %8357 = vmatprep.subr.mxu0 0.0
        %8358 = vmatpush1.xpose.msra.mxu0 0.0
        %8359 = vmatprep.subr.mxu0 0.0
        %8360 = vmatpush1.xpose.msra.mxu0 0.0
        %8361 = vmatprep.subr.mxu0 0.0
        %8362 = vmatpush1.xpose.msra.mxu0 0.0
        %8363 = vmatprep.subr.mxu0 0.0
        %8364 = vmatpush1.xpose.msra.mxu0 0.0
        %8365 = vmatprep.subr.mxu0 0.0
        %8366 = vmatpush1.xpose.msra.mxu0 0.0
        %8367 = vmatprep.subr.mxu0 0.0
        %8368 = vmatpush1.xpose.msra.mxu0 0.0
        %8369 = vmatprep.subr.mxu0 0.0
        %8370 = vmatpush1.xpose.msra.mxu0 0.0
        %8371 = vmatprep.subr.mxu0 0.0
        %8372 = vmatpush1.xpose.msra.mxu0 0.0
        %8373 = vmatprep.mubr.f32.mxu0 0.0
        %v8374 = vand.u32 %v1609, 4294901760
        %8375 = vmatmul.mubr.f32.gmra.mrb[0].mxu0 %v8374
        %v8376 = vpop.f32.mrb[0].mxu0
        %v8377 = vadd.f32 %v8258, %v8376
        %v8378 = vpop.f32.mrb[0].mxu0
        %8379 = vdwg.mxu0
        %8380 = vmatprep.subr.mxu0 0.0
        %v8381 = vand.u32 %v7779, 4294901760
        %8382 = vmatpush1.xpose.msra.mxu0 %v8381
        %8383 = vmatprep.subr.mxu0 0.0
        %v8384 = vand.u32 %v7782, 4294901760
        %8385 = vmatpush1.xpose.msra.mxu0 %v8384
        %8386 = vmatprep.subr.mxu0 0.0
        %v8387 = vand.u32 %v7785, 4294901760
        %8388 = vmatpush1.xpose.msra.mxu0 %v8387
        %8389 = vmatprep.subr.mxu0 0.0
        %v8390 = vand.u32 %v7788, 4294901760
        %8391 = vmatpush1.xpose.msra.mxu0 %v8390
        %8392 = vmatprep.subr.mxu0 0.0
        %v8393 = vand.u32 %v7791, 4294901760
        %8394 = vmatpush1.xpose.msra.mxu0 %v8393
        %8395 = vmatprep.subr.mxu0 0.0
        %v8396 = vand.u32 %v7794, 4294901760
        %8397 = vmatpush1.xpose.msra.mxu0 %v8396
        %8398 = vmatprep.subr.mxu0 0.0
        %v8399 = vand.u32 %v7797, 4294901760
        %8400 = vmatpush1.xpose.msra.mxu0 %v8399
        %8401 = vmatprep.subr.mxu0 0.0
        %v8402 = vand.u32 %v7800, 4294901760
        %8403 = vmatpush1.xpose.msra.mxu0 %v8402
        %8404 = vmatprep.subr.mxu0 0.0
        %v8405 = vand.u32 %v7803, 4294901760
        %8406 = vmatpush1.xpose.msra.mxu0 %v8405
        %8407 = vmatprep.subr.mxu0 0.0
        %v8408 = vand.u32 %v7806, 4294901760
        %8409 = vmatpush1.xpose.msra.mxu0 %v8408
        %8410 = vmatprep.subr.mxu0 0.0
        %v8411 = vand.u32 %v7809, 4294901760
        %8412 = vmatpush1.xpose.msra.mxu0 %v8411
        %8413 = vmatprep.subr.mxu0 0.0
        %v8414 = vand.u32 %v7812, 4294901760
        %8415 = vmatpush1.xpose.msra.mxu0 %v8414
        %8416 = vmatprep.subr.mxu0 0.0
        %v8417 = vand.u32 %v7815, 4294901760
        %8418 = vmatpush1.xpose.msra.mxu0 %v8417
        %8419 = vmatprep.subr.mxu0 0.0
        %v8420 = vand.u32 %v7818, 4294901760
        %8421 = vmatpush1.xpose.msra.mxu0 %v8420
        %8422 = vmatprep.subr.mxu0 0.0
        %v8423 = vand.u32 %v7821, 4294901760
        %8424 = vmatpush1.xpose.msra.mxu0 %v8423
        %8425 = vmatprep.subr.mxu0 0.0
        %v8426 = vand.u32 %v7824, 4294901760
        %8427 = vmatpush1.xpose.msra.mxu0 %v8426
        %8428 = vmatprep.subr.mxu0 0.0
        %8429 = vmatpush1.xpose.msra.mxu0 0.0
        %8430 = vmatprep.subr.mxu0 0.0
        %8431 = vmatpush1.xpose.msra.mxu0 0.0
        %8432 = vmatprep.subr.mxu0 0.0
        %8433 = vmatpush1.xpose.msra.mxu0 0.0
        %8434 = vmatprep.subr.mxu0 0.0
        %8435 = vmatpush1.xpose.msra.mxu0 0.0
        %8436 = vmatprep.subr.mxu0 0.0
        %8437 = vmatpush1.xpose.msra.mxu0 0.0
        %8438 = vmatprep.subr.mxu0 0.0
        %8439 = vmatpush1.xpose.msra.mxu0 0.0
        %8440 = vmatprep.subr.mxu0 0.0
        %8441 = vmatpush1.xpose.msra.mxu0 0.0
        %8442 = vmatprep.subr.mxu0 0.0
        %8443 = vmatpush1.xpose.msra.mxu0 0.0
        %8444 = vmatprep.subr.mxu0 0.0
        %8445 = vmatpush1.xpose.msra.mxu0 0.0
        %8446 = vmatprep.subr.mxu0 0.0
        %8447 = vmatpush1.xpose.msra.mxu0 0.0
        %8448 = vmatprep.subr.mxu0 0.0
        %8449 = vmatpush1.xpose.msra.mxu0 0.0
        %8450 = vmatprep.subr.mxu0 0.0
        %8451 = vmatpush1.xpose.msra.mxu0 0.0
        %8452 = vmatprep.subr.mxu0 0.0
        %8453 = vmatpush1.xpose.msra.mxu0 0.0
        %8454 = vmatprep.subr.mxu0 0.0
        %8455 = vmatpush1.xpose.msra.mxu0 0.0
        %8456 = vmatprep.subr.mxu0 0.0
        %8457 = vmatpush1.xpose.msra.mxu0 0.0
        %8458 = vmatprep.subr.mxu0 0.0
        %8459 = vmatpush1.xpose.msra.mxu0 0.0
        %8460 = vmatprep.mubr.f32.mxu0 0.0
        %v8461 = vand.u32 %v1609, 4294901760
        %8462 = vmatmul.mubr.f32.gmra.mrb[0].mxu0 %v8461
        %v8463 = vpop.f32.mrb[0].mxu0
        %v8464 = vadd.f32 %v8377, %v8463
        %v8465 = vpop.f32.mrb[0].mxu0
        %8466 = vdwg.mxu0
        %v8468 = vrot.slane %v3178, 5
        %v8471 = vrot.slane %v4059, 2
        %v8474 = vrot.slane %v4940, 7
        %v8477 = vrot.slane %v5821, 4
        %v8480 = vrot.slane %v6702, 1
        %v8483 = vrot.slane %v7583, 6
        %v8486 = vrot.slane %v8464, 3
        %vm8488 = vcmask 1042432
        %v8489 = vsel %vm8488, %v2297, %v8468
        %vm8490 = vcmask 1045504
        %v8491 = vsel %vm8490, %v8489, %v8471
        %vm8492 = vcmask 1040384
        %v8493 = vsel %vm8492, %v8471, %v8474
        %vm8494 = vcmask 1043456
        %v8495 = vsel %vm8494, %v8493, %v8477
        %vm8496 = vcmask 1046528
        %v8497 = vsel %vm8496, %v8495, %v8480
        %vm8498 = vcmask 1041408
        %v8499 = vsel %vm8498, %v8480, %v8483
        %vm8500 = vcmask 1044480
        %v8501 = vsel %vm8500, %v8499, %v8486
        %8502 = vst [vmem:[%s245] sm:$0xff] %v8491
        %8503 = vst [vmem:[%s245 + $0x8] sm:$0xff] %v8497
        %8504 = vst [vmem:[%s245 + $0x10] sm:$0xff] %v8501
        %v8506 = vrot.slane %v2297, 5
        %v8508 = vrot.slane %v3178, 4
        %v8510 = vrot.slane %v4059, 3
        %v8512 = vrot.slane %v4940, 2
        %v8514 = vrot.slane %v5821, 1
        %v8516 = vrot.slane %v7583, 7
        %v8518 = vrot.slane %v8464, 6
        %v8520 = vsel %vm8492, %v8506, %v8508
        %v8521 = vsel %vm8498, %v8520, %v8510
        %v8522 = vsel %vm8488, %v8521, %v8512
        %v8523 = vsel %vm8494, %v8522, %v8514
        %v8524 = vsel %vm8500, %v8523, %v6702
        %v8525 = vsel %vm8490, %v8524, %v8516
        %v8526 = vsel %vm8496, %v8525, %v8518
        %v8527 = vcvt.f32.s32.ties.to.even %v8526
        %8528 = vst [vmem:[%s252] sm:$0xff] %v8527
        %s8529 = sand.u32 %s103, 1
        %s8530 = scalar_lea.sflag [#allocation4], %s8529
        %s8531 = sand.u32 %s103, 1
        %s8532 = smul.addr %s8531, 24
        %s8533 = scalar_lea.vmem [#allocation7], %s8532
        %s8534 = sand.u32 %s131, 1
        %s8535 = scalar_lea.sflag [#allocation9], %s8534
        %s8536 = sand.u32 %s131, 1
        %s8537 = smul.addr %s8536, 8
        %s8538 = scalar_lea.vmem [#allocation8], %s8537
        // Predicated region
        $region37: #{tpu_custom_call.1} parent=27 // pred_check
          %p8539 = pneg %p113
        $region38: #{tpu_custom_call.1} parent=27 // pred_check_branch
          %8541 = sbr.rel (%p8539) target = $region40
        $region39: #{tpu_custom_call.1} parent=27 // pred_region
          %s8543 = ssub.s32 384, 384
          %8544 = vsyncadd %s8530, %s8543
          %s8545 = smul.addr %s31, 3
          %s8546 = sadd.s32 %s32, %s8545
          %s8547 = smul.addr %s8546, 128
          %s8548 = scalar_lea.hbm %s2, %s8547
          %s8549 = sshll.u32 %s8533, 4
          %s8550 = int_to_ptr.vmem [resolvable:$true] %s8549
          %8555 = dma.vmem_to_hbm [thread:$0]  %s8550, 384, %s8548, %s8530, 128, 128, 8
        $region40: #{tpu_custom_call.1} parent=27 // pred_fallthru
          _
        // Predicated region
        $region41: #{tpu_custom_call.1} parent=27 // pred_check
          %p8556 = pneg %p141
        $region42: #{tpu_custom_call.1} parent=27 // pred_check_branch
          %8558 = sbr.rel (%p8556) target = $region44
        $region43: #{tpu_custom_call.1} parent=27 // pred_region
          %s8560 = ssub.s32 128, 128
          %8561 = vsyncadd %s8535, %s8560
          %s8562 = sadd.s32 %s32, %s31
          %s8563 = smul.addr %s8562, 128
          %s8564 = scalar_lea.hbm %s3, %s8563
          %s8566 = sshll.u32 %s8538, 4
          %s8567 = int_to_ptr.vmem [resolvable:$true] %s8566
          %8569 = dma.vmem_to_hbm [thread:$0]  %s8567, 128, %s8564, %s8535
        $region44: #{tpu_custom_call.1} parent=27 // pred_fallthru
          _
      $region28: #{tpu_custom_call.1} parent=5 // pred_fallthru
        _
      %p8570 = scmp.le.s32.totalorder 2, %s22
      // Predicated region
      $region45: #{tpu_custom_call.1} parent=5 // pred_check
        %p8571 = pneg %p8570
      $region46: #{tpu_custom_call.1} parent=5 // pred_check_branch
        %8573 = sbr.rel (%p8571) target = $region48
      $region47: #{tpu_custom_call.1} parent=5 // pred_region
        %s8574 = ssub.s32 %s22, 2
        // Predicated region
        $region49: #{tpu_custom_call.1} parent=47 // pred_check
          %p8575 = pneg %p119
        $region50: #{tpu_custom_call.1} parent=47 // pred_check_branch
          %8577 = sbr.rel (%p8575) target = $region52
        $region51: #{tpu_custom_call.1} parent=47 // pred_region
          %s8578 = sand.u32 %s104, 1
          %s8579 = scalar_lea.sflag [#allocation4], %s8578
          %s8580 = sand.u32 %s104, 1
          %s8581 = smul.addr %s8580, 24
          %s8582 = scalar_lea.vmem [#allocation7], %s8581
          %8583 = dma.done %s8579, 384
        $region52: #{tpu_custom_call.1} parent=47 // pred_fallthru
          _
        // Predicated region
        $region53: #{tpu_custom_call.1} parent=47 // pred_check
          %p8584 = pneg %p147
        $region54: #{tpu_custom_call.1} parent=47 // pred_check_branch
          %8586 = sbr.rel (%p8584) target = $region56
        $region55: #{tpu_custom_call.1} parent=47 // pred_region
          %s8587 = sand.u32 %s132, 1
          %s8588 = scalar_lea.sflag [#allocation9], %s8587
          %s8589 = sand.u32 %s132, 1
          %s8590 = smul.addr %s8589, 8
          %s8591 = scalar_lea.vmem [#allocation8], %s8590
          %8592 = dma.done %s8588, 128
        $region56: #{tpu_custom_call.1} parent=47 // pred_fallthru
          _
      $region48: #{tpu_custom_call.1} parent=5 // pred_fallthru
        _
    $region6: #{tpu_custom_call.1} parent=1 // loop_footer
      %s26 = sadd.s32 1, %s22
    $region7: #{tpu_custom_call.1} parent=1 // loop_footer_branch
      %21 = sbr.rel target = $region3
    $region8: #{tpu_custom_call.1} parent=1 // loop_exit
      _
    %8593 = vsyncpa [#allocation3], 1
    %s8594 = scalar_lea.sflag [#allocation3], 1
    %8595 = vsyncpa %s8594, 1
    %8596 = vsyncpa [#allocation6], 1
    %s8597 = scalar_lea.sflag [#allocation6], 1
    %8598 = vsyncpa %s8597, 1
    %8599 = vsyncpa [#allocation4], 1
    %s8600 = scalar_lea.sflag [#allocation4], 1
    %8601 = vsyncpa %s8600, 1
    %8602 = vsyncpa [#allocation9], 1
    %s8603 = scalar_lea.sflag [#allocation9], 1
    %8604 = vsyncpa %s8603, 1

</llo_original>
